<compile_context>
chip_gen: v6e
topology: v6e:2x2x1
jax: 0.10.0
libtpu: 0.0.40
codegen_flags: <defaults>
</compile_context>

<pallas_src>
import jax
import jax.numpy as jnp
from jax.experimental import pallas as pl
from jax.experimental.pallas import tpu as pltpu


# Layer sizes of the reference module.
DIMS = [28 * 28, 512, 256, 128, 64, 32, 16, 10]
N_LAYERS = len(DIMS) - 1
LANE = 128
TB = 512  # batch tile (multiple of 8 sublanes and of 128 for clean MXU M-dim)


def _round_up(n, m):
    return ((n + m - 1) // m) * m


# Lane-padded layer widths: [896, 512, 256, 128, 128, 128, 128, 128]
PDIMS = [_round_up(d, LANE) for d in DIMS]


def mlp_kernel(x_ref, *rest):
    """One batch tile of the whole MLP forward pass.

    x_ref : (TB, 896) bf16   (feature-padded input tile)
    rest  : w1,b1,...,w7,b7, out_ref
            wK : (PDIMS[K-1], PDIMS[K]) bf16  (transposed vs. nn.Linear, zero-padded)
            bK : (1, PDIMS[K]) f32            (zero-padded)
    out_ref: (TB, 128) f32  -> log_softmax over the first 10 lanes
    """
    out_ref = rest[-1]
    wb = rest[:-1]

    h = x_ref[...]  # bf16
    logits = None
    for l in range(N_LAYERS):
        w_ref = wb[2 * l]
        b_ref = wb[2 * l + 1]
        acc = jnp.dot(h, w_ref[...], preferred_element_type=jnp.float32)
        acc = acc + b_ref[...]  # f32 bias add
        if l < N_LAYERS - 1:
            acc = jnp.maximum(acc, 0.0)      # ReLU in f32
            h = acc.astype(jnp.bfloat16)     # back to bf16 for the next MXU pass
        else:
            logits = acc                     # (TB, 128) f32

    # Mask the padded logit lanes (cols >= 10) before the softmax.
    col = jax.lax.broadcasted_iota(jnp.int32, logits.shape, 1)
    logits = jnp.where(col < DIMS[-1], logits, jnp.float32(-1e30))

    # Numerically stable log_softmax over the last dim.
    m = jnp.max(logits, axis=-1, keepdims=True)
    shifted = logits - m
    lse = jnp.log(jnp.sum(jnp.exp(shifted), axis=-1, keepdims=True))
    out_ref[...] = shifted - lse


def init_params(key):
    """nn.Linear-style init (uniform in [-1/sqrt(fan_in), 1/sqrt(fan_in)]),
    stored as (in, out) f32 at the *nominal* (unpadded) shapes."""
    params = []
    for i in range(N_LAYERS):
        fan_in, fan_out = DIMS[i], DIMS[i + 1]
        key, kw, kb = jax.random.split(key, 3)
        bound = 1.0 / jnp.sqrt(fan_in)
        w = jax.random.uniform(kw, (fan_in, fan_out), jnp.float32, -bound, bound)
        b = jax.random.uniform(kb, (1, fan_out), jnp.float32, -bound, bound)
        params.append((w, b))
    return params


def pack_params(params):
    """Zero-pad every layer to lane-aligned shapes and cast weights to bf16."""
    flat = []
    for l, (w, b) in enumerate(params):
        in_p, out_p = PDIMS[l], PDIMS[l + 1]
        wp = jnp.zeros((in_p, out_p), jnp.float32)
        wp = wp.at[: w.shape[0], : w.shape[1]].set(w)
        bp = jnp.zeros((1, out_p), jnp.float32)
        bp = bp.at[:, : b.shape[1]].set(b)
        flat.append(wp.astype(jnp.bfloat16))
        flat.append(bp)  # bias stays f32
    return flat


def fully_connected_nn(x_nchw, params):
    """x_nchw: (B, C, H, W) with C*H*W == 784.  Returns (B, 10) f32 log-probs."""
    batch = x_nchw.shape[0]
    x = x_nchw.reshape(batch, -1).astype(jnp.float32)          # (B, 784)

    # Pad features 784 -> 896 (zero columns; matching W1 rows are zero).
    x = jnp.pad(x, ((0, 0), (0, PDIMS[0] - DIMS[0])))
    # Pad batch to a multiple of TB so the last grid tile is full.
    b_pad = _round_up(max(batch, 1), TB)
    if b_pad != batch:
        x = jnp.pad(x, ((0, b_pad - batch), (0, 0)))
    x = x.astype(jnp.bfloat16)                                  # halve HBM traffic

    flat_params = pack_params(params)
    n_tiles = b_pad // TB

    # BlockSpecs: x/out tiled over the batch; weights/biases resident.
    x_spec = pl.BlockSpec((TB, PDIMS[0]), lambda i: (i, 0))
    wb_specs = []
    for l in range(N_LAYERS):
        wb_specs.append(pl.BlockSpec((PDIMS[l], PDIMS[l + 1]), lambda i: (0, 0)))
        wb_specs.append(pl.BlockSpec((1, PDIMS[l + 1]), lambda i: (0, 0)))
    out_spec = pl.BlockSpec((TB, PDIMS[-1]), lambda i: (i, 0))

    # Advisory cost estimate for the XLA scheduler.
    flops_per_row = 2 * sum(PDIMS[l] * PDIMS[l + 1] for l in range(N_LAYERS))
    weight_bytes = sum(PDIMS[l] * PDIMS[l + 1] * 2 + PDIMS[l + 1] * 4
                       for l in range(N_LAYERS))
    cost = pl.CostEstimate(
        flops=int(flops_per_row * b_pad),
        transcendentals=int(b_pad * PDIMS[-1]),
        bytes_accessed=int(b_pad * PDIMS[0] * 2 + weight_bytes
                           + b_pad * PDIMS[-1] * 4),
    )

    out = pl.pallas_call(
        mlp_kernel,
        out_shape=jax.ShapeDtypeStruct((b_pad, PDIMS[-1]), jnp.float32),
        grid=(n_tiles,),
        in_specs=[x_spec] + wb_specs,
        out_specs=out_spec,
        compiler_params=pltpu.CompilerParams(
            dimension_semantics=("parallel",)),
        cost_estimate=cost,
    )(x, *flat_params)

    # Slice away batch padding and the padded logit lanes.
    return out[:batch, :DIMS[-1]]


def reference_forward_f32(x_nchw, params):
    """Pure-JAX f32 reference (matches the PyTorch module semantics)."""
    h = x_nchw.reshape(x_nchw.shape[0], -1).astype(jnp.float32)
    for i, (w, b) in enumerate(params):
        h = h @ w + b
        if i < len(params) - 1:
            h = jnp.maximum(h, 0.0)
    return jax.nn.log_softmax(h, axis=1)


def reference_forward_bf16(x_nchw, params):
    """Pure-JAX reference mimicking the kernel's precision (bf16 MXU inputs,
    f32 accumulation/elementwise) for a tight correctness check."""
    h = x_nchw.reshape(x_nchw.shape[0], -1).astype(jnp.bfloat16)
    for i, (w, b) in enumerate(params):
        acc = jnp.dot(h, w.astype(jnp.bfloat16),
                      preferred_element_type=jnp.float32) + b
        if i < len(params) - 1:
            h = jnp.maximum(acc, 0.0).astype(jnp.bfloat16)
        else:
            logits = acc
    return jax.nn.log_softmax(logits, axis=1)


if __name__ == "__main__":
    key = jax.random.PRNGKey(0)
    key, k_x = jax.random.split(key)

    # Small MNIST-like batch: (B, C, H, W) = (2, 1, 28, 28) -> 784 features.
    x = jax.random.normal(k_x, (2, 1, 28, 28), dtype=jnp.float32)
    params = init_params(key)

    out = fully_connected_nn(x, params)
    out = jax.block_until_ready(out)

    assert out.shape == (2, 10), out.shape

    # Tight check vs. a precision-matched reference.
    ref_bf16 = reference_forward_bf16(x, params)
    assert jnp.allclose(out, ref_bf16, atol=2e-2, rtol=2e-2), (
        f"max abs err vs bf16 ref = {jnp.max(jnp.abs(out - ref_bf16))}"
    )
    # Loose sanity check vs. the full-f32 reference (bf16 rounding error only).
    ref_f32 = reference_forward_f32(x, params)
    assert jnp.max(jnp.abs(out - ref_f32)) < 0.5, (
        f"max abs err vs f32 ref = {jnp.max(jnp.abs(out - ref_f32))}"
    )
    # Each row of log_softmax output should sum (in prob space) to ~1.
    assert jnp.allclose(jnp.sum(jnp.exp(out), axis=1), 1.0, atol=1e-3)

    print("KERNEL_OK")
</pallas_src>

<mosaic_0001>
module attributes {stable_mosaic.version = 11 : i64} {
  func.func @mlp_kernel(%arg0: i32, %arg1: memref<512x896xbf16, #tpu.memory_space<vmem>>, %arg2: memref<896x512xbf16, #tpu.memory_space<vmem>>, %arg3: memref<1x512xf32, #tpu.memory_space<vmem>>, %arg4: memref<512x256xbf16, #tpu.memory_space<vmem>>, %arg5: memref<1x256xf32, #tpu.memory_space<vmem>>, %arg6: memref<256x128xbf16, #tpu.memory_space<vmem>>, %arg7: memref<1x128xf32, #tpu.memory_space<vmem>>, %arg8: memref<128x128xbf16, #tpu.memory_space<vmem>>, %arg9: memref<1x128xf32, #tpu.memory_space<vmem>>, %arg10: memref<128x128xbf16, #tpu.memory_space<vmem>>, %arg11: memref<1x128xf32, #tpu.memory_space<vmem>>, %arg12: memref<128x128xbf16, #tpu.memory_space<vmem>>, %arg13: memref<1x128xf32, #tpu.memory_space<vmem>>, %arg14: memref<128x128xbf16, #tpu.memory_space<vmem>>, %arg15: memref<1x128xf32, #tpu.memory_space<vmem>>, %arg16: memref<512x128xf32, #tpu.memory_space<vmem>>) attributes {dimension_semantics = [#tpu.dimension_semantics<parallel>], iteration_bounds = array<i64: 1>, scalar_prefetch = 0 : i64, scratch_operands = 0 : i64, tpu.core_type = #tpu.core_type<tc>, window_params = [{transform_indices = @transform_0, window_bounds = array<i64: 512, 896>}, {pipeline_mode = #tpu.pipeline_mode<synchronous>, transform_indices = @transform_1, window_bounds = array<i64: 896, 512>}, {pipeline_mode = #tpu.pipeline_mode<synchronous>, transform_indices = @transform_2, window_bounds = array<i64: 1, 512>}, {pipeline_mode = #tpu.pipeline_mode<synchronous>, transform_indices = @transform_3, window_bounds = array<i64: 512, 256>}, {pipeline_mode = #tpu.pipeline_mode<synchronous>, transform_indices = @transform_4, window_bounds = array<i64: 1, 256>}, {pipeline_mode = #tpu.pipeline_mode<synchronous>, transform_indices = @transform_5, window_bounds = array<i64: 256, 128>}, {pipeline_mode = #tpu.pipeline_mode<synchronous>, transform_indices = @transform_6, window_bounds = array<i64: 1, 128>}, {pipeline_mode = #tpu.pipeline_mode<synchronous>, transform_indices = @transform_7, window_bounds = array<i64: 128, 128>}, {pipeline_mode = #tpu.pipeline_mode<synchronous>, transform_indices = @transform_8, window_bounds = array<i64: 1, 128>}, {pipeline_mode = #tpu.pipeline_mode<synchronous>, transform_indices = @transform_9, window_bounds = array<i64: 128, 128>}, {pipeline_mode = #tpu.pipeline_mode<synchronous>, transform_indices = @transform_10, window_bounds = array<i64: 1, 128>}, {pipeline_mode = #tpu.pipeline_mode<synchronous>, transform_indices = @transform_11, window_bounds = array<i64: 128, 128>}, {pipeline_mode = #tpu.pipeline_mode<synchronous>, transform_indices = @transform_12, window_bounds = array<i64: 1, 128>}, {pipeline_mode = #tpu.pipeline_mode<synchronous>, transform_indices = @transform_13, window_bounds = array<i64: 128, 128>}, {pipeline_mode = #tpu.pipeline_mode<synchronous>, transform_indices = @transform_14, window_bounds = array<i64: 1, 128>}, {transform_indices = @transform_15, window_bounds = array<i64: 512, 128>}]} {
    %c0 = arith.constant 0 : index
    %c0_0 = arith.constant 0 : index
    %0 = vector.load %arg1[%c0, %c0_0] : memref<512x896xbf16, #tpu.memory_space<vmem>>, vector<512x896xbf16>
    %c0_1 = arith.constant 0 : index
    %c0_2 = arith.constant 0 : index
    %1 = vector.load %arg2[%c0_1, %c0_2] : memref<896x512xbf16, #tpu.memory_space<vmem>>, vector<896x512xbf16>
    %cst = arith.constant dense<0.000000e+00> : vector<512x512xf32>
    %2 = tpu.matmul %0, %1, %cst {dimension_numbers = #tpu.dot_dimension_numbers<[1], [0], [0], [1], [0, 0, 1, 1], [], []>} : vector<512x896xbf16>, vector<896x512xbf16>, vector<512x512xf32> -> vector<512x512xf32>
    %c0_3 = arith.constant 0 : index
    %c0_4 = arith.constant 0 : index
    %3 = vector.load %arg3[%c0_3, %c0_4] : memref<1x512xf32, #tpu.memory_space<vmem>>, vector<1x512xf32>
    %4 = vector.broadcast %3 : vector<1x512xf32> to vector<512x512xf32>
    %5 = arith.addf %2, %4 : vector<512x512xf32>
    %cst_5 = arith.constant 0.000000e+00 : f32
    %6 = vector.broadcast %cst_5 : f32 to vector<512x512xf32>
    %7 = arith.maximumf %5, %6 : vector<512x512xf32>
    %8 = arith.truncf %7 : vector<512x512xf32> to vector<512x512xbf16>
    %c0_6 = arith.constant 0 : index
    %c0_7 = arith.constant 0 : index
    %9 = vector.load %arg4[%c0_6, %c0_7] : memref<512x256xbf16, #tpu.memory_space<vmem>>, vector<512x256xbf16>
    %cst_8 = arith.constant dense<0.000000e+00> : vector<512x256xf32>
    %10 = tpu.matmul %8, %9, %cst_8 {dimension_numbers = #tpu.dot_dimension_numbers<[1], [0], [0], [1], [0, 0, 1, 1], [], []>} : vector<512x512xbf16>, vector<512x256xbf16>, vector<512x256xf32> -> vector<512x256xf32>
    %c0_9 = arith.constant 0 : index
    %c0_10 = arith.constant 0 : index
    %11 = vector.load %arg5[%c0_9, %c0_10] : memref<1x256xf32, #tpu.memory_space<vmem>>, vector<1x256xf32>
    %12 = vector.broadcast %11 : vector<1x256xf32> to vector<512x256xf32>
    %13 = arith.addf %10, %12 : vector<512x256xf32>
    %cst_11 = arith.constant 0.000000e+00 : f32
    %14 = vector.broadcast %cst_11 : f32 to vector<512x256xf32>
    %15 = arith.maximumf %13, %14 : vector<512x256xf32>
    %16 = arith.truncf %15 : vector<512x256xf32> to vector<512x256xbf16>
    %c0_12 = arith.constant 0 : index
    %c0_13 = arith.constant 0 : index
    %17 = vector.load %arg6[%c0_12, %c0_13] : memref<256x128xbf16, #tpu.memory_space<vmem>>, vector<256x128xbf16>
    %cst_14 = arith.constant dense<0.000000e+00> : vector<512x128xf32>
    %18 = tpu.matmul %16, %17, %cst_14 {dimension_numbers = #tpu.dot_dimension_numbers<[1], [0], [0], [1], [0, 0, 1, 1], [], []>} : vector<512x256xbf16>, vector<256x128xbf16>, vector<512x128xf32> -> vector<512x128xf32>
    %c0_15 = arith.constant 0 : index
    %c0_16 = arith.constant 0 : index
    %19 = vector.load %arg7[%c0_15, %c0_16] : memref<1x128xf32, #tpu.memory_space<vmem>>, vector<1x128xf32>
    %20 = vector.broadcast %19 : vector<1x128xf32> to vector<512x128xf32>
    %21 = arith.addf %18, %20 : vector<512x128xf32>
    %cst_17 = arith.constant 0.000000e+00 : f32
    %22 = vector.broadcast %cst_17 : f32 to vector<512x128xf32>
    %23 = arith.maximumf %21, %22 : vector<512x128xf32>
    %24 = arith.truncf %23 : vector<512x128xf32> to vector<512x128xbf16>
    %c0_18 = arith.constant 0 : index
    %c0_19 = arith.constant 0 : index
    %25 = vector.load %arg8[%c0_18, %c0_19] : memref<128x128xbf16, #tpu.memory_space<vmem>>, vector<128x128xbf16>
    %cst_20 = arith.constant dense<0.000000e+00> : vector<512x128xf32>
    %26 = tpu.matmul %24, %25, %cst_20 {dimension_numbers = #tpu.dot_dimension_numbers<[1], [0], [0], [1], [0, 0, 1, 1], [], []>} : vector<512x128xbf16>, vector<128x128xbf16>, vector<512x128xf32> -> vector<512x128xf32>
    %c0_21 = arith.constant 0 : index
    %c0_22 = arith.constant 0 : index
    %27 = vector.load %arg9[%c0_21, %c0_22] : memref<1x128xf32, #tpu.memory_space<vmem>>, vector<1x128xf32>
    %28 = vector.broadcast %27 : vector<1x128xf32> to vector<512x128xf32>
    %29 = arith.addf %26, %28 : vector<512x128xf32>
    %cst_23 = arith.constant 0.000000e+00 : f32
    %30 = vector.broadcast %cst_23 : f32 to vector<512x128xf32>
    %31 = arith.maximumf %29, %30 : vector<512x128xf32>
    %32 = arith.truncf %31 : vector<512x128xf32> to vector<512x128xbf16>
    %c0_24 = arith.constant 0 : index
    %c0_25 = arith.constant 0 : index
    %33 = vector.load %arg10[%c0_24, %c0_25] : memref<128x128xbf16, #tpu.memory_space<vmem>>, vector<128x128xbf16>
    %cst_26 = arith.constant dense<0.000000e+00> : vector<512x128xf32>
    %34 = tpu.matmul %32, %33, %cst_26 {dimension_numbers = #tpu.dot_dimension_numbers<[1], [0], [0], [1], [0, 0, 1, 1], [], []>} : vector<512x128xbf16>, vector<128x128xbf16>, vector<512x128xf32> -> vector<512x128xf32>
    %c0_27 = arith.constant 0 : index
    %c0_28 = arith.constant 0 : index
    %35 = vector.load %arg11[%c0_27, %c0_28] : memref<1x128xf32, #tpu.memory_space<vmem>>, vector<1x128xf32>
    %36 = vector.broadcast %35 : vector<1x128xf32> to vector<512x128xf32>
    %37 = arith.addf %34, %36 : vector<512x128xf32>
    %cst_29 = arith.constant 0.000000e+00 : f32
    %38 = vector.broadcast %cst_29 : f32 to vector<512x128xf32>
    %39 = arith.maximumf %37, %38 : vector<512x128xf32>
    %40 = arith.truncf %39 : vector<512x128xf32> to vector<512x128xbf16>
    %c0_30 = arith.constant 0 : index
    %c0_31 = arith.constant 0 : index
    %41 = vector.load %arg12[%c0_30, %c0_31] : memref<128x128xbf16, #tpu.memory_space<vmem>>, vector<128x128xbf16>
    %cst_32 = arith.constant dense<0.000000e+00> : vector<512x128xf32>
    %42 = tpu.matmul %40, %41, %cst_32 {dimension_numbers = #tpu.dot_dimension_numbers<[1], [0], [0], [1], [0, 0, 1, 1], [], []>} : vector<512x128xbf16>, vector<128x128xbf16>, vector<512x128xf32> -> vector<512x128xf32>
    %c0_33 = arith.constant 0 : index
    %c0_34 = arith.constant 0 : index
    %43 = vector.load %arg13[%c0_33, %c0_34] : memref<1x128xf32, #tpu.memory_space<vmem>>, vector<1x128xf32>
    %44 = vector.broadcast %43 : vector<1x128xf32> to vector<512x128xf32>
    %45 = arith.addf %42, %44 : vector<512x128xf32>
    %cst_35 = arith.constant 0.000000e+00 : f32
    %46 = vector.broadcast %cst_35 : f32 to vector<512x128xf32>
    %47 = arith.maximumf %45, %46 : vector<512x128xf32>
    %48 = arith.truncf %47 : vector<512x128xf32> to vector<512x128xbf16>
    %c0_36 = arith.constant 0 : index
    %c0_37 = arith.constant 0 : index
    %49 = vector.load %arg14[%c0_36, %c0_37] : memref<128x128xbf16, #tpu.memory_space<vmem>>, vector<128x128xbf16>
    %cst_38 = arith.constant dense<0.000000e+00> : vector<512x128xf32>
    %50 = tpu.matmul %48, %49, %cst_38 {dimension_numbers = #tpu.dot_dimension_numbers<[1], [0], [0], [1], [0, 0, 1, 1], [], []>} : vector<512x128xbf16>, vector<128x128xbf16>, vector<512x128xf32> -> vector<512x128xf32>
    %c0_39 = arith.constant 0 : index
    %c0_40 = arith.constant 0 : index
    %51 = vector.load %arg15[%c0_39, %c0_40] : memref<1x128xf32, #tpu.memory_space<vmem>>, vector<1x128xf32>
    %52 = vector.broadcast %51 : vector<1x128xf32> to vector<512x128xf32>
    %53 = arith.addf %50, %52 : vector<512x128xf32>
    %54 = tpu.iota {dimensions = array<i32: 1>} : vector<512x128xi32>
    %c10_i32 = arith.constant 10 : i32
    %55 = vector.broadcast %c10_i32 : i32 to vector<512x128xi32>
    %56 = arith.cmpi slt, %54, %55 : vector<512x128xi32>
    %cst_41 = arith.constant -1.000000e+30 : f32
    %57 = vector.broadcast %cst_41 : f32 to vector<512x128xf32>
    %58 = arith.select %56, %53, %57 : vector<512x128xi1>, vector<512x128xf32>
    %cst_42 = arith.constant dense<0xFF800000> : vector<512xf32>
    %59 = vector.multi_reduction <maximumf>, %58, %cst_42 [1] : vector<512x128xf32> to vector<512xf32>
    %60 = vector.shape_cast %59 : vector<512xf32> to vector<512x1xf32>
    %61 = vector.broadcast %60 : vector<512x1xf32> to vector<512x128xf32>
    %62 = arith.subf %58, %61 : vector<512x128xf32>
    %63 = math.exp %62 : vector<512x128xf32>
    %cst_43 = arith.constant dense<0.000000e+00> : vector<512xf32>
    %64 = vector.multi_reduction <add>, %63, %cst_43 [1] : vector<512x128xf32> to vector<512xf32>
    %65 = vector.shape_cast %64 : vector<512xf32> to vector<512x1xf32>
    %66 = math.log %65 : vector<512x1xf32>
    %67 = vector.broadcast %66 : vector<512x1xf32> to vector<512x128xf32>
    %68 = arith.subf %62, %67 : vector<512x128xf32>
    %c0_44 = arith.constant 0 : index
    %c0_45 = arith.constant 0 : index
    %69 = vector.load %arg16[%c0_44, %c0_45] : memref<512x128xf32, #tpu.memory_space<vmem>>, vector<512x128xf32>
    tpu.vector_store %arg16[%c0_44, %c0_45], %68 {strides = array<i32>} : memref<512x128xf32, #tpu.memory_space<vmem>>, vector<512x128xf32>,
    return
  }
  func.func @transform_0(%arg0: i32) -> (i32, i32) {
    %c0_i32 = arith.constant 0 : i32
    %c0_i32_0 = arith.constant 0 : i32
    return %arg0, %c0_i32 : i32, i32
  }
  func.func @transform_1(%arg0: i32) -> (i32, i32) {
    %c0_i32 = arith.constant 0 : i32
    %c0_i32_0 = arith.constant 0 : i32
    %c0_i32_1 = arith.constant 0 : i32
    return %c0_i32, %c0_i32_0 : i32, i32
  }
  func.func @transform_2(%arg0: i32) -> (i32, i32) {
    %c0_i32 = arith.constant 0 : i32
    %c0_i32_0 = arith.constant 0 : i32
    %c0_i32_1 = arith.constant 0 : i32
    return %c0_i32, %c0_i32_0 : i32, i32
  }
  func.func @transform_3(%arg0: i32) -> (i32, i32) {
    %c0_i32 = arith.constant 0 : i32
    %c0_i32_0 = arith.constant 0 : i32
    %c0_i32_1 = arith.constant 0 : i32
    return %c0_i32, %c0_i32_0 : i32, i32
  }
  func.func @transform_4(%arg0: i32) -> (i32, i32) {
    %c0_i32 = arith.constant 0 : i32
    %c0_i32_0 = arith.constant 0 : i32
    %c0_i32_1 = arith.constant 0 : i32
    return %c0_i32, %c0_i32_0 : i32, i32
  }
  func.func @transform_5(%arg0: i32) -> (i32, i32) {
    %c0_i32 = arith.constant 0 : i32
    %c0_i32_0 = arith.constant 0 : i32
    %c0_i32_1 = arith.constant 0 : i32
    return %c0_i32, %c0_i32_0 : i32, i32
  }
  func.func @transform_6(%arg0: i32) -> (i32, i32) {
    %c0_i32 = arith.constant 0 : i32
    %c0_i32_0 = arith.constant 0 : i32
    %c0_i32_1 = arith.constant 0 : i32
    return %c0_i32, %c0_i32_0 : i32, i32
  }
  func.func @transform_7(%arg0: i32) -> (i32, i32) {
    %c0_i32 = arith.constant 0 : i32
    %c0_i32_0 = arith.constant 0 : i32
    %c0_i32_1 = arith.constant 0 : i32
    return %c0_i32, %c0_i32_0 : i32, i32
  }
  func.func @transform_8(%arg0: i32) -> (i32, i32) {
    %c0_i32 = arith.constant 0 : i32
    %c0_i32_0 = arith.constant 0 : i32
    %c0_i32_1 = arith.constant 0 : i32
    return %c0_i32, %c0_i32_0 : i32, i32
  }
  func.func @transform_9(%arg0: i32) -> (i32, i32) {
    %c0_i32 = arith.constant 0 : i32
    %c0_i32_0 = arith.constant 0 : i32
    %c0_i32_1 = arith.constant 0 : i32
    return %c0_i32, %c0_i32_0 : i32, i32
  }
  func.func @transform_10(%arg0: i32) -> (i32, i32) {
    %c0_i32 = arith.constant 0 : i32
    %c0_i32_0 = arith.constant 0 : i32
    %c0_i32_1 = arith.constant 0 : i32
    return %c0_i32, %c0_i32_0 : i32, i32
  }
  func.func @transform_11(%arg0: i32) -> (i32, i32) {
    %c0_i32 = arith.constant 0 : i32
    %c0_i32_0 = arith.constant 0 : i32
    %c0_i32_1 = arith.constant 0 : i32
    return %c0_i32, %c0_i32_0 : i32, i32
  }
  func.func @transform_12(%arg0: i32) -> (i32, i32) {
    %c0_i32 = arith.constant 0 : i32
    %c0_i32_0 = arith.constant 0 : i32
    %c0_i32_1 = arith.constant 0 : i32
    return %c0_i32, %c0_i32_0 : i32, i32
  }
  func.func @transform_13(%arg0: i32) -> (i32, i32) {
    %c0_i32 = arith.constant 0 : i32
    %c0_i32_0 = arith.constant 0 : i32
    %c0_i32_1 = arith.constant 0 : i32
    return %c0_i32, %c0_i32_0 : i32, i32
  }
  func.func @transform_14(%arg0: i32) -> (i32, i32) {
    %c0_i32 = arith.constant 0 : i32
    %c0_i32_0 = arith.constant 0 : i32
    %c0_i32_1 = arith.constant 0 : i32
    return %c0_i32, %c0_i32_0 : i32, i32
  }
  func.func @transform_15(%arg0: i32) -> (i32, i32) {
    %c0_i32 = arith.constant 0 : i32
    %c0_i32_0 = arith.constant 0 : i32
    return %arg0, %c0_i32 : i32, i32
  }
}

</mosaic_0001>

<llo_original>
// kernel: tpu_custom_call.1
$region0: #{tpu_custom_call.1}
  #allocation0 [shape = 'u32[]', space=smem, size = 0x4, offset = 0x4, fixed_abs, tag = 'smem constant byte address 0x4 - core index']
  #allocation1 [shape = 'u32[144,128]{1,0:T(1,128)}', space=vmem, size = 0x12000, scoped, tag = 'internal scratch']
  %s0 = inlined_call_operand.hbm [shape: bf16[512,896], index: 0, kind: input, shape index: {}]
  %s1 = inlined_call_operand.hbm [shape: bf16[896,512], index: 1, kind: input, shape index: {}]
  %s2 = inlined_call_operand.hbm [shape: f32[1,512], index: 2, kind: input, shape index: {}]
  %s3 = inlined_call_operand.hbm [shape: bf16[512,256], index: 3, kind: input, shape index: {}]
  %s4 = inlined_call_operand.vmem [shape: f32[1,256], index: 4, kind: input, shape index: {}]
  %s5 = inlined_call_operand.hbm [shape: bf16[256,128], index: 5, kind: input, shape index: {}]
  %s6 = inlined_call_operand.vmem [shape: f32[1,128], index: 6, kind: input, shape index: {}]
  %s7 = inlined_call_operand.hbm [shape: bf16[128,128], index: 7, kind: input, shape index: {}]
  %s8 = inlined_call_operand.vmem [shape: f32[1,128], index: 8, kind: input, shape index: {}]
  %s9 = inlined_call_operand.hbm [shape: bf16[128,128], index: 9, kind: input, shape index: {}]
  %s10 = inlined_call_operand.vmem [shape: f32[1,128], index: 10, kind: input, shape index: {}]
  %s11 = inlined_call_operand.hbm [shape: bf16[128,128], index: 11, kind: input, shape index: {}]
  %s12 = inlined_call_operand.vmem [shape: f32[1,128], index: 12, kind: input, shape index: {}]
  %s13 = inlined_call_operand.hbm [shape: bf16[128,128], index: 13, kind: input, shape index: {}]
  %s14 = inlined_call_operand.vmem [shape: f32[1,128], index: 14, kind: input, shape index: {}]
  %s15 = inlined_call_operand.hbm [shape: f32[512,128], index: 15, kind: output, shape index: {}]
  %s16 = sld [smem:[#allocation0]]
  $region106: #{tpu_custom_call.1} parent=0
    _
  %s18 = ssub.s32 1, %s16
  %s19 = scalar_select 0, %s18, %s16
  $region1: #{tpu_custom_call.1} parent=0
    #allocation2 [shape = 'u8[917504]{0}', space=vmem, size = 0xe0000, scoped, tag = 'input window, operand 0, single buffered']
    #allocation3 [shape = 's32[1]{0}', space=sflag, size = 0x4, scoped, tag = 'scoped memory for tpu_custom_call.1']
    #allocation4 [shape = 's32[1]{0}', space=sflag, size = 0x4, scoped, tag = 'scoped memory for tpu_custom_call.1']
    #allocation5 [shape = 'u8[917504]{0}', space=vmem, size = 0xe0000, scoped, tag = 'input window, operand 1, single buffered']
    #allocation6 [shape = 's32[1]{0}', space=sflag, size = 0x4, scoped, tag = 'scoped memory for tpu_custom_call.1']
    #allocation7 [shape = 'u8[2048]{0}', space=vmem, size = 0x800, scoped, tag = 'input window, operand 2, single buffered']
    #allocation8 [shape = 'u8[262144]{0}', space=vmem, size = 0x40000, scoped, tag = 'input window, operand 3, single buffered']
    #allocation9 [shape = 's32[1]{0}', space=sflag, size = 0x4, scoped, tag = 'scoped memory for tpu_custom_call.1']
    #allocation10 [shape = 'u8[65536]{0}', space=vmem, size = 0x10000, scoped, tag = 'input window, operand 5, single buffered']
    #allocation11 [shape = 'u8[32768]{0}', space=vmem, size = 0x8000, scoped, tag = 'input window, operand 7, single buffered']
    #allocation12 [shape = 's32[1]{0}', space=sflag, size = 0x4, scoped, tag = 'scoped memory for tpu_custom_call.1']
    #allocation13 [shape = 'u8[32768]{0}', space=vmem, size = 0x8000, scoped, tag = 'input window, operand 9, single buffered']
    #allocation14 [shape = 'u8[32768]{0}', space=vmem, size = 0x8000, scoped, tag = 'input window, operand 11, single buffered']
    #allocation15 [shape = 's32[1]{0}', space=sflag, size = 0x4, scoped, tag = 'scoped memory for tpu_custom_call.1']
    #allocation16 [shape = 'u8[32768]{0}', space=vmem, size = 0x8000, scoped, tag = 'input window, operand 13, single buffered']
    #allocation17 [shape = 'u8[262144]{0}', space=vmem, size = 0x40000, scoped, tag = 'output window, operand 0, single buffered']
    %20 = vsyncpa [#allocation3], 0
    %21 = vsyncpa [#allocation6], 0
    %22 = vsyncpa [#allocation9], 0
    %23 = vsyncpa [#allocation12], 0
    %24 = vsyncpa [#allocation15], 0
    %25 = vsyncpa [#allocation4], 0
    // Predicated region
    $region2: #{tpu_custom_call.1} parent=1 // pred_check
      _
    $region3: #{tpu_custom_call.1} parent=1 // pred_check_branch
      %27 = sbr.rel (0) target = $region5
    $region4: #{tpu_custom_call.1} parent=1 // pred_region
      %s29 = ssub.s32 28672, 28672
      %30 = vsyncadd [#allocation3], %s29
      %s31 = sshll.u32 [#allocation2], 4
      %s32 = int_to_ptr.vmem [resolvable:$true] %s31
      %37 = dma.hbm_to_vmem [thread:$0]  %s0, 28672, %s32, [#allocation3], 448, 448, 28
    $region5: #{tpu_custom_call.1} parent=1 // pred_fallthru
      _
    // Predicated region
    $region6: #{tpu_custom_call.1} parent=1 // pred_check
      _
    $region7: #{tpu_custom_call.1} parent=1 // pred_check_branch
      %39 = sbr.rel (0) target = $region9
    $region8: #{tpu_custom_call.1} parent=1 // pred_region
      %s41 = ssub.s32 28672, 28672
      %42 = vsyncadd [#allocation6], %s41
      %s43 = sshll.u32 [#allocation5], 4
      %s44 = int_to_ptr.vmem [resolvable:$true] %s43
      %49 = dma.hbm_to_vmem [thread:$0]  %s1, 28672, %s44, [#allocation6], 256, 256, 16
    $region9: #{tpu_custom_call.1} parent=1 // pred_fallthru
      _
    // Predicated region
    $region10: #{tpu_custom_call.1} parent=1 // pred_check
      _
    $region11: #{tpu_custom_call.1} parent=1 // pred_check_branch
      %51 = sbr.rel (0) target = $region13
    $region12: #{tpu_custom_call.1} parent=1 // pred_region
      %s53 = ssub.s32 64, 64
      %54 = vsyncadd [#allocation6], %s53
      %s56 = sshll.u32 [#allocation7], 4
      %s57 = int_to_ptr.vmem [resolvable:$true] %s56
      %59 = dma.hbm_to_vmem [thread:$0]  %s2, 64, %s57, [#allocation6]
    $region13: #{tpu_custom_call.1} parent=1 // pred_fallthru
      _
    // Predicated region
    $region14: #{tpu_custom_call.1} parent=1 // pred_check
      _
    $region15: #{tpu_custom_call.1} parent=1 // pred_check_branch
      %61 = sbr.rel (0) target = $region17
    $region16: #{tpu_custom_call.1} parent=1 // pred_region
      %s63 = ssub.s32 8192, 8192
      %64 = vsyncadd [#allocation9], %s63
      %s65 = sshll.u32 [#allocation8], 4
      %s66 = int_to_ptr.vmem [resolvable:$true] %s65
      %71 = dma.hbm_to_vmem [thread:$0]  %s3, 8192, %s66, [#allocation9], 128, 128, 8
    $region17: #{tpu_custom_call.1} parent=1 // pred_fallthru
      _
    // Predicated region
    $region18: #{tpu_custom_call.1} parent=1 // pred_check
      _
    $region19: #{tpu_custom_call.1} parent=1 // pred_check_branch
      %73 = sbr.rel (0) target = $region21
    $region20: #{tpu_custom_call.1} parent=1 // pred_region
      _
    $region21: #{tpu_custom_call.1} parent=1 // pred_fallthru
      _
    // Predicated region
    $region22: #{tpu_custom_call.1} parent=1 // pred_check
      _
    $region23: #{tpu_custom_call.1} parent=1 // pred_check_branch
      %75 = sbr.rel (0) target = $region25
    $region24: #{tpu_custom_call.1} parent=1 // pred_region
      %s77 = ssub.s32 2048, 2048
      %78 = vsyncadd [#allocation9], %s77
      %s79 = sshll.u32 [#allocation10], 4
      %s80 = int_to_ptr.vmem [resolvable:$true] %s79
      %85 = dma.hbm_to_vmem [thread:$0]  %s5, 2048, %s80, [#allocation9], 64, 64, 4
    $region25: #{tpu_custom_call.1} parent=1 // pred_fallthru
      _
    // Predicated region
    $region26: #{tpu_custom_call.1} parent=1 // pred_check
      _
    $region27: #{tpu_custom_call.1} parent=1 // pred_check_branch
      %87 = sbr.rel (0) target = $region29
    $region28: #{tpu_custom_call.1} parent=1 // pred_region
      _
    $region29: #{tpu_custom_call.1} parent=1 // pred_fallthru
      _
    // Predicated region
    $region30: #{tpu_custom_call.1} parent=1 // pred_check
      _
    $region31: #{tpu_custom_call.1} parent=1 // pred_check_branch
      %89 = sbr.rel (0) target = $region33
    $region32: #{tpu_custom_call.1} parent=1 // pred_region
      %s91 = ssub.s32 1024, 1024
      %92 = vsyncadd [#allocation12], %s91
      %s93 = sshll.u32 [#allocation11], 4
      %s94 = int_to_ptr.vmem [resolvable:$true] %s93
      %99 = dma.hbm_to_vmem [thread:$0]  %s7, 1024, %s94, [#allocation12], 64, 64, 4
    $region33: #{tpu_custom_call.1} parent=1 // pred_fallthru
      _
    // Predicated region
    $region34: #{tpu_custom_call.1} parent=1 // pred_check
      _
    $region35: #{tpu_custom_call.1} parent=1 // pred_check_branch
      %101 = sbr.rel (0) target = $region37
    $region36: #{tpu_custom_call.1} parent=1 // pred_region
      _
    $region37: #{tpu_custom_call.1} parent=1 // pred_fallthru
      _
    // Predicated region
    $region38: #{tpu_custom_call.1} parent=1 // pred_check
      _
    $region39: #{tpu_custom_call.1} parent=1 // pred_check_branch
      %103 = sbr.rel (0) target = $region41
    $region40: #{tpu_custom_call.1} parent=1 // pred_region
      %s105 = ssub.s32 1024, 1024
      %106 = vsyncadd [#allocation12], %s105
      %s107 = sshll.u32 [#allocation13], 4
      %s108 = int_to_ptr.vmem [resolvable:$true] %s107
      %113 = dma.hbm_to_vmem [thread:$0]  %s9, 1024, %s108, [#allocation12], 64, 64, 4
    $region41: #{tpu_custom_call.1} parent=1 // pred_fallthru
      _
    // Predicated region
    $region42: #{tpu_custom_call.1} parent=1 // pred_check
      _
    $region43: #{tpu_custom_call.1} parent=1 // pred_check_branch
      %115 = sbr.rel (0) target = $region45
    $region44: #{tpu_custom_call.1} parent=1 // pred_region
      _
    $region45: #{tpu_custom_call.1} parent=1 // pred_fallthru
      _
    // Predicated region
    $region46: #{tpu_custom_call.1} parent=1 // pred_check
      _
    $region47: #{tpu_custom_call.1} parent=1 // pred_check_branch
      %117 = sbr.rel (0) target = $region49
    $region48: #{tpu_custom_call.1} parent=1 // pred_region
      %s119 = ssub.s32 1024, 1024
      %120 = vsyncadd [#allocation15], %s119
      %s121 = sshll.u32 [#allocation14], 4
      %s122 = int_to_ptr.vmem [resolvable:$true] %s121
      %127 = dma.hbm_to_vmem [thread:$0]  %s11, 1024, %s122, [#allocation15], 64, 64, 4
    $region49: #{tpu_custom_call.1} parent=1 // pred_fallthru
      _
    // Predicated region
    $region50: #{tpu_custom_call.1} parent=1 // pred_check
      _
    $region51: #{tpu_custom_call.1} parent=1 // pred_check_branch
      %129 = sbr.rel (0) target = $region53
    $region52: #{tpu_custom_call.1} parent=1 // pred_region
      _
    $region53: #{tpu_custom_call.1} parent=1 // pred_fallthru
      _
    // Predicated region
    $region54: #{tpu_custom_call.1} parent=1 // pred_check
      _
    $region55: #{tpu_custom_call.1} parent=1 // pred_check_branch
      %131 = sbr.rel (0) target = $region57
    $region56: #{tpu_custom_call.1} parent=1 // pred_region
      %s133 = ssub.s32 1024, 1024
      %134 = vsyncadd [#allocation15], %s133
      %s135 = sshll.u32 [#allocation16], 4
      %s136 = int_to_ptr.vmem [resolvable:$true] %s135
      %141 = dma.hbm_to_vmem [thread:$0]  %s13, 1024, %s136, [#allocation15], 64, 64, 4
    $region57: #{tpu_custom_call.1} parent=1 // pred_fallthru
      _
    // Predicated region
    $region58: #{tpu_custom_call.1} parent=1 // pred_check
      _
    $region59: #{tpu_custom_call.1} parent=1 // pred_check_branch
      %143 = sbr.rel (0) target = $region61
    $region60: #{tpu_custom_call.1} parent=1 // pred_region
      _
    $region61: #{tpu_custom_call.1} parent=1 // pred_fallthru
      _
    // Predicated region
    $region62: #{tpu_custom_call.1} parent=1 // pred_check
      _
    $region63: #{tpu_custom_call.1} parent=1 // pred_check_branch
      %145 = sbr.rel (0) target = $region65
    $region64: #{tpu_custom_call.1} parent=1 // pred_region
      %146 = dma.done [#allocation3], 28672
    $region65: #{tpu_custom_call.1} parent=1 // pred_fallthru
      _
    // Predicated region
    $region66: #{tpu_custom_call.1} parent=1 // pred_check
      _
    $region67: #{tpu_custom_call.1} parent=1 // pred_check_branch
      %148 = sbr.rel (0) target = $region69
    $region68: #{tpu_custom_call.1} parent=1 // pred_region
      %149 = dma.done [#allocation6], 28672
    $region69: #{tpu_custom_call.1} parent=1 // pred_fallthru
      _
    // Predicated region
    $region70: #{tpu_custom_call.1} parent=1 // pred_check
      _
    $region71: #{tpu_custom_call.1} parent=1 // pred_check_branch
      %151 = sbr.rel (0) target = $region73
    $region72: #{tpu_custom_call.1} parent=1 // pred_region
      %152 = dma.done [#allocation6], 64
    $region73: #{tpu_custom_call.1} parent=1 // pred_fallthru
      _
    // Predicated region
    $region74: #{tpu_custom_call.1} parent=1 // pred_check
      _
    $region75: #{tpu_custom_call.1} parent=1 // pred_check_branch
      %154 = sbr.rel (0) target = $region77
    $region76: #{tpu_custom_call.1} parent=1 // pred_region
      %155 = dma.done [#allocation9], 8192
    $region77: #{tpu_custom_call.1} parent=1 // pred_fallthru
      _
    // Predicated region
    $region78: #{tpu_custom_call.1} parent=1 // pred_check
      _
    $region79: #{tpu_custom_call.1} parent=1 // pred_check_branch
      %157 = sbr.rel (0) target = $region81
    $region80: #{tpu_custom_call.1} parent=1 // pred_region
      %158 = dma.done [#allocation9], 2048
    $region81: #{tpu_custom_call.1} parent=1 // pred_fallthru
      _
    // Predicated region
    $region82: #{tpu_custom_call.1} parent=1 // pred_check
      _
    $region83: #{tpu_custom_call.1} parent=1 // pred_check_branch
      %160 = sbr.rel (0) target = $region85
    $region84: #{tpu_custom_call.1} parent=1 // pred_region
      %161 = dma.done [#allocation12], 1024
    $region85: #{tpu_custom_call.1} parent=1 // pred_fallthru
      _
    // Predicated region
    $region86: #{tpu_custom_call.1} parent=1 // pred_check
      _
    $region87: #{tpu_custom_call.1} parent=1 // pred_check_branch
      %163 = sbr.rel (0) target = $region89
    $region88: #{tpu_custom_call.1} parent=1 // pred_region
      %164 = dma.done [#allocation12], 1024
    $region89: #{tpu_custom_call.1} parent=1 // pred_fallthru
      _
    // Predicated region
    $region90: #{tpu_custom_call.1} parent=1 // pred_check
      _
    $region91: #{tpu_custom_call.1} parent=1 // pred_check_branch
      %166 = sbr.rel (0) target = $region93
    $region92: #{tpu_custom_call.1} parent=1 // pred_region
      %167 = dma.done [#allocation15], 1024
    $region93: #{tpu_custom_call.1} parent=1 // pred_fallthru
      _
    // Predicated region
    $region94: #{tpu_custom_call.1} parent=1 // pred_check
      _
    $region95: #{tpu_custom_call.1} parent=1 // pred_check_branch
      %169 = sbr.rel (0) target = $region97
    $region96: #{tpu_custom_call.1} parent=1 // pred_region
      %170 = dma.done [#allocation15], 1024
    $region97: #{tpu_custom_call.1} parent=1 // pred_fallthru
      _
    %v172 = vld [vmem:[#allocation2] sm:$0xff]
    %v173 = vld [vmem:[#allocation2 + $0x8] sm:$0xff]
    %v174 = vld [vmem:[#allocation2 + $0x10] sm:$0xff]
    %v175 = vld [vmem:[#allocation2 + $0x18] sm:$0xf]
    %v176 = vld [vmem:[#allocation2 + $0x1c] sm:$0xff]
    %v177 = vld [vmem:[#allocation2 + $0x24] sm:$0xff]
    %v178 = vld [vmem:[#allocation2 + $0x2c] sm:$0xff]
    %v179 = vld [vmem:[#allocation2 + $0x34] sm:$0xf]
    %v180 = vld [vmem:[#allocation2 + $0x38] sm:$0xff]
    %v181 = vld [vmem:[#allocation2 + $0x40] sm:$0xff]
    %v182 = vld [vmem:[#allocation2 + $0x48] sm:$0xff]
    %v183 = vld [vmem:[#allocation2 + $0x50] sm:$0xf]
    %v184 = vld [vmem:[#allocation2 + $0x54] sm:$0xff]
    %v185 = vld [vmem:[#allocation2 + $0x5c] sm:$0xff]
    %v186 = vld [vmem:[#allocation2 + $0x64] sm:$0xff]
    %v187 = vld [vmem:[#allocation2 + $0x6c] sm:$0xf]
    %v188 = vld [vmem:[#allocation2 + $0x70] sm:$0xff]
    %v189 = vld [vmem:[#allocation2 + $0x78] sm:$0xff]
    %v190 = vld [vmem:[#allocation2 + $0x80] sm:$0xff]
    %v191 = vld [vmem:[#allocation2 + $0x88] sm:$0xf]
    %v192 = vld [vmem:[#allocation2 + $0x8c] sm:$0xff]
    %v193 = vld [vmem:[#allocation2 + $0x94] sm:$0xff]
    %v194 = vld [vmem:[#allocation2 + $0x9c] sm:$0xff]
    %v195 = vld [vmem:[#allocation2 + $0xa4] sm:$0xf]
    %v196 = vld [vmem:[#allocation2 + $0xa8] sm:$0xff]
    %v197 = vld [vmem:[#allocation2 + $0xb0] sm:$0xff]
    %v198 = vld [vmem:[#allocation2 + $0xb8] sm:$0xff]
    %v199 = vld [vmem:[#allocation2 + $0xc0] sm:$0xf]
    %v200 = vld [vmem:[#allocation2 + $0xc4] sm:$0xff]
    %v201 = vld [vmem:[#allocation2 + $0xcc] sm:$0xff]
    %v202 = vld [vmem:[#allocation2 + $0xd4] sm:$0xff]
    %v203 = vld [vmem:[#allocation2 + $0xdc] sm:$0xf]
    %v204 = vld [vmem:[#allocation2 + $0xe0] sm:$0xff]
    %v205 = vld [vmem:[#allocation2 + $0xe8] sm:$0xff]
    %v206 = vld [vmem:[#allocation2 + $0xf0] sm:$0xff]
    %v207 = vld [vmem:[#allocation2 + $0xf8] sm:$0xf]
    %v208 = vld [vmem:[#allocation2 + $0xfc] sm:$0xff]
    %v209 = vld [vmem:[#allocation2 + $0x104] sm:$0xff]
    %v210 = vld [vmem:[#allocation2 + $0x10c] sm:$0xff]
    %v211 = vld [vmem:[#allocation2 + $0x114] sm:$0xf]
    %v212 = vld [vmem:[#allocation2 + $0x118] sm:$0xff]
    %v213 = vld [vmem:[#allocation2 + $0x120] sm:$0xff]
    %v214 = vld [vmem:[#allocation2 + $0x128] sm:$0xff]
    %v215 = vld [vmem:[#allocation2 + $0x130] sm:$0xf]
    %v216 = vld [vmem:[#allocation2 + $0x134] sm:$0xff]
    %v217 = vld [vmem:[#allocation2 + $0x13c] sm:$0xff]
    %v218 = vld [vmem:[#allocation2 + $0x144] sm:$0xff]
    %v219 = vld [vmem:[#allocation2 + $0x14c] sm:$0xf]
    %v220 = vld [vmem:[#allocation2 + $0x150] sm:$0xff]
    %v221 = vld [vmem:[#allocation2 + $0x158] sm:$0xff]
    %v222 = vld [vmem:[#allocation2 + $0x160] sm:$0xff]
    %v223 = vld [vmem:[#allocation2 + $0x168] sm:$0xf]
    %v224 = vld [vmem:[#allocation2 + $0x16c] sm:$0xff]
    %v225 = vld [vmem:[#allocation2 + $0x174] sm:$0xff]
    %v226 = vld [vmem:[#allocation2 + $0x17c] sm:$0xff]
    %v227 = vld [vmem:[#allocation2 + $0x184] sm:$0xf]
    %v228 = vld [vmem:[#allocation2 + $0x188] sm:$0xff]
    %v229 = vld [vmem:[#allocation2 + $0x190] sm:$0xff]
    %v230 = vld [vmem:[#allocation2 + $0x198] sm:$0xff]
    %v231 = vld [vmem:[#allocation2 + $0x1a0] sm:$0xf]
    %v232 = vld [vmem:[#allocation2 + $0x1a4] sm:$0xff]
    %v233 = vld [vmem:[#allocation2 + $0x1ac] sm:$0xff]
    %v234 = vld [vmem:[#allocation2 + $0x1b4] sm:$0xff]
    %v235 = vld [vmem:[#allocation2 + $0x1bc] sm:$0xf]
    %v236 = vld [vmem:[#allocation2 + $0x1c0] sm:$0xff]
    %v237 = vld [vmem:[#allocation2 + $0x1c8] sm:$0xff]
    %v238 = vld [vmem:[#allocation2 + $0x1d0] sm:$0xff]
    %v239 = vld [vmem:[#allocation2 + $0x1d8] sm:$0xf]
    %v240 = vld [vmem:[#allocation2 + $0x1dc] sm:$0xff]
    %v241 = vld [vmem:[#allocation2 + $0x1e4] sm:$0xff]
    %v242 = vld [vmem:[#allocation2 + $0x1ec] sm:$0xff]
    %v243 = vld [vmem:[#allocation2 + $0x1f4] sm:$0xf]
    %v244 = vld [vmem:[#allocation2 + $0x1f8] sm:$0xff]
    %v245 = vld [vmem:[#allocation2 + $0x200] sm:$0xff]
    %v246 = vld [vmem:[#allocation2 + $0x208] sm:$0xff]
    %v247 = vld [vmem:[#allocation2 + $0x210] sm:$0xf]
    %v248 = vld [vmem:[#allocation2 + $0x214] sm:$0xff]
    %v249 = vld [vmem:[#allocation2 + $0x21c] sm:$0xff]
    %v250 = vld [vmem:[#allocation2 + $0x224] sm:$0xff]
    %v251 = vld [vmem:[#allocation2 + $0x22c] sm:$0xf]
    %v252 = vld [vmem:[#allocation2 + $0x230] sm:$0xff]
    %v253 = vld [vmem:[#allocation2 + $0x238] sm:$0xff]
    %v254 = vld [vmem:[#allocation2 + $0x240] sm:$0xff]
    %v255 = vld [vmem:[#allocation2 + $0x248] sm:$0xf]
    %v256 = vld [vmem:[#allocation2 + $0x24c] sm:$0xff]
    %v257 = vld [vmem:[#allocation2 + $0x254] sm:$0xff]
    %v258 = vld [vmem:[#allocation2 + $0x25c] sm:$0xff]
    %v259 = vld [vmem:[#allocation2 + $0x264] sm:$0xf]
    %v260 = vld [vmem:[#allocation2 + $0x268] sm:$0xff]
    %v261 = vld [vmem:[#allocation2 + $0x270] sm:$0xff]
    %v262 = vld [vmem:[#allocation2 + $0x278] sm:$0xff]
    %v263 = vld [vmem:[#allocation2 + $0x280] sm:$0xf]
    %v264 = vld [vmem:[#allocation2 + $0x284] sm:$0xff]
    %v265 = vld [vmem:[#allocation2 + $0x28c] sm:$0xff]
    %v266 = vld [vmem:[#allocation2 + $0x294] sm:$0xff]
    %v267 = vld [vmem:[#allocation2 + $0x29c] sm:$0xf]
    %v268 = vld [vmem:[#allocation2 + $0x2a0] sm:$0xff]
    %v269 = vld [vmem:[#allocation2 + $0x2a8] sm:$0xff]
    %v270 = vld [vmem:[#allocation2 + $0x2b0] sm:$0xff]
    %v271 = vld [vmem:[#allocation2 + $0x2b8] sm:$0xf]
    %v272 = vld [vmem:[#allocation2 + $0x2bc] sm:$0xff]
    %v273 = vld [vmem:[#allocation2 + $0x2c4] sm:$0xff]
    %v274 = vld [vmem:[#allocation2 + $0x2cc] sm:$0xff]
    %v275 = vld [vmem:[#allocation2 + $0x2d4] sm:$0xf]
    %v276 = vld [vmem:[#allocation2 + $0x2d8] sm:$0xff]
    %v277 = vld [vmem:[#allocation2 + $0x2e0] sm:$0xff]
    %v278 = vld [vmem:[#allocation2 + $0x2e8] sm:$0xff]
    %v279 = vld [vmem:[#allocation2 + $0x2f0] sm:$0xf]
    %v280 = vld [vmem:[#allocation2 + $0x2f4] sm:$0xff]
    %v281 = vld [vmem:[#allocation2 + $0x2fc] sm:$0xff]
    %v282 = vld [vmem:[#allocation2 + $0x304] sm:$0xff]
    %v283 = vld [vmem:[#allocation2 + $0x30c] sm:$0xf]
    %v284 = vld [vmem:[#allocation2 + $0x310] sm:$0xff]
    %v285 = vld [vmem:[#allocation2 + $0x318] sm:$0xff]
    %v286 = vld [vmem:[#allocation2 + $0x320] sm:$0xff]
    %v287 = vld [vmem:[#allocation2 + $0x328] sm:$0xf]
    %v288 = vld [vmem:[#allocation2 + $0x32c] sm:$0xff]
    %v289 = vld [vmem:[#allocation2 + $0x334] sm:$0xff]
    %v290 = vld [vmem:[#allocation2 + $0x33c] sm:$0xff]
    %v291 = vld [vmem:[#allocation2 + $0x344] sm:$0xf]
    %v292 = vld [vmem:[#allocation2 + $0x348] sm:$0xff]
    %v293 = vld [vmem:[#allocation2 + $0x350] sm:$0xff]
    %v294 = vld [vmem:[#allocation2 + $0x358] sm:$0xff]
    %v295 = vld [vmem:[#allocation2 + $0x360] sm:$0xf]
    %v296 = vld [vmem:[#allocation2 + $0x364] sm:$0xff]
    %v297 = vld [vmem:[#allocation2 + $0x36c] sm:$0xff]
    %v298 = vld [vmem:[#allocation2 + $0x374] sm:$0xff]
    %v299 = vld [vmem:[#allocation2 + $0x37c] sm:$0xf]
    %v300 = vld [vmem:[#allocation2 + $0x380] sm:$0xff]
    %v301 = vld [vmem:[#allocation2 + $0x388] sm:$0xff]
    %v302 = vld [vmem:[#allocation2 + $0x390] sm:$0xff]
    %v303 = vld [vmem:[#allocation2 + $0x398] sm:$0xf]
    %v304 = vld [vmem:[#allocation2 + $0x39c] sm:$0xff]
    %v305 = vld [vmem:[#allocation2 + $0x3a4] sm:$0xff]
    %v306 = vld [vmem:[#allocation2 + $0x3ac] sm:$0xff]
    %v307 = vld [vmem:[#allocation2 + $0x3b4] sm:$0xf]
    %v308 = vld [vmem:[#allocation2 + $0x3b8] sm:$0xff]
    %v309 = vld [vmem:[#allocation2 + $0x3c0] sm:$0xff]
    %v310 = vld [vmem:[#allocation2 + $0x3c8] sm:$0xff]
    %v311 = vld [vmem:[#allocation2 + $0x3d0] sm:$0xf]
    %v312 = vld [vmem:[#allocation2 + $0x3d4] sm:$0xff]
    %v313 = vld [vmem:[#allocation2 + $0x3dc] sm:$0xff]
    %v314 = vld [vmem:[#allocation2 + $0x3e4] sm:$0xff]
    %v315 = vld [vmem:[#allocation2 + $0x3ec] sm:$0xf]
    %v316 = vld [vmem:[#allocation2 + $0x3f0] sm:$0xff]
    %v317 = vld [vmem:[#allocation2 + $0x3f8] sm:$0xff]
    %v318 = vld [vmem:[#allocation2 + $0x400] sm:$0xff]
    %v319 = vld [vmem:[#allocation2 + $0x408] sm:$0xf]
    %v320 = vld [vmem:[#allocation2 + $0x40c] sm:$0xff]
    %v321 = vld [vmem:[#allocation2 + $0x414] sm:$0xff]
    %v322 = vld [vmem:[#allocation2 + $0x41c] sm:$0xff]
    %v323 = vld [vmem:[#allocation2 + $0x424] sm:$0xf]
    %v324 = vld [vmem:[#allocation2 + $0x428] sm:$0xff]
    %v325 = vld [vmem:[#allocation2 + $0x430] sm:$0xff]
    %v326 = vld [vmem:[#allocation2 + $0x438] sm:$0xff]
    %v327 = vld [vmem:[#allocation2 + $0x440] sm:$0xf]
    %v328 = vld [vmem:[#allocation2 + $0x444] sm:$0xff]
    %v329 = vld [vmem:[#allocation2 + $0x44c] sm:$0xff]
    %v330 = vld [vmem:[#allocation2 + $0x454] sm:$0xff]
    %v331 = vld [vmem:[#allocation2 + $0x45c] sm:$0xf]
    %v332 = vld [vmem:[#allocation2 + $0x460] sm:$0xff]
    %v333 = vld [vmem:[#allocation2 + $0x468] sm:$0xff]
    %v334 = vld [vmem:[#allocation2 + $0x470] sm:$0xff]
    %v335 = vld [vmem:[#allocation2 + $0x478] sm:$0xf]
    %v336 = vld [vmem:[#allocation2 + $0x47c] sm:$0xff]
    %v337 = vld [vmem:[#allocation2 + $0x484] sm:$0xff]
    %v338 = vld [vmem:[#allocation2 + $0x48c] sm:$0xff]
    %v339 = vld [vmem:[#allocation2 + $0x494] sm:$0xf]
    %v340 = vld [vmem:[#allocation2 + $0x498] sm:$0xff]
    %v341 = vld [vmem:[#allocation2 + $0x4a0] sm:$0xff]
    %v342 = vld [vmem:[#allocation2 + $0x4a8] sm:$0xff]
    %v343 = vld [vmem:[#allocation2 + $0x4b0] sm:$0xf]
    %v344 = vld [vmem:[#allocation2 + $0x4b4] sm:$0xff]
    %v345 = vld [vmem:[#allocation2 + $0x4bc] sm:$0xff]
    %v346 = vld [vmem:[#allocation2 + $0x4c4] sm:$0xff]
    %v347 = vld [vmem:[#allocation2 + $0x4cc] sm:$0xf]
    %v348 = vld [vmem:[#allocation2 + $0x4d0] sm:$0xff]
    %v349 = vld [vmem:[#allocation2 + $0x4d8] sm:$0xff]
    %v350 = vld [vmem:[#allocation2 + $0x4e0] sm:$0xff]
    %v351 = vld [vmem:[#allocation2 + $0x4e8] sm:$0xf]
    %v352 = vld [vmem:[#allocation2 + $0x4ec] sm:$0xff]
    %v353 = vld [vmem:[#allocation2 + $0x4f4] sm:$0xff]
    %v354 = vld [vmem:[#allocation2 + $0x4fc] sm:$0xff]
    %v355 = vld [vmem:[#allocation2 + $0x504] sm:$0xf]
    %v356 = vld [vmem:[#allocation2 + $0x508] sm:$0xff]
    %v357 = vld [vmem:[#allocation2 + $0x510] sm:$0xff]
    %v358 = vld [vmem:[#allocation2 + $0x518] sm:$0xff]
    %v359 = vld [vmem:[#allocation2 + $0x520] sm:$0xf]
    %v360 = vld [vmem:[#allocation2 + $0x524] sm:$0xff]
    %v361 = vld [vmem:[#allocation2 + $0x52c] sm:$0xff]
    %v362 = vld [vmem:[#allocation2 + $0x534] sm:$0xff]
    %v363 = vld [vmem:[#allocation2 + $0x53c] sm:$0xf]
    %v364 = vld [vmem:[#allocation2 + $0x540] sm:$0xff]
    %v365 = vld [vmem:[#allocation2 + $0x548] sm:$0xff]
    %v366 = vld [vmem:[#allocation2 + $0x550] sm:$0xff]
    %v367 = vld [vmem:[#allocation2 + $0x558] sm:$0xf]
    %v368 = vld [vmem:[#allocation2 + $0x55c] sm:$0xff]
    %v369 = vld [vmem:[#allocation2 + $0x564] sm:$0xff]
    %v370 = vld [vmem:[#allocation2 + $0x56c] sm:$0xff]
    %v371 = vld [vmem:[#allocation2 + $0x574] sm:$0xf]
    %v372 = vld [vmem:[#allocation2 + $0x578] sm:$0xff]
    %v373 = vld [vmem:[#allocation2 + $0x580] sm:$0xff]
    %v374 = vld [vmem:[#allocation2 + $0x588] sm:$0xff]
    %v375 = vld [vmem:[#allocation2 + $0x590] sm:$0xf]
    %v376 = vld [vmem:[#allocation2 + $0x594] sm:$0xff]
    %v377 = vld [vmem:[#allocation2 + $0x59c] sm:$0xff]
    %v378 = vld [vmem:[#allocation2 + $0x5a4] sm:$0xff]
    %v379 = vld [vmem:[#allocation2 + $0x5ac] sm:$0xf]
    %v380 = vld [vmem:[#allocation2 + $0x5b0] sm:$0xff]
    %v381 = vld [vmem:[#allocation2 + $0x5b8] sm:$0xff]
    %v382 = vld [vmem:[#allocation2 + $0x5c0] sm:$0xff]
    %v383 = vld [vmem:[#allocation2 + $0x5c8] sm:$0xf]
    %v384 = vld [vmem:[#allocation2 + $0x5cc] sm:$0xff]
    %v385 = vld [vmem:[#allocation2 + $0x5d4] sm:$0xff]
    %v386 = vld [vmem:[#allocation2 + $0x5dc] sm:$0xff]
    %v387 = vld [vmem:[#allocation2 + $0x5e4] sm:$0xf]
    %v388 = vld [vmem:[#allocation2 + $0x5e8] sm:$0xff]
    %v389 = vld [vmem:[#allocation2 + $0x5f0] sm:$0xff]
    %v390 = vld [vmem:[#allocation2 + $0x5f8] sm:$0xff]
    %v391 = vld [vmem:[#allocation2 + $0x600] sm:$0xf]
    %v392 = vld [vmem:[#allocation2 + $0x604] sm:$0xff]
    %v393 = vld [vmem:[#allocation2 + $0x60c] sm:$0xff]
    %v394 = vld [vmem:[#allocation2 + $0x614] sm:$0xff]
    %v395 = vld [vmem:[#allocation2 + $0x61c] sm:$0xf]
    %v396 = vld [vmem:[#allocation2 + $0x620] sm:$0xff]
    %v397 = vld [vmem:[#allocation2 + $0x628] sm:$0xff]
    %v398 = vld [vmem:[#allocation2 + $0x630] sm:$0xff]
    %v399 = vld [vmem:[#allocation2 + $0x638] sm:$0xf]
    %v400 = vld [vmem:[#allocation2 + $0x63c] sm:$0xff]
    %v401 = vld [vmem:[#allocation2 + $0x644] sm:$0xff]
    %v402 = vld [vmem:[#allocation2 + $0x64c] sm:$0xff]
    %v403 = vld [vmem:[#allocation2 + $0x654] sm:$0xf]
    %v404 = vld [vmem:[#allocation2 + $0x658] sm:$0xff]
    %v405 = vld [vmem:[#allocation2 + $0x660] sm:$0xff]
    %v406 = vld [vmem:[#allocation2 + $0x668] sm:$0xff]
    %v407 = vld [vmem:[#allocation2 + $0x670] sm:$0xf]
    %v408 = vld [vmem:[#allocation2 + $0x674] sm:$0xff]
    %v409 = vld [vmem:[#allocation2 + $0x67c] sm:$0xff]
    %v410 = vld [vmem:[#allocation2 + $0x684] sm:$0xff]
    %v411 = vld [vmem:[#allocation2 + $0x68c] sm:$0xf]
    %v412 = vld [vmem:[#allocation2 + $0x690] sm:$0xff]
    %v413 = vld [vmem:[#allocation2 + $0x698] sm:$0xff]
    %v414 = vld [vmem:[#allocation2 + $0x6a0] sm:$0xff]
    %v415 = vld [vmem:[#allocation2 + $0x6a8] sm:$0xf]
    %v416 = vld [vmem:[#allocation2 + $0x6ac] sm:$0xff]
    %v417 = vld [vmem:[#allocation2 + $0x6b4] sm:$0xff]
    %v418 = vld [vmem:[#allocation2 + $0x6bc] sm:$0xff]
    %v419 = vld [vmem:[#allocation2 + $0x6c4] sm:$0xf]
    %v420 = vld [vmem:[#allocation2 + $0x6c8] sm:$0xff]
    %v421 = vld [vmem:[#allocation2 + $0x6d0] sm:$0xff]
    %v422 = vld [vmem:[#allocation2 + $0x6d8] sm:$0xff]
    %v423 = vld [vmem:[#allocation2 + $0x6e0] sm:$0xf]
    %v424 = vld [vmem:[#allocation2 + $0x6e4] sm:$0xff]
    %v425 = vld [vmem:[#allocation2 + $0x6ec] sm:$0xff]
    %v426 = vld [vmem:[#allocation2 + $0x6f4] sm:$0xff]
    %v427 = vld [vmem:[#allocation2 + $0x6fc] sm:$0xf]
    %v428 = vld [vmem:[#allocation5] sm:$0xff]
    %v429 = vld [vmem:[#allocation5 + $0x8] sm:$0xff]
    %v430 = vld [vmem:[#allocation5 + $0x10] sm:$0xff]
    %v431 = vld [vmem:[#allocation5 + $0x18] sm:$0xff]
    %v432 = vld [vmem:[#allocation5 + $0x20] sm:$0xff]
    %v433 = vld [vmem:[#allocation5 + $0x28] sm:$0xff]
    %v434 = vld [vmem:[#allocation5 + $0x30] sm:$0xff]
    %v435 = vld [vmem:[#allocation5 + $0x38] sm:$0xff]
    %v436 = vld [vmem:[#allocation5 + $0x40] sm:$0xff]
    %v437 = vld [vmem:[#allocation5 + $0x48] sm:$0xff]
    %v438 = vld [vmem:[#allocation5 + $0x50] sm:$0xff]
    %v439 = vld [vmem:[#allocation5 + $0x58] sm:$0xff]
    %v440 = vld [vmem:[#allocation5 + $0x60] sm:$0xff]
    %v441 = vld [vmem:[#allocation5 + $0x68] sm:$0xff]
    %v442 = vld [vmem:[#allocation5 + $0x70] sm:$0xff]
    %v443 = vld [vmem:[#allocation5 + $0x78] sm:$0xff]
    %v444 = vld [vmem:[#allocation5 + $0x80] sm:$0xff]
    %v445 = vld [vmem:[#allocation5 + $0x88] sm:$0xff]
    %v446 = vld [vmem:[#allocation5 + $0x90] sm:$0xff]
    %v447 = vld [vmem:[#allocation5 + $0x98] sm:$0xff]
    %v448 = vld [vmem:[#allocation5 + $0xa0] sm:$0xff]
    %v449 = vld [vmem:[#allocation5 + $0xa8] sm:$0xff]
    %v450 = vld [vmem:[#allocation5 + $0xb0] sm:$0xff]
    %v451 = vld [vmem:[#allocation5 + $0xb8] sm:$0xff]
    %v452 = vld [vmem:[#allocation5 + $0xc0] sm:$0xff]
    %v453 = vld [vmem:[#allocation5 + $0xc8] sm:$0xff]
    %v454 = vld [vmem:[#allocation5 + $0xd0] sm:$0xff]
    %v455 = vld [vmem:[#allocation5 + $0xd8] sm:$0xff]
    %v456 = vld [vmem:[#allocation5 + $0xe0] sm:$0xff]
    %v457 = vld [vmem:[#allocation5 + $0xe8] sm:$0xff]
    %v458 = vld [vmem:[#allocation5 + $0xf0] sm:$0xff]
    %v459 = vld [vmem:[#allocation5 + $0xf8] sm:$0xff]
    %v460 = vld [vmem:[#allocation5 + $0x100] sm:$0xff]
    %v461 = vld [vmem:[#allocation5 + $0x108] sm:$0xff]
    %v462 = vld [vmem:[#allocation5 + $0x110] sm:$0xff]
    %v463 = vld [vmem:[#allocation5 + $0x118] sm:$0xff]
    %v464 = vld [vmem:[#allocation5 + $0x120] sm:$0xff]
    %v465 = vld [vmem:[#allocation5 + $0x128] sm:$0xff]
    %v466 = vld [vmem:[#allocation5 + $0x130] sm:$0xff]
    %v467 = vld [vmem:[#allocation5 + $0x138] sm:$0xff]
    %v468 = vld [vmem:[#allocation5 + $0x140] sm:$0xff]
    %v469 = vld [vmem:[#allocation5 + $0x148] sm:$0xff]
    %v470 = vld [vmem:[#allocation5 + $0x150] sm:$0xff]
    %v471 = vld [vmem:[#allocation5 + $0x158] sm:$0xff]
    %v472 = vld [vmem:[#allocation5 + $0x160] sm:$0xff]
    %v473 = vld [vmem:[#allocation5 + $0x168] sm:$0xff]
    %v474 = vld [vmem:[#allocation5 + $0x170] sm:$0xff]
    %v475 = vld [vmem:[#allocation5 + $0x178] sm:$0xff]
    %v476 = vld [vmem:[#allocation5 + $0x180] sm:$0xff]
    %v477 = vld [vmem:[#allocation5 + $0x188] sm:$0xff]
    %v478 = vld [vmem:[#allocation5 + $0x190] sm:$0xff]
    %v479 = vld [vmem:[#allocation5 + $0x198] sm:$0xff]
    %v480 = vld [vmem:[#allocation5 + $0x1a0] sm:$0xff]
    %v481 = vld [vmem:[#allocation5 + $0x1a8] sm:$0xff]
    %v482 = vld [vmem:[#allocation5 + $0x1b0] sm:$0xff]
    %v483 = vld [vmem:[#allocation5 + $0x1b8] sm:$0xff]
    %v484 = vld [vmem:[#allocation5 + $0x1c0] sm:$0xff]
    %v485 = vld [vmem:[#allocation5 + $0x1c8] sm:$0xff]
    %v486 = vld [vmem:[#allocation5 + $0x1d0] sm:$0xff]
    %v487 = vld [vmem:[#allocation5 + $0x1d8] sm:$0xff]
    %v488 = vld [vmem:[#allocation5 + $0x1e0] sm:$0xff]
    %v489 = vld [vmem:[#allocation5 + $0x1e8] sm:$0xff]
    %v490 = vld [vmem:[#allocation5 + $0x1f0] sm:$0xff]
    %v491 = vld [vmem:[#allocation5 + $0x1f8] sm:$0xff]
    %v492 = vld [vmem:[#allocation5 + $0x200] sm:$0xff]
    %v493 = vld [vmem:[#allocation5 + $0x208] sm:$0xff]
    %v494 = vld [vmem:[#allocation5 + $0x210] sm:$0xff]
    %v495 = vld [vmem:[#allocation5 + $0x218] sm:$0xff]
    %v496 = vld [vmem:[#allocation5 + $0x220] sm:$0xff]
    %v497 = vld [vmem:[#allocation5 + $0x228] sm:$0xff]
    %v498 = vld [vmem:[#allocation5 + $0x230] sm:$0xff]
    %v499 = vld [vmem:[#allocation5 + $0x238] sm:$0xff]
    %v500 = vld [vmem:[#allocation5 + $0x240] sm:$0xff]
    %v501 = vld [vmem:[#allocation5 + $0x248] sm:$0xff]
    %v502 = vld [vmem:[#allocation5 + $0x250] sm:$0xff]
    %v503 = vld [vmem:[#allocation5 + $0x258] sm:$0xff]
    %v504 = vld [vmem:[#allocation5 + $0x260] sm:$0xff]
    %v505 = vld [vmem:[#allocation5 + $0x268] sm:$0xff]
    %v506 = vld [vmem:[#allocation5 + $0x270] sm:$0xff]
    %v507 = vld [vmem:[#allocation5 + $0x278] sm:$0xff]
    %v508 = vld [vmem:[#allocation5 + $0x280] sm:$0xff]
    %v509 = vld [vmem:[#allocation5 + $0x288] sm:$0xff]
    %v510 = vld [vmem:[#allocation5 + $0x290] sm:$0xff]
    %v511 = vld [vmem:[#allocation5 + $0x298] sm:$0xff]
    %v512 = vld [vmem:[#allocation5 + $0x2a0] sm:$0xff]
    %v513 = vld [vmem:[#allocation5 + $0x2a8] sm:$0xff]
    %v514 = vld [vmem:[#allocation5 + $0x2b0] sm:$0xff]
    %v515 = vld [vmem:[#allocation5 + $0x2b8] sm:$0xff]
    %v516 = vld [vmem:[#allocation5 + $0x2c0] sm:$0xff]
    %v517 = vld [vmem:[#allocation5 + $0x2c8] sm:$0xff]
    %v518 = vld [vmem:[#allocation5 + $0x2d0] sm:$0xff]
    %v519 = vld [vmem:[#allocation5 + $0x2d8] sm:$0xff]
    %v520 = vld [vmem:[#allocation5 + $0x2e0] sm:$0xff]
    %v521 = vld [vmem:[#allocation5 + $0x2e8] sm:$0xff]
    %v522 = vld [vmem:[#allocation5 + $0x2f0] sm:$0xff]
    %v523 = vld [vmem:[#allocation5 + $0x2f8] sm:$0xff]
    %v524 = vld [vmem:[#allocation5 + $0x300] sm:$0xff]
    %v525 = vld [vmem:[#allocation5 + $0x308] sm:$0xff]
    %v526 = vld [vmem:[#allocation5 + $0x310] sm:$0xff]
    %v527 = vld [vmem:[#allocation5 + $0x318] sm:$0xff]
    %v528 = vld [vmem:[#allocation5 + $0x320] sm:$0xff]
    %v529 = vld [vmem:[#allocation5 + $0x328] sm:$0xff]
    %v530 = vld [vmem:[#allocation5 + $0x330] sm:$0xff]
    %v531 = vld [vmem:[#allocation5 + $0x338] sm:$0xff]
    %v532 = vld [vmem:[#allocation5 + $0x340] sm:$0xff]
    %v533 = vld [vmem:[#allocation5 + $0x348] sm:$0xff]
    %v534 = vld [vmem:[#allocation5 + $0x350] sm:$0xff]
    %v535 = vld [vmem:[#allocation5 + $0x358] sm:$0xff]
    %v536 = vld [vmem:[#allocation5 + $0x360] sm:$0xff]
    %v537 = vld [vmem:[#allocation5 + $0x368] sm:$0xff]
    %v538 = vld [vmem:[#allocation5 + $0x370] sm:$0xff]
    %v539 = vld [vmem:[#allocation5 + $0x378] sm:$0xff]
    %v540 = vld [vmem:[#allocation5 + $0x380] sm:$0xff]
    %v541 = vld [vmem:[#allocation5 + $0x388] sm:$0xff]
    %v542 = vld [vmem:[#allocation5 + $0x390] sm:$0xff]
    %v543 = vld [vmem:[#allocation5 + $0x398] sm:$0xff]
    %v544 = vld [vmem:[#allocation5 + $0x3a0] sm:$0xff]
    %v545 = vld [vmem:[#allocation5 + $0x3a8] sm:$0xff]
    %v546 = vld [vmem:[#allocation5 + $0x3b0] sm:$0xff]
    %v547 = vld [vmem:[#allocation5 + $0x3b8] sm:$0xff]
    %v548 = vld [vmem:[#allocation5 + $0x3c0] sm:$0xff]
    %v549 = vld [vmem:[#allocation5 + $0x3c8] sm:$0xff]
    %v550 = vld [vmem:[#allocation5 + $0x3d0] sm:$0xff]
    %v551 = vld [vmem:[#allocation5 + $0x3d8] sm:$0xff]
    %v552 = vld [vmem:[#allocation5 + $0x3e0] sm:$0xff]
    %v553 = vld [vmem:[#allocation5 + $0x3e8] sm:$0xff]
    %v554 = vld [vmem:[#allocation5 + $0x3f0] sm:$0xff]
    %v555 = vld [vmem:[#allocation5 + $0x3f8] sm:$0xff]
    %v556 = vld [vmem:[#allocation5 + $0x400] sm:$0xff]
    %v557 = vld [vmem:[#allocation5 + $0x408] sm:$0xff]
    %v558 = vld [vmem:[#allocation5 + $0x410] sm:$0xff]
    %v559 = vld [vmem:[#allocation5 + $0x418] sm:$0xff]
    %v560 = vld [vmem:[#allocation5 + $0x420] sm:$0xff]
    %v561 = vld [vmem:[#allocation5 + $0x428] sm:$0xff]
    %v562 = vld [vmem:[#allocation5 + $0x430] sm:$0xff]
    %v563 = vld [vmem:[#allocation5 + $0x438] sm:$0xff]
    %v564 = vld [vmem:[#allocation5 + $0x440] sm:$0xff]
    %v565 = vld [vmem:[#allocation5 + $0x448] sm:$0xff]
    %v566 = vld [vmem:[#allocation5 + $0x450] sm:$0xff]
    %v567 = vld [vmem:[#allocation5 + $0x458] sm:$0xff]
    %v568 = vld [vmem:[#allocation5 + $0x460] sm:$0xff]
    %v569 = vld [vmem:[#allocation5 + $0x468] sm:$0xff]
    %v570 = vld [vmem:[#allocation5 + $0x470] sm:$0xff]
    %v571 = vld [vmem:[#allocation5 + $0x478] sm:$0xff]
    %v572 = vld [vmem:[#allocation5 + $0x480] sm:$0xff]
    %v573 = vld [vmem:[#allocation5 + $0x488] sm:$0xff]
    %v574 = vld [vmem:[#allocation5 + $0x490] sm:$0xff]
    %v575 = vld [vmem:[#allocation5 + $0x498] sm:$0xff]
    %v576 = vld [vmem:[#allocation5 + $0x4a0] sm:$0xff]
    %v577 = vld [vmem:[#allocation5 + $0x4a8] sm:$0xff]
    %v578 = vld [vmem:[#allocation5 + $0x4b0] sm:$0xff]
    %v579 = vld [vmem:[#allocation5 + $0x4b8] sm:$0xff]
    %v580 = vld [vmem:[#allocation5 + $0x4c0] sm:$0xff]
    %v581 = vld [vmem:[#allocation5 + $0x4c8] sm:$0xff]
    %v582 = vld [vmem:[#allocation5 + $0x4d0] sm:$0xff]
    %v583 = vld [vmem:[#allocation5 + $0x4d8] sm:$0xff]
    %v584 = vld [vmem:[#allocation5 + $0x4e0] sm:$0xff]
    %v585 = vld [vmem:[#allocation5 + $0x4e8] sm:$0xff]
    %v586 = vld [vmem:[#allocation5 + $0x4f0] sm:$0xff]
    %v587 = vld [vmem:[#allocation5 + $0x4f8] sm:$0xff]
    %v588 = vld [vmem:[#allocation5 + $0x500] sm:$0xff]
    %v589 = vld [vmem:[#allocation5 + $0x508] sm:$0xff]
    %v590 = vld [vmem:[#allocation5 + $0x510] sm:$0xff]
    %v591 = vld [vmem:[#allocation5 + $0x518] sm:$0xff]
    %v592 = vld [vmem:[#allocation5 + $0x520] sm:$0xff]
    %v593 = vld [vmem:[#allocation5 + $0x528] sm:$0xff]
    %v594 = vld [vmem:[#allocation5 + $0x530] sm:$0xff]
    %v595 = vld [vmem:[#allocation5 + $0x538] sm:$0xff]
    %v596 = vld [vmem:[#allocation5 + $0x540] sm:$0xff]
    %v597 = vld [vmem:[#allocation5 + $0x548] sm:$0xff]
    %v598 = vld [vmem:[#allocation5 + $0x550] sm:$0xff]
    %v599 = vld [vmem:[#allocation5 + $0x558] sm:$0xff]
    %v600 = vld [vmem:[#allocation5 + $0x560] sm:$0xff]
    %v601 = vld [vmem:[#allocation5 + $0x568] sm:$0xff]
    %v602 = vld [vmem:[#allocation5 + $0x570] sm:$0xff]
    %v603 = vld [vmem:[#allocation5 + $0x578] sm:$0xff]
    %v604 = vld [vmem:[#allocation5 + $0x580] sm:$0xff]
    %v605 = vld [vmem:[#allocation5 + $0x588] sm:$0xff]
    %v606 = vld [vmem:[#allocation5 + $0x590] sm:$0xff]
    %v607 = vld [vmem:[#allocation5 + $0x598] sm:$0xff]
    %v608 = vld [vmem:[#allocation5 + $0x5a0] sm:$0xff]
    %v609 = vld [vmem:[#allocation5 + $0x5a8] sm:$0xff]
    %v610 = vld [vmem:[#allocation5 + $0x5b0] sm:$0xff]
    %v611 = vld [vmem:[#allocation5 + $0x5b8] sm:$0xff]
    %v612 = vld [vmem:[#allocation5 + $0x5c0] sm:$0xff]
    %v613 = vld [vmem:[#allocation5 + $0x5c8] sm:$0xff]
    %v614 = vld [vmem:[#allocation5 + $0x5d0] sm:$0xff]
    %v615 = vld [vmem:[#allocation5 + $0x5d8] sm:$0xff]
    %v616 = vld [vmem:[#allocation5 + $0x5e0] sm:$0xff]
    %v617 = vld [vmem:[#allocation5 + $0x5e8] sm:$0xff]
    %v618 = vld [vmem:[#allocation5 + $0x5f0] sm:$0xff]
    %v619 = vld [vmem:[#allocation5 + $0x5f8] sm:$0xff]
    %v620 = vld [vmem:[#allocation5 + $0x600] sm:$0xff]
    %v621 = vld [vmem:[#allocation5 + $0x608] sm:$0xff]
    %v622 = vld [vmem:[#allocation5 + $0x610] sm:$0xff]
    %v623 = vld [vmem:[#allocation5 + $0x618] sm:$0xff]
    %v624 = vld [vmem:[#allocation5 + $0x620] sm:$0xff]
    %v625 = vld [vmem:[#allocation5 + $0x628] sm:$0xff]
    %v626 = vld [vmem:[#allocation5 + $0x630] sm:$0xff]
    %v627 = vld [vmem:[#allocation5 + $0x638] sm:$0xff]
    %v628 = vld [vmem:[#allocation5 + $0x640] sm:$0xff]
    %v629 = vld [vmem:[#allocation5 + $0x648] sm:$0xff]
    %v630 = vld [vmem:[#allocation5 + $0x650] sm:$0xff]
    %v631 = vld [vmem:[#allocation5 + $0x658] sm:$0xff]
    %v632 = vld [vmem:[#allocation5 + $0x660] sm:$0xff]
    %v633 = vld [vmem:[#allocation5 + $0x668] sm:$0xff]
    %v634 = vld [vmem:[#allocation5 + $0x670] sm:$0xff]
    %v635 = vld [vmem:[#allocation5 + $0x678] sm:$0xff]
    %v636 = vld [vmem:[#allocation5 + $0x680] sm:$0xff]
    %v637 = vld [vmem:[#allocation5 + $0x688] sm:$0xff]
    %v638 = vld [vmem:[#allocation5 + $0x690] sm:$0xff]
    %v639 = vld [vmem:[#allocation5 + $0x698] sm:$0xff]
    %v640 = vld [vmem:[#allocation5 + $0x6a0] sm:$0xff]
    %v641 = vld [vmem:[#allocation5 + $0x6a8] sm:$0xff]
    %v642 = vld [vmem:[#allocation5 + $0x6b0] sm:$0xff]
    %v643 = vld [vmem:[#allocation5 + $0x6b8] sm:$0xff]
    %v644 = vld [vmem:[#allocation5 + $0x6c0] sm:$0xff]
    %v645 = vld [vmem:[#allocation5 + $0x6c8] sm:$0xff]
    %v646 = vld [vmem:[#allocation5 + $0x6d0] sm:$0xff]
    %v647 = vld [vmem:[#allocation5 + $0x6d8] sm:$0xff]
    %v648 = vld [vmem:[#allocation5 + $0x6e0] sm:$0xff]
    %v649 = vld [vmem:[#allocation5 + $0x6e8] sm:$0xff]
    %v650 = vld [vmem:[#allocation5 + $0x6f0] sm:$0xff]
    %v651 = vld [vmem:[#allocation5 + $0x6f8] sm:$0xff]
    %v652 = vld [vmem:[#allocation7] sm:$0xf]
    %v654 = vlaneseq
    %v655 = vshrl.u32 %v654, 7
    %v656 = vsub.s32 0, %v655
    %v657 = vrot.slane %v652, %v656
    %v658 = vlaneseq
    %v659 = vshrl.u32 %v658, 7
    %v660 = vsub.s32 1, %v659
    %v661 = vrot.slane %v652, %v660
    %v662 = vlaneseq
    %v663 = vshrl.u32 %v662, 7
    %v664 = vsub.s32 2, %v663
    %v665 = vrot.slane %v652, %v664
    %v666 = vlaneseq
    %v667 = vshrl.u32 %v666, 7
    %v668 = vsub.s32 3, %v667
    %v669 = vrot.slane %v652, %v668
    %v930 = vunpack.c.l.b16 %v172
    %v931 = vunpack.c.h.b16 %v172
    %v932 = vunpack.c.l.b16 %v173
    %v933 = vunpack.c.h.b16 %v173
    %v934 = vunpack.c.l.b16 %v174
    %v935 = vunpack.c.h.b16 %v174
    %v936 = vunpack.c.l.b16 %v175
    %v937 = vunpack.c.l.b16 %v176
    %v938 = vunpack.c.h.b16 %v176
    %v939 = vunpack.c.l.b16 %v177
    %v940 = vunpack.c.h.b16 %v177
    %v941 = vunpack.c.l.b16 %v178
    %v942 = vunpack.c.h.b16 %v178
    %v943 = vunpack.c.l.b16 %v179
    %v944 = vunpack.c.l.b16 %v180
    %v945 = vunpack.c.h.b16 %v180
    %v946 = vunpack.c.l.b16 %v181
    %v947 = vunpack.c.h.b16 %v181
    %v948 = vunpack.c.l.b16 %v182
    %v949 = vunpack.c.h.b16 %v182
    %v950 = vunpack.c.l.b16 %v183
    %v951 = vunpack.c.l.b16 %v184
    %v952 = vunpack.c.h.b16 %v184
    %v953 = vunpack.c.l.b16 %v185
    %v954 = vunpack.c.h.b16 %v185
    %v955 = vunpack.c.l.b16 %v186
    %v956 = vunpack.c.h.b16 %v186
    %v957 = vunpack.c.l.b16 %v187
    %v958 = vunpack.c.l.b16 %v188
    %v959 = vunpack.c.h.b16 %v188
    %v960 = vunpack.c.l.b16 %v189
    %v961 = vunpack.c.h.b16 %v189
    %v962 = vunpack.c.l.b16 %v190
    %v963 = vunpack.c.h.b16 %v190
    %v964 = vunpack.c.l.b16 %v191
    %v965 = vunpack.c.l.b16 %v192
    %v966 = vunpack.c.h.b16 %v192
    %v967 = vunpack.c.l.b16 %v193
    %v968 = vunpack.c.h.b16 %v193
    %v969 = vunpack.c.l.b16 %v194
    %v970 = vunpack.c.h.b16 %v194
    %v971 = vunpack.c.l.b16 %v195
    %v972 = vunpack.c.l.b16 %v196
    %v973 = vunpack.c.h.b16 %v196
    %v974 = vunpack.c.l.b16 %v197
    %v975 = vunpack.c.h.b16 %v197
    %v976 = vunpack.c.l.b16 %v198
    %v977 = vunpack.c.h.b16 %v198
    %v978 = vunpack.c.l.b16 %v199
    %v979 = vunpack.c.l.b16 %v200
    %v980 = vunpack.c.h.b16 %v200
    %v981 = vunpack.c.l.b16 %v201
    %v982 = vunpack.c.h.b16 %v201
    %v983 = vunpack.c.l.b16 %v202
    %v984 = vunpack.c.h.b16 %v202
    %v985 = vunpack.c.l.b16 %v203
    %v986 = vunpack.c.l.b16 %v204
    %v987 = vunpack.c.h.b16 %v204
    %v988 = vunpack.c.l.b16 %v205
    %v989 = vunpack.c.h.b16 %v205
    %v990 = vunpack.c.l.b16 %v206
    %v991 = vunpack.c.h.b16 %v206
    %v992 = vunpack.c.l.b16 %v207
    %v993 = vunpack.c.l.b16 %v208
    %v994 = vunpack.c.h.b16 %v208
    %v995 = vunpack.c.l.b16 %v209
    %v996 = vunpack.c.h.b16 %v209
    %v997 = vunpack.c.l.b16 %v210
    %v998 = vunpack.c.h.b16 %v210
    %v999 = vunpack.c.l.b16 %v211
    %v1000 = vunpack.c.l.b16 %v212
    %v1001 = vunpack.c.h.b16 %v212
    %v1002 = vunpack.c.l.b16 %v213
    %v1003 = vunpack.c.h.b16 %v213
    %v1004 = vunpack.c.l.b16 %v214
    %v1005 = vunpack.c.h.b16 %v214
    %v1006 = vunpack.c.l.b16 %v215
    %v1007 = vunpack.c.l.b16 %v216
    %v1008 = vunpack.c.h.b16 %v216
    %v1009 = vunpack.c.l.b16 %v217
    %v1010 = vunpack.c.h.b16 %v217
    %v1011 = vunpack.c.l.b16 %v218
    %v1012 = vunpack.c.h.b16 %v218
    %v1013 = vunpack.c.l.b16 %v219
    %v1014 = vunpack.c.l.b16 %v220
    %v1015 = vunpack.c.h.b16 %v220
    %v1016 = vunpack.c.l.b16 %v221
    %v1017 = vunpack.c.h.b16 %v221
    %v1018 = vunpack.c.l.b16 %v222
    %v1019 = vunpack.c.h.b16 %v222
    %v1020 = vunpack.c.l.b16 %v223
    %v1021 = vunpack.c.l.b16 %v224
    %v1022 = vunpack.c.h.b16 %v224
    %v1023 = vunpack.c.l.b16 %v225
    %v1024 = vunpack.c.h.b16 %v225
    %v1025 = vunpack.c.l.b16 %v226
    %v1026 = vunpack.c.h.b16 %v226
    %v1027 = vunpack.c.l.b16 %v227
    %v1028 = vunpack.c.l.b16 %v228
    %v1029 = vunpack.c.h.b16 %v228
    %v1030 = vunpack.c.l.b16 %v229
    %v1031 = vunpack.c.h.b16 %v229
    %v1032 = vunpack.c.l.b16 %v230
    %v1033 = vunpack.c.h.b16 %v230
    %v1034 = vunpack.c.l.b16 %v231
    %v1035 = vunpack.c.l.b16 %v232
    %v1036 = vunpack.c.h.b16 %v232
    %v1037 = vunpack.c.l.b16 %v233
    %v1038 = vunpack.c.h.b16 %v233
    %v1039 = vunpack.c.l.b16 %v234
    %v1040 = vunpack.c.h.b16 %v234
    %v1041 = vunpack.c.l.b16 %v235
    %v1042 = vunpack.c.l.b16 %v236
    %v1043 = vunpack.c.h.b16 %v236
    %v1044 = vunpack.c.l.b16 %v237
    %v1045 = vunpack.c.h.b16 %v237
    %v1046 = vunpack.c.l.b16 %v238
    %v1047 = vunpack.c.h.b16 %v238
    %v1048 = vunpack.c.l.b16 %v239
    %v1049 = vunpack.c.l.b16 %v240
    %v1050 = vunpack.c.h.b16 %v240
    %v1051 = vunpack.c.l.b16 %v241
    %v1052 = vunpack.c.h.b16 %v241
    %v1053 = vunpack.c.l.b16 %v242
    %v1054 = vunpack.c.h.b16 %v242
    %v1055 = vunpack.c.l.b16 %v243
    %v1056 = vunpack.c.l.b16 %v244
    %v1057 = vunpack.c.h.b16 %v244
    %v1058 = vunpack.c.l.b16 %v245
    %v1059 = vunpack.c.h.b16 %v245
    %v1060 = vunpack.c.l.b16 %v246
    %v1061 = vunpack.c.h.b16 %v246
    %v1062 = vunpack.c.l.b16 %v247
    %v1063 = vunpack.c.l.b16 %v248
    %v1064 = vunpack.c.h.b16 %v248
    %v1065 = vunpack.c.l.b16 %v249
    %v1066 = vunpack.c.h.b16 %v249
    %v1067 = vunpack.c.l.b16 %v250
    %v1068 = vunpack.c.h.b16 %v250
    %v1069 = vunpack.c.l.b16 %v251
    %v1070 = vunpack.c.l.b16 %v252
    %v1071 = vunpack.c.h.b16 %v252
    %v1072 = vunpack.c.l.b16 %v253
    %v1073 = vunpack.c.h.b16 %v253
    %v1074 = vunpack.c.l.b16 %v254
    %v1075 = vunpack.c.h.b16 %v254
    %v1076 = vunpack.c.l.b16 %v255
    %v1077 = vunpack.c.l.b16 %v256
    %v1078 = vunpack.c.h.b16 %v256
    %v1079 = vunpack.c.l.b16 %v257
    %v1080 = vunpack.c.h.b16 %v257
    %v1081 = vunpack.c.l.b16 %v258
    %v1082 = vunpack.c.h.b16 %v258
    %v1083 = vunpack.c.l.b16 %v259
    %v1084 = vunpack.c.l.b16 %v260
    %v1085 = vunpack.c.h.b16 %v260
    %v1086 = vunpack.c.l.b16 %v261
    %v1087 = vunpack.c.h.b16 %v261
    %v1088 = vunpack.c.l.b16 %v262
    %v1089 = vunpack.c.h.b16 %v262
    %v1090 = vunpack.c.l.b16 %v263
    %v1091 = vunpack.c.l.b16 %v264
    %v1092 = vunpack.c.h.b16 %v264
    %v1093 = vunpack.c.l.b16 %v265
    %v1094 = vunpack.c.h.b16 %v265
    %v1095 = vunpack.c.l.b16 %v266
    %v1096 = vunpack.c.h.b16 %v266
    %v1097 = vunpack.c.l.b16 %v267
    %v1098 = vunpack.c.l.b16 %v268
    %v1099 = vunpack.c.h.b16 %v268
    %v1100 = vunpack.c.l.b16 %v269
    %v1101 = vunpack.c.h.b16 %v269
    %v1102 = vunpack.c.l.b16 %v270
    %v1103 = vunpack.c.h.b16 %v270
    %v1104 = vunpack.c.l.b16 %v271
    %v1105 = vunpack.c.l.b16 %v272
    %v1106 = vunpack.c.h.b16 %v272
    %v1107 = vunpack.c.l.b16 %v273
    %v1108 = vunpack.c.h.b16 %v273
    %v1109 = vunpack.c.l.b16 %v274
    %v1110 = vunpack.c.h.b16 %v274
    %v1111 = vunpack.c.l.b16 %v275
    %v1112 = vunpack.c.l.b16 %v276
    %v1113 = vunpack.c.h.b16 %v276
    %v1114 = vunpack.c.l.b16 %v277
    %v1115 = vunpack.c.h.b16 %v277
    %v1116 = vunpack.c.l.b16 %v278
    %v1117 = vunpack.c.h.b16 %v278
    %v1118 = vunpack.c.l.b16 %v279
    %v1119 = vunpack.c.l.b16 %v280
    %v1120 = vunpack.c.h.b16 %v280
    %v1121 = vunpack.c.l.b16 %v281
    %v1122 = vunpack.c.h.b16 %v281
    %v1123 = vunpack.c.l.b16 %v282
    %v1124 = vunpack.c.h.b16 %v282
    %v1125 = vunpack.c.l.b16 %v283
    %v1126 = vunpack.c.l.b16 %v284
    %v1127 = vunpack.c.h.b16 %v284
    %v1128 = vunpack.c.l.b16 %v285
    %v1129 = vunpack.c.h.b16 %v285
    %v1130 = vunpack.c.l.b16 %v286
    %v1131 = vunpack.c.h.b16 %v286
    %v1132 = vunpack.c.l.b16 %v287
    %v1133 = vunpack.c.l.b16 %v288
    %v1134 = vunpack.c.h.b16 %v288
    %v1135 = vunpack.c.l.b16 %v289
    %v1136 = vunpack.c.h.b16 %v289
    %v1137 = vunpack.c.l.b16 %v290
    %v1138 = vunpack.c.h.b16 %v290
    %v1139 = vunpack.c.l.b16 %v291
    %v1140 = vunpack.c.l.b16 %v292
    %v1141 = vunpack.c.h.b16 %v292
    %v1142 = vunpack.c.l.b16 %v293
    %v1143 = vunpack.c.h.b16 %v293
    %v1144 = vunpack.c.l.b16 %v294
    %v1145 = vunpack.c.h.b16 %v294
    %v1146 = vunpack.c.l.b16 %v295
    %v1147 = vunpack.c.l.b16 %v296
    %v1148 = vunpack.c.h.b16 %v296
    %v1149 = vunpack.c.l.b16 %v297
    %v1150 = vunpack.c.h.b16 %v297
    %v1151 = vunpack.c.l.b16 %v298
    %v1152 = vunpack.c.h.b16 %v298
    %v1153 = vunpack.c.l.b16 %v299
    %v1154 = vunpack.c.l.b16 %v300
    %v1155 = vunpack.c.h.b16 %v300
    %v1156 = vunpack.c.l.b16 %v301
    %v1157 = vunpack.c.h.b16 %v301
    %v1158 = vunpack.c.l.b16 %v302
    %v1159 = vunpack.c.h.b16 %v302
    %v1160 = vunpack.c.l.b16 %v303
    %v1161 = vunpack.c.l.b16 %v304
    %v1162 = vunpack.c.h.b16 %v304
    %v1163 = vunpack.c.l.b16 %v305
    %v1164 = vunpack.c.h.b16 %v305
    %v1165 = vunpack.c.l.b16 %v306
    %v1166 = vunpack.c.h.b16 %v306
    %v1167 = vunpack.c.l.b16 %v307
    %v1168 = vunpack.c.l.b16 %v308
    %v1169 = vunpack.c.h.b16 %v308
    %v1170 = vunpack.c.l.b16 %v309
    %v1171 = vunpack.c.h.b16 %v309
    %v1172 = vunpack.c.l.b16 %v310
    %v1173 = vunpack.c.h.b16 %v310
    %v1174 = vunpack.c.l.b16 %v311
    %v1175 = vunpack.c.l.b16 %v312
    %v1176 = vunpack.c.h.b16 %v312
    %v1177 = vunpack.c.l.b16 %v313
    %v1178 = vunpack.c.h.b16 %v313
    %v1179 = vunpack.c.l.b16 %v314
    %v1180 = vunpack.c.h.b16 %v314
    %v1181 = vunpack.c.l.b16 %v315
    %v1182 = vunpack.c.l.b16 %v316
    %v1183 = vunpack.c.h.b16 %v316
    %v1184 = vunpack.c.l.b16 %v317
    %v1185 = vunpack.c.h.b16 %v317
    %v1186 = vunpack.c.l.b16 %v318
    %v1187 = vunpack.c.h.b16 %v318
    %v1188 = vunpack.c.l.b16 %v319
    %v1189 = vunpack.c.l.b16 %v320
    %v1190 = vunpack.c.h.b16 %v320
    %v1191 = vunpack.c.l.b16 %v321
    %v1192 = vunpack.c.h.b16 %v321
    %v1193 = vunpack.c.l.b16 %v322
    %v1194 = vunpack.c.h.b16 %v322
    %v1195 = vunpack.c.l.b16 %v323
    %v1196 = vunpack.c.l.b16 %v324
    %v1197 = vunpack.c.h.b16 %v324
    %v1198 = vunpack.c.l.b16 %v325
    %v1199 = vunpack.c.h.b16 %v325
    %v1200 = vunpack.c.l.b16 %v326
    %v1201 = vunpack.c.h.b16 %v326
    %v1202 = vunpack.c.l.b16 %v327
    %v1203 = vunpack.c.l.b16 %v328
    %v1204 = vunpack.c.h.b16 %v328
    %v1205 = vunpack.c.l.b16 %v329
    %v1206 = vunpack.c.h.b16 %v329
    %v1207 = vunpack.c.l.b16 %v330
    %v1208 = vunpack.c.h.b16 %v330
    %v1209 = vunpack.c.l.b16 %v331
    %v1210 = vunpack.c.l.b16 %v332
    %v1211 = vunpack.c.h.b16 %v332
    %v1212 = vunpack.c.l.b16 %v333
    %v1213 = vunpack.c.h.b16 %v333
    %v1214 = vunpack.c.l.b16 %v334
    %v1215 = vunpack.c.h.b16 %v334
    %v1216 = vunpack.c.l.b16 %v335
    %v1217 = vunpack.c.l.b16 %v336
    %v1218 = vunpack.c.h.b16 %v336
    %v1219 = vunpack.c.l.b16 %v337
    %v1220 = vunpack.c.h.b16 %v337
    %v1221 = vunpack.c.l.b16 %v338
    %v1222 = vunpack.c.h.b16 %v338
    %v1223 = vunpack.c.l.b16 %v339
    %v1224 = vunpack.c.l.b16 %v340
    %v1225 = vunpack.c.h.b16 %v340
    %v1226 = vunpack.c.l.b16 %v341
    %v1227 = vunpack.c.h.b16 %v341
    %v1228 = vunpack.c.l.b16 %v342
    %v1229 = vunpack.c.h.b16 %v342
    %v1230 = vunpack.c.l.b16 %v343
    %v1231 = vunpack.c.l.b16 %v344
    %v1232 = vunpack.c.h.b16 %v344
    %v1233 = vunpack.c.l.b16 %v345
    %v1234 = vunpack.c.h.b16 %v345
    %v1235 = vunpack.c.l.b16 %v346
    %v1236 = vunpack.c.h.b16 %v346
    %v1237 = vunpack.c.l.b16 %v347
    %v1238 = vunpack.c.l.b16 %v348
    %v1239 = vunpack.c.h.b16 %v348
    %v1240 = vunpack.c.l.b16 %v349
    %v1241 = vunpack.c.h.b16 %v349
    %v1242 = vunpack.c.l.b16 %v350
    %v1243 = vunpack.c.h.b16 %v350
    %v1244 = vunpack.c.l.b16 %v351
    %v1245 = vunpack.c.l.b16 %v352
    %v1246 = vunpack.c.h.b16 %v352
    %v1247 = vunpack.c.l.b16 %v353
    %v1248 = vunpack.c.h.b16 %v353
    %v1249 = vunpack.c.l.b16 %v354
    %v1250 = vunpack.c.h.b16 %v354
    %v1251 = vunpack.c.l.b16 %v355
    %v1252 = vunpack.c.l.b16 %v356
    %v1253 = vunpack.c.h.b16 %v356
    %v1254 = vunpack.c.l.b16 %v357
    %v1255 = vunpack.c.h.b16 %v357
    %v1256 = vunpack.c.l.b16 %v358
    %v1257 = vunpack.c.h.b16 %v358
    %v1258 = vunpack.c.l.b16 %v359
    %v1259 = vunpack.c.l.b16 %v360
    %v1260 = vunpack.c.h.b16 %v360
    %v1261 = vunpack.c.l.b16 %v361
    %v1262 = vunpack.c.h.b16 %v361
    %v1263 = vunpack.c.l.b16 %v362
    %v1264 = vunpack.c.h.b16 %v362
    %v1265 = vunpack.c.l.b16 %v363
    %v1266 = vunpack.c.l.b16 %v364
    %v1267 = vunpack.c.h.b16 %v364
    %v1268 = vunpack.c.l.b16 %v365
    %v1269 = vunpack.c.h.b16 %v365
    %v1270 = vunpack.c.l.b16 %v366
    %v1271 = vunpack.c.h.b16 %v366
    %v1272 = vunpack.c.l.b16 %v367
    %v1273 = vunpack.c.l.b16 %v368
    %v1274 = vunpack.c.h.b16 %v368
    %v1275 = vunpack.c.l.b16 %v369
    %v1276 = vunpack.c.h.b16 %v369
    %v1277 = vunpack.c.l.b16 %v370
    %v1278 = vunpack.c.h.b16 %v370
    %v1279 = vunpack.c.l.b16 %v371
    %v1280 = vunpack.c.l.b16 %v372
    %v1281 = vunpack.c.h.b16 %v372
    %v1282 = vunpack.c.l.b16 %v373
    %v1283 = vunpack.c.h.b16 %v373
    %v1284 = vunpack.c.l.b16 %v374
    %v1285 = vunpack.c.h.b16 %v374
    %v1286 = vunpack.c.l.b16 %v375
    %v1287 = vunpack.c.l.b16 %v376
    %v1288 = vunpack.c.h.b16 %v376
    %v1289 = vunpack.c.l.b16 %v377
    %v1290 = vunpack.c.h.b16 %v377
    %v1291 = vunpack.c.l.b16 %v378
    %v1292 = vunpack.c.h.b16 %v378
    %v1293 = vunpack.c.l.b16 %v379
    %v1294 = vunpack.c.l.b16 %v380
    %v1295 = vunpack.c.h.b16 %v380
    %v1296 = vunpack.c.l.b16 %v381
    %v1297 = vunpack.c.h.b16 %v381
    %v1298 = vunpack.c.l.b16 %v382
    %v1299 = vunpack.c.h.b16 %v382
    %v1300 = vunpack.c.l.b16 %v383
    %v1301 = vunpack.c.l.b16 %v384
    %v1302 = vunpack.c.h.b16 %v384
    %v1303 = vunpack.c.l.b16 %v385
    %v1304 = vunpack.c.h.b16 %v385
    %v1305 = vunpack.c.l.b16 %v386
    %v1306 = vunpack.c.h.b16 %v386
    %v1307 = vunpack.c.l.b16 %v387
    %v1308 = vunpack.c.l.b16 %v388
    %v1309 = vunpack.c.h.b16 %v388
    %v1310 = vunpack.c.l.b16 %v389
    %v1311 = vunpack.c.h.b16 %v389
    %v1312 = vunpack.c.l.b16 %v390
    %v1313 = vunpack.c.h.b16 %v390
    %v1314 = vunpack.c.l.b16 %v391
    %v1315 = vunpack.c.l.b16 %v392
    %v1316 = vunpack.c.h.b16 %v392
    %v1317 = vunpack.c.l.b16 %v393
    %v1318 = vunpack.c.h.b16 %v393
    %v1319 = vunpack.c.l.b16 %v394
    %v1320 = vunpack.c.h.b16 %v394
    %v1321 = vunpack.c.l.b16 %v395
    %v1322 = vunpack.c.l.b16 %v396
    %v1323 = vunpack.c.h.b16 %v396
    %v1324 = vunpack.c.l.b16 %v397
    %v1325 = vunpack.c.h.b16 %v397
    %v1326 = vunpack.c.l.b16 %v398
    %v1327 = vunpack.c.h.b16 %v398
    %v1328 = vunpack.c.l.b16 %v399
    %v1329 = vunpack.c.l.b16 %v400
    %v1330 = vunpack.c.h.b16 %v400
    %v1331 = vunpack.c.l.b16 %v401
    %v1332 = vunpack.c.h.b16 %v401
    %v1333 = vunpack.c.l.b16 %v402
    %v1334 = vunpack.c.h.b16 %v402
    %v1335 = vunpack.c.l.b16 %v403
    %v1336 = vunpack.c.l.b16 %v404
    %v1337 = vunpack.c.h.b16 %v404
    %v1338 = vunpack.c.l.b16 %v405
    %v1339 = vunpack.c.h.b16 %v405
    %v1340 = vunpack.c.l.b16 %v406
    %v1341 = vunpack.c.h.b16 %v406
    %v1342 = vunpack.c.l.b16 %v407
    %v1343 = vunpack.c.l.b16 %v408
    %v1344 = vunpack.c.h.b16 %v408
    %v1345 = vunpack.c.l.b16 %v409
    %v1346 = vunpack.c.h.b16 %v409
    %v1347 = vunpack.c.l.b16 %v410
    %v1348 = vunpack.c.h.b16 %v410
    %v1349 = vunpack.c.l.b16 %v411
    %v1350 = vunpack.c.l.b16 %v412
    %v1351 = vunpack.c.h.b16 %v412
    %v1352 = vunpack.c.l.b16 %v413
    %v1353 = vunpack.c.h.b16 %v413
    %v1354 = vunpack.c.l.b16 %v414
    %v1355 = vunpack.c.h.b16 %v414
    %v1356 = vunpack.c.l.b16 %v415
    %v1357 = vunpack.c.l.b16 %v416
    %v1358 = vunpack.c.h.b16 %v416
    %v1359 = vunpack.c.l.b16 %v417
    %v1360 = vunpack.c.h.b16 %v417
    %v1361 = vunpack.c.l.b16 %v418
    %v1362 = vunpack.c.h.b16 %v418
    %v1363 = vunpack.c.l.b16 %v419
    %v1364 = vunpack.c.l.b16 %v420
    %v1365 = vunpack.c.h.b16 %v420
    %v1366 = vunpack.c.l.b16 %v421
    %v1367 = vunpack.c.h.b16 %v421
    %v1368 = vunpack.c.l.b16 %v422
    %v1369 = vunpack.c.h.b16 %v422
    %v1370 = vunpack.c.l.b16 %v423
    %v1371 = vunpack.c.l.b16 %v424
    %v1372 = vunpack.c.h.b16 %v424
    %v1373 = vunpack.c.l.b16 %v425
    %v1374 = vunpack.c.h.b16 %v425
    %v1375 = vunpack.c.l.b16 %v426
    %v1376 = vunpack.c.h.b16 %v426
    %v1377 = vunpack.c.l.b16 %v427
    %v1378 = vpack.c.b16 %v937, %v930
    %v1379 = vpack.c.b16 %v938, %v931
    %v1380 = vpack.c.b16 %v939, %v932
    %v1381 = vpack.c.b16 %v940, %v933
    %v1382 = vpack.c.b16 %v941, %v934
    %v1383 = vpack.c.b16 %v942, %v935
    %v1384 = vpack.c.b16 %v943, %v936
    %v1385 = vpack.c.b16 %v951, %v944
    %v1386 = vpack.c.b16 %v952, %v945
    %v1387 = vpack.c.b16 %v953, %v946
    %v1388 = vpack.c.b16 %v954, %v947
    %v1389 = vpack.c.b16 %v955, %v948
    %v1390 = vpack.c.b16 %v956, %v949
    %v1391 = vpack.c.b16 %v957, %v950
    %v1392 = vpack.c.b16 %v965, %v958
    %v1393 = vpack.c.b16 %v966, %v959
    %v1394 = vpack.c.b16 %v967, %v960
    %v1395 = vpack.c.b16 %v968, %v961
    %v1396 = vpack.c.b16 %v969, %v962
    %v1397 = vpack.c.b16 %v970, %v963
    %v1398 = vpack.c.b16 %v971, %v964
    %v1399 = vpack.c.b16 %v979, %v972
    %v1400 = vpack.c.b16 %v980, %v973
    %v1401 = vpack.c.b16 %v981, %v974
    %v1402 = vpack.c.b16 %v982, %v975
    %v1403 = vpack.c.b16 %v983, %v976
    %v1404 = vpack.c.b16 %v984, %v977
    %v1405 = vpack.c.b16 %v985, %v978
    %v1406 = vpack.c.b16 %v993, %v986
    %v1407 = vpack.c.b16 %v994, %v987
    %v1408 = vpack.c.b16 %v995, %v988
    %v1409 = vpack.c.b16 %v996, %v989
    %v1410 = vpack.c.b16 %v997, %v990
    %v1411 = vpack.c.b16 %v998, %v991
    %v1412 = vpack.c.b16 %v999, %v992
    %v1413 = vpack.c.b16 %v1007, %v1000
    %v1414 = vpack.c.b16 %v1008, %v1001
    %v1415 = vpack.c.b16 %v1009, %v1002
    %v1416 = vpack.c.b16 %v1010, %v1003
    %v1417 = vpack.c.b16 %v1011, %v1004
    %v1418 = vpack.c.b16 %v1012, %v1005
    %v1419 = vpack.c.b16 %v1013, %v1006
    %v1420 = vpack.c.b16 %v1021, %v1014
    %v1421 = vpack.c.b16 %v1022, %v1015
    %v1422 = vpack.c.b16 %v1023, %v1016
    %v1423 = vpack.c.b16 %v1024, %v1017
    %v1424 = vpack.c.b16 %v1025, %v1018
    %v1425 = vpack.c.b16 %v1026, %v1019
    %v1426 = vpack.c.b16 %v1027, %v1020
    %v1427 = vpack.c.b16 %v1035, %v1028
    %v1428 = vpack.c.b16 %v1036, %v1029
    %v1429 = vpack.c.b16 %v1037, %v1030
    %v1430 = vpack.c.b16 %v1038, %v1031
    %v1431 = vpack.c.b16 %v1039, %v1032
    %v1432 = vpack.c.b16 %v1040, %v1033
    %v1433 = vpack.c.b16 %v1041, %v1034
    %v1434 = vpack.c.b16 %v1049, %v1042
    %v1435 = vpack.c.b16 %v1050, %v1043
    %v1436 = vpack.c.b16 %v1051, %v1044
    %v1437 = vpack.c.b16 %v1052, %v1045
    %v1438 = vpack.c.b16 %v1053, %v1046
    %v1439 = vpack.c.b16 %v1054, %v1047
    %v1440 = vpack.c.b16 %v1055, %v1048
    %v1441 = vpack.c.b16 %v1063, %v1056
    %v1442 = vpack.c.b16 %v1064, %v1057
    %v1443 = vpack.c.b16 %v1065, %v1058
    %v1444 = vpack.c.b16 %v1066, %v1059
    %v1445 = vpack.c.b16 %v1067, %v1060
    %v1446 = vpack.c.b16 %v1068, %v1061
    %v1447 = vpack.c.b16 %v1069, %v1062
    %v1448 = vpack.c.b16 %v1077, %v1070
    %v1449 = vpack.c.b16 %v1078, %v1071
    %v1450 = vpack.c.b16 %v1079, %v1072
    %v1451 = vpack.c.b16 %v1080, %v1073
    %v1452 = vpack.c.b16 %v1081, %v1074
    %v1453 = vpack.c.b16 %v1082, %v1075
    %v1454 = vpack.c.b16 %v1083, %v1076
    %v1455 = vpack.c.b16 %v1091, %v1084
    %v1456 = vpack.c.b16 %v1092, %v1085
    %v1457 = vpack.c.b16 %v1093, %v1086
    %v1458 = vpack.c.b16 %v1094, %v1087
    %v1459 = vpack.c.b16 %v1095, %v1088
    %v1460 = vpack.c.b16 %v1096, %v1089
    %v1461 = vpack.c.b16 %v1097, %v1090
    %v1462 = vpack.c.b16 %v1105, %v1098
    %v1463 = vpack.c.b16 %v1106, %v1099
    %v1464 = vpack.c.b16 %v1107, %v1100
    %v1465 = vpack.c.b16 %v1108, %v1101
    %v1466 = vpack.c.b16 %v1109, %v1102
    %v1467 = vpack.c.b16 %v1110, %v1103
    %v1468 = vpack.c.b16 %v1111, %v1104
    %v1469 = vpack.c.b16 %v1119, %v1112
    %v1470 = vpack.c.b16 %v1120, %v1113
    %v1471 = vpack.c.b16 %v1121, %v1114
    %v1472 = vpack.c.b16 %v1122, %v1115
    %v1473 = vpack.c.b16 %v1123, %v1116
    %v1474 = vpack.c.b16 %v1124, %v1117
    %v1475 = vpack.c.b16 %v1125, %v1118
    %v1476 = vpack.c.b16 %v1133, %v1126
    %v1477 = vpack.c.b16 %v1134, %v1127
    %v1478 = vpack.c.b16 %v1135, %v1128
    %v1479 = vpack.c.b16 %v1136, %v1129
    %v1480 = vpack.c.b16 %v1137, %v1130
    %v1481 = vpack.c.b16 %v1138, %v1131
    %v1482 = vpack.c.b16 %v1139, %v1132
    %v1483 = vpack.c.b16 %v1147, %v1140
    %v1484 = vpack.c.b16 %v1148, %v1141
    %v1485 = vpack.c.b16 %v1149, %v1142
    %v1486 = vpack.c.b16 %v1150, %v1143
    %v1487 = vpack.c.b16 %v1151, %v1144
    %v1488 = vpack.c.b16 %v1152, %v1145
    %v1489 = vpack.c.b16 %v1153, %v1146
    %v1490 = vpack.c.b16 %v1161, %v1154
    %v1491 = vpack.c.b16 %v1162, %v1155
    %v1492 = vpack.c.b16 %v1163, %v1156
    %v1493 = vpack.c.b16 %v1164, %v1157
    %v1494 = vpack.c.b16 %v1165, %v1158
    %v1495 = vpack.c.b16 %v1166, %v1159
    %v1496 = vpack.c.b16 %v1167, %v1160
    %v1497 = vpack.c.b16 %v1175, %v1168
    %v1498 = vpack.c.b16 %v1176, %v1169
    %v1499 = vpack.c.b16 %v1177, %v1170
    %v1500 = vpack.c.b16 %v1178, %v1171
    %v1501 = vpack.c.b16 %v1179, %v1172
    %v1502 = vpack.c.b16 %v1180, %v1173
    %v1503 = vpack.c.b16 %v1181, %v1174
    %v1504 = vpack.c.b16 %v1189, %v1182
    %v1505 = vpack.c.b16 %v1190, %v1183
    %v1506 = vpack.c.b16 %v1191, %v1184
    %v1507 = vpack.c.b16 %v1192, %v1185
    %v1508 = vpack.c.b16 %v1193, %v1186
    %v1509 = vpack.c.b16 %v1194, %v1187
    %v1510 = vpack.c.b16 %v1195, %v1188
    %v1511 = vpack.c.b16 %v1203, %v1196
    %v1512 = vpack.c.b16 %v1204, %v1197
    %v1513 = vpack.c.b16 %v1205, %v1198
    %v1514 = vpack.c.b16 %v1206, %v1199
    %v1515 = vpack.c.b16 %v1207, %v1200
    %v1516 = vpack.c.b16 %v1208, %v1201
    %v1517 = vpack.c.b16 %v1209, %v1202
    %v1518 = vpack.c.b16 %v1217, %v1210
    %v1519 = vpack.c.b16 %v1218, %v1211
    %v1520 = vpack.c.b16 %v1219, %v1212
    %v1521 = vpack.c.b16 %v1220, %v1213
    %v1522 = vpack.c.b16 %v1221, %v1214
    %v1523 = vpack.c.b16 %v1222, %v1215
    %v1524 = vpack.c.b16 %v1223, %v1216
    %v1525 = vpack.c.b16 %v1231, %v1224
    %v1526 = vpack.c.b16 %v1232, %v1225
    %v1527 = vpack.c.b16 %v1233, %v1226
    %v1528 = vpack.c.b16 %v1234, %v1227
    %v1529 = vpack.c.b16 %v1235, %v1228
    %v1530 = vpack.c.b16 %v1236, %v1229
    %v1531 = vpack.c.b16 %v1237, %v1230
    %v1532 = vpack.c.b16 %v1245, %v1238
    %v1533 = vpack.c.b16 %v1246, %v1239
    %v1534 = vpack.c.b16 %v1247, %v1240
    %v1535 = vpack.c.b16 %v1248, %v1241
    %v1536 = vpack.c.b16 %v1249, %v1242
    %v1537 = vpack.c.b16 %v1250, %v1243
    %v1538 = vpack.c.b16 %v1251, %v1244
    %v1539 = vpack.c.b16 %v1259, %v1252
    %v1540 = vpack.c.b16 %v1260, %v1253
    %v1541 = vpack.c.b16 %v1261, %v1254
    %v1542 = vpack.c.b16 %v1262, %v1255
    %v1543 = vpack.c.b16 %v1263, %v1256
    %v1544 = vpack.c.b16 %v1264, %v1257
    %v1545 = vpack.c.b16 %v1265, %v1258
    %v1546 = vpack.c.b16 %v1273, %v1266
    %v1547 = vpack.c.b16 %v1274, %v1267
    %v1548 = vpack.c.b16 %v1275, %v1268
    %v1549 = vpack.c.b16 %v1276, %v1269
    %v1550 = vpack.c.b16 %v1277, %v1270
    %v1551 = vpack.c.b16 %v1278, %v1271
    %v1552 = vpack.c.b16 %v1279, %v1272
    %v1553 = vpack.c.b16 %v1287, %v1280
    %v1554 = vpack.c.b16 %v1288, %v1281
    %v1555 = vpack.c.b16 %v1289, %v1282
    %v1556 = vpack.c.b16 %v1290, %v1283
    %v1557 = vpack.c.b16 %v1291, %v1284
    %v1558 = vpack.c.b16 %v1292, %v1285
    %v1559 = vpack.c.b16 %v1293, %v1286
    %v1560 = vpack.c.b16 %v1301, %v1294
    %v1561 = vpack.c.b16 %v1302, %v1295
    %v1562 = vpack.c.b16 %v1303, %v1296
    %v1563 = vpack.c.b16 %v1304, %v1297
    %v1564 = vpack.c.b16 %v1305, %v1298
    %v1565 = vpack.c.b16 %v1306, %v1299
    %v1566 = vpack.c.b16 %v1307, %v1300
    %v1567 = vpack.c.b16 %v1315, %v1308
    %v1568 = vpack.c.b16 %v1316, %v1309
    %v1569 = vpack.c.b16 %v1317, %v1310
    %v1570 = vpack.c.b16 %v1318, %v1311
    %v1571 = vpack.c.b16 %v1319, %v1312
    %v1572 = vpack.c.b16 %v1320, %v1313
    %v1573 = vpack.c.b16 %v1321, %v1314
    %v1574 = vpack.c.b16 %v1329, %v1322
    %v1575 = vpack.c.b16 %v1330, %v1323
    %v1576 = vpack.c.b16 %v1331, %v1324
    %v1577 = vpack.c.b16 %v1332, %v1325
    %v1578 = vpack.c.b16 %v1333, %v1326
    %v1579 = vpack.c.b16 %v1334, %v1327
    %v1580 = vpack.c.b16 %v1335, %v1328
    %v1581 = vpack.c.b16 %v1343, %v1336
    %v1582 = vpack.c.b16 %v1344, %v1337
    %v1583 = vpack.c.b16 %v1345, %v1338
    %v1584 = vpack.c.b16 %v1346, %v1339
    %v1585 = vpack.c.b16 %v1347, %v1340
    %v1586 = vpack.c.b16 %v1348, %v1341
    %v1587 = vpack.c.b16 %v1349, %v1342
    %v1588 = vpack.c.b16 %v1357, %v1350
    %v1589 = vpack.c.b16 %v1358, %v1351
    %v1590 = vpack.c.b16 %v1359, %v1352
    %v1591 = vpack.c.b16 %v1360, %v1353
    %v1592 = vpack.c.b16 %v1361, %v1354
    %v1593 = vpack.c.b16 %v1362, %v1355
    %v1594 = vpack.c.b16 %v1363, %v1356
    %v1595 = vpack.c.b16 %v1371, %v1364
    %v1596 = vpack.c.b16 %v1372, %v1365
    %v1597 = vpack.c.b16 %v1373, %v1366
    %v1598 = vpack.c.b16 %v1374, %v1367
    %v1599 = vpack.c.b16 %v1375, %v1368
    %v1600 = vpack.c.b16 %v1376, %v1369
    %v1601 = vpack.c.b16 %v1377, %v1370
    %v2050 = vunpack.c.l.b16 %v428
    %v2051 = vunpack.c.h.b16 %v428
    %v2052 = vunpack.c.l.b16 %v429
    %v2053 = vunpack.c.h.b16 %v429
    %v2054 = vunpack.c.l.b16 %v430
    %v2055 = vunpack.c.h.b16 %v430
    %v2056 = vunpack.c.l.b16 %v431
    %v2057 = vunpack.c.h.b16 %v431
    %v2058 = vunpack.c.l.b16 %v432
    %v2059 = vunpack.c.h.b16 %v432
    %v2060 = vunpack.c.l.b16 %v433
    %v2061 = vunpack.c.h.b16 %v433
    %v2062 = vunpack.c.l.b16 %v434
    %v2063 = vunpack.c.h.b16 %v434
    %v2064 = vunpack.c.l.b16 %v435
    %v2065 = vunpack.c.h.b16 %v435
    %v2066 = vunpack.c.l.b16 %v436
    %v2067 = vunpack.c.h.b16 %v436
    %v2068 = vunpack.c.l.b16 %v437
    %v2069 = vunpack.c.h.b16 %v437
    %v2070 = vunpack.c.l.b16 %v438
    %v2071 = vunpack.c.h.b16 %v438
    %v2072 = vunpack.c.l.b16 %v439
    %v2073 = vunpack.c.h.b16 %v439
    %v2074 = vunpack.c.l.b16 %v440
    %v2075 = vunpack.c.h.b16 %v440
    %v2076 = vunpack.c.l.b16 %v441
    %v2077 = vunpack.c.h.b16 %v441
    %v2078 = vunpack.c.l.b16 %v442
    %v2079 = vunpack.c.h.b16 %v442
    %v2080 = vunpack.c.l.b16 %v443
    %v2081 = vunpack.c.h.b16 %v443
    %v2082 = vunpack.c.l.b16 %v444
    %v2083 = vunpack.c.h.b16 %v444
    %v2084 = vunpack.c.l.b16 %v445
    %v2085 = vunpack.c.h.b16 %v445
    %v2086 = vunpack.c.l.b16 %v446
    %v2087 = vunpack.c.h.b16 %v446
    %v2088 = vunpack.c.l.b16 %v447
    %v2089 = vunpack.c.h.b16 %v447
    %v2090 = vunpack.c.l.b16 %v448
    %v2091 = vunpack.c.h.b16 %v448
    %v2092 = vunpack.c.l.b16 %v449
    %v2093 = vunpack.c.h.b16 %v449
    %v2094 = vunpack.c.l.b16 %v450
    %v2095 = vunpack.c.h.b16 %v450
    %v2096 = vunpack.c.l.b16 %v451
    %v2097 = vunpack.c.h.b16 %v451
    %v2098 = vunpack.c.l.b16 %v452
    %v2099 = vunpack.c.h.b16 %v452
    %v2100 = vunpack.c.l.b16 %v453
    %v2101 = vunpack.c.h.b16 %v453
    %v2102 = vunpack.c.l.b16 %v454
    %v2103 = vunpack.c.h.b16 %v454
    %v2104 = vunpack.c.l.b16 %v455
    %v2105 = vunpack.c.h.b16 %v455
    %v2106 = vunpack.c.l.b16 %v456
    %v2107 = vunpack.c.h.b16 %v456
    %v2108 = vunpack.c.l.b16 %v457
    %v2109 = vunpack.c.h.b16 %v457
    %v2110 = vunpack.c.l.b16 %v458
    %v2111 = vunpack.c.h.b16 %v458
    %v2112 = vunpack.c.l.b16 %v459
    %v2113 = vunpack.c.h.b16 %v459
    %v2114 = vunpack.c.l.b16 %v460
    %v2115 = vunpack.c.h.b16 %v460
    %v2116 = vunpack.c.l.b16 %v461
    %v2117 = vunpack.c.h.b16 %v461
    %v2118 = vunpack.c.l.b16 %v462
    %v2119 = vunpack.c.h.b16 %v462
    %v2120 = vunpack.c.l.b16 %v463
    %v2121 = vunpack.c.h.b16 %v463
    %v2122 = vunpack.c.l.b16 %v464
    %v2123 = vunpack.c.h.b16 %v464
    %v2124 = vunpack.c.l.b16 %v465
    %v2125 = vunpack.c.h.b16 %v465
    %v2126 = vunpack.c.l.b16 %v466
    %v2127 = vunpack.c.h.b16 %v466
    %v2128 = vunpack.c.l.b16 %v467
    %v2129 = vunpack.c.h.b16 %v467
    %v2130 = vunpack.c.l.b16 %v468
    %v2131 = vunpack.c.h.b16 %v468
    %v2132 = vunpack.c.l.b16 %v469
    %v2133 = vunpack.c.h.b16 %v469
    %v2134 = vunpack.c.l.b16 %v470
    %v2135 = vunpack.c.h.b16 %v470
    %v2136 = vunpack.c.l.b16 %v471
    %v2137 = vunpack.c.h.b16 %v471
    %v2138 = vunpack.c.l.b16 %v472
    %v2139 = vunpack.c.h.b16 %v472
    %v2140 = vunpack.c.l.b16 %v473
    %v2141 = vunpack.c.h.b16 %v473
    %v2142 = vunpack.c.l.b16 %v474
    %v2143 = vunpack.c.h.b16 %v474
    %v2144 = vunpack.c.l.b16 %v475
    %v2145 = vunpack.c.h.b16 %v475
    %v2146 = vunpack.c.l.b16 %v476
    %v2147 = vunpack.c.h.b16 %v476
    %v2148 = vunpack.c.l.b16 %v477
    %v2149 = vunpack.c.h.b16 %v477
    %v2150 = vunpack.c.l.b16 %v478
    %v2151 = vunpack.c.h.b16 %v478
    %v2152 = vunpack.c.l.b16 %v479
    %v2153 = vunpack.c.h.b16 %v479
    %v2154 = vunpack.c.l.b16 %v480
    %v2155 = vunpack.c.h.b16 %v480
    %v2156 = vunpack.c.l.b16 %v481
    %v2157 = vunpack.c.h.b16 %v481
    %v2158 = vunpack.c.l.b16 %v482
    %v2159 = vunpack.c.h.b16 %v482
    %v2160 = vunpack.c.l.b16 %v483
    %v2161 = vunpack.c.h.b16 %v483
    %v2162 = vunpack.c.l.b16 %v484
    %v2163 = vunpack.c.h.b16 %v484
    %v2164 = vunpack.c.l.b16 %v485
    %v2165 = vunpack.c.h.b16 %v485
    %v2166 = vunpack.c.l.b16 %v486
    %v2167 = vunpack.c.h.b16 %v486
    %v2168 = vunpack.c.l.b16 %v487
    %v2169 = vunpack.c.h.b16 %v487
    %v2170 = vunpack.c.l.b16 %v488
    %v2171 = vunpack.c.h.b16 %v488
    %v2172 = vunpack.c.l.b16 %v489
    %v2173 = vunpack.c.h.b16 %v489
    %v2174 = vunpack.c.l.b16 %v490
    %v2175 = vunpack.c.h.b16 %v490
    %v2176 = vunpack.c.l.b16 %v491
    %v2177 = vunpack.c.h.b16 %v491
    %v2178 = vunpack.c.l.b16 %v492
    %v2179 = vunpack.c.h.b16 %v492
    %v2180 = vunpack.c.l.b16 %v493
    %v2181 = vunpack.c.h.b16 %v493
    %v2182 = vunpack.c.l.b16 %v494
    %v2183 = vunpack.c.h.b16 %v494
    %v2184 = vunpack.c.l.b16 %v495
    %v2185 = vunpack.c.h.b16 %v495
    %v2186 = vunpack.c.l.b16 %v496
    %v2187 = vunpack.c.h.b16 %v496
    %v2188 = vunpack.c.l.b16 %v497
    %v2189 = vunpack.c.h.b16 %v497
    %v2190 = vunpack.c.l.b16 %v498
    %v2191 = vunpack.c.h.b16 %v498
    %v2192 = vunpack.c.l.b16 %v499
    %v2193 = vunpack.c.h.b16 %v499
    %v2194 = vunpack.c.l.b16 %v500
    %v2195 = vunpack.c.h.b16 %v500
    %v2196 = vunpack.c.l.b16 %v501
    %v2197 = vunpack.c.h.b16 %v501
    %v2198 = vunpack.c.l.b16 %v502
    %v2199 = vunpack.c.h.b16 %v502
    %v2200 = vunpack.c.l.b16 %v503
    %v2201 = vunpack.c.h.b16 %v503
    %v2202 = vunpack.c.l.b16 %v504
    %v2203 = vunpack.c.h.b16 %v504
    %v2204 = vunpack.c.l.b16 %v505
    %v2205 = vunpack.c.h.b16 %v505
    %v2206 = vunpack.c.l.b16 %v506
    %v2207 = vunpack.c.h.b16 %v506
    %v2208 = vunpack.c.l.b16 %v507
    %v2209 = vunpack.c.h.b16 %v507
    %v2210 = vunpack.c.l.b16 %v508
    %v2211 = vunpack.c.h.b16 %v508
    %v2212 = vunpack.c.l.b16 %v509
    %v2213 = vunpack.c.h.b16 %v509
    %v2214 = vunpack.c.l.b16 %v510
    %v2215 = vunpack.c.h.b16 %v510
    %v2216 = vunpack.c.l.b16 %v511
    %v2217 = vunpack.c.h.b16 %v511
    %v2218 = vunpack.c.l.b16 %v512
    %v2219 = vunpack.c.h.b16 %v512
    %v2220 = vunpack.c.l.b16 %v513
    %v2221 = vunpack.c.h.b16 %v513
    %v2222 = vunpack.c.l.b16 %v514
    %v2223 = vunpack.c.h.b16 %v514
    %v2224 = vunpack.c.l.b16 %v515
    %v2225 = vunpack.c.h.b16 %v515
    %v2226 = vunpack.c.l.b16 %v516
    %v2227 = vunpack.c.h.b16 %v516
    %v2228 = vunpack.c.l.b16 %v517
    %v2229 = vunpack.c.h.b16 %v517
    %v2230 = vunpack.c.l.b16 %v518
    %v2231 = vunpack.c.h.b16 %v518
    %v2232 = vunpack.c.l.b16 %v519
    %v2233 = vunpack.c.h.b16 %v519
    %v2234 = vunpack.c.l.b16 %v520
    %v2235 = vunpack.c.h.b16 %v520
    %v2236 = vunpack.c.l.b16 %v521
    %v2237 = vunpack.c.h.b16 %v521
    %v2238 = vunpack.c.l.b16 %v522
    %v2239 = vunpack.c.h.b16 %v522
    %v2240 = vunpack.c.l.b16 %v523
    %v2241 = vunpack.c.h.b16 %v523
    %v2242 = vunpack.c.l.b16 %v524
    %v2243 = vunpack.c.h.b16 %v524
    %v2244 = vunpack.c.l.b16 %v525
    %v2245 = vunpack.c.h.b16 %v525
    %v2246 = vunpack.c.l.b16 %v526
    %v2247 = vunpack.c.h.b16 %v526
    %v2248 = vunpack.c.l.b16 %v527
    %v2249 = vunpack.c.h.b16 %v527
    %v2250 = vunpack.c.l.b16 %v528
    %v2251 = vunpack.c.h.b16 %v528
    %v2252 = vunpack.c.l.b16 %v529
    %v2253 = vunpack.c.h.b16 %v529
    %v2254 = vunpack.c.l.b16 %v530
    %v2255 = vunpack.c.h.b16 %v530
    %v2256 = vunpack.c.l.b16 %v531
    %v2257 = vunpack.c.h.b16 %v531
    %v2258 = vunpack.c.l.b16 %v532
    %v2259 = vunpack.c.h.b16 %v532
    %v2260 = vunpack.c.l.b16 %v533
    %v2261 = vunpack.c.h.b16 %v533
    %v2262 = vunpack.c.l.b16 %v534
    %v2263 = vunpack.c.h.b16 %v534
    %v2264 = vunpack.c.l.b16 %v535
    %v2265 = vunpack.c.h.b16 %v535
    %v2266 = vunpack.c.l.b16 %v536
    %v2267 = vunpack.c.h.b16 %v536
    %v2268 = vunpack.c.l.b16 %v537
    %v2269 = vunpack.c.h.b16 %v537
    %v2270 = vunpack.c.l.b16 %v538
    %v2271 = vunpack.c.h.b16 %v538
    %v2272 = vunpack.c.l.b16 %v539
    %v2273 = vunpack.c.h.b16 %v539
    %v2274 = vunpack.c.l.b16 %v540
    %v2275 = vunpack.c.h.b16 %v540
    %v2276 = vunpack.c.l.b16 %v541
    %v2277 = vunpack.c.h.b16 %v541
    %v2278 = vunpack.c.l.b16 %v542
    %v2279 = vunpack.c.h.b16 %v542
    %v2280 = vunpack.c.l.b16 %v543
    %v2281 = vunpack.c.h.b16 %v543
    %v2282 = vunpack.c.l.b16 %v544
    %v2283 = vunpack.c.h.b16 %v544
    %v2284 = vunpack.c.l.b16 %v545
    %v2285 = vunpack.c.h.b16 %v545
    %v2286 = vunpack.c.l.b16 %v546
    %v2287 = vunpack.c.h.b16 %v546
    %v2288 = vunpack.c.l.b16 %v547
    %v2289 = vunpack.c.h.b16 %v547
    %v2290 = vunpack.c.l.b16 %v548
    %v2291 = vunpack.c.h.b16 %v548
    %v2292 = vunpack.c.l.b16 %v549
    %v2293 = vunpack.c.h.b16 %v549
    %v2294 = vunpack.c.l.b16 %v550
    %v2295 = vunpack.c.h.b16 %v550
    %v2296 = vunpack.c.l.b16 %v551
    %v2297 = vunpack.c.h.b16 %v551
    %v2298 = vunpack.c.l.b16 %v552
    %v2299 = vunpack.c.h.b16 %v552
    %v2300 = vunpack.c.l.b16 %v553
    %v2301 = vunpack.c.h.b16 %v553
    %v2302 = vunpack.c.l.b16 %v554
    %v2303 = vunpack.c.h.b16 %v554
    %v2304 = vunpack.c.l.b16 %v555
    %v2305 = vunpack.c.h.b16 %v555
    %v2306 = vunpack.c.l.b16 %v556
    %v2307 = vunpack.c.h.b16 %v556
    %v2308 = vunpack.c.l.b16 %v557
    %v2309 = vunpack.c.h.b16 %v557
    %v2310 = vunpack.c.l.b16 %v558
    %v2311 = vunpack.c.h.b16 %v558
    %v2312 = vunpack.c.l.b16 %v559
    %v2313 = vunpack.c.h.b16 %v559
    %v2314 = vunpack.c.l.b16 %v560
    %v2315 = vunpack.c.h.b16 %v560
    %v2316 = vunpack.c.l.b16 %v561
    %v2317 = vunpack.c.h.b16 %v561
    %v2318 = vunpack.c.l.b16 %v562
    %v2319 = vunpack.c.h.b16 %v562
    %v2320 = vunpack.c.l.b16 %v563
    %v2321 = vunpack.c.h.b16 %v563
    %v2322 = vunpack.c.l.b16 %v564
    %v2323 = vunpack.c.h.b16 %v564
    %v2324 = vunpack.c.l.b16 %v565
    %v2325 = vunpack.c.h.b16 %v565
    %v2326 = vunpack.c.l.b16 %v566
    %v2327 = vunpack.c.h.b16 %v566
    %v2328 = vunpack.c.l.b16 %v567
    %v2329 = vunpack.c.h.b16 %v567
    %v2330 = vunpack.c.l.b16 %v568
    %v2331 = vunpack.c.h.b16 %v568
    %v2332 = vunpack.c.l.b16 %v569
    %v2333 = vunpack.c.h.b16 %v569
    %v2334 = vunpack.c.l.b16 %v570
    %v2335 = vunpack.c.h.b16 %v570
    %v2336 = vunpack.c.l.b16 %v571
    %v2337 = vunpack.c.h.b16 %v571
    %v2338 = vunpack.c.l.b16 %v572
    %v2339 = vunpack.c.h.b16 %v572
    %v2340 = vunpack.c.l.b16 %v573
    %v2341 = vunpack.c.h.b16 %v573
    %v2342 = vunpack.c.l.b16 %v574
    %v2343 = vunpack.c.h.b16 %v574
    %v2344 = vunpack.c.l.b16 %v575
    %v2345 = vunpack.c.h.b16 %v575
    %v2346 = vunpack.c.l.b16 %v576
    %v2347 = vunpack.c.h.b16 %v576
    %v2348 = vunpack.c.l.b16 %v577
    %v2349 = vunpack.c.h.b16 %v577
    %v2350 = vunpack.c.l.b16 %v578
    %v2351 = vunpack.c.h.b16 %v578
    %v2352 = vunpack.c.l.b16 %v579
    %v2353 = vunpack.c.h.b16 %v579
    %v2354 = vunpack.c.l.b16 %v580
    %v2355 = vunpack.c.h.b16 %v580
    %v2356 = vunpack.c.l.b16 %v581
    %v2357 = vunpack.c.h.b16 %v581
    %v2358 = vunpack.c.l.b16 %v582
    %v2359 = vunpack.c.h.b16 %v582
    %v2360 = vunpack.c.l.b16 %v583
    %v2361 = vunpack.c.h.b16 %v583
    %v2362 = vunpack.c.l.b16 %v584
    %v2363 = vunpack.c.h.b16 %v584
    %v2364 = vunpack.c.l.b16 %v585
    %v2365 = vunpack.c.h.b16 %v585
    %v2366 = vunpack.c.l.b16 %v586
    %v2367 = vunpack.c.h.b16 %v586
    %v2368 = vunpack.c.l.b16 %v587
    %v2369 = vunpack.c.h.b16 %v587
    %v2370 = vunpack.c.l.b16 %v588
    %v2371 = vunpack.c.h.b16 %v588
    %v2372 = vunpack.c.l.b16 %v589
    %v2373 = vunpack.c.h.b16 %v589
    %v2374 = vunpack.c.l.b16 %v590
    %v2375 = vunpack.c.h.b16 %v590
    %v2376 = vunpack.c.l.b16 %v591
    %v2377 = vunpack.c.h.b16 %v591
    %v2378 = vunpack.c.l.b16 %v592
    %v2379 = vunpack.c.h.b16 %v592
    %v2380 = vunpack.c.l.b16 %v593
    %v2381 = vunpack.c.h.b16 %v593
    %v2382 = vunpack.c.l.b16 %v594
    %v2383 = vunpack.c.h.b16 %v594
    %v2384 = vunpack.c.l.b16 %v595
    %v2385 = vunpack.c.h.b16 %v595
    %v2386 = vunpack.c.l.b16 %v596
    %v2387 = vunpack.c.h.b16 %v596
    %v2388 = vunpack.c.l.b16 %v597
    %v2389 = vunpack.c.h.b16 %v597
    %v2390 = vunpack.c.l.b16 %v598
    %v2391 = vunpack.c.h.b16 %v598
    %v2392 = vunpack.c.l.b16 %v599
    %v2393 = vunpack.c.h.b16 %v599
    %v2394 = vunpack.c.l.b16 %v600
    %v2395 = vunpack.c.h.b16 %v600
    %v2396 = vunpack.c.l.b16 %v601
    %v2397 = vunpack.c.h.b16 %v601
    %v2398 = vunpack.c.l.b16 %v602
    %v2399 = vunpack.c.h.b16 %v602
    %v2400 = vunpack.c.l.b16 %v603
    %v2401 = vunpack.c.h.b16 %v603
    %v2402 = vunpack.c.l.b16 %v604
    %v2403 = vunpack.c.h.b16 %v604
    %v2404 = vunpack.c.l.b16 %v605
    %v2405 = vunpack.c.h.b16 %v605
    %v2406 = vunpack.c.l.b16 %v606
    %v2407 = vunpack.c.h.b16 %v606
    %v2408 = vunpack.c.l.b16 %v607
    %v2409 = vunpack.c.h.b16 %v607
    %v2410 = vunpack.c.l.b16 %v608
    %v2411 = vunpack.c.h.b16 %v608
    %v2412 = vunpack.c.l.b16 %v609
    %v2413 = vunpack.c.h.b16 %v609
    %v2414 = vunpack.c.l.b16 %v610
    %v2415 = vunpack.c.h.b16 %v610
    %v2416 = vunpack.c.l.b16 %v611
    %v2417 = vunpack.c.h.b16 %v611
    %v2418 = vunpack.c.l.b16 %v612
    %v2419 = vunpack.c.h.b16 %v612
    %v2420 = vunpack.c.l.b16 %v613
    %v2421 = vunpack.c.h.b16 %v613
    %v2422 = vunpack.c.l.b16 %v614
    %v2423 = vunpack.c.h.b16 %v614
    %v2424 = vunpack.c.l.b16 %v615
    %v2425 = vunpack.c.h.b16 %v615
    %v2426 = vunpack.c.l.b16 %v616
    %v2427 = vunpack.c.h.b16 %v616
    %v2428 = vunpack.c.l.b16 %v617
    %v2429 = vunpack.c.h.b16 %v617
    %v2430 = vunpack.c.l.b16 %v618
    %v2431 = vunpack.c.h.b16 %v618
    %v2432 = vunpack.c.l.b16 %v619
    %v2433 = vunpack.c.h.b16 %v619
    %v2434 = vunpack.c.l.b16 %v620
    %v2435 = vunpack.c.h.b16 %v620
    %v2436 = vunpack.c.l.b16 %v621
    %v2437 = vunpack.c.h.b16 %v621
    %v2438 = vunpack.c.l.b16 %v622
    %v2439 = vunpack.c.h.b16 %v622
    %v2440 = vunpack.c.l.b16 %v623
    %v2441 = vunpack.c.h.b16 %v623
    %v2442 = vunpack.c.l.b16 %v624
    %v2443 = vunpack.c.h.b16 %v624
    %v2444 = vunpack.c.l.b16 %v625
    %v2445 = vunpack.c.h.b16 %v625
    %v2446 = vunpack.c.l.b16 %v626
    %v2447 = vunpack.c.h.b16 %v626
    %v2448 = vunpack.c.l.b16 %v627
    %v2449 = vunpack.c.h.b16 %v627
    %v2450 = vunpack.c.l.b16 %v628
    %v2451 = vunpack.c.h.b16 %v628
    %v2452 = vunpack.c.l.b16 %v629
    %v2453 = vunpack.c.h.b16 %v629
    %v2454 = vunpack.c.l.b16 %v630
    %v2455 = vunpack.c.h.b16 %v630
    %v2456 = vunpack.c.l.b16 %v631
    %v2457 = vunpack.c.h.b16 %v631
    %v2458 = vunpack.c.l.b16 %v632
    %v2459 = vunpack.c.h.b16 %v632
    %v2460 = vunpack.c.l.b16 %v633
    %v2461 = vunpack.c.h.b16 %v633
    %v2462 = vunpack.c.l.b16 %v634
    %v2463 = vunpack.c.h.b16 %v634
    %v2464 = vunpack.c.l.b16 %v635
    %v2465 = vunpack.c.h.b16 %v635
    %v2466 = vunpack.c.l.b16 %v636
    %v2467 = vunpack.c.h.b16 %v636
    %v2468 = vunpack.c.l.b16 %v637
    %v2469 = vunpack.c.h.b16 %v637
    %v2470 = vunpack.c.l.b16 %v638
    %v2471 = vunpack.c.h.b16 %v638
    %v2472 = vunpack.c.l.b16 %v639
    %v2473 = vunpack.c.h.b16 %v639
    %v2474 = vunpack.c.l.b16 %v640
    %v2475 = vunpack.c.h.b16 %v640
    %v2476 = vunpack.c.l.b16 %v641
    %v2477 = vunpack.c.h.b16 %v641
    %v2478 = vunpack.c.l.b16 %v642
    %v2479 = vunpack.c.h.b16 %v642
    %v2480 = vunpack.c.l.b16 %v643
    %v2481 = vunpack.c.h.b16 %v643
    %v2482 = vunpack.c.l.b16 %v644
    %v2483 = vunpack.c.h.b16 %v644
    %v2484 = vunpack.c.l.b16 %v645
    %v2485 = vunpack.c.h.b16 %v645
    %v2486 = vunpack.c.l.b16 %v646
    %v2487 = vunpack.c.h.b16 %v646
    %v2488 = vunpack.c.l.b16 %v647
    %v2489 = vunpack.c.h.b16 %v647
    %v2490 = vunpack.c.l.b16 %v648
    %v2491 = vunpack.c.h.b16 %v648
    %v2492 = vunpack.c.l.b16 %v649
    %v2493 = vunpack.c.h.b16 %v649
    %v2494 = vunpack.c.l.b16 %v650
    %v2495 = vunpack.c.h.b16 %v650
    %v2496 = vunpack.c.l.b16 %v651
    %v2497 = vunpack.c.h.b16 %v651
    %v2498 = vpack.c.b16 %v2054, %v2050
    %v2499 = vpack.c.b16 %v2055, %v2051
    %v2500 = vpack.c.b16 %v2056, %v2052
    %v2501 = vpack.c.b16 %v2057, %v2053
    %v2502 = vpack.c.b16 %v2062, %v2058
    %v2503 = vpack.c.b16 %v2063, %v2059
    %v2504 = vpack.c.b16 %v2064, %v2060
    %v2505 = vpack.c.b16 %v2065, %v2061
    %v2506 = vpack.c.b16 %v2070, %v2066
    %v2507 = vpack.c.b16 %v2071, %v2067
    %v2508 = vpack.c.b16 %v2072, %v2068
    %v2509 = vpack.c.b16 %v2073, %v2069
    %v2510 = vpack.c.b16 %v2078, %v2074
    %v2511 = vpack.c.b16 %v2079, %v2075
    %v2512 = vpack.c.b16 %v2080, %v2076
    %v2513 = vpack.c.b16 %v2081, %v2077
    %v2514 = vpack.c.b16 %v2086, %v2082
    %v2515 = vpack.c.b16 %v2087, %v2083
    %v2516 = vpack.c.b16 %v2088, %v2084
    %v2517 = vpack.c.b16 %v2089, %v2085
    %v2518 = vpack.c.b16 %v2094, %v2090
    %v2519 = vpack.c.b16 %v2095, %v2091
    %v2520 = vpack.c.b16 %v2096, %v2092
    %v2521 = vpack.c.b16 %v2097, %v2093
    %v2522 = vpack.c.b16 %v2102, %v2098
    %v2523 = vpack.c.b16 %v2103, %v2099
    %v2524 = vpack.c.b16 %v2104, %v2100
    %v2525 = vpack.c.b16 %v2105, %v2101
    %v2526 = vpack.c.b16 %v2110, %v2106
    %v2527 = vpack.c.b16 %v2111, %v2107
    %v2528 = vpack.c.b16 %v2112, %v2108
    %v2529 = vpack.c.b16 %v2113, %v2109
    %v2530 = vpack.c.b16 %v2118, %v2114
    %v2531 = vpack.c.b16 %v2119, %v2115
    %v2532 = vpack.c.b16 %v2120, %v2116
    %v2533 = vpack.c.b16 %v2121, %v2117
    %v2534 = vpack.c.b16 %v2126, %v2122
    %v2535 = vpack.c.b16 %v2127, %v2123
    %v2536 = vpack.c.b16 %v2128, %v2124
    %v2537 = vpack.c.b16 %v2129, %v2125
    %v2538 = vpack.c.b16 %v2134, %v2130
    %v2539 = vpack.c.b16 %v2135, %v2131
    %v2540 = vpack.c.b16 %v2136, %v2132
    %v2541 = vpack.c.b16 %v2137, %v2133
    %v2542 = vpack.c.b16 %v2142, %v2138
    %v2543 = vpack.c.b16 %v2143, %v2139
    %v2544 = vpack.c.b16 %v2144, %v2140
    %v2545 = vpack.c.b16 %v2145, %v2141
    %v2546 = vpack.c.b16 %v2150, %v2146
    %v2547 = vpack.c.b16 %v2151, %v2147
    %v2548 = vpack.c.b16 %v2152, %v2148
    %v2549 = vpack.c.b16 %v2153, %v2149
    %v2550 = vpack.c.b16 %v2158, %v2154
    %v2551 = vpack.c.b16 %v2159, %v2155
    %v2552 = vpack.c.b16 %v2160, %v2156
    %v2553 = vpack.c.b16 %v2161, %v2157
    %v2554 = vpack.c.b16 %v2166, %v2162
    %v2555 = vpack.c.b16 %v2167, %v2163
    %v2556 = vpack.c.b16 %v2168, %v2164
    %v2557 = vpack.c.b16 %v2169, %v2165
    %v2558 = vpack.c.b16 %v2174, %v2170
    %v2559 = vpack.c.b16 %v2175, %v2171
    %v2560 = vpack.c.b16 %v2176, %v2172
    %v2561 = vpack.c.b16 %v2177, %v2173
    %v2562 = vpack.c.b16 %v2182, %v2178
    %v2563 = vpack.c.b16 %v2183, %v2179
    %v2564 = vpack.c.b16 %v2184, %v2180
    %v2565 = vpack.c.b16 %v2185, %v2181
    %v2566 = vpack.c.b16 %v2190, %v2186
    %v2567 = vpack.c.b16 %v2191, %v2187
    %v2568 = vpack.c.b16 %v2192, %v2188
    %v2569 = vpack.c.b16 %v2193, %v2189
    %v2570 = vpack.c.b16 %v2198, %v2194
    %v2571 = vpack.c.b16 %v2199, %v2195
    %v2572 = vpack.c.b16 %v2200, %v2196
    %v2573 = vpack.c.b16 %v2201, %v2197
    %v2574 = vpack.c.b16 %v2206, %v2202
    %v2575 = vpack.c.b16 %v2207, %v2203
    %v2576 = vpack.c.b16 %v2208, %v2204
    %v2577 = vpack.c.b16 %v2209, %v2205
    %v2578 = vpack.c.b16 %v2214, %v2210
    %v2579 = vpack.c.b16 %v2215, %v2211
    %v2580 = vpack.c.b16 %v2216, %v2212
    %v2581 = vpack.c.b16 %v2217, %v2213
    %v2582 = vpack.c.b16 %v2222, %v2218
    %v2583 = vpack.c.b16 %v2223, %v2219
    %v2584 = vpack.c.b16 %v2224, %v2220
    %v2585 = vpack.c.b16 %v2225, %v2221
    %v2586 = vpack.c.b16 %v2230, %v2226
    %v2587 = vpack.c.b16 %v2231, %v2227
    %v2588 = vpack.c.b16 %v2232, %v2228
    %v2589 = vpack.c.b16 %v2233, %v2229
    %v2590 = vpack.c.b16 %v2238, %v2234
    %v2591 = vpack.c.b16 %v2239, %v2235
    %v2592 = vpack.c.b16 %v2240, %v2236
    %v2593 = vpack.c.b16 %v2241, %v2237
    %v2594 = vpack.c.b16 %v2246, %v2242
    %v2595 = vpack.c.b16 %v2247, %v2243
    %v2596 = vpack.c.b16 %v2248, %v2244
    %v2597 = vpack.c.b16 %v2249, %v2245
    %v2598 = vpack.c.b16 %v2254, %v2250
    %v2599 = vpack.c.b16 %v2255, %v2251
    %v2600 = vpack.c.b16 %v2256, %v2252
    %v2601 = vpack.c.b16 %v2257, %v2253
    %v2602 = vpack.c.b16 %v2262, %v2258
    %v2603 = vpack.c.b16 %v2263, %v2259
    %v2604 = vpack.c.b16 %v2264, %v2260
    %v2605 = vpack.c.b16 %v2265, %v2261
    %v2606 = vpack.c.b16 %v2270, %v2266
    %v2607 = vpack.c.b16 %v2271, %v2267
    %v2608 = vpack.c.b16 %v2272, %v2268
    %v2609 = vpack.c.b16 %v2273, %v2269
    %v2610 = vpack.c.b16 %v2278, %v2274
    %v2611 = vpack.c.b16 %v2279, %v2275
    %v2612 = vpack.c.b16 %v2280, %v2276
    %v2613 = vpack.c.b16 %v2281, %v2277
    %v2614 = vpack.c.b16 %v2286, %v2282
    %v2615 = vpack.c.b16 %v2287, %v2283
    %v2616 = vpack.c.b16 %v2288, %v2284
    %v2617 = vpack.c.b16 %v2289, %v2285
    %v2618 = vpack.c.b16 %v2294, %v2290
    %v2619 = vpack.c.b16 %v2295, %v2291
    %v2620 = vpack.c.b16 %v2296, %v2292
    %v2621 = vpack.c.b16 %v2297, %v2293
    %v2622 = vpack.c.b16 %v2302, %v2298
    %v2623 = vpack.c.b16 %v2303, %v2299
    %v2624 = vpack.c.b16 %v2304, %v2300
    %v2625 = vpack.c.b16 %v2305, %v2301
    %v2626 = vpack.c.b16 %v2310, %v2306
    %v2627 = vpack.c.b16 %v2311, %v2307
    %v2628 = vpack.c.b16 %v2312, %v2308
    %v2629 = vpack.c.b16 %v2313, %v2309
    %v2630 = vpack.c.b16 %v2318, %v2314
    %v2631 = vpack.c.b16 %v2319, %v2315
    %v2632 = vpack.c.b16 %v2320, %v2316
    %v2633 = vpack.c.b16 %v2321, %v2317
    %v2634 = vpack.c.b16 %v2326, %v2322
    %v2635 = vpack.c.b16 %v2327, %v2323
    %v2636 = vpack.c.b16 %v2328, %v2324
    %v2637 = vpack.c.b16 %v2329, %v2325
    %v2638 = vpack.c.b16 %v2334, %v2330
    %v2639 = vpack.c.b16 %v2335, %v2331
    %v2640 = vpack.c.b16 %v2336, %v2332
    %v2641 = vpack.c.b16 %v2337, %v2333
    %v2642 = vpack.c.b16 %v2342, %v2338
    %v2643 = vpack.c.b16 %v2343, %v2339
    %v2644 = vpack.c.b16 %v2344, %v2340
    %v2645 = vpack.c.b16 %v2345, %v2341
    %v2646 = vpack.c.b16 %v2350, %v2346
    %v2647 = vpack.c.b16 %v2351, %v2347
    %v2648 = vpack.c.b16 %v2352, %v2348
    %v2649 = vpack.c.b16 %v2353, %v2349
    %v2650 = vpack.c.b16 %v2358, %v2354
    %v2651 = vpack.c.b16 %v2359, %v2355
    %v2652 = vpack.c.b16 %v2360, %v2356
    %v2653 = vpack.c.b16 %v2361, %v2357
    %v2654 = vpack.c.b16 %v2366, %v2362
    %v2655 = vpack.c.b16 %v2367, %v2363
    %v2656 = vpack.c.b16 %v2368, %v2364
    %v2657 = vpack.c.b16 %v2369, %v2365
    %v2658 = vpack.c.b16 %v2374, %v2370
    %v2659 = vpack.c.b16 %v2375, %v2371
    %v2660 = vpack.c.b16 %v2376, %v2372
    %v2661 = vpack.c.b16 %v2377, %v2373
    %v2662 = vpack.c.b16 %v2382, %v2378
    %v2663 = vpack.c.b16 %v2383, %v2379
    %v2664 = vpack.c.b16 %v2384, %v2380
    %v2665 = vpack.c.b16 %v2385, %v2381
    %v2666 = vpack.c.b16 %v2390, %v2386
    %v2667 = vpack.c.b16 %v2391, %v2387
    %v2668 = vpack.c.b16 %v2392, %v2388
    %v2669 = vpack.c.b16 %v2393, %v2389
    %v2670 = vpack.c.b16 %v2398, %v2394
    %v2671 = vpack.c.b16 %v2399, %v2395
    %v2672 = vpack.c.b16 %v2400, %v2396
    %v2673 = vpack.c.b16 %v2401, %v2397
    %v2674 = vpack.c.b16 %v2406, %v2402
    %v2675 = vpack.c.b16 %v2407, %v2403
    %v2676 = vpack.c.b16 %v2408, %v2404
    %v2677 = vpack.c.b16 %v2409, %v2405
    %v2678 = vpack.c.b16 %v2414, %v2410
    %v2679 = vpack.c.b16 %v2415, %v2411
    %v2680 = vpack.c.b16 %v2416, %v2412
    %v2681 = vpack.c.b16 %v2417, %v2413
    %v2682 = vpack.c.b16 %v2422, %v2418
    %v2683 = vpack.c.b16 %v2423, %v2419
    %v2684 = vpack.c.b16 %v2424, %v2420
    %v2685 = vpack.c.b16 %v2425, %v2421
    %v2686 = vpack.c.b16 %v2430, %v2426
    %v2687 = vpack.c.b16 %v2431, %v2427
    %v2688 = vpack.c.b16 %v2432, %v2428
    %v2689 = vpack.c.b16 %v2433, %v2429
    %v2690 = vpack.c.b16 %v2438, %v2434
    %v2691 = vpack.c.b16 %v2439, %v2435
    %v2692 = vpack.c.b16 %v2440, %v2436
    %v2693 = vpack.c.b16 %v2441, %v2437
    %v2694 = vpack.c.b16 %v2446, %v2442
    %v2695 = vpack.c.b16 %v2447, %v2443
    %v2696 = vpack.c.b16 %v2448, %v2444
    %v2697 = vpack.c.b16 %v2449, %v2445
    %v2698 = vpack.c.b16 %v2454, %v2450
    %v2699 = vpack.c.b16 %v2455, %v2451
    %v2700 = vpack.c.b16 %v2456, %v2452
    %v2701 = vpack.c.b16 %v2457, %v2453
    %v2702 = vpack.c.b16 %v2462, %v2458
    %v2703 = vpack.c.b16 %v2463, %v2459
    %v2704 = vpack.c.b16 %v2464, %v2460
    %v2705 = vpack.c.b16 %v2465, %v2461
    %v2706 = vpack.c.b16 %v2470, %v2466
    %v2707 = vpack.c.b16 %v2471, %v2467
    %v2708 = vpack.c.b16 %v2472, %v2468
    %v2709 = vpack.c.b16 %v2473, %v2469
    %v2710 = vpack.c.b16 %v2478, %v2474
    %v2711 = vpack.c.b16 %v2479, %v2475
    %v2712 = vpack.c.b16 %v2480, %v2476
    %v2713 = vpack.c.b16 %v2481, %v2477
    %v2714 = vpack.c.b16 %v2486, %v2482
    %v2715 = vpack.c.b16 %v2487, %v2483
    %v2716 = vpack.c.b16 %v2488, %v2484
    %v2717 = vpack.c.b16 %v2489, %v2485
    %v2718 = vpack.c.b16 %v2494, %v2490
    %v2719 = vpack.c.b16 %v2495, %v2491
    %v2720 = vpack.c.b16 %v2496, %v2492
    %v2721 = vpack.c.b16 %v2497, %v2493
    %2946 = vmatprep.subr.bf16.mxu0 %v2527
    %2947 = vmatpush1.bf16.msra.mxu0 %v2526
    %2948 = vmatprep.subr.bf16.mxu0 %v2523
    %2949 = vmatpush1.bf16.msra.mxu0 %v2522
    %2950 = vmatprep.subr.bf16.mxu0 %v2519
    %2951 = vmatpush1.bf16.msra.mxu0 %v2518
    %2952 = vmatprep.subr.bf16.mxu0 %v2515
    %2953 = vmatpush1.bf16.msra.mxu0 %v2514
    %2954 = vmatprep.subr.bf16.mxu0 %v2511
    %2955 = vmatpush1.bf16.msra.mxu0 %v2510
    %2956 = vmatprep.subr.bf16.mxu0 %v2507
    %2957 = vmatpush1.bf16.msra.mxu0 %v2506
    %2958 = vmatprep.subr.bf16.mxu0 %v2503
    %2959 = vmatpush1.bf16.msra.mxu0 %v2502
    %2960 = vmatprep.subr.bf16.mxu0 %v2499
    %2961 = vmatpush1.bf16.msra.mxu0 %v2498
    %2962 = vmatprep.subr.bf16.mxu0 %v2559
    %2963 = vmatpush2.bf16.msra.mxu0 %v2558
    %2964 = vmatprep.subr.bf16.mxu0 %v2555
    %2965 = vmatpush2.bf16.msra.mxu0 %v2554
    %2966 = vmatprep.subr.bf16.mxu0 %v2551
    %2967 = vmatpush2.bf16.msra.mxu0 %v2550
    %2968 = vmatprep.subr.bf16.mxu0 %v2547
    %2969 = vmatpush2.bf16.msra.mxu0 %v2546
    %2970 = vmatprep.subr.bf16.mxu0 %v2543
    %2971 = vmatpush2.bf16.msra.mxu0 %v2542
    %2972 = vmatprep.subr.bf16.mxu0 %v2539
    %2973 = vmatpush2.bf16.msra.mxu0 %v2538
    %2974 = vmatprep.subr.bf16.mxu0 %v2535
    %2975 = vmatpush2.bf16.msra.mxu0 %v2534
    %2976 = vmatprep.subr.bf16.mxu0 %v2531
    %2977 = vmatpush2.bf16.msra.mxu0 %v2530
    %2978 = vmatprep.mubr.bf16.mxu0 %v1379
    %2979 = vmatmul.mubr.bf16.gmra.mxu0 %v1378
    %v2980 = vpop.f32.mrf.mxu0
    %v2981 = vadd.f32 %v657, %v2980
    %v2982 = vpop.f32.mrf.mxu0
    %v2983 = vadd.f32 %v661, %v2982
    %v2984 = vpop.f32.mrf.mxu0
    %v2985 = vadd.f32 %v657, %v2984
    %v2986 = vpop.f32.mrf.mxu0
    %v2987 = vadd.f32 %v661, %v2986
    %2988 = vmatprep.mubr.bf16.mxu0 %v1386
    %2989 = vmatmul.mubr.bf16.gmra.mxu0 %v1385
    %v2990 = vpop.f32.mrf.mxu0
    %v2991 = vadd.f32 %v657, %v2990
    %v2992 = vpop.f32.mrf.mxu0
    %v2993 = vadd.f32 %v661, %v2992
    %v2994 = vpop.f32.mrf.mxu0
    %v2995 = vadd.f32 %v657, %v2994
    %v2996 = vpop.f32.mrf.mxu0
    %v2997 = vadd.f32 %v661, %v2996
    %2998 = vmatprep.mubr.bf16.mxu0 %v1393
    %2999 = vmatmul.mubr.bf16.gmra.mxu0 %v1392
    %v3000 = vpop.f32.mrf.mxu0
    %v3001 = vadd.f32 %v657, %v3000
    %v3002 = vpop.f32.mrf.mxu0
    %v3003 = vadd.f32 %v661, %v3002
    %v3004 = vpop.f32.mrf.mxu0
    %v3005 = vadd.f32 %v657, %v3004
    %v3006 = vpop.f32.mrf.mxu0
    %v3007 = vadd.f32 %v661, %v3006
    %3008 = vmatprep.mubr.bf16.mxu0 %v1400
    %3009 = vmatmul.mubr.bf16.gmra.mxu0 %v1399
    %v3010 = vpop.f32.mrf.mxu0
    %v3011 = vadd.f32 %v657, %v3010
    %v3012 = vpop.f32.mrf.mxu0
    %v3013 = vadd.f32 %v661, %v3012
    %v3014 = vpop.f32.mrf.mxu0
    %v3015 = vadd.f32 %v657, %v3014
    %v3016 = vpop.f32.mrf.mxu0
    %v3017 = vadd.f32 %v661, %v3016
    %3018 = vmatprep.mubr.bf16.mxu0 %v1407
    %3019 = vmatmul.mubr.bf16.gmra.mxu0 %v1406
    %v3020 = vpop.f32.mrf.mxu0
    %v3021 = vadd.f32 %v657, %v3020
    %v3022 = vpop.f32.mrf.mxu0
    %v3023 = vadd.f32 %v661, %v3022
    %v3024 = vpop.f32.mrf.mxu0
    %v3025 = vadd.f32 %v657, %v3024
    %v3026 = vpop.f32.mrf.mxu0
    %v3027 = vadd.f32 %v661, %v3026
    %3028 = vmatprep.mubr.bf16.mxu0 %v1414
    %3029 = vmatmul.mubr.bf16.gmra.mxu0 %v1413
    %v3030 = vpop.f32.mrf.mxu0
    %v3031 = vadd.f32 %v657, %v3030
    %v3032 = vpop.f32.mrf.mxu0
    %v3033 = vadd.f32 %v661, %v3032
    %v3034 = vpop.f32.mrf.mxu0
    %v3035 = vadd.f32 %v657, %v3034
    %v3036 = vpop.f32.mrf.mxu0
    %v3037 = vadd.f32 %v661, %v3036
    %3038 = vmatprep.mubr.bf16.mxu0 %v1421
    %3039 = vmatmul.mubr.bf16.gmra.mxu0 %v1420
    %v3040 = vpop.f32.mrf.mxu0
    %v3041 = vadd.f32 %v657, %v3040
    %v3042 = vpop.f32.mrf.mxu0
    %v3043 = vadd.f32 %v661, %v3042
    %v3044 = vpop.f32.mrf.mxu0
    %v3045 = vadd.f32 %v657, %v3044
    %v3046 = vpop.f32.mrf.mxu0
    %v3047 = vadd.f32 %v661, %v3046
    %3048 = vmatprep.mubr.bf16.mxu0 %v1428
    %3049 = vmatmul.mubr.bf16.gmra.mxu0 %v1427
    %v3050 = vpop.f32.mrf.mxu0
    %v3051 = vadd.f32 %v657, %v3050
    %v3052 = vpop.f32.mrf.mxu0
    %v3053 = vadd.f32 %v661, %v3052
    %v3054 = vpop.f32.mrf.mxu0
    %v3055 = vadd.f32 %v657, %v3054
    %v3056 = vpop.f32.mrf.mxu0
    %v3057 = vadd.f32 %v661, %v3056
    %3058 = vmatprep.mubr.bf16.mxu0 %v1435
    %3059 = vmatmul.mubr.bf16.gmra.mxu0 %v1434
    %v3060 = vpop.f32.mrf.mxu0
    %v3061 = vadd.f32 %v657, %v3060
    %v3062 = vpop.f32.mrf.mxu0
    %v3063 = vadd.f32 %v661, %v3062
    %v3064 = vpop.f32.mrf.mxu0
    %v3065 = vadd.f32 %v657, %v3064
    %v3066 = vpop.f32.mrf.mxu0
    %v3067 = vadd.f32 %v661, %v3066
    %3068 = vmatprep.mubr.bf16.mxu0 %v1442
    %3069 = vmatmul.mubr.bf16.gmra.mxu0 %v1441
    %v3070 = vpop.f32.mrf.mxu0
    %v3071 = vadd.f32 %v657, %v3070
    %v3072 = vpop.f32.mrf.mxu0
    %v3073 = vadd.f32 %v661, %v3072
    %v3074 = vpop.f32.mrf.mxu0
    %v3075 = vadd.f32 %v657, %v3074
    %v3076 = vpop.f32.mrf.mxu0
    %v3077 = vadd.f32 %v661, %v3076
    %3078 = vmatprep.mubr.bf16.mxu0 %v1449
    %3079 = vmatmul.mubr.bf16.gmra.mxu0 %v1448
    %v3080 = vpop.f32.mrf.mxu0
    %v3081 = vadd.f32 %v657, %v3080
    %v3082 = vpop.f32.mrf.mxu0
    %v3083 = vadd.f32 %v661, %v3082
    %v3084 = vpop.f32.mrf.mxu0
    %v3085 = vadd.f32 %v657, %v3084
    %v3086 = vpop.f32.mrf.mxu0
    %v3087 = vadd.f32 %v661, %v3086
    %3088 = vmatprep.mubr.bf16.mxu0 %v1456
    %3089 = vmatmul.mubr.bf16.gmra.mxu0 %v1455
    %v3090 = vpop.f32.mrf.mxu0
    %v3091 = vadd.f32 %v657, %v3090
    %v3092 = vpop.f32.mrf.mxu0
    %v3093 = vadd.f32 %v661, %v3092
    %v3094 = vpop.f32.mrf.mxu0
    %v3095 = vadd.f32 %v657, %v3094
    %v3096 = vpop.f32.mrf.mxu0
    %v3097 = vadd.f32 %v661, %v3096
    %3098 = vmatprep.mubr.bf16.mxu0 %v1463
    %3099 = vmatmul.mubr.bf16.gmra.mxu0 %v1462
    %v3100 = vpop.f32.mrf.mxu0
    %v3101 = vadd.f32 %v657, %v3100
    %v3102 = vpop.f32.mrf.mxu0
    %v3103 = vadd.f32 %v661, %v3102
    %v3104 = vpop.f32.mrf.mxu0
    %v3105 = vadd.f32 %v657, %v3104
    %v3106 = vpop.f32.mrf.mxu0
    %v3107 = vadd.f32 %v661, %v3106
    %3108 = vmatprep.mubr.bf16.mxu0 %v1470
    %3109 = vmatmul.mubr.bf16.gmra.mxu0 %v1469
    %v3110 = vpop.f32.mrf.mxu0
    %v3111 = vadd.f32 %v657, %v3110
    %v3112 = vpop.f32.mrf.mxu0
    %v3113 = vadd.f32 %v661, %v3112
    %v3114 = vpop.f32.mrf.mxu0
    %v3115 = vadd.f32 %v657, %v3114
    %v3116 = vpop.f32.mrf.mxu0
    %v3117 = vadd.f32 %v661, %v3116
    %3118 = vmatprep.mubr.bf16.mxu0 %v1477
    %3119 = vmatmul.mubr.bf16.gmra.mxu0 %v1476
    %v3120 = vpop.f32.mrf.mxu0
    %v3121 = vadd.f32 %v657, %v3120
    %v3122 = vpop.f32.mrf.mxu0
    %v3123 = vadd.f32 %v661, %v3122
    %v3124 = vpop.f32.mrf.mxu0
    %v3125 = vadd.f32 %v657, %v3124
    %v3126 = vpop.f32.mrf.mxu0
    %v3127 = vadd.f32 %v661, %v3126
    %3128 = vmatprep.mubr.bf16.mxu0 %v1484
    %3129 = vmatmul.mubr.bf16.gmra.mxu0 %v1483
    %v3130 = vpop.f32.mrf.mxu0
    %v3131 = vadd.f32 %v657, %v3130
    %v3132 = vpop.f32.mrf.mxu0
    %v3133 = vadd.f32 %v661, %v3132
    %v3134 = vpop.f32.mrf.mxu0
    %v3135 = vadd.f32 %v657, %v3134
    %v3136 = vpop.f32.mrf.mxu0
    %v3137 = vadd.f32 %v661, %v3136
    %3138 = vmatprep.mubr.bf16.mxu0 %v1491
    %3139 = vmatmul.mubr.bf16.gmra.mxu0 %v1490
    %v3140 = vpop.f32.mrf.mxu0
    %v3141 = vadd.f32 %v657, %v3140
    %v3142 = vpop.f32.mrf.mxu0
    %v3143 = vadd.f32 %v661, %v3142
    %v3144 = vpop.f32.mrf.mxu0
    %v3145 = vadd.f32 %v657, %v3144
    %v3146 = vpop.f32.mrf.mxu0
    %v3147 = vadd.f32 %v661, %v3146
    %3148 = vmatprep.mubr.bf16.mxu0 %v1498
    %3149 = vmatmul.mubr.bf16.gmra.mxu0 %v1497
    %v3150 = vpop.f32.mrf.mxu0
    %v3151 = vadd.f32 %v657, %v3150
    %v3152 = vpop.f32.mrf.mxu0
    %v3153 = vadd.f32 %v661, %v3152
    %v3154 = vpop.f32.mrf.mxu0
    %v3155 = vadd.f32 %v657, %v3154
    %v3156 = vpop.f32.mrf.mxu0
    %v3157 = vadd.f32 %v661, %v3156
    %3158 = vmatprep.mubr.bf16.mxu0 %v1505
    %3159 = vmatmul.mubr.bf16.gmra.mxu0 %v1504
    %v3160 = vpop.f32.mrf.mxu0
    %v3161 = vadd.f32 %v657, %v3160
    %v3162 = vpop.f32.mrf.mxu0
    %v3163 = vadd.f32 %v661, %v3162
    %v3164 = vpop.f32.mrf.mxu0
    %v3165 = vadd.f32 %v657, %v3164
    %v3166 = vpop.f32.mrf.mxu0
    %v3167 = vadd.f32 %v661, %v3166
    %3168 = vmatprep.mubr.bf16.mxu0 %v1512
    %3169 = vmatmul.mubr.bf16.gmra.mxu0 %v1511
    %v3170 = vpop.f32.mrf.mxu0
    %v3171 = vadd.f32 %v657, %v3170
    %v3172 = vpop.f32.mrf.mxu0
    %v3173 = vadd.f32 %v661, %v3172
    %v3174 = vpop.f32.mrf.mxu0
    %v3175 = vadd.f32 %v657, %v3174
    %v3176 = vpop.f32.mrf.mxu0
    %v3177 = vadd.f32 %v661, %v3176
    %3178 = vmatprep.mubr.bf16.mxu0 %v1519
    %3179 = vmatmul.mubr.bf16.gmra.mxu0 %v1518
    %v3180 = vpop.f32.mrf.mxu0
    %v3181 = vadd.f32 %v657, %v3180
    %v3182 = vpop.f32.mrf.mxu0
    %v3183 = vadd.f32 %v661, %v3182
    %v3184 = vpop.f32.mrf.mxu0
    %v3185 = vadd.f32 %v657, %v3184
    %v3186 = vpop.f32.mrf.mxu0
    %v3187 = vadd.f32 %v661, %v3186
    %3188 = vmatprep.mubr.bf16.mxu0 %v1526
    %3189 = vmatmul.mubr.bf16.gmra.mxu0 %v1525
    %v3190 = vpop.f32.mrf.mxu0
    %v3191 = vadd.f32 %v657, %v3190
    %v3192 = vpop.f32.mrf.mxu0
    %v3193 = vadd.f32 %v661, %v3192
    %v3194 = vpop.f32.mrf.mxu0
    %v3195 = vadd.f32 %v657, %v3194
    %v3196 = vpop.f32.mrf.mxu0
    %v3197 = vadd.f32 %v661, %v3196
    %3198 = vmatprep.mubr.bf16.mxu0 %v1533
    %3199 = vmatmul.mubr.bf16.gmra.mxu0 %v1532
    %v3200 = vpop.f32.mrf.mxu0
    %v3201 = vadd.f32 %v657, %v3200
    %v3202 = vpop.f32.mrf.mxu0
    %v3203 = vadd.f32 %v661, %v3202
    %v3204 = vpop.f32.mrf.mxu0
    %v3205 = vadd.f32 %v657, %v3204
    %v3206 = vpop.f32.mrf.mxu0
    %v3207 = vadd.f32 %v661, %v3206
    %3208 = vmatprep.mubr.bf16.mxu0 %v1540
    %3209 = vmatmul.mubr.bf16.gmra.mxu0 %v1539
    %v3210 = vpop.f32.mrf.mxu0
    %v3211 = vadd.f32 %v657, %v3210
    %v3212 = vpop.f32.mrf.mxu0
    %v3213 = vadd.f32 %v661, %v3212
    %v3214 = vpop.f32.mrf.mxu0
    %v3215 = vadd.f32 %v657, %v3214
    %v3216 = vpop.f32.mrf.mxu0
    %v3217 = vadd.f32 %v661, %v3216
    %3218 = vmatprep.mubr.bf16.mxu0 %v1547
    %3219 = vmatmul.mubr.bf16.gmra.mxu0 %v1546
    %v3220 = vpop.f32.mrf.mxu0
    %v3221 = vadd.f32 %v657, %v3220
    %v3222 = vpop.f32.mrf.mxu0
    %v3223 = vadd.f32 %v661, %v3222
    %v3224 = vpop.f32.mrf.mxu0
    %v3225 = vadd.f32 %v657, %v3224
    %v3226 = vpop.f32.mrf.mxu0
    %v3227 = vadd.f32 %v661, %v3226
    %3228 = vmatprep.mubr.bf16.mxu0 %v1554
    %3229 = vmatmul.mubr.bf16.gmra.mxu0 %v1553
    %v3230 = vpop.f32.mrf.mxu0
    %v3231 = vadd.f32 %v657, %v3230
    %v3232 = vpop.f32.mrf.mxu0
    %v3233 = vadd.f32 %v661, %v3232
    %v3234 = vpop.f32.mrf.mxu0
    %v3235 = vadd.f32 %v657, %v3234
    %v3236 = vpop.f32.mrf.mxu0
    %v3237 = vadd.f32 %v661, %v3236
    %3238 = vmatprep.mubr.bf16.mxu0 %v1561
    %3239 = vmatmul.mubr.bf16.gmra.mxu0 %v1560
    %v3240 = vpop.f32.mrf.mxu0
    %v3241 = vadd.f32 %v657, %v3240
    %v3242 = vpop.f32.mrf.mxu0
    %v3243 = vadd.f32 %v661, %v3242
    %v3244 = vpop.f32.mrf.mxu0
    %v3245 = vadd.f32 %v657, %v3244
    %v3246 = vpop.f32.mrf.mxu0
    %v3247 = vadd.f32 %v661, %v3246
    %3248 = vmatprep.mubr.bf16.mxu0 %v1568
    %3249 = vmatmul.mubr.bf16.gmra.mxu0 %v1567
    %v3250 = vpop.f32.mrf.mxu0
    %v3251 = vadd.f32 %v657, %v3250
    %v3252 = vpop.f32.mrf.mxu0
    %v3253 = vadd.f32 %v661, %v3252
    %v3254 = vpop.f32.mrf.mxu0
    %v3255 = vadd.f32 %v657, %v3254
    %v3256 = vpop.f32.mrf.mxu0
    %v3257 = vadd.f32 %v661, %v3256
    %3258 = vmatprep.mubr.bf16.mxu0 %v1575
    %3259 = vmatmul.mubr.bf16.gmra.mxu0 %v1574
    %v3260 = vpop.f32.mrf.mxu0
    %v3261 = vadd.f32 %v657, %v3260
    %v3262 = vpop.f32.mrf.mxu0
    %v3263 = vadd.f32 %v661, %v3262
    %v3264 = vpop.f32.mrf.mxu0
    %v3265 = vadd.f32 %v657, %v3264
    %v3266 = vpop.f32.mrf.mxu0
    %v3267 = vadd.f32 %v661, %v3266
    %3268 = vmatprep.mubr.bf16.mxu0 %v1582
    %3269 = vmatmul.mubr.bf16.gmra.mxu0 %v1581
    %v3270 = vpop.f32.mrf.mxu0
    %v3271 = vadd.f32 %v657, %v3270
    %v3272 = vpop.f32.mrf.mxu0
    %v3273 = vadd.f32 %v661, %v3272
    %v3274 = vpop.f32.mrf.mxu0
    %v3275 = vadd.f32 %v657, %v3274
    %v3276 = vpop.f32.mrf.mxu0
    %v3277 = vadd.f32 %v661, %v3276
    %3278 = vmatprep.mubr.bf16.mxu0 %v1589
    %3279 = vmatmul.mubr.bf16.gmra.mxu0 %v1588
    %v3280 = vpop.f32.mrf.mxu0
    %v3281 = vadd.f32 %v657, %v3280
    %v3282 = vpop.f32.mrf.mxu0
    %v3283 = vadd.f32 %v661, %v3282
    %v3284 = vpop.f32.mrf.mxu0
    %v3285 = vadd.f32 %v657, %v3284
    %v3286 = vpop.f32.mrf.mxu0
    %v3287 = vadd.f32 %v661, %v3286
    %3288 = vmatprep.mubr.bf16.mxu0 %v1596
    %3289 = vmatmul.mubr.bf16.gmra.mxu0 %v1595
    %v3290 = vpop.f32.mrf.mxu0
    %v3291 = vadd.f32 %v657, %v3290
    %v3292 = vpop.f32.mrf.mxu0
    %v3293 = vadd.f32 %v661, %v3292
    %v3294 = vpop.f32.mrf.mxu0
    %v3295 = vadd.f32 %v657, %v3294
    %v3296 = vpop.f32.mrf.mxu0
    %v3297 = vadd.f32 %v661, %v3296
    %3298 = vdwg.mxu0
    %3299 = vmatprep.subr.bf16.mxu0 %v2591
    %3300 = vmatpush1.bf16.msra.mxu0 %v2590
    %3301 = vmatprep.subr.bf16.mxu0 %v2587
    %3302 = vmatpush1.bf16.msra.mxu0 %v2586
    %3303 = vmatprep.subr.bf16.mxu0 %v2583
    %3304 = vmatpush1.bf16.msra.mxu0 %v2582
    %3305 = vmatprep.subr.bf16.mxu0 %v2579
    %3306 = vmatpush1.bf16.msra.mxu0 %v2578
    %3307 = vmatprep.subr.bf16.mxu0 %v2575
    %3308 = vmatpush1.bf16.msra.mxu0 %v2574
    %3309 = vmatprep.subr.bf16.mxu0 %v2571
    %3310 = vmatpush1.bf16.msra.mxu0 %v2570
    %3311 = vmatprep.subr.bf16.mxu0 %v2567
    %3312 = vmatpush1.bf16.msra.mxu0 %v2566
    %3313 = vmatprep.subr.bf16.mxu0 %v2563
    %3314 = vmatpush1.bf16.msra.mxu0 %v2562
    %3315 = vmatprep.subr.bf16.mxu0 %v2623
    %3316 = vmatpush2.bf16.msra.mxu0 %v2622
    %3317 = vmatprep.subr.bf16.mxu0 %v2619
    %3318 = vmatpush2.bf16.msra.mxu0 %v2618
    %3319 = vmatprep.subr.bf16.mxu0 %v2615
    %3320 = vmatpush2.bf16.msra.mxu0 %v2614
    %3321 = vmatprep.subr.bf16.mxu0 %v2611
    %3322 = vmatpush2.bf16.msra.mxu0 %v2610
    %3323 = vmatprep.subr.bf16.mxu0 %v2607
    %3324 = vmatpush2.bf16.msra.mxu0 %v2606
    %3325 = vmatprep.subr.bf16.mxu0 %v2603
    %3326 = vmatpush2.bf16.msra.mxu0 %v2602
    %3327 = vmatprep.subr.bf16.mxu0 %v2599
    %3328 = vmatpush2.bf16.msra.mxu0 %v2598
    %3329 = vmatprep.subr.bf16.mxu0 %v2595
    %3330 = vmatpush2.bf16.msra.mxu0 %v2594
    %3331 = vmatprep.mubr.bf16.mxu0 %v1381
    %3332 = vmatmul.mubr.bf16.gmra.mxu0 %v1380
    %v3333 = vpop.f32.mrf.mxu0
    %v3334 = vadd.f32 %v2981, %v3333
    %v3335 = vpop.f32.mrf.mxu0
    %v3336 = vadd.f32 %v2983, %v3335
    %v3337 = vpop.f32.mrf.mxu0
    %v3338 = vadd.f32 %v2985, %v3337
    %v3339 = vpop.f32.mrf.mxu0
    %v3340 = vadd.f32 %v2987, %v3339
    %3341 = vmatprep.mubr.bf16.mxu0 %v1388
    %3342 = vmatmul.mubr.bf16.gmra.mxu0 %v1387
    %v3343 = vpop.f32.mrf.mxu0
    %v3344 = vadd.f32 %v2991, %v3343
    %v3345 = vpop.f32.mrf.mxu0
    %v3346 = vadd.f32 %v2993, %v3345
    %v3347 = vpop.f32.mrf.mxu0
    %v3348 = vadd.f32 %v2995, %v3347
    %v3349 = vpop.f32.mrf.mxu0
    %v3350 = vadd.f32 %v2997, %v3349
    %3351 = vmatprep.mubr.bf16.mxu0 %v1395
    %3352 = vmatmul.mubr.bf16.gmra.mxu0 %v1394
    %v3353 = vpop.f32.mrf.mxu0
    %v3354 = vadd.f32 %v3001, %v3353
    %v3355 = vpop.f32.mrf.mxu0
    %v3356 = vadd.f32 %v3003, %v3355
    %v3357 = vpop.f32.mrf.mxu0
    %v3358 = vadd.f32 %v3005, %v3357
    %v3359 = vpop.f32.mrf.mxu0
    %v3360 = vadd.f32 %v3007, %v3359
    %3361 = vmatprep.mubr.bf16.mxu0 %v1402
    %3362 = vmatmul.mubr.bf16.gmra.mxu0 %v1401
    %v3363 = vpop.f32.mrf.mxu0
    %v3364 = vadd.f32 %v3011, %v3363
    %v3365 = vpop.f32.mrf.mxu0
    %v3366 = vadd.f32 %v3013, %v3365
    %v3367 = vpop.f32.mrf.mxu0
    %v3368 = vadd.f32 %v3015, %v3367
    %v3369 = vpop.f32.mrf.mxu0
    %v3370 = vadd.f32 %v3017, %v3369
    %3371 = vmatprep.mubr.bf16.mxu0 %v1409
    %3372 = vmatmul.mubr.bf16.gmra.mxu0 %v1408
    %v3373 = vpop.f32.mrf.mxu0
    %v3374 = vadd.f32 %v3021, %v3373
    %v3375 = vpop.f32.mrf.mxu0
    %v3376 = vadd.f32 %v3023, %v3375
    %v3377 = vpop.f32.mrf.mxu0
    %v3378 = vadd.f32 %v3025, %v3377
    %v3379 = vpop.f32.mrf.mxu0
    %v3380 = vadd.f32 %v3027, %v3379
    %3381 = vmatprep.mubr.bf16.mxu0 %v1416
    %3382 = vmatmul.mubr.bf16.gmra.mxu0 %v1415
    %v3383 = vpop.f32.mrf.mxu0
    %v3384 = vadd.f32 %v3031, %v3383
    %v3385 = vpop.f32.mrf.mxu0
    %v3386 = vadd.f32 %v3033, %v3385
    %v3387 = vpop.f32.mrf.mxu0
    %v3388 = vadd.f32 %v3035, %v3387
    %v3389 = vpop.f32.mrf.mxu0
    %v3390 = vadd.f32 %v3037, %v3389
    %3391 = vmatprep.mubr.bf16.mxu0 %v1423
    %3392 = vmatmul.mubr.bf16.gmra.mxu0 %v1422
    %v3393 = vpop.f32.mrf.mxu0
    %v3394 = vadd.f32 %v3041, %v3393
    %v3395 = vpop.f32.mrf.mxu0
    %v3396 = vadd.f32 %v3043, %v3395
    %v3397 = vpop.f32.mrf.mxu0
    %v3398 = vadd.f32 %v3045, %v3397
    %v3399 = vpop.f32.mrf.mxu0
    %v3400 = vadd.f32 %v3047, %v3399
    %3401 = vmatprep.mubr.bf16.mxu0 %v1430
    %3402 = vmatmul.mubr.bf16.gmra.mxu0 %v1429
    %v3403 = vpop.f32.mrf.mxu0
    %v3404 = vadd.f32 %v3051, %v3403
    %v3405 = vpop.f32.mrf.mxu0
    %v3406 = vadd.f32 %v3053, %v3405
    %v3407 = vpop.f32.mrf.mxu0
    %v3408 = vadd.f32 %v3055, %v3407
    %v3409 = vpop.f32.mrf.mxu0
    %v3410 = vadd.f32 %v3057, %v3409
    %3411 = vmatprep.mubr.bf16.mxu0 %v1437
    %3412 = vmatmul.mubr.bf16.gmra.mxu0 %v1436
    %v3413 = vpop.f32.mrf.mxu0
    %v3414 = vadd.f32 %v3061, %v3413
    %v3415 = vpop.f32.mrf.mxu0
    %v3416 = vadd.f32 %v3063, %v3415
    %v3417 = vpop.f32.mrf.mxu0
    %v3418 = vadd.f32 %v3065, %v3417
    %v3419 = vpop.f32.mrf.mxu0
    %v3420 = vadd.f32 %v3067, %v3419
    %3421 = vmatprep.mubr.bf16.mxu0 %v1444
    %3422 = vmatmul.mubr.bf16.gmra.mxu0 %v1443
    %v3423 = vpop.f32.mrf.mxu0
    %v3424 = vadd.f32 %v3071, %v3423
    %v3425 = vpop.f32.mrf.mxu0
    %v3426 = vadd.f32 %v3073, %v3425
    %v3427 = vpop.f32.mrf.mxu0
    %v3428 = vadd.f32 %v3075, %v3427
    %v3429 = vpop.f32.mrf.mxu0
    %v3430 = vadd.f32 %v3077, %v3429
    %3431 = vmatprep.mubr.bf16.mxu0 %v1451
    %3432 = vmatmul.mubr.bf16.gmra.mxu0 %v1450
    %v3433 = vpop.f32.mrf.mxu0
    %v3434 = vadd.f32 %v3081, %v3433
    %v3435 = vpop.f32.mrf.mxu0
    %v3436 = vadd.f32 %v3083, %v3435
    %v3437 = vpop.f32.mrf.mxu0
    %v3438 = vadd.f32 %v3085, %v3437
    %v3439 = vpop.f32.mrf.mxu0
    %v3440 = vadd.f32 %v3087, %v3439
    %3441 = vmatprep.mubr.bf16.mxu0 %v1458
    %3442 = vmatmul.mubr.bf16.gmra.mxu0 %v1457
    %v3443 = vpop.f32.mrf.mxu0
    %v3444 = vadd.f32 %v3091, %v3443
    %v3445 = vpop.f32.mrf.mxu0
    %v3446 = vadd.f32 %v3093, %v3445
    %v3447 = vpop.f32.mrf.mxu0
    %v3448 = vadd.f32 %v3095, %v3447
    %v3449 = vpop.f32.mrf.mxu0
    %v3450 = vadd.f32 %v3097, %v3449
    %3451 = vmatprep.mubr.bf16.mxu0 %v1465
    %3452 = vmatmul.mubr.bf16.gmra.mxu0 %v1464
    %v3453 = vpop.f32.mrf.mxu0
    %v3454 = vadd.f32 %v3101, %v3453
    %v3455 = vpop.f32.mrf.mxu0
    %v3456 = vadd.f32 %v3103, %v3455
    %v3457 = vpop.f32.mrf.mxu0
    %v3458 = vadd.f32 %v3105, %v3457
    %v3459 = vpop.f32.mrf.mxu0
    %v3460 = vadd.f32 %v3107, %v3459
    %3461 = vmatprep.mubr.bf16.mxu0 %v1472
    %3462 = vmatmul.mubr.bf16.gmra.mxu0 %v1471
    %v3463 = vpop.f32.mrf.mxu0
    %v3464 = vadd.f32 %v3111, %v3463
    %v3465 = vpop.f32.mrf.mxu0
    %v3466 = vadd.f32 %v3113, %v3465
    %v3467 = vpop.f32.mrf.mxu0
    %v3468 = vadd.f32 %v3115, %v3467
    %v3469 = vpop.f32.mrf.mxu0
    %v3470 = vadd.f32 %v3117, %v3469
    %3471 = vmatprep.mubr.bf16.mxu0 %v1479
    %3472 = vmatmul.mubr.bf16.gmra.mxu0 %v1478
    %v3473 = vpop.f32.mrf.mxu0
    %v3474 = vadd.f32 %v3121, %v3473
    %v3475 = vpop.f32.mrf.mxu0
    %v3476 = vadd.f32 %v3123, %v3475
    %v3477 = vpop.f32.mrf.mxu0
    %v3478 = vadd.f32 %v3125, %v3477
    %v3479 = vpop.f32.mrf.mxu0
    %v3480 = vadd.f32 %v3127, %v3479
    %3481 = vmatprep.mubr.bf16.mxu0 %v1486
    %3482 = vmatmul.mubr.bf16.gmra.mxu0 %v1485
    %v3483 = vpop.f32.mrf.mxu0
    %v3484 = vadd.f32 %v3131, %v3483
    %v3485 = vpop.f32.mrf.mxu0
    %v3486 = vadd.f32 %v3133, %v3485
    %v3487 = vpop.f32.mrf.mxu0
    %v3488 = vadd.f32 %v3135, %v3487
    %v3489 = vpop.f32.mrf.mxu0
    %v3490 = vadd.f32 %v3137, %v3489
    %3491 = vmatprep.mubr.bf16.mxu0 %v1493
    %3492 = vmatmul.mubr.bf16.gmra.mxu0 %v1492
    %v3493 = vpop.f32.mrf.mxu0
    %v3494 = vadd.f32 %v3141, %v3493
    %v3495 = vpop.f32.mrf.mxu0
    %v3496 = vadd.f32 %v3143, %v3495
    %v3497 = vpop.f32.mrf.mxu0
    %v3498 = vadd.f32 %v3145, %v3497
    %v3499 = vpop.f32.mrf.mxu0
    %v3500 = vadd.f32 %v3147, %v3499
    %3501 = vmatprep.mubr.bf16.mxu0 %v1500
    %3502 = vmatmul.mubr.bf16.gmra.mxu0 %v1499
    %v3503 = vpop.f32.mrf.mxu0
    %v3504 = vadd.f32 %v3151, %v3503
    %v3505 = vpop.f32.mrf.mxu0
    %v3506 = vadd.f32 %v3153, %v3505
    %v3507 = vpop.f32.mrf.mxu0
    %v3508 = vadd.f32 %v3155, %v3507
    %v3509 = vpop.f32.mrf.mxu0
    %v3510 = vadd.f32 %v3157, %v3509
    %3511 = vmatprep.mubr.bf16.mxu0 %v1507
    %3512 = vmatmul.mubr.bf16.gmra.mxu0 %v1506
    %v3513 = vpop.f32.mrf.mxu0
    %v3514 = vadd.f32 %v3161, %v3513
    %v3515 = vpop.f32.mrf.mxu0
    %v3516 = vadd.f32 %v3163, %v3515
    %v3517 = vpop.f32.mrf.mxu0
    %v3518 = vadd.f32 %v3165, %v3517
    %v3519 = vpop.f32.mrf.mxu0
    %v3520 = vadd.f32 %v3167, %v3519
    %3521 = vmatprep.mubr.bf16.mxu0 %v1514
    %3522 = vmatmul.mubr.bf16.gmra.mxu0 %v1513
    %v3523 = vpop.f32.mrf.mxu0
    %v3524 = vadd.f32 %v3171, %v3523
    %v3525 = vpop.f32.mrf.mxu0
    %v3526 = vadd.f32 %v3173, %v3525
    %v3527 = vpop.f32.mrf.mxu0
    %v3528 = vadd.f32 %v3175, %v3527
    %v3529 = vpop.f32.mrf.mxu0
    %v3530 = vadd.f32 %v3177, %v3529
    %3531 = vmatprep.mubr.bf16.mxu0 %v1521
    %3532 = vmatmul.mubr.bf16.gmra.mxu0 %v1520
    %v3533 = vpop.f32.mrf.mxu0
    %v3534 = vadd.f32 %v3181, %v3533
    %v3535 = vpop.f32.mrf.mxu0
    %v3536 = vadd.f32 %v3183, %v3535
    %v3537 = vpop.f32.mrf.mxu0
    %v3538 = vadd.f32 %v3185, %v3537
    %v3539 = vpop.f32.mrf.mxu0
    %v3540 = vadd.f32 %v3187, %v3539
    %3541 = vmatprep.mubr.bf16.mxu0 %v1528
    %3542 = vmatmul.mubr.bf16.gmra.mxu0 %v1527
    %v3543 = vpop.f32.mrf.mxu0
    %v3544 = vadd.f32 %v3191, %v3543
    %v3545 = vpop.f32.mrf.mxu0
    %v3546 = vadd.f32 %v3193, %v3545
    %v3547 = vpop.f32.mrf.mxu0
    %v3548 = vadd.f32 %v3195, %v3547
    %v3549 = vpop.f32.mrf.mxu0
    %v3550 = vadd.f32 %v3197, %v3549
    %3551 = vmatprep.mubr.bf16.mxu0 %v1535
    %3552 = vmatmul.mubr.bf16.gmra.mxu0 %v1534
    %v3553 = vpop.f32.mrf.mxu0
    %v3554 = vadd.f32 %v3201, %v3553
    %v3555 = vpop.f32.mrf.mxu0
    %v3556 = vadd.f32 %v3203, %v3555
    %v3557 = vpop.f32.mrf.mxu0
    %v3558 = vadd.f32 %v3205, %v3557
    %v3559 = vpop.f32.mrf.mxu0
    %v3560 = vadd.f32 %v3207, %v3559
    %3561 = vmatprep.mubr.bf16.mxu0 %v1542
    %3562 = vmatmul.mubr.bf16.gmra.mxu0 %v1541
    %v3563 = vpop.f32.mrf.mxu0
    %v3564 = vadd.f32 %v3211, %v3563
    %v3565 = vpop.f32.mrf.mxu0
    %v3566 = vadd.f32 %v3213, %v3565
    %v3567 = vpop.f32.mrf.mxu0
    %v3568 = vadd.f32 %v3215, %v3567
    %v3569 = vpop.f32.mrf.mxu0
    %v3570 = vadd.f32 %v3217, %v3569
    %3571 = vmatprep.mubr.bf16.mxu0 %v1549
    %3572 = vmatmul.mubr.bf16.gmra.mxu0 %v1548
    %v3573 = vpop.f32.mrf.mxu0
    %v3574 = vadd.f32 %v3221, %v3573
    %v3575 = vpop.f32.mrf.mxu0
    %v3576 = vadd.f32 %v3223, %v3575
    %v3577 = vpop.f32.mrf.mxu0
    %v3578 = vadd.f32 %v3225, %v3577
    %v3579 = vpop.f32.mrf.mxu0
    %v3580 = vadd.f32 %v3227, %v3579
    %3581 = vmatprep.mubr.bf16.mxu0 %v1556
    %3582 = vmatmul.mubr.bf16.gmra.mxu0 %v1555
    %v3583 = vpop.f32.mrf.mxu0
    %v3584 = vadd.f32 %v3231, %v3583
    %v3585 = vpop.f32.mrf.mxu0
    %v3586 = vadd.f32 %v3233, %v3585
    %v3587 = vpop.f32.mrf.mxu0
    %v3588 = vadd.f32 %v3235, %v3587
    %v3589 = vpop.f32.mrf.mxu0
    %v3590 = vadd.f32 %v3237, %v3589
    %3591 = vmatprep.mubr.bf16.mxu0 %v1563
    %3592 = vmatmul.mubr.bf16.gmra.mxu0 %v1562
    %v3593 = vpop.f32.mrf.mxu0
    %v3594 = vadd.f32 %v3241, %v3593
    %v3595 = vpop.f32.mrf.mxu0
    %v3596 = vadd.f32 %v3243, %v3595
    %v3597 = vpop.f32.mrf.mxu0
    %v3598 = vadd.f32 %v3245, %v3597
    %v3599 = vpop.f32.mrf.mxu0
    %v3600 = vadd.f32 %v3247, %v3599
    %3601 = vmatprep.mubr.bf16.mxu0 %v1570
    %3602 = vmatmul.mubr.bf16.gmra.mxu0 %v1569
    %v3603 = vpop.f32.mrf.mxu0
    %v3604 = vadd.f32 %v3251, %v3603
    %v3605 = vpop.f32.mrf.mxu0
    %v3606 = vadd.f32 %v3253, %v3605
    %v3607 = vpop.f32.mrf.mxu0
    %v3608 = vadd.f32 %v3255, %v3607
    %v3609 = vpop.f32.mrf.mxu0
    %v3610 = vadd.f32 %v3257, %v3609
    %3611 = vmatprep.mubr.bf16.mxu0 %v1577
    %3612 = vmatmul.mubr.bf16.gmra.mxu0 %v1576
    %v3613 = vpop.f32.mrf.mxu0
    %v3614 = vadd.f32 %v3261, %v3613
    %v3615 = vpop.f32.mrf.mxu0
    %v3616 = vadd.f32 %v3263, %v3615
    %v3617 = vpop.f32.mrf.mxu0
    %v3618 = vadd.f32 %v3265, %v3617
    %v3619 = vpop.f32.mrf.mxu0
    %v3620 = vadd.f32 %v3267, %v3619
    %3621 = vmatprep.mubr.bf16.mxu0 %v1584
    %3622 = vmatmul.mubr.bf16.gmra.mxu0 %v1583
    %v3623 = vpop.f32.mrf.mxu0
    %v3624 = vadd.f32 %v3271, %v3623
    %v3625 = vpop.f32.mrf.mxu0
    %v3626 = vadd.f32 %v3273, %v3625
    %v3627 = vpop.f32.mrf.mxu0
    %v3628 = vadd.f32 %v3275, %v3627
    %v3629 = vpop.f32.mrf.mxu0
    %v3630 = vadd.f32 %v3277, %v3629
    %3631 = vmatprep.mubr.bf16.mxu0 %v1591
    %3632 = vmatmul.mubr.bf16.gmra.mxu0 %v1590
    %v3633 = vpop.f32.mrf.mxu0
    %v3634 = vadd.f32 %v3281, %v3633
    %v3635 = vpop.f32.mrf.mxu0
    %v3636 = vadd.f32 %v3283, %v3635
    %v3637 = vpop.f32.mrf.mxu0
    %v3638 = vadd.f32 %v3285, %v3637
    %v3639 = vpop.f32.mrf.mxu0
    %v3640 = vadd.f32 %v3287, %v3639
    %3641 = vmatprep.mubr.bf16.mxu0 %v1598
    %3642 = vmatmul.mubr.bf16.gmra.mxu0 %v1597
    %v3643 = vpop.f32.mrf.mxu0
    %v3644 = vadd.f32 %v3291, %v3643
    %v3645 = vpop.f32.mrf.mxu0
    %v3646 = vadd.f32 %v3293, %v3645
    %v3647 = vpop.f32.mrf.mxu0
    %v3648 = vadd.f32 %v3295, %v3647
    %v3649 = vpop.f32.mrf.mxu0
    %v3650 = vadd.f32 %v3297, %v3649
    %3651 = vdwg.mxu0
    %3652 = vmatprep.subr.bf16.mxu0 %v2655
    %3653 = vmatpush1.bf16.msra.mxu0 %v2654
    %3654 = vmatprep.subr.bf16.mxu0 %v2651
    %3655 = vmatpush1.bf16.msra.mxu0 %v2650
    %3656 = vmatprep.subr.bf16.mxu0 %v2647
    %3657 = vmatpush1.bf16.msra.mxu0 %v2646
    %3658 = vmatprep.subr.bf16.mxu0 %v2643
    %3659 = vmatpush1.bf16.msra.mxu0 %v2642
    %3660 = vmatprep.subr.bf16.mxu0 %v2639
    %3661 = vmatpush1.bf16.msra.mxu0 %v2638
    %3662 = vmatprep.subr.bf16.mxu0 %v2635
    %3663 = vmatpush1.bf16.msra.mxu0 %v2634
    %3664 = vmatprep.subr.bf16.mxu0 %v2631
    %3665 = vmatpush1.bf16.msra.mxu0 %v2630
    %3666 = vmatprep.subr.bf16.mxu0 %v2627
    %3667 = vmatpush1.bf16.msra.mxu0 %v2626
    %3668 = vmatprep.subr.bf16.mxu0 %v2687
    %3669 = vmatpush2.bf16.msra.mxu0 %v2686
    %3670 = vmatprep.subr.bf16.mxu0 %v2683
    %3671 = vmatpush2.bf16.msra.mxu0 %v2682
    %3672 = vmatprep.subr.bf16.mxu0 %v2679
    %3673 = vmatpush2.bf16.msra.mxu0 %v2678
    %3674 = vmatprep.subr.bf16.mxu0 %v2675
    %3675 = vmatpush2.bf16.msra.mxu0 %v2674
    %3676 = vmatprep.subr.bf16.mxu0 %v2671
    %3677 = vmatpush2.bf16.msra.mxu0 %v2670
    %3678 = vmatprep.subr.bf16.mxu0 %v2667
    %3679 = vmatpush2.bf16.msra.mxu0 %v2666
    %3680 = vmatprep.subr.bf16.mxu0 %v2663
    %3681 = vmatpush2.bf16.msra.mxu0 %v2662
    %3682 = vmatprep.subr.bf16.mxu0 %v2659
    %3683 = vmatpush2.bf16.msra.mxu0 %v2658
    %3684 = vmatprep.mubr.bf16.mxu0 %v1383
    %3685 = vmatmul.mubr.bf16.gmra.mxu0 %v1382
    %v3686 = vpop.f32.mrf.mxu0
    %v3687 = vadd.f32 %v3334, %v3686
    %v3688 = vpop.f32.mrf.mxu0
    %v3689 = vadd.f32 %v3336, %v3688
    %v3690 = vpop.f32.mrf.mxu0
    %v3691 = vadd.f32 %v3338, %v3690
    %v3692 = vpop.f32.mrf.mxu0
    %v3693 = vadd.f32 %v3340, %v3692
    %3694 = vmatprep.mubr.bf16.mxu0 %v1390
    %3695 = vmatmul.mubr.bf16.gmra.mxu0 %v1389
    %v3696 = vpop.f32.mrf.mxu0
    %v3697 = vadd.f32 %v3344, %v3696
    %v3698 = vpop.f32.mrf.mxu0
    %v3699 = vadd.f32 %v3346, %v3698
    %v3700 = vpop.f32.mrf.mxu0
    %v3701 = vadd.f32 %v3348, %v3700
    %v3702 = vpop.f32.mrf.mxu0
    %v3703 = vadd.f32 %v3350, %v3702
    %3704 = vmatprep.mubr.bf16.mxu0 %v1397
    %3705 = vmatmul.mubr.bf16.gmra.mxu0 %v1396
    %v3706 = vpop.f32.mrf.mxu0
    %v3707 = vadd.f32 %v3354, %v3706
    %v3708 = vpop.f32.mrf.mxu0
    %v3709 = vadd.f32 %v3356, %v3708
    %v3710 = vpop.f32.mrf.mxu0
    %v3711 = vadd.f32 %v3358, %v3710
    %v3712 = vpop.f32.mrf.mxu0
    %v3713 = vadd.f32 %v3360, %v3712
    %3714 = vmatprep.mubr.bf16.mxu0 %v1404
    %3715 = vmatmul.mubr.bf16.gmra.mxu0 %v1403
    %v3716 = vpop.f32.mrf.mxu0
    %v3717 = vadd.f32 %v3364, %v3716
    %v3718 = vpop.f32.mrf.mxu0
    %v3719 = vadd.f32 %v3366, %v3718
    %v3720 = vpop.f32.mrf.mxu0
    %v3721 = vadd.f32 %v3368, %v3720
    %v3722 = vpop.f32.mrf.mxu0
    %v3723 = vadd.f32 %v3370, %v3722
    %3724 = vmatprep.mubr.bf16.mxu0 %v1411
    %3725 = vmatmul.mubr.bf16.gmra.mxu0 %v1410
    %v3726 = vpop.f32.mrf.mxu0
    %v3727 = vadd.f32 %v3374, %v3726
    %v3728 = vpop.f32.mrf.mxu0
    %v3729 = vadd.f32 %v3376, %v3728
    %v3730 = vpop.f32.mrf.mxu0
    %v3731 = vadd.f32 %v3378, %v3730
    %v3732 = vpop.f32.mrf.mxu0
    %v3733 = vadd.f32 %v3380, %v3732
    %3734 = vmatprep.mubr.bf16.mxu0 %v1418
    %3735 = vmatmul.mubr.bf16.gmra.mxu0 %v1417
    %v3736 = vpop.f32.mrf.mxu0
    %v3737 = vadd.f32 %v3384, %v3736
    %v3738 = vpop.f32.mrf.mxu0
    %v3739 = vadd.f32 %v3386, %v3738
    %v3740 = vpop.f32.mrf.mxu0
    %v3741 = vadd.f32 %v3388, %v3740
    %v3742 = vpop.f32.mrf.mxu0
    %v3743 = vadd.f32 %v3390, %v3742
    %3744 = vmatprep.mubr.bf16.mxu0 %v1425
    %3745 = vmatmul.mubr.bf16.gmra.mxu0 %v1424
    %v3746 = vpop.f32.mrf.mxu0
    %v3747 = vadd.f32 %v3394, %v3746
    %v3748 = vpop.f32.mrf.mxu0
    %v3749 = vadd.f32 %v3396, %v3748
    %v3750 = vpop.f32.mrf.mxu0
    %v3751 = vadd.f32 %v3398, %v3750
    %v3752 = vpop.f32.mrf.mxu0
    %v3753 = vadd.f32 %v3400, %v3752
    %3754 = vmatprep.mubr.bf16.mxu0 %v1432
    %3755 = vmatmul.mubr.bf16.gmra.mxu0 %v1431
    %v3756 = vpop.f32.mrf.mxu0
    %v3757 = vadd.f32 %v3404, %v3756
    %v3758 = vpop.f32.mrf.mxu0
    %v3759 = vadd.f32 %v3406, %v3758
    %v3760 = vpop.f32.mrf.mxu0
    %v3761 = vadd.f32 %v3408, %v3760
    %v3762 = vpop.f32.mrf.mxu0
    %v3763 = vadd.f32 %v3410, %v3762
    %3764 = vmatprep.mubr.bf16.mxu0 %v1439
    %3765 = vmatmul.mubr.bf16.gmra.mxu0 %v1438
    %v3766 = vpop.f32.mrf.mxu0
    %v3767 = vadd.f32 %v3414, %v3766
    %v3768 = vpop.f32.mrf.mxu0
    %v3769 = vadd.f32 %v3416, %v3768
    %v3770 = vpop.f32.mrf.mxu0
    %v3771 = vadd.f32 %v3418, %v3770
    %v3772 = vpop.f32.mrf.mxu0
    %v3773 = vadd.f32 %v3420, %v3772
    %3774 = vmatprep.mubr.bf16.mxu0 %v1446
    %3775 = vmatmul.mubr.bf16.gmra.mxu0 %v1445
    %v3776 = vpop.f32.mrf.mxu0
    %v3777 = vadd.f32 %v3424, %v3776
    %v3778 = vpop.f32.mrf.mxu0
    %v3779 = vadd.f32 %v3426, %v3778
    %v3780 = vpop.f32.mrf.mxu0
    %v3781 = vadd.f32 %v3428, %v3780
    %v3782 = vpop.f32.mrf.mxu0
    %v3783 = vadd.f32 %v3430, %v3782
    %3784 = vmatprep.mubr.bf16.mxu0 %v1453
    %3785 = vmatmul.mubr.bf16.gmra.mxu0 %v1452
    %v3786 = vpop.f32.mrf.mxu0
    %v3787 = vadd.f32 %v3434, %v3786
    %v3788 = vpop.f32.mrf.mxu0
    %v3789 = vadd.f32 %v3436, %v3788
    %v3790 = vpop.f32.mrf.mxu0
    %v3791 = vadd.f32 %v3438, %v3790
    %v3792 = vpop.f32.mrf.mxu0
    %v3793 = vadd.f32 %v3440, %v3792
    %3794 = vmatprep.mubr.bf16.mxu0 %v1460
    %3795 = vmatmul.mubr.bf16.gmra.mxu0 %v1459
    %v3796 = vpop.f32.mrf.mxu0
    %v3797 = vadd.f32 %v3444, %v3796
    %v3798 = vpop.f32.mrf.mxu0
    %v3799 = vadd.f32 %v3446, %v3798
    %v3800 = vpop.f32.mrf.mxu0
    %v3801 = vadd.f32 %v3448, %v3800
    %v3802 = vpop.f32.mrf.mxu0
    %v3803 = vadd.f32 %v3450, %v3802
    %3804 = vmatprep.mubr.bf16.mxu0 %v1467
    %3805 = vmatmul.mubr.bf16.gmra.mxu0 %v1466
    %v3806 = vpop.f32.mrf.mxu0
    %v3807 = vadd.f32 %v3454, %v3806
    %v3808 = vpop.f32.mrf.mxu0
    %v3809 = vadd.f32 %v3456, %v3808
    %v3810 = vpop.f32.mrf.mxu0
    %v3811 = vadd.f32 %v3458, %v3810
    %v3812 = vpop.f32.mrf.mxu0
    %v3813 = vadd.f32 %v3460, %v3812
    %3814 = vmatprep.mubr.bf16.mxu0 %v1474
    %3815 = vmatmul.mubr.bf16.gmra.mxu0 %v1473
    %v3816 = vpop.f32.mrf.mxu0
    %v3817 = vadd.f32 %v3464, %v3816
    %v3818 = vpop.f32.mrf.mxu0
    %v3819 = vadd.f32 %v3466, %v3818
    %v3820 = vpop.f32.mrf.mxu0
    %v3821 = vadd.f32 %v3468, %v3820
    %v3822 = vpop.f32.mrf.mxu0
    %v3823 = vadd.f32 %v3470, %v3822
    %3824 = vmatprep.mubr.bf16.mxu0 %v1481
    %3825 = vmatmul.mubr.bf16.gmra.mxu0 %v1480
    %v3826 = vpop.f32.mrf.mxu0
    %v3827 = vadd.f32 %v3474, %v3826
    %v3828 = vpop.f32.mrf.mxu0
    %v3829 = vadd.f32 %v3476, %v3828
    %v3830 = vpop.f32.mrf.mxu0
    %v3831 = vadd.f32 %v3478, %v3830
    %v3832 = vpop.f32.mrf.mxu0
    %v3833 = vadd.f32 %v3480, %v3832
    %3834 = vmatprep.mubr.bf16.mxu0 %v1488
    %3835 = vmatmul.mubr.bf16.gmra.mxu0 %v1487
    %v3836 = vpop.f32.mrf.mxu0
    %v3837 = vadd.f32 %v3484, %v3836
    %v3838 = vpop.f32.mrf.mxu0
    %v3839 = vadd.f32 %v3486, %v3838
    %v3840 = vpop.f32.mrf.mxu0
    %v3841 = vadd.f32 %v3488, %v3840
    %v3842 = vpop.f32.mrf.mxu0
    %v3843 = vadd.f32 %v3490, %v3842
    %3844 = vmatprep.mubr.bf16.mxu0 %v1495
    %3845 = vmatmul.mubr.bf16.gmra.mxu0 %v1494
    %v3846 = vpop.f32.mrf.mxu0
    %v3847 = vadd.f32 %v3494, %v3846
    %v3848 = vpop.f32.mrf.mxu0
    %v3849 = vadd.f32 %v3496, %v3848
    %v3850 = vpop.f32.mrf.mxu0
    %v3851 = vadd.f32 %v3498, %v3850
    %v3852 = vpop.f32.mrf.mxu0
    %v3853 = vadd.f32 %v3500, %v3852
    %3854 = vmatprep.mubr.bf16.mxu0 %v1502
    %3855 = vmatmul.mubr.bf16.gmra.mxu0 %v1501
    %v3856 = vpop.f32.mrf.mxu0
    %v3857 = vadd.f32 %v3504, %v3856
    %v3858 = vpop.f32.mrf.mxu0
    %v3859 = vadd.f32 %v3506, %v3858
    %v3860 = vpop.f32.mrf.mxu0
    %v3861 = vadd.f32 %v3508, %v3860
    %v3862 = vpop.f32.mrf.mxu0
    %v3863 = vadd.f32 %v3510, %v3862
    %3864 = vmatprep.mubr.bf16.mxu0 %v1509
    %3865 = vmatmul.mubr.bf16.gmra.mxu0 %v1508
    %v3866 = vpop.f32.mrf.mxu0
    %v3867 = vadd.f32 %v3514, %v3866
    %v3868 = vpop.f32.mrf.mxu0
    %v3869 = vadd.f32 %v3516, %v3868
    %v3870 = vpop.f32.mrf.mxu0
    %v3871 = vadd.f32 %v3518, %v3870
    %v3872 = vpop.f32.mrf.mxu0
    %v3873 = vadd.f32 %v3520, %v3872
    %3874 = vmatprep.mubr.bf16.mxu0 %v1516
    %3875 = vmatmul.mubr.bf16.gmra.mxu0 %v1515
    %v3876 = vpop.f32.mrf.mxu0
    %v3877 = vadd.f32 %v3524, %v3876
    %v3878 = vpop.f32.mrf.mxu0
    %v3879 = vadd.f32 %v3526, %v3878
    %v3880 = vpop.f32.mrf.mxu0
    %v3881 = vadd.f32 %v3528, %v3880
    %v3882 = vpop.f32.mrf.mxu0
    %v3883 = vadd.f32 %v3530, %v3882
    %3884 = vmatprep.mubr.bf16.mxu0 %v1523
    %3885 = vmatmul.mubr.bf16.gmra.mxu0 %v1522
    %v3886 = vpop.f32.mrf.mxu0
    %v3887 = vadd.f32 %v3534, %v3886
    %v3888 = vpop.f32.mrf.mxu0
    %v3889 = vadd.f32 %v3536, %v3888
    %v3890 = vpop.f32.mrf.mxu0
    %v3891 = vadd.f32 %v3538, %v3890
    %v3892 = vpop.f32.mrf.mxu0
    %v3893 = vadd.f32 %v3540, %v3892
    %3894 = vmatprep.mubr.bf16.mxu0 %v1530
    %3895 = vmatmul.mubr.bf16.gmra.mxu0 %v1529
    %v3896 = vpop.f32.mrf.mxu0
    %v3897 = vadd.f32 %v3544, %v3896
    %v3898 = vpop.f32.mrf.mxu0
    %v3899 = vadd.f32 %v3546, %v3898
    %v3900 = vpop.f32.mrf.mxu0
    %v3901 = vadd.f32 %v3548, %v3900
    %v3902 = vpop.f32.mrf.mxu0
    %v3903 = vadd.f32 %v3550, %v3902
    %3904 = vmatprep.mubr.bf16.mxu0 %v1537
    %3905 = vmatmul.mubr.bf16.gmra.mxu0 %v1536
    %v3906 = vpop.f32.mrf.mxu0
    %v3907 = vadd.f32 %v3554, %v3906
    %v3908 = vpop.f32.mrf.mxu0
    %v3909 = vadd.f32 %v3556, %v3908
    %v3910 = vpop.f32.mrf.mxu0
    %v3911 = vadd.f32 %v3558, %v3910
    %v3912 = vpop.f32.mrf.mxu0
    %v3913 = vadd.f32 %v3560, %v3912
    %3914 = vmatprep.mubr.bf16.mxu0 %v1544
    %3915 = vmatmul.mubr.bf16.gmra.mxu0 %v1543
    %v3916 = vpop.f32.mrf.mxu0
    %v3917 = vadd.f32 %v3564, %v3916
    %v3918 = vpop.f32.mrf.mxu0
    %v3919 = vadd.f32 %v3566, %v3918
    %v3920 = vpop.f32.mrf.mxu0
    %v3921 = vadd.f32 %v3568, %v3920
    %v3922 = vpop.f32.mrf.mxu0
    %v3923 = vadd.f32 %v3570, %v3922
    %3924 = vmatprep.mubr.bf16.mxu0 %v1551
    %3925 = vmatmul.mubr.bf16.gmra.mxu0 %v1550
    %v3926 = vpop.f32.mrf.mxu0
    %v3927 = vadd.f32 %v3574, %v3926
    %v3928 = vpop.f32.mrf.mxu0
    %v3929 = vadd.f32 %v3576, %v3928
    %v3930 = vpop.f32.mrf.mxu0
    %v3931 = vadd.f32 %v3578, %v3930
    %v3932 = vpop.f32.mrf.mxu0
    %v3933 = vadd.f32 %v3580, %v3932
    %3934 = vmatprep.mubr.bf16.mxu0 %v1558
    %3935 = vmatmul.mubr.bf16.gmra.mxu0 %v1557
    %v3936 = vpop.f32.mrf.mxu0
    %v3937 = vadd.f32 %v3584, %v3936
    %v3938 = vpop.f32.mrf.mxu0
    %v3939 = vadd.f32 %v3586, %v3938
    %v3940 = vpop.f32.mrf.mxu0
    %v3941 = vadd.f32 %v3588, %v3940
    %v3942 = vpop.f32.mrf.mxu0
    %v3943 = vadd.f32 %v3590, %v3942
    %3944 = vmatprep.mubr.bf16.mxu0 %v1565
    %3945 = vmatmul.mubr.bf16.gmra.mxu0 %v1564
    %v3946 = vpop.f32.mrf.mxu0
    %v3947 = vadd.f32 %v3594, %v3946
    %v3948 = vpop.f32.mrf.mxu0
    %v3949 = vadd.f32 %v3596, %v3948
    %v3950 = vpop.f32.mrf.mxu0
    %v3951 = vadd.f32 %v3598, %v3950
    %v3952 = vpop.f32.mrf.mxu0
    %v3953 = vadd.f32 %v3600, %v3952
    %3954 = vmatprep.mubr.bf16.mxu0 %v1572
    %3955 = vmatmul.mubr.bf16.gmra.mxu0 %v1571
    %v3956 = vpop.f32.mrf.mxu0
    %v3957 = vadd.f32 %v3604, %v3956
    %v3958 = vpop.f32.mrf.mxu0
    %v3959 = vadd.f32 %v3606, %v3958
    %v3960 = vpop.f32.mrf.mxu0
    %v3961 = vadd.f32 %v3608, %v3960
    %v3962 = vpop.f32.mrf.mxu0
    %v3963 = vadd.f32 %v3610, %v3962
    %3964 = vmatprep.mubr.bf16.mxu0 %v1579
    %3965 = vmatmul.mubr.bf16.gmra.mxu0 %v1578
    %v3966 = vpop.f32.mrf.mxu0
    %v3967 = vadd.f32 %v3614, %v3966
    %v3968 = vpop.f32.mrf.mxu0
    %v3969 = vadd.f32 %v3616, %v3968
    %v3970 = vpop.f32.mrf.mxu0
    %v3971 = vadd.f32 %v3618, %v3970
    %v3972 = vpop.f32.mrf.mxu0
    %v3973 = vadd.f32 %v3620, %v3972
    %3974 = vmatprep.mubr.bf16.mxu0 %v1586
    %3975 = vmatmul.mubr.bf16.gmra.mxu0 %v1585
    %v3976 = vpop.f32.mrf.mxu0
    %v3977 = vadd.f32 %v3624, %v3976
    %v3978 = vpop.f32.mrf.mxu0
    %v3979 = vadd.f32 %v3626, %v3978
    %v3980 = vpop.f32.mrf.mxu0
    %v3981 = vadd.f32 %v3628, %v3980
    %v3982 = vpop.f32.mrf.mxu0
    %v3983 = vadd.f32 %v3630, %v3982
    %3984 = vmatprep.mubr.bf16.mxu0 %v1593
    %3985 = vmatmul.mubr.bf16.gmra.mxu0 %v1592
    %v3986 = vpop.f32.mrf.mxu0
    %v3987 = vadd.f32 %v3634, %v3986
    %v3988 = vpop.f32.mrf.mxu0
    %v3989 = vadd.f32 %v3636, %v3988
    %v3990 = vpop.f32.mrf.mxu0
    %v3991 = vadd.f32 %v3638, %v3990
    %v3992 = vpop.f32.mrf.mxu0
    %v3993 = vadd.f32 %v3640, %v3992
    %3994 = vmatprep.mubr.bf16.mxu0 %v1600
    %3995 = vmatmul.mubr.bf16.gmra.mxu0 %v1599
    %v3996 = vpop.f32.mrf.mxu0
    %v3997 = vadd.f32 %v3644, %v3996
    %v3998 = vpop.f32.mrf.mxu0
    %v3999 = vadd.f32 %v3646, %v3998
    %v4000 = vpop.f32.mrf.mxu0
    %v4001 = vadd.f32 %v3648, %v4000
    %v4002 = vpop.f32.mrf.mxu0
    %v4003 = vadd.f32 %v3650, %v4002
    %4004 = vdwg.mxu0
    %4005 = vmatprep.subr.bf16.mxu0 %v2719
    %4006 = vmatpush1.bf16.msra.mxu0 %v2718
    %4007 = vmatprep.subr.bf16.mxu0 %v2715
    %4008 = vmatpush1.bf16.msra.mxu0 %v2714
    %4009 = vmatprep.subr.bf16.mxu0 %v2711
    %4010 = vmatpush1.bf16.msra.mxu0 %v2710
    %4011 = vmatprep.subr.bf16.mxu0 %v2707
    %4012 = vmatpush1.bf16.msra.mxu0 %v2706
    %4013 = vmatprep.subr.bf16.mxu0 %v2703
    %4014 = vmatpush1.bf16.msra.mxu0 %v2702
    %4015 = vmatprep.subr.bf16.mxu0 %v2699
    %4016 = vmatpush1.bf16.msra.mxu0 %v2698
    %4017 = vmatprep.subr.bf16.mxu0 %v2695
    %4018 = vmatpush1.bf16.msra.mxu0 %v2694
    %4019 = vmatprep.subr.bf16.mxu0 %v2691
    %4020 = vmatpush1.bf16.msra.mxu0 %v2690
    %4021 = vmatprep.subr.bf16.mxu0 0
    %4022 = vmatpush2.bf16.msra.mxu0 0
    %4023 = vmatprep.subr.bf16.mxu0 0
    %4024 = vmatpush2.bf16.msra.mxu0 0
    %4025 = vmatprep.subr.bf16.mxu0 0
    %4026 = vmatpush2.bf16.msra.mxu0 0
    %4027 = vmatprep.subr.bf16.mxu0 0
    %4028 = vmatpush2.bf16.msra.mxu0 0
    %4029 = vmatprep.subr.bf16.mxu0 0
    %4030 = vmatpush2.bf16.msra.mxu0 0
    %4031 = vmatprep.subr.bf16.mxu0 0
    %4032 = vmatpush2.bf16.msra.mxu0 0
    %4033 = vmatprep.subr.bf16.mxu0 0
    %4034 = vmatpush2.bf16.msra.mxu0 0
    %4035 = vmatprep.subr.bf16.mxu0 0
    %4036 = vmatpush2.bf16.msra.mxu0 0
    %4037 = vmatprep.mubr.bf16.mxu0 0
    %4038 = vmatmul.mubr.bf16.gmra.mxu0 %v1384
    %v4039 = vpop.f32.mrf.mxu0
    %v4040 = vadd.f32 %v3687, %v4039
    %v4041 = vpop.f32.mrf.mxu0
    %v4042 = vadd.f32 %v3689, %v4041
    %v4043 = vpop.f32.mrf.mxu0
    %v4044 = vadd.f32 %v3691, %v4043
    %v4045 = vpop.f32.mrf.mxu0
    %v4046 = vadd.f32 %v3693, %v4045
    %4047 = vmatprep.mubr.bf16.mxu0 0
    %4048 = vmatmul.mubr.bf16.gmra.mxu0 %v1391
    %v4049 = vpop.f32.mrf.mxu0
    %v4050 = vadd.f32 %v3697, %v4049
    %v4051 = vpop.f32.mrf.mxu0
    %v4052 = vadd.f32 %v3699, %v4051
    %v4053 = vpop.f32.mrf.mxu0
    %v4054 = vadd.f32 %v3701, %v4053
    %v4055 = vpop.f32.mrf.mxu0
    %v4056 = vadd.f32 %v3703, %v4055
    %4057 = vmatprep.mubr.bf16.mxu0 0
    %4058 = vmatmul.mubr.bf16.gmra.mxu0 %v1398
    %v4059 = vpop.f32.mrf.mxu0
    %v4060 = vadd.f32 %v3707, %v4059
    %v4061 = vpop.f32.mrf.mxu0
    %v4062 = vadd.f32 %v3709, %v4061
    %v4063 = vpop.f32.mrf.mxu0
    %v4064 = vadd.f32 %v3711, %v4063
    %v4065 = vpop.f32.mrf.mxu0
    %v4066 = vadd.f32 %v3713, %v4065
    %4067 = vmatprep.mubr.bf16.mxu0 0
    %4068 = vmatmul.mubr.bf16.gmra.mxu0 %v1405
    %v4069 = vpop.f32.mrf.mxu0
    %v4070 = vadd.f32 %v3717, %v4069
    %v4071 = vpop.f32.mrf.mxu0
    %v4072 = vadd.f32 %v3719, %v4071
    %v4073 = vpop.f32.mrf.mxu0
    %v4074 = vadd.f32 %v3721, %v4073
    %v4075 = vpop.f32.mrf.mxu0
    %v4076 = vadd.f32 %v3723, %v4075
    %4077 = vmatprep.mubr.bf16.mxu0 0
    %4078 = vmatmul.mubr.bf16.gmra.mxu0 %v1412
    %v4079 = vpop.f32.mrf.mxu0
    %v4080 = vadd.f32 %v3727, %v4079
    %v4081 = vpop.f32.mrf.mxu0
    %v4082 = vadd.f32 %v3729, %v4081
    %v4083 = vpop.f32.mrf.mxu0
    %v4084 = vadd.f32 %v3731, %v4083
    %v4085 = vpop.f32.mrf.mxu0
    %v4086 = vadd.f32 %v3733, %v4085
    %4087 = vmatprep.mubr.bf16.mxu0 0
    %4088 = vmatmul.mubr.bf16.gmra.mxu0 %v1419
    %v4089 = vpop.f32.mrf.mxu0
    %v4090 = vadd.f32 %v3737, %v4089
    %v4091 = vpop.f32.mrf.mxu0
    %v4092 = vadd.f32 %v3739, %v4091
    %v4093 = vpop.f32.mrf.mxu0
    %v4094 = vadd.f32 %v3741, %v4093
    %v4095 = vpop.f32.mrf.mxu0
    %v4096 = vadd.f32 %v3743, %v4095
    %4097 = vmatprep.mubr.bf16.mxu0 0
    %4098 = vmatmul.mubr.bf16.gmra.mxu0 %v1426
    %v4099 = vpop.f32.mrf.mxu0
    %v4100 = vadd.f32 %v3747, %v4099
    %v4101 = vpop.f32.mrf.mxu0
    %v4102 = vadd.f32 %v3749, %v4101
    %v4103 = vpop.f32.mrf.mxu0
    %v4104 = vadd.f32 %v3751, %v4103
    %v4105 = vpop.f32.mrf.mxu0
    %v4106 = vadd.f32 %v3753, %v4105
    %4107 = vmatprep.mubr.bf16.mxu0 0
    %4108 = vmatmul.mubr.bf16.gmra.mxu0 %v1433
    %v4109 = vpop.f32.mrf.mxu0
    %v4110 = vadd.f32 %v3757, %v4109
    %v4111 = vpop.f32.mrf.mxu0
    %v4112 = vadd.f32 %v3759, %v4111
    %v4113 = vpop.f32.mrf.mxu0
    %v4114 = vadd.f32 %v3761, %v4113
    %v4115 = vpop.f32.mrf.mxu0
    %v4116 = vadd.f32 %v3763, %v4115
    %4117 = vmatprep.mubr.bf16.mxu0 0
    %4118 = vmatmul.mubr.bf16.gmra.mxu0 %v1440
    %v4119 = vpop.f32.mrf.mxu0
    %v4120 = vadd.f32 %v3767, %v4119
    %v4121 = vpop.f32.mrf.mxu0
    %v4122 = vadd.f32 %v3769, %v4121
    %v4123 = vpop.f32.mrf.mxu0
    %v4124 = vadd.f32 %v3771, %v4123
    %v4125 = vpop.f32.mrf.mxu0
    %v4126 = vadd.f32 %v3773, %v4125
    %4127 = vmatprep.mubr.bf16.mxu0 0
    %4128 = vmatmul.mubr.bf16.gmra.mxu0 %v1447
    %v4129 = vpop.f32.mrf.mxu0
    %v4130 = vadd.f32 %v3777, %v4129
    %v4131 = vpop.f32.mrf.mxu0
    %v4132 = vadd.f32 %v3779, %v4131
    %v4133 = vpop.f32.mrf.mxu0
    %v4134 = vadd.f32 %v3781, %v4133
    %v4135 = vpop.f32.mrf.mxu0
    %v4136 = vadd.f32 %v3783, %v4135
    %4137 = vmatprep.mubr.bf16.mxu0 0
    %4138 = vmatmul.mubr.bf16.gmra.mxu0 %v1454
    %v4139 = vpop.f32.mrf.mxu0
    %v4140 = vadd.f32 %v3787, %v4139
    %v4141 = vpop.f32.mrf.mxu0
    %v4142 = vadd.f32 %v3789, %v4141
    %v4143 = vpop.f32.mrf.mxu0
    %v4144 = vadd.f32 %v3791, %v4143
    %v4145 = vpop.f32.mrf.mxu0
    %v4146 = vadd.f32 %v3793, %v4145
    %4147 = vmatprep.mubr.bf16.mxu0 0
    %4148 = vmatmul.mubr.bf16.gmra.mxu0 %v1461
    %v4149 = vpop.f32.mrf.mxu0
    %v4150 = vadd.f32 %v3797, %v4149
    %v4151 = vpop.f32.mrf.mxu0
    %v4152 = vadd.f32 %v3799, %v4151
    %v4153 = vpop.f32.mrf.mxu0
    %v4154 = vadd.f32 %v3801, %v4153
    %v4155 = vpop.f32.mrf.mxu0
    %v4156 = vadd.f32 %v3803, %v4155
    %4157 = vmatprep.mubr.bf16.mxu0 0
    %4158 = vmatmul.mubr.bf16.gmra.mxu0 %v1468
    %v4159 = vpop.f32.mrf.mxu0
    %v4160 = vadd.f32 %v3807, %v4159
    %v4161 = vpop.f32.mrf.mxu0
    %v4162 = vadd.f32 %v3809, %v4161
    %v4163 = vpop.f32.mrf.mxu0
    %v4164 = vadd.f32 %v3811, %v4163
    %v4165 = vpop.f32.mrf.mxu0
    %v4166 = vadd.f32 %v3813, %v4165
    %4167 = vmatprep.mubr.bf16.mxu0 0
    %4168 = vmatmul.mubr.bf16.gmra.mxu0 %v1475
    %v4169 = vpop.f32.mrf.mxu0
    %v4170 = vadd.f32 %v3817, %v4169
    %v4171 = vpop.f32.mrf.mxu0
    %v4172 = vadd.f32 %v3819, %v4171
    %v4173 = vpop.f32.mrf.mxu0
    %v4174 = vadd.f32 %v3821, %v4173
    %v4175 = vpop.f32.mrf.mxu0
    %v4176 = vadd.f32 %v3823, %v4175
    %4177 = vmatprep.mubr.bf16.mxu0 0
    %4178 = vmatmul.mubr.bf16.gmra.mxu0 %v1482
    %v4179 = vpop.f32.mrf.mxu0
    %v4180 = vadd.f32 %v3827, %v4179
    %v4181 = vpop.f32.mrf.mxu0
    %v4182 = vadd.f32 %v3829, %v4181
    %v4183 = vpop.f32.mrf.mxu0
    %v4184 = vadd.f32 %v3831, %v4183
    %v4185 = vpop.f32.mrf.mxu0
    %v4186 = vadd.f32 %v3833, %v4185
    %4187 = vmatprep.mubr.bf16.mxu0 0
    %4188 = vmatmul.mubr.bf16.gmra.mxu0 %v1489
    %v4189 = vpop.f32.mrf.mxu0
    %v4190 = vadd.f32 %v3837, %v4189
    %v4191 = vpop.f32.mrf.mxu0
    %v4192 = vadd.f32 %v3839, %v4191
    %v4193 = vpop.f32.mrf.mxu0
    %v4194 = vadd.f32 %v3841, %v4193
    %v4195 = vpop.f32.mrf.mxu0
    %v4196 = vadd.f32 %v3843, %v4195
    %4197 = vmatprep.mubr.bf16.mxu0 0
    %4198 = vmatmul.mubr.bf16.gmra.mxu0 %v1496
    %v4199 = vpop.f32.mrf.mxu0
    %v4200 = vadd.f32 %v3847, %v4199
    %v4201 = vpop.f32.mrf.mxu0
    %v4202 = vadd.f32 %v3849, %v4201
    %v4203 = vpop.f32.mrf.mxu0
    %v4204 = vadd.f32 %v3851, %v4203
    %v4205 = vpop.f32.mrf.mxu0
    %v4206 = vadd.f32 %v3853, %v4205
    %4207 = vmatprep.mubr.bf16.mxu0 0
    %4208 = vmatmul.mubr.bf16.gmra.mxu0 %v1503
    %v4209 = vpop.f32.mrf.mxu0
    %v4210 = vadd.f32 %v3857, %v4209
    %v4211 = vpop.f32.mrf.mxu0
    %v4212 = vadd.f32 %v3859, %v4211
    %v4213 = vpop.f32.mrf.mxu0
    %v4214 = vadd.f32 %v3861, %v4213
    %v4215 = vpop.f32.mrf.mxu0
    %v4216 = vadd.f32 %v3863, %v4215
    %4217 = vmatprep.mubr.bf16.mxu0 0
    %4218 = vmatmul.mubr.bf16.gmra.mxu0 %v1510
    %v4219 = vpop.f32.mrf.mxu0
    %v4220 = vadd.f32 %v3867, %v4219
    %v4221 = vpop.f32.mrf.mxu0
    %v4222 = vadd.f32 %v3869, %v4221
    %v4223 = vpop.f32.mrf.mxu0
    %v4224 = vadd.f32 %v3871, %v4223
    %v4225 = vpop.f32.mrf.mxu0
    %v4226 = vadd.f32 %v3873, %v4225
    %4227 = vmatprep.mubr.bf16.mxu0 0
    %4228 = vmatmul.mubr.bf16.gmra.mxu0 %v1517
    %v4229 = vpop.f32.mrf.mxu0
    %v4230 = vadd.f32 %v3877, %v4229
    %v4231 = vpop.f32.mrf.mxu0
    %v4232 = vadd.f32 %v3879, %v4231
    %v4233 = vpop.f32.mrf.mxu0
    %v4234 = vadd.f32 %v3881, %v4233
    %v4235 = vpop.f32.mrf.mxu0
    %v4236 = vadd.f32 %v3883, %v4235
    %4237 = vmatprep.mubr.bf16.mxu0 0
    %4238 = vmatmul.mubr.bf16.gmra.mxu0 %v1524
    %v4239 = vpop.f32.mrf.mxu0
    %v4240 = vadd.f32 %v3887, %v4239
    %v4241 = vpop.f32.mrf.mxu0
    %v4242 = vadd.f32 %v3889, %v4241
    %v4243 = vpop.f32.mrf.mxu0
    %v4244 = vadd.f32 %v3891, %v4243
    %v4245 = vpop.f32.mrf.mxu0
    %v4246 = vadd.f32 %v3893, %v4245
    %4247 = vmatprep.mubr.bf16.mxu0 0
    %4248 = vmatmul.mubr.bf16.gmra.mxu0 %v1531
    %v4249 = vpop.f32.mrf.mxu0
    %v4250 = vadd.f32 %v3897, %v4249
    %v4251 = vpop.f32.mrf.mxu0
    %v4252 = vadd.f32 %v3899, %v4251
    %v4253 = vpop.f32.mrf.mxu0
    %v4254 = vadd.f32 %v3901, %v4253
    %v4255 = vpop.f32.mrf.mxu0
    %v4256 = vadd.f32 %v3903, %v4255
    %4257 = vmatprep.mubr.bf16.mxu0 0
    %4258 = vmatmul.mubr.bf16.gmra.mxu0 %v1538
    %v4259 = vpop.f32.mrf.mxu0
    %v4260 = vadd.f32 %v3907, %v4259
    %v4261 = vpop.f32.mrf.mxu0
    %v4262 = vadd.f32 %v3909, %v4261
    %v4263 = vpop.f32.mrf.mxu0
    %v4264 = vadd.f32 %v3911, %v4263
    %v4265 = vpop.f32.mrf.mxu0
    %v4266 = vadd.f32 %v3913, %v4265
    %4267 = vmatprep.mubr.bf16.mxu0 0
    %4268 = vmatmul.mubr.bf16.gmra.mxu0 %v1545
    %v4269 = vpop.f32.mrf.mxu0
    %v4270 = vadd.f32 %v3917, %v4269
    %v4271 = vpop.f32.mrf.mxu0
    %v4272 = vadd.f32 %v3919, %v4271
    %v4273 = vpop.f32.mrf.mxu0
    %v4274 = vadd.f32 %v3921, %v4273
    %v4275 = vpop.f32.mrf.mxu0
    %v4276 = vadd.f32 %v3923, %v4275
    %4277 = vmatprep.mubr.bf16.mxu0 0
    %4278 = vmatmul.mubr.bf16.gmra.mxu0 %v1552
    %v4279 = vpop.f32.mrf.mxu0
    %v4280 = vadd.f32 %v3927, %v4279
    %v4281 = vpop.f32.mrf.mxu0
    %v4282 = vadd.f32 %v3929, %v4281
    %v4283 = vpop.f32.mrf.mxu0
    %v4284 = vadd.f32 %v3931, %v4283
    %v4285 = vpop.f32.mrf.mxu0
    %v4286 = vadd.f32 %v3933, %v4285
    %4287 = vmatprep.mubr.bf16.mxu0 0
    %4288 = vmatmul.mubr.bf16.gmra.mxu0 %v1559
    %v4289 = vpop.f32.mrf.mxu0
    %v4290 = vadd.f32 %v3937, %v4289
    %v4291 = vpop.f32.mrf.mxu0
    %v4292 = vadd.f32 %v3939, %v4291
    %v4293 = vpop.f32.mrf.mxu0
    %v4294 = vadd.f32 %v3941, %v4293
    %v4295 = vpop.f32.mrf.mxu0
    %v4296 = vadd.f32 %v3943, %v4295
    %4297 = vmatprep.mubr.bf16.mxu0 0
    %4298 = vmatmul.mubr.bf16.gmra.mxu0 %v1566
    %v4299 = vpop.f32.mrf.mxu0
    %v4300 = vadd.f32 %v3947, %v4299
    %v4301 = vpop.f32.mrf.mxu0
    %v4302 = vadd.f32 %v3949, %v4301
    %v4303 = vpop.f32.mrf.mxu0
    %v4304 = vadd.f32 %v3951, %v4303
    %v4305 = vpop.f32.mrf.mxu0
    %v4306 = vadd.f32 %v3953, %v4305
    %4307 = vmatprep.mubr.bf16.mxu0 0
    %4308 = vmatmul.mubr.bf16.gmra.mxu0 %v1573
    %v4309 = vpop.f32.mrf.mxu0
    %v4310 = vadd.f32 %v3957, %v4309
    %v4311 = vpop.f32.mrf.mxu0
    %v4312 = vadd.f32 %v3959, %v4311
    %v4313 = vpop.f32.mrf.mxu0
    %v4314 = vadd.f32 %v3961, %v4313
    %v4315 = vpop.f32.mrf.mxu0
    %v4316 = vadd.f32 %v3963, %v4315
    %4317 = vmatprep.mubr.bf16.mxu0 0
    %4318 = vmatmul.mubr.bf16.gmra.mxu0 %v1580
    %v4319 = vpop.f32.mrf.mxu0
    %v4320 = vadd.f32 %v3967, %v4319
    %v4321 = vpop.f32.mrf.mxu0
    %v4322 = vadd.f32 %v3969, %v4321
    %v4323 = vpop.f32.mrf.mxu0
    %v4324 = vadd.f32 %v3971, %v4323
    %v4325 = vpop.f32.mrf.mxu0
    %v4326 = vadd.f32 %v3973, %v4325
    %4327 = vmatprep.mubr.bf16.mxu0 0
    %4328 = vmatmul.mubr.bf16.gmra.mxu0 %v1587
    %v4329 = vpop.f32.mrf.mxu0
    %v4330 = vadd.f32 %v3977, %v4329
    %v4331 = vpop.f32.mrf.mxu0
    %v4332 = vadd.f32 %v3979, %v4331
    %v4333 = vpop.f32.mrf.mxu0
    %v4334 = vadd.f32 %v3981, %v4333
    %v4335 = vpop.f32.mrf.mxu0
    %v4336 = vadd.f32 %v3983, %v4335
    %4337 = vmatprep.mubr.bf16.mxu0 0
    %4338 = vmatmul.mubr.bf16.gmra.mxu0 %v1594
    %v4339 = vpop.f32.mrf.mxu0
    %v4340 = vadd.f32 %v3987, %v4339
    %v4341 = vpop.f32.mrf.mxu0
    %v4342 = vadd.f32 %v3989, %v4341
    %v4343 = vpop.f32.mrf.mxu0
    %v4344 = vadd.f32 %v3991, %v4343
    %v4345 = vpop.f32.mrf.mxu0
    %v4346 = vadd.f32 %v3993, %v4345
    %4347 = vmatprep.mubr.bf16.mxu0 0
    %4348 = vmatmul.mubr.bf16.gmra.mxu0 %v1601
    %v4349 = vpop.f32.mrf.mxu0
    %v4350 = vadd.f32 %v3997, %v4349
    %v4351 = vpop.f32.mrf.mxu0
    %v4352 = vadd.f32 %v3999, %v4351
    %v4353 = vpop.f32.mrf.mxu0
    %v4354 = vadd.f32 %v4001, %v4353
    %v4355 = vpop.f32.mrf.mxu0
    %v4356 = vadd.f32 %v4003, %v4355
    %4357 = vdwg.mxu0
    %4358 = vmatprep.subr.bf16.mxu0 %v2529
    %4359 = vmatpush1.bf16.msra.mxu0 %v2528
    %4360 = vmatprep.subr.bf16.mxu0 %v2525
    %4361 = vmatpush1.bf16.msra.mxu0 %v2524
    %4362 = vmatprep.subr.bf16.mxu0 %v2521
    %4363 = vmatpush1.bf16.msra.mxu0 %v2520
    %4364 = vmatprep.subr.bf16.mxu0 %v2517
    %4365 = vmatpush1.bf16.msra.mxu0 %v2516
    %4366 = vmatprep.subr.bf16.mxu0 %v2513
    %4367 = vmatpush1.bf16.msra.mxu0 %v2512
    %4368 = vmatprep.subr.bf16.mxu0 %v2509
    %4369 = vmatpush1.bf16.msra.mxu0 %v2508
    %4370 = vmatprep.subr.bf16.mxu0 %v2505
    %4371 = vmatpush1.bf16.msra.mxu0 %v2504
    %4372 = vmatprep.subr.bf16.mxu0 %v2501
    %4373 = vmatpush1.bf16.msra.mxu0 %v2500
    %4374 = vmatprep.subr.bf16.mxu0 %v2561
    %4375 = vmatpush2.bf16.msra.mxu0 %v2560
    %4376 = vmatprep.subr.bf16.mxu0 %v2557
    %4377 = vmatpush2.bf16.msra.mxu0 %v2556
    %4378 = vmatprep.subr.bf16.mxu0 %v2553
    %4379 = vmatpush2.bf16.msra.mxu0 %v2552
    %4380 = vmatprep.subr.bf16.mxu0 %v2549
    %4381 = vmatpush2.bf16.msra.mxu0 %v2548
    %4382 = vmatprep.subr.bf16.mxu0 %v2545
    %4383 = vmatpush2.bf16.msra.mxu0 %v2544
    %4384 = vmatprep.subr.bf16.mxu0 %v2541
    %4385 = vmatpush2.bf16.msra.mxu0 %v2540
    %4386 = vmatprep.subr.bf16.mxu0 %v2537
    %4387 = vmatpush2.bf16.msra.mxu0 %v2536
    %4388 = vmatprep.subr.bf16.mxu0 %v2533
    %4389 = vmatpush2.bf16.msra.mxu0 %v2532
    %4390 = vmatprep.mubr.bf16.mxu0 %v1379
    %4391 = vmatmul.mubr.bf16.gmra.mxu0 %v1378
    %v4392 = vpop.f32.mrf.mxu0
    %v4393 = vadd.f32 %v665, %v4392
    %v4394 = vpop.f32.mrf.mxu0
    %v4395 = vadd.f32 %v669, %v4394
    %v4396 = vpop.f32.mrf.mxu0
    %v4397 = vadd.f32 %v665, %v4396
    %v4398 = vpop.f32.mrf.mxu0
    %v4399 = vadd.f32 %v669, %v4398
    %4400 = vmatprep.mubr.bf16.mxu0 %v1386
    %4401 = vmatmul.mubr.bf16.gmra.mxu0 %v1385
    %v4402 = vpop.f32.mrf.mxu0
    %v4403 = vadd.f32 %v665, %v4402
    %v4404 = vpop.f32.mrf.mxu0
    %v4405 = vadd.f32 %v669, %v4404
    %v4406 = vpop.f32.mrf.mxu0
    %v4407 = vadd.f32 %v665, %v4406
    %v4408 = vpop.f32.mrf.mxu0
    %v4409 = vadd.f32 %v669, %v4408
    %4410 = vmatprep.mubr.bf16.mxu0 %v1393
    %4411 = vmatmul.mubr.bf16.gmra.mxu0 %v1392
    %v4412 = vpop.f32.mrf.mxu0
    %v4413 = vadd.f32 %v665, %v4412
    %v4414 = vpop.f32.mrf.mxu0
    %v4415 = vadd.f32 %v669, %v4414
    %v4416 = vpop.f32.mrf.mxu0
    %v4417 = vadd.f32 %v665, %v4416
    %v4418 = vpop.f32.mrf.mxu0
    %v4419 = vadd.f32 %v669, %v4418
    %4420 = vmatprep.mubr.bf16.mxu0 %v1400
    %4421 = vmatmul.mubr.bf16.gmra.mxu0 %v1399
    %v4422 = vpop.f32.mrf.mxu0
    %v4423 = vadd.f32 %v665, %v4422
    %v4424 = vpop.f32.mrf.mxu0
    %v4425 = vadd.f32 %v669, %v4424
    %v4426 = vpop.f32.mrf.mxu0
    %v4427 = vadd.f32 %v665, %v4426
    %v4428 = vpop.f32.mrf.mxu0
    %v4429 = vadd.f32 %v669, %v4428
    %4430 = vmatprep.mubr.bf16.mxu0 %v1407
    %4431 = vmatmul.mubr.bf16.gmra.mxu0 %v1406
    %v4432 = vpop.f32.mrf.mxu0
    %v4433 = vadd.f32 %v665, %v4432
    %v4434 = vpop.f32.mrf.mxu0
    %v4435 = vadd.f32 %v669, %v4434
    %v4436 = vpop.f32.mrf.mxu0
    %v4437 = vadd.f32 %v665, %v4436
    %v4438 = vpop.f32.mrf.mxu0
    %v4439 = vadd.f32 %v669, %v4438
    %4440 = vmatprep.mubr.bf16.mxu0 %v1414
    %4441 = vmatmul.mubr.bf16.gmra.mxu0 %v1413
    %v4442 = vpop.f32.mrf.mxu0
    %v4443 = vadd.f32 %v665, %v4442
    %v4444 = vpop.f32.mrf.mxu0
    %v4445 = vadd.f32 %v669, %v4444
    %v4446 = vpop.f32.mrf.mxu0
    %v4447 = vadd.f32 %v665, %v4446
    %v4448 = vpop.f32.mrf.mxu0
    %v4449 = vadd.f32 %v669, %v4448
    %4450 = vmatprep.mubr.bf16.mxu0 %v1421
    %4451 = vmatmul.mubr.bf16.gmra.mxu0 %v1420
    %v4452 = vpop.f32.mrf.mxu0
    %v4453 = vadd.f32 %v665, %v4452
    %v4454 = vpop.f32.mrf.mxu0
    %v4455 = vadd.f32 %v669, %v4454
    %v4456 = vpop.f32.mrf.mxu0
    %v4457 = vadd.f32 %v665, %v4456
    %v4458 = vpop.f32.mrf.mxu0
    %v4459 = vadd.f32 %v669, %v4458
    %4460 = vmatprep.mubr.bf16.mxu0 %v1428
    %4461 = vmatmul.mubr.bf16.gmra.mxu0 %v1427
    %v4462 = vpop.f32.mrf.mxu0
    %v4463 = vadd.f32 %v665, %v4462
    %v4464 = vpop.f32.mrf.mxu0
    %v4465 = vadd.f32 %v669, %v4464
    %v4466 = vpop.f32.mrf.mxu0
    %v4467 = vadd.f32 %v665, %v4466
    %v4468 = vpop.f32.mrf.mxu0
    %v4469 = vadd.f32 %v669, %v4468
    %4470 = vmatprep.mubr.bf16.mxu0 %v1435
    %4471 = vmatmul.mubr.bf16.gmra.mxu0 %v1434
    %v4472 = vpop.f32.mrf.mxu0
    %v4473 = vadd.f32 %v665, %v4472
    %v4474 = vpop.f32.mrf.mxu0
    %v4475 = vadd.f32 %v669, %v4474
    %v4476 = vpop.f32.mrf.mxu0
    %v4477 = vadd.f32 %v665, %v4476
    %v4478 = vpop.f32.mrf.mxu0
    %v4479 = vadd.f32 %v669, %v4478
    %4480 = vmatprep.mubr.bf16.mxu0 %v1442
    %4481 = vmatmul.mubr.bf16.gmra.mxu0 %v1441
    %v4482 = vpop.f32.mrf.mxu0
    %v4483 = vadd.f32 %v665, %v4482
    %v4484 = vpop.f32.mrf.mxu0
    %v4485 = vadd.f32 %v669, %v4484
    %v4486 = vpop.f32.mrf.mxu0
    %v4487 = vadd.f32 %v665, %v4486
    %v4488 = vpop.f32.mrf.mxu0
    %v4489 = vadd.f32 %v669, %v4488
    %4490 = vmatprep.mubr.bf16.mxu0 %v1449
    %4491 = vmatmul.mubr.bf16.gmra.mxu0 %v1448
    %v4492 = vpop.f32.mrf.mxu0
    %v4493 = vadd.f32 %v665, %v4492
    %v4494 = vpop.f32.mrf.mxu0
    %v4495 = vadd.f32 %v669, %v4494
    %v4496 = vpop.f32.mrf.mxu0
    %v4497 = vadd.f32 %v665, %v4496
    %v4498 = vpop.f32.mrf.mxu0
    %v4499 = vadd.f32 %v669, %v4498
    %4500 = vmatprep.mubr.bf16.mxu0 %v1456
    %4501 = vmatmul.mubr.bf16.gmra.mxu0 %v1455
    %v4502 = vpop.f32.mrf.mxu0
    %v4503 = vadd.f32 %v665, %v4502
    %v4504 = vpop.f32.mrf.mxu0
    %v4505 = vadd.f32 %v669, %v4504
    %v4506 = vpop.f32.mrf.mxu0
    %v4507 = vadd.f32 %v665, %v4506
    %v4508 = vpop.f32.mrf.mxu0
    %v4509 = vadd.f32 %v669, %v4508
    %4510 = vmatprep.mubr.bf16.mxu0 %v1463
    %4511 = vmatmul.mubr.bf16.gmra.mxu0 %v1462
    %v4512 = vpop.f32.mrf.mxu0
    %v4513 = vadd.f32 %v665, %v4512
    %v4514 = vpop.f32.mrf.mxu0
    %v4515 = vadd.f32 %v669, %v4514
    %v4516 = vpop.f32.mrf.mxu0
    %v4517 = vadd.f32 %v665, %v4516
    %v4518 = vpop.f32.mrf.mxu0
    %v4519 = vadd.f32 %v669, %v4518
    %4520 = vmatprep.mubr.bf16.mxu0 %v1470
    %4521 = vmatmul.mubr.bf16.gmra.mxu0 %v1469
    %v4522 = vpop.f32.mrf.mxu0
    %v4523 = vadd.f32 %v665, %v4522
    %v4524 = vpop.f32.mrf.mxu0
    %v4525 = vadd.f32 %v669, %v4524
    %v4526 = vpop.f32.mrf.mxu0
    %v4527 = vadd.f32 %v665, %v4526
    %v4528 = vpop.f32.mrf.mxu0
    %v4529 = vadd.f32 %v669, %v4528
    %4530 = vmatprep.mubr.bf16.mxu0 %v1477
    %4531 = vmatmul.mubr.bf16.gmra.mxu0 %v1476
    %v4532 = vpop.f32.mrf.mxu0
    %v4533 = vadd.f32 %v665, %v4532
    %v4534 = vpop.f32.mrf.mxu0
    %v4535 = vadd.f32 %v669, %v4534
    %v4536 = vpop.f32.mrf.mxu0
    %v4537 = vadd.f32 %v665, %v4536
    %v4538 = vpop.f32.mrf.mxu0
    %v4539 = vadd.f32 %v669, %v4538
    %4540 = vmatprep.mubr.bf16.mxu0 %v1484
    %4541 = vmatmul.mubr.bf16.gmra.mxu0 %v1483
    %v4542 = vpop.f32.mrf.mxu0
    %v4543 = vadd.f32 %v665, %v4542
    %v4544 = vpop.f32.mrf.mxu0
    %v4545 = vadd.f32 %v669, %v4544
    %v4546 = vpop.f32.mrf.mxu0
    %v4547 = vadd.f32 %v665, %v4546
    %v4548 = vpop.f32.mrf.mxu0
    %v4549 = vadd.f32 %v669, %v4548
    %4550 = vmatprep.mubr.bf16.mxu0 %v1491
    %4551 = vmatmul.mubr.bf16.gmra.mxu0 %v1490
    %v4552 = vpop.f32.mrf.mxu0
    %v4553 = vadd.f32 %v665, %v4552
    %v4554 = vpop.f32.mrf.mxu0
    %v4555 = vadd.f32 %v669, %v4554
    %v4556 = vpop.f32.mrf.mxu0
    %v4557 = vadd.f32 %v665, %v4556
    %v4558 = vpop.f32.mrf.mxu0
    %v4559 = vadd.f32 %v669, %v4558
    %4560 = vmatprep.mubr.bf16.mxu0 %v1498
    %4561 = vmatmul.mubr.bf16.gmra.mxu0 %v1497
    %v4562 = vpop.f32.mrf.mxu0
    %v4563 = vadd.f32 %v665, %v4562
    %v4564 = vpop.f32.mrf.mxu0
    %v4565 = vadd.f32 %v669, %v4564
    %v4566 = vpop.f32.mrf.mxu0
    %v4567 = vadd.f32 %v665, %v4566
    %v4568 = vpop.f32.mrf.mxu0
    %v4569 = vadd.f32 %v669, %v4568
    %4570 = vmatprep.mubr.bf16.mxu0 %v1505
    %4571 = vmatmul.mubr.bf16.gmra.mxu0 %v1504
    %v4572 = vpop.f32.mrf.mxu0
    %v4573 = vadd.f32 %v665, %v4572
    %v4574 = vpop.f32.mrf.mxu0
    %v4575 = vadd.f32 %v669, %v4574
    %v4576 = vpop.f32.mrf.mxu0
    %v4577 = vadd.f32 %v665, %v4576
    %v4578 = vpop.f32.mrf.mxu0
    %v4579 = vadd.f32 %v669, %v4578
    %4580 = vmatprep.mubr.bf16.mxu0 %v1512
    %4581 = vmatmul.mubr.bf16.gmra.mxu0 %v1511
    %v4582 = vpop.f32.mrf.mxu0
    %v4583 = vadd.f32 %v665, %v4582
    %v4584 = vpop.f32.mrf.mxu0
    %v4585 = vadd.f32 %v669, %v4584
    %v4586 = vpop.f32.mrf.mxu0
    %v4587 = vadd.f32 %v665, %v4586
    %v4588 = vpop.f32.mrf.mxu0
    %v4589 = vadd.f32 %v669, %v4588
    %4590 = vmatprep.mubr.bf16.mxu0 %v1519
    %4591 = vmatmul.mubr.bf16.gmra.mxu0 %v1518
    %v4592 = vpop.f32.mrf.mxu0
    %v4593 = vadd.f32 %v665, %v4592
    %v4594 = vpop.f32.mrf.mxu0
    %v4595 = vadd.f32 %v669, %v4594
    %v4596 = vpop.f32.mrf.mxu0
    %v4597 = vadd.f32 %v665, %v4596
    %v4598 = vpop.f32.mrf.mxu0
    %v4599 = vadd.f32 %v669, %v4598
    %4600 = vmatprep.mubr.bf16.mxu0 %v1526
    %4601 = vmatmul.mubr.bf16.gmra.mxu0 %v1525
    %v4602 = vpop.f32.mrf.mxu0
    %v4603 = vadd.f32 %v665, %v4602
    %v4604 = vpop.f32.mrf.mxu0
    %v4605 = vadd.f32 %v669, %v4604
    %v4606 = vpop.f32.mrf.mxu0
    %v4607 = vadd.f32 %v665, %v4606
    %v4608 = vpop.f32.mrf.mxu0
    %v4609 = vadd.f32 %v669, %v4608
    %4610 = vmatprep.mubr.bf16.mxu0 %v1533
    %4611 = vmatmul.mubr.bf16.gmra.mxu0 %v1532
    %v4612 = vpop.f32.mrf.mxu0
    %v4613 = vadd.f32 %v665, %v4612
    %v4614 = vpop.f32.mrf.mxu0
    %v4615 = vadd.f32 %v669, %v4614
    %v4616 = vpop.f32.mrf.mxu0
    %v4617 = vadd.f32 %v665, %v4616
    %v4618 = vpop.f32.mrf.mxu0
    %v4619 = vadd.f32 %v669, %v4618
    %4620 = vmatprep.mubr.bf16.mxu0 %v1540
    %4621 = vmatmul.mubr.bf16.gmra.mxu0 %v1539
    %v4622 = vpop.f32.mrf.mxu0
    %v4623 = vadd.f32 %v665, %v4622
    %v4624 = vpop.f32.mrf.mxu0
    %v4625 = vadd.f32 %v669, %v4624
    %v4626 = vpop.f32.mrf.mxu0
    %v4627 = vadd.f32 %v665, %v4626
    %v4628 = vpop.f32.mrf.mxu0
    %v4629 = vadd.f32 %v669, %v4628
    %4630 = vmatprep.mubr.bf16.mxu0 %v1547
    %4631 = vmatmul.mubr.bf16.gmra.mxu0 %v1546
    %v4632 = vpop.f32.mrf.mxu0
    %v4633 = vadd.f32 %v665, %v4632
    %v4634 = vpop.f32.mrf.mxu0
    %v4635 = vadd.f32 %v669, %v4634
    %v4636 = vpop.f32.mrf.mxu0
    %v4637 = vadd.f32 %v665, %v4636
    %v4638 = vpop.f32.mrf.mxu0
    %v4639 = vadd.f32 %v669, %v4638
    %4640 = vmatprep.mubr.bf16.mxu0 %v1554
    %4641 = vmatmul.mubr.bf16.gmra.mxu0 %v1553
    %v4642 = vpop.f32.mrf.mxu0
    %v4643 = vadd.f32 %v665, %v4642
    %v4644 = vpop.f32.mrf.mxu0
    %v4645 = vadd.f32 %v669, %v4644
    %v4646 = vpop.f32.mrf.mxu0
    %v4647 = vadd.f32 %v665, %v4646
    %v4648 = vpop.f32.mrf.mxu0
    %v4649 = vadd.f32 %v669, %v4648
    %4650 = vmatprep.mubr.bf16.mxu0 %v1561
    %4651 = vmatmul.mubr.bf16.gmra.mxu0 %v1560
    %v4652 = vpop.f32.mrf.mxu0
    %v4653 = vadd.f32 %v665, %v4652
    %v4654 = vpop.f32.mrf.mxu0
    %v4655 = vadd.f32 %v669, %v4654
    %v4656 = vpop.f32.mrf.mxu0
    %v4657 = vadd.f32 %v665, %v4656
    %v4658 = vpop.f32.mrf.mxu0
    %v4659 = vadd.f32 %v669, %v4658
    %4660 = vmatprep.mubr.bf16.mxu0 %v1568
    %4661 = vmatmul.mubr.bf16.gmra.mxu0 %v1567
    %v4662 = vpop.f32.mrf.mxu0
    %v4663 = vadd.f32 %v665, %v4662
    %v4664 = vpop.f32.mrf.mxu0
    %v4665 = vadd.f32 %v669, %v4664
    %v4666 = vpop.f32.mrf.mxu0
    %v4667 = vadd.f32 %v665, %v4666
    %v4668 = vpop.f32.mrf.mxu0
    %v4669 = vadd.f32 %v669, %v4668
    %4670 = vmatprep.mubr.bf16.mxu0 %v1575
    %4671 = vmatmul.mubr.bf16.gmra.mxu0 %v1574
    %v4672 = vpop.f32.mrf.mxu0
    %v4673 = vadd.f32 %v665, %v4672
    %v4674 = vpop.f32.mrf.mxu0
    %v4675 = vadd.f32 %v669, %v4674
    %v4676 = vpop.f32.mrf.mxu0
    %v4677 = vadd.f32 %v665, %v4676
    %v4678 = vpop.f32.mrf.mxu0
    %v4679 = vadd.f32 %v669, %v4678
    %4680 = vmatprep.mubr.bf16.mxu0 %v1582
    %4681 = vmatmul.mubr.bf16.gmra.mxu0 %v1581
    %v4682 = vpop.f32.mrf.mxu0
    %v4683 = vadd.f32 %v665, %v4682
    %v4684 = vpop.f32.mrf.mxu0
    %v4685 = vadd.f32 %v669, %v4684
    %v4686 = vpop.f32.mrf.mxu0
    %v4687 = vadd.f32 %v665, %v4686
    %v4688 = vpop.f32.mrf.mxu0
    %v4689 = vadd.f32 %v669, %v4688
    %4690 = vmatprep.mubr.bf16.mxu0 %v1589
    %4691 = vmatmul.mubr.bf16.gmra.mxu0 %v1588
    %v4692 = vpop.f32.mrf.mxu0
    %v4693 = vadd.f32 %v665, %v4692
    %v4694 = vpop.f32.mrf.mxu0
    %v4695 = vadd.f32 %v669, %v4694
    %v4696 = vpop.f32.mrf.mxu0
    %v4697 = vadd.f32 %v665, %v4696
    %v4698 = vpop.f32.mrf.mxu0
    %v4699 = vadd.f32 %v669, %v4698
    %4700 = vmatprep.mubr.bf16.mxu0 %v1596
    %4701 = vmatmul.mubr.bf16.gmra.mxu0 %v1595
    %v4702 = vpop.f32.mrf.mxu0
    %v4703 = vadd.f32 %v665, %v4702
    %v4704 = vpop.f32.mrf.mxu0
    %v4705 = vadd.f32 %v669, %v4704
    %v4706 = vpop.f32.mrf.mxu0
    %v4707 = vadd.f32 %v665, %v4706
    %v4708 = vpop.f32.mrf.mxu0
    %v4709 = vadd.f32 %v669, %v4708
    %4710 = vdwg.mxu0
    %4711 = vmatprep.subr.bf16.mxu0 %v2593
    %4712 = vmatpush1.bf16.msra.mxu0 %v2592
    %4713 = vmatprep.subr.bf16.mxu0 %v2589
    %4714 = vmatpush1.bf16.msra.mxu0 %v2588
    %4715 = vmatprep.subr.bf16.mxu0 %v2585
    %4716 = vmatpush1.bf16.msra.mxu0 %v2584
    %4717 = vmatprep.subr.bf16.mxu0 %v2581
    %4718 = vmatpush1.bf16.msra.mxu0 %v2580
    %4719 = vmatprep.subr.bf16.mxu0 %v2577
    %4720 = vmatpush1.bf16.msra.mxu0 %v2576
    %4721 = vmatprep.subr.bf16.mxu0 %v2573
    %4722 = vmatpush1.bf16.msra.mxu0 %v2572
    %4723 = vmatprep.subr.bf16.mxu0 %v2569
    %4724 = vmatpush1.bf16.msra.mxu0 %v2568
    %4725 = vmatprep.subr.bf16.mxu0 %v2565
    %4726 = vmatpush1.bf16.msra.mxu0 %v2564
    %4727 = vmatprep.subr.bf16.mxu0 %v2625
    %4728 = vmatpush2.bf16.msra.mxu0 %v2624
    %4729 = vmatprep.subr.bf16.mxu0 %v2621
    %4730 = vmatpush2.bf16.msra.mxu0 %v2620
    %4731 = vmatprep.subr.bf16.mxu0 %v2617
    %4732 = vmatpush2.bf16.msra.mxu0 %v2616
    %4733 = vmatprep.subr.bf16.mxu0 %v2613
    %4734 = vmatpush2.bf16.msra.mxu0 %v2612
    %4735 = vmatprep.subr.bf16.mxu0 %v2609
    %4736 = vmatpush2.bf16.msra.mxu0 %v2608
    %4737 = vmatprep.subr.bf16.mxu0 %v2605
    %4738 = vmatpush2.bf16.msra.mxu0 %v2604
    %4739 = vmatprep.subr.bf16.mxu0 %v2601
    %4740 = vmatpush2.bf16.msra.mxu0 %v2600
    %4741 = vmatprep.subr.bf16.mxu0 %v2597
    %4742 = vmatpush2.bf16.msra.mxu0 %v2596
    %4743 = vmatprep.mubr.bf16.mxu0 %v1381
    %4744 = vmatmul.mubr.bf16.gmra.mxu0 %v1380
    %v4745 = vpop.f32.mrf.mxu0
    %v4746 = vadd.f32 %v4393, %v4745
    %v4747 = vpop.f32.mrf.mxu0
    %v4748 = vadd.f32 %v4395, %v4747
    %v4749 = vpop.f32.mrf.mxu0
    %v4750 = vadd.f32 %v4397, %v4749
    %v4751 = vpop.f32.mrf.mxu0
    %v4752 = vadd.f32 %v4399, %v4751
    %4753 = vmatprep.mubr.bf16.mxu0 %v1388
    %4754 = vmatmul.mubr.bf16.gmra.mxu0 %v1387
    %v4755 = vpop.f32.mrf.mxu0
    %v4756 = vadd.f32 %v4403, %v4755
    %v4757 = vpop.f32.mrf.mxu0
    %v4758 = vadd.f32 %v4405, %v4757
    %v4759 = vpop.f32.mrf.mxu0
    %v4760 = vadd.f32 %v4407, %v4759
    %v4761 = vpop.f32.mrf.mxu0
    %v4762 = vadd.f32 %v4409, %v4761
    %4763 = vmatprep.mubr.bf16.mxu0 %v1395
    %4764 = vmatmul.mubr.bf16.gmra.mxu0 %v1394
    %v4765 = vpop.f32.mrf.mxu0
    %v4766 = vadd.f32 %v4413, %v4765
    %v4767 = vpop.f32.mrf.mxu0
    %v4768 = vadd.f32 %v4415, %v4767
    %v4769 = vpop.f32.mrf.mxu0
    %v4770 = vadd.f32 %v4417, %v4769
    %v4771 = vpop.f32.mrf.mxu0
    %v4772 = vadd.f32 %v4419, %v4771
    %4773 = vmatprep.mubr.bf16.mxu0 %v1402
    %4774 = vmatmul.mubr.bf16.gmra.mxu0 %v1401
    %v4775 = vpop.f32.mrf.mxu0
    %v4776 = vadd.f32 %v4423, %v4775
    %v4777 = vpop.f32.mrf.mxu0
    %v4778 = vadd.f32 %v4425, %v4777
    %v4779 = vpop.f32.mrf.mxu0
    %v4780 = vadd.f32 %v4427, %v4779
    %v4781 = vpop.f32.mrf.mxu0
    %v4782 = vadd.f32 %v4429, %v4781
    %4783 = vmatprep.mubr.bf16.mxu0 %v1409
    %4784 = vmatmul.mubr.bf16.gmra.mxu0 %v1408
    %v4785 = vpop.f32.mrf.mxu0
    %v4786 = vadd.f32 %v4433, %v4785
    %v4787 = vpop.f32.mrf.mxu0
    %v4788 = vadd.f32 %v4435, %v4787
    %v4789 = vpop.f32.mrf.mxu0
    %v4790 = vadd.f32 %v4437, %v4789
    %v4791 = vpop.f32.mrf.mxu0
    %v4792 = vadd.f32 %v4439, %v4791
    %4793 = vmatprep.mubr.bf16.mxu0 %v1416
    %4794 = vmatmul.mubr.bf16.gmra.mxu0 %v1415
    %v4795 = vpop.f32.mrf.mxu0
    %v4796 = vadd.f32 %v4443, %v4795
    %v4797 = vpop.f32.mrf.mxu0
    %v4798 = vadd.f32 %v4445, %v4797
    %v4799 = vpop.f32.mrf.mxu0
    %v4800 = vadd.f32 %v4447, %v4799
    %v4801 = vpop.f32.mrf.mxu0
    %v4802 = vadd.f32 %v4449, %v4801
    %4803 = vmatprep.mubr.bf16.mxu0 %v1423
    %4804 = vmatmul.mubr.bf16.gmra.mxu0 %v1422
    %v4805 = vpop.f32.mrf.mxu0
    %v4806 = vadd.f32 %v4453, %v4805
    %v4807 = vpop.f32.mrf.mxu0
    %v4808 = vadd.f32 %v4455, %v4807
    %v4809 = vpop.f32.mrf.mxu0
    %v4810 = vadd.f32 %v4457, %v4809
    %v4811 = vpop.f32.mrf.mxu0
    %v4812 = vadd.f32 %v4459, %v4811
    %4813 = vmatprep.mubr.bf16.mxu0 %v1430
    %4814 = vmatmul.mubr.bf16.gmra.mxu0 %v1429
    %v4815 = vpop.f32.mrf.mxu0
    %v4816 = vadd.f32 %v4463, %v4815
    %v4817 = vpop.f32.mrf.mxu0
    %v4818 = vadd.f32 %v4465, %v4817
    %v4819 = vpop.f32.mrf.mxu0
    %v4820 = vadd.f32 %v4467, %v4819
    %v4821 = vpop.f32.mrf.mxu0
    %v4822 = vadd.f32 %v4469, %v4821
    %4823 = vmatprep.mubr.bf16.mxu0 %v1437
    %4824 = vmatmul.mubr.bf16.gmra.mxu0 %v1436
    %v4825 = vpop.f32.mrf.mxu0
    %v4826 = vadd.f32 %v4473, %v4825
    %v4827 = vpop.f32.mrf.mxu0
    %v4828 = vadd.f32 %v4475, %v4827
    %v4829 = vpop.f32.mrf.mxu0
    %v4830 = vadd.f32 %v4477, %v4829
    %v4831 = vpop.f32.mrf.mxu0
    %v4832 = vadd.f32 %v4479, %v4831
    %4833 = vmatprep.mubr.bf16.mxu0 %v1444
    %4834 = vmatmul.mubr.bf16.gmra.mxu0 %v1443
    %v4835 = vpop.f32.mrf.mxu0
    %v4836 = vadd.f32 %v4483, %v4835
    %v4837 = vpop.f32.mrf.mxu0
    %v4838 = vadd.f32 %v4485, %v4837
    %v4839 = vpop.f32.mrf.mxu0
    %v4840 = vadd.f32 %v4487, %v4839
    %v4841 = vpop.f32.mrf.mxu0
    %v4842 = vadd.f32 %v4489, %v4841
    %4843 = vmatprep.mubr.bf16.mxu0 %v1451
    %4844 = vmatmul.mubr.bf16.gmra.mxu0 %v1450
    %v4845 = vpop.f32.mrf.mxu0
    %v4846 = vadd.f32 %v4493, %v4845
    %v4847 = vpop.f32.mrf.mxu0
    %v4848 = vadd.f32 %v4495, %v4847
    %v4849 = vpop.f32.mrf.mxu0
    %v4850 = vadd.f32 %v4497, %v4849
    %v4851 = vpop.f32.mrf.mxu0
    %v4852 = vadd.f32 %v4499, %v4851
    %4853 = vmatprep.mubr.bf16.mxu0 %v1458
    %4854 = vmatmul.mubr.bf16.gmra.mxu0 %v1457
    %v4855 = vpop.f32.mrf.mxu0
    %v4856 = vadd.f32 %v4503, %v4855
    %v4857 = vpop.f32.mrf.mxu0
    %v4858 = vadd.f32 %v4505, %v4857
    %v4859 = vpop.f32.mrf.mxu0
    %v4860 = vadd.f32 %v4507, %v4859
    %v4861 = vpop.f32.mrf.mxu0
    %v4862 = vadd.f32 %v4509, %v4861
    %4863 = vmatprep.mubr.bf16.mxu0 %v1465
    %4864 = vmatmul.mubr.bf16.gmra.mxu0 %v1464
    %v4865 = vpop.f32.mrf.mxu0
    %v4866 = vadd.f32 %v4513, %v4865
    %v4867 = vpop.f32.mrf.mxu0
    %v4868 = vadd.f32 %v4515, %v4867
    %v4869 = vpop.f32.mrf.mxu0
    %v4870 = vadd.f32 %v4517, %v4869
    %v4871 = vpop.f32.mrf.mxu0
    %v4872 = vadd.f32 %v4519, %v4871
    %4873 = vmatprep.mubr.bf16.mxu0 %v1472
    %4874 = vmatmul.mubr.bf16.gmra.mxu0 %v1471
    %v4875 = vpop.f32.mrf.mxu0
    %v4876 = vadd.f32 %v4523, %v4875
    %v4877 = vpop.f32.mrf.mxu0
    %v4878 = vadd.f32 %v4525, %v4877
    %v4879 = vpop.f32.mrf.mxu0
    %v4880 = vadd.f32 %v4527, %v4879
    %v4881 = vpop.f32.mrf.mxu0
    %v4882 = vadd.f32 %v4529, %v4881
    %4883 = vmatprep.mubr.bf16.mxu0 %v1479
    %4884 = vmatmul.mubr.bf16.gmra.mxu0 %v1478
    %v4885 = vpop.f32.mrf.mxu0
    %v4886 = vadd.f32 %v4533, %v4885
    %v4887 = vpop.f32.mrf.mxu0
    %v4888 = vadd.f32 %v4535, %v4887
    %v4889 = vpop.f32.mrf.mxu0
    %v4890 = vadd.f32 %v4537, %v4889
    %v4891 = vpop.f32.mrf.mxu0
    %v4892 = vadd.f32 %v4539, %v4891
    %4893 = vmatprep.mubr.bf16.mxu0 %v1486
    %4894 = vmatmul.mubr.bf16.gmra.mxu0 %v1485
    %v4895 = vpop.f32.mrf.mxu0
    %v4896 = vadd.f32 %v4543, %v4895
    %v4897 = vpop.f32.mrf.mxu0
    %v4898 = vadd.f32 %v4545, %v4897
    %v4899 = vpop.f32.mrf.mxu0
    %v4900 = vadd.f32 %v4547, %v4899
    %v4901 = vpop.f32.mrf.mxu0
    %v4902 = vadd.f32 %v4549, %v4901
    %4903 = vmatprep.mubr.bf16.mxu0 %v1493
    %4904 = vmatmul.mubr.bf16.gmra.mxu0 %v1492
    %v4905 = vpop.f32.mrf.mxu0
    %v4906 = vadd.f32 %v4553, %v4905
    %v4907 = vpop.f32.mrf.mxu0
    %v4908 = vadd.f32 %v4555, %v4907
    %v4909 = vpop.f32.mrf.mxu0
    %v4910 = vadd.f32 %v4557, %v4909
    %v4911 = vpop.f32.mrf.mxu0
    %v4912 = vadd.f32 %v4559, %v4911
    %4913 = vmatprep.mubr.bf16.mxu0 %v1500
    %4914 = vmatmul.mubr.bf16.gmra.mxu0 %v1499
    %v4915 = vpop.f32.mrf.mxu0
    %v4916 = vadd.f32 %v4563, %v4915
    %v4917 = vpop.f32.mrf.mxu0
    %v4918 = vadd.f32 %v4565, %v4917
    %v4919 = vpop.f32.mrf.mxu0
    %v4920 = vadd.f32 %v4567, %v4919
    %v4921 = vpop.f32.mrf.mxu0
    %v4922 = vadd.f32 %v4569, %v4921
    %4923 = vmatprep.mubr.bf16.mxu0 %v1507
    %4924 = vmatmul.mubr.bf16.gmra.mxu0 %v1506
    %v4925 = vpop.f32.mrf.mxu0
    %v4926 = vadd.f32 %v4573, %v4925
    %v4927 = vpop.f32.mrf.mxu0
    %v4928 = vadd.f32 %v4575, %v4927
    %v4929 = vpop.f32.mrf.mxu0
    %v4930 = vadd.f32 %v4577, %v4929
    %v4931 = vpop.f32.mrf.mxu0
    %v4932 = vadd.f32 %v4579, %v4931
    %4933 = vmatprep.mubr.bf16.mxu0 %v1514
    %4934 = vmatmul.mubr.bf16.gmra.mxu0 %v1513
    %v4935 = vpop.f32.mrf.mxu0
    %v4936 = vadd.f32 %v4583, %v4935
    %v4937 = vpop.f32.mrf.mxu0
    %v4938 = vadd.f32 %v4585, %v4937
    %v4939 = vpop.f32.mrf.mxu0
    %v4940 = vadd.f32 %v4587, %v4939
    %v4941 = vpop.f32.mrf.mxu0
    %v4942 = vadd.f32 %v4589, %v4941
    %4943 = vmatprep.mubr.bf16.mxu0 %v1521
    %4944 = vmatmul.mubr.bf16.gmra.mxu0 %v1520
    %v4945 = vpop.f32.mrf.mxu0
    %v4946 = vadd.f32 %v4593, %v4945
    %v4947 = vpop.f32.mrf.mxu0
    %v4948 = vadd.f32 %v4595, %v4947
    %v4949 = vpop.f32.mrf.mxu0
    %v4950 = vadd.f32 %v4597, %v4949
    %v4951 = vpop.f32.mrf.mxu0
    %v4952 = vadd.f32 %v4599, %v4951
    %4953 = vmatprep.mubr.bf16.mxu0 %v1528
    %4954 = vmatmul.mubr.bf16.gmra.mxu0 %v1527
    %v4955 = vpop.f32.mrf.mxu0
    %v4956 = vadd.f32 %v4603, %v4955
    %v4957 = vpop.f32.mrf.mxu0
    %v4958 = vadd.f32 %v4605, %v4957
    %v4959 = vpop.f32.mrf.mxu0
    %v4960 = vadd.f32 %v4607, %v4959
    %v4961 = vpop.f32.mrf.mxu0
    %v4962 = vadd.f32 %v4609, %v4961
    %4963 = vmatprep.mubr.bf16.mxu0 %v1535
    %4964 = vmatmul.mubr.bf16.gmra.mxu0 %v1534
    %v4965 = vpop.f32.mrf.mxu0
    %v4966 = vadd.f32 %v4613, %v4965
    %v4967 = vpop.f32.mrf.mxu0
    %v4968 = vadd.f32 %v4615, %v4967
    %v4969 = vpop.f32.mrf.mxu0
    %v4970 = vadd.f32 %v4617, %v4969
    %v4971 = vpop.f32.mrf.mxu0
    %v4972 = vadd.f32 %v4619, %v4971
    %4973 = vmatprep.mubr.bf16.mxu0 %v1542
    %4974 = vmatmul.mubr.bf16.gmra.mxu0 %v1541
    %v4975 = vpop.f32.mrf.mxu0
    %v4976 = vadd.f32 %v4623, %v4975
    %v4977 = vpop.f32.mrf.mxu0
    %v4978 = vadd.f32 %v4625, %v4977
    %v4979 = vpop.f32.mrf.mxu0
    %v4980 = vadd.f32 %v4627, %v4979
    %v4981 = vpop.f32.mrf.mxu0
    %v4982 = vadd.f32 %v4629, %v4981
    %4983 = vmatprep.mubr.bf16.mxu0 %v1549
    %4984 = vmatmul.mubr.bf16.gmra.mxu0 %v1548
    %v4985 = vpop.f32.mrf.mxu0
    %v4986 = vadd.f32 %v4633, %v4985
    %v4987 = vpop.f32.mrf.mxu0
    %v4988 = vadd.f32 %v4635, %v4987
    %v4989 = vpop.f32.mrf.mxu0
    %v4990 = vadd.f32 %v4637, %v4989
    %v4991 = vpop.f32.mrf.mxu0
    %v4992 = vadd.f32 %v4639, %v4991
    %4993 = vmatprep.mubr.bf16.mxu0 %v1556
    %4994 = vmatmul.mubr.bf16.gmra.mxu0 %v1555
    %v4995 = vpop.f32.mrf.mxu0
    %v4996 = vadd.f32 %v4643, %v4995
    %v4997 = vpop.f32.mrf.mxu0
    %v4998 = vadd.f32 %v4645, %v4997
    %v4999 = vpop.f32.mrf.mxu0
    %v5000 = vadd.f32 %v4647, %v4999
    %v5001 = vpop.f32.mrf.mxu0
    %v5002 = vadd.f32 %v4649, %v5001
    %5003 = vmatprep.mubr.bf16.mxu0 %v1563
    %5004 = vmatmul.mubr.bf16.gmra.mxu0 %v1562
    %v5005 = vpop.f32.mrf.mxu0
    %v5006 = vadd.f32 %v4653, %v5005
    %v5007 = vpop.f32.mrf.mxu0
    %v5008 = vadd.f32 %v4655, %v5007
    %v5009 = vpop.f32.mrf.mxu0
    %v5010 = vadd.f32 %v4657, %v5009
    %v5011 = vpop.f32.mrf.mxu0
    %v5012 = vadd.f32 %v4659, %v5011
    %5013 = vmatprep.mubr.bf16.mxu0 %v1570
    %5014 = vmatmul.mubr.bf16.gmra.mxu0 %v1569
    %v5015 = vpop.f32.mrf.mxu0
    %v5016 = vadd.f32 %v4663, %v5015
    %v5017 = vpop.f32.mrf.mxu0
    %v5018 = vadd.f32 %v4665, %v5017
    %v5019 = vpop.f32.mrf.mxu0
    %v5020 = vadd.f32 %v4667, %v5019
    %v5021 = vpop.f32.mrf.mxu0
    %v5022 = vadd.f32 %v4669, %v5021
    %5023 = vmatprep.mubr.bf16.mxu0 %v1577
    %5024 = vmatmul.mubr.bf16.gmra.mxu0 %v1576
    %v5025 = vpop.f32.mrf.mxu0
    %v5026 = vadd.f32 %v4673, %v5025
    %v5027 = vpop.f32.mrf.mxu0
    %v5028 = vadd.f32 %v4675, %v5027
    %v5029 = vpop.f32.mrf.mxu0
    %v5030 = vadd.f32 %v4677, %v5029
    %v5031 = vpop.f32.mrf.mxu0
    %v5032 = vadd.f32 %v4679, %v5031
    %5033 = vmatprep.mubr.bf16.mxu0 %v1584
    %5034 = vmatmul.mubr.bf16.gmra.mxu0 %v1583
    %v5035 = vpop.f32.mrf.mxu0
    %v5036 = vadd.f32 %v4683, %v5035
    %v5037 = vpop.f32.mrf.mxu0
    %v5038 = vadd.f32 %v4685, %v5037
    %v5039 = vpop.f32.mrf.mxu0
    %v5040 = vadd.f32 %v4687, %v5039
    %v5041 = vpop.f32.mrf.mxu0
    %v5042 = vadd.f32 %v4689, %v5041
    %5043 = vmatprep.mubr.bf16.mxu0 %v1591
    %5044 = vmatmul.mubr.bf16.gmra.mxu0 %v1590
    %v5045 = vpop.f32.mrf.mxu0
    %v5046 = vadd.f32 %v4693, %v5045
    %v5047 = vpop.f32.mrf.mxu0
    %v5048 = vadd.f32 %v4695, %v5047
    %v5049 = vpop.f32.mrf.mxu0
    %v5050 = vadd.f32 %v4697, %v5049
    %v5051 = vpop.f32.mrf.mxu0
    %v5052 = vadd.f32 %v4699, %v5051
    %5053 = vmatprep.mubr.bf16.mxu0 %v1598
    %5054 = vmatmul.mubr.bf16.gmra.mxu0 %v1597
    %v5055 = vpop.f32.mrf.mxu0
    %v5056 = vadd.f32 %v4703, %v5055
    %v5057 = vpop.f32.mrf.mxu0
    %v5058 = vadd.f32 %v4705, %v5057
    %v5059 = vpop.f32.mrf.mxu0
    %v5060 = vadd.f32 %v4707, %v5059
    %v5061 = vpop.f32.mrf.mxu0
    %v5062 = vadd.f32 %v4709, %v5061
    %5063 = vdwg.mxu0
    %5064 = vmatprep.subr.bf16.mxu0 %v2657
    %5065 = vmatpush1.bf16.msra.mxu0 %v2656
    %5066 = vmatprep.subr.bf16.mxu0 %v2653
    %5067 = vmatpush1.bf16.msra.mxu0 %v2652
    %5068 = vmatprep.subr.bf16.mxu0 %v2649
    %5069 = vmatpush1.bf16.msra.mxu0 %v2648
    %5070 = vmatprep.subr.bf16.mxu0 %v2645
    %5071 = vmatpush1.bf16.msra.mxu0 %v2644
    %5072 = vmatprep.subr.bf16.mxu0 %v2641
    %5073 = vmatpush1.bf16.msra.mxu0 %v2640
    %5074 = vmatprep.subr.bf16.mxu0 %v2637
    %5075 = vmatpush1.bf16.msra.mxu0 %v2636
    %5076 = vmatprep.subr.bf16.mxu0 %v2633
    %5077 = vmatpush1.bf16.msra.mxu0 %v2632
    %5078 = vmatprep.subr.bf16.mxu0 %v2629
    %5079 = vmatpush1.bf16.msra.mxu0 %v2628
    %5080 = vmatprep.subr.bf16.mxu0 %v2689
    %5081 = vmatpush2.bf16.msra.mxu0 %v2688
    %5082 = vmatprep.subr.bf16.mxu0 %v2685
    %5083 = vmatpush2.bf16.msra.mxu0 %v2684
    %5084 = vmatprep.subr.bf16.mxu0 %v2681
    %5085 = vmatpush2.bf16.msra.mxu0 %v2680
    %5086 = vmatprep.subr.bf16.mxu0 %v2677
    %5087 = vmatpush2.bf16.msra.mxu0 %v2676
    %5088 = vmatprep.subr.bf16.mxu0 %v2673
    %5089 = vmatpush2.bf16.msra.mxu0 %v2672
    %5090 = vmatprep.subr.bf16.mxu0 %v2669
    %5091 = vmatpush2.bf16.msra.mxu0 %v2668
    %5092 = vmatprep.subr.bf16.mxu0 %v2665
    %5093 = vmatpush2.bf16.msra.mxu0 %v2664
    %5094 = vmatprep.subr.bf16.mxu0 %v2661
    %5095 = vmatpush2.bf16.msra.mxu0 %v2660
    %5096 = vmatprep.mubr.bf16.mxu0 %v1383
    %5097 = vmatmul.mubr.bf16.gmra.mxu0 %v1382
    %v5098 = vpop.f32.mrf.mxu0
    %v5099 = vadd.f32 %v4746, %v5098
    %v5100 = vpop.f32.mrf.mxu0
    %v5101 = vadd.f32 %v4748, %v5100
    %v5102 = vpop.f32.mrf.mxu0
    %v5103 = vadd.f32 %v4750, %v5102
    %v5104 = vpop.f32.mrf.mxu0
    %v5105 = vadd.f32 %v4752, %v5104
    %5106 = vmatprep.mubr.bf16.mxu0 %v1390
    %5107 = vmatmul.mubr.bf16.gmra.mxu0 %v1389
    %v5108 = vpop.f32.mrf.mxu0
    %v5109 = vadd.f32 %v4756, %v5108
    %v5110 = vpop.f32.mrf.mxu0
    %v5111 = vadd.f32 %v4758, %v5110
    %v5112 = vpop.f32.mrf.mxu0
    %v5113 = vadd.f32 %v4760, %v5112
    %v5114 = vpop.f32.mrf.mxu0
    %v5115 = vadd.f32 %v4762, %v5114
    %5116 = vmatprep.mubr.bf16.mxu0 %v1397
    %5117 = vmatmul.mubr.bf16.gmra.mxu0 %v1396
    %v5118 = vpop.f32.mrf.mxu0
    %v5119 = vadd.f32 %v4766, %v5118
    %v5120 = vpop.f32.mrf.mxu0
    %v5121 = vadd.f32 %v4768, %v5120
    %v5122 = vpop.f32.mrf.mxu0
    %v5123 = vadd.f32 %v4770, %v5122
    %v5124 = vpop.f32.mrf.mxu0
    %v5125 = vadd.f32 %v4772, %v5124
    %5126 = vmatprep.mubr.bf16.mxu0 %v1404
    %5127 = vmatmul.mubr.bf16.gmra.mxu0 %v1403
    %v5128 = vpop.f32.mrf.mxu0
    %v5129 = vadd.f32 %v4776, %v5128
    %v5130 = vpop.f32.mrf.mxu0
    %v5131 = vadd.f32 %v4778, %v5130
    %v5132 = vpop.f32.mrf.mxu0
    %v5133 = vadd.f32 %v4780, %v5132
    %v5134 = vpop.f32.mrf.mxu0
    %v5135 = vadd.f32 %v4782, %v5134
    %5136 = vmatprep.mubr.bf16.mxu0 %v1411
    %5137 = vmatmul.mubr.bf16.gmra.mxu0 %v1410
    %v5138 = vpop.f32.mrf.mxu0
    %v5139 = vadd.f32 %v4786, %v5138
    %v5140 = vpop.f32.mrf.mxu0
    %v5141 = vadd.f32 %v4788, %v5140
    %v5142 = vpop.f32.mrf.mxu0
    %v5143 = vadd.f32 %v4790, %v5142
    %v5144 = vpop.f32.mrf.mxu0
    %v5145 = vadd.f32 %v4792, %v5144
    %5146 = vmatprep.mubr.bf16.mxu0 %v1418
    %5147 = vmatmul.mubr.bf16.gmra.mxu0 %v1417
    %v5148 = vpop.f32.mrf.mxu0
    %v5149 = vadd.f32 %v4796, %v5148
    %v5150 = vpop.f32.mrf.mxu0
    %v5151 = vadd.f32 %v4798, %v5150
    %v5152 = vpop.f32.mrf.mxu0
    %v5153 = vadd.f32 %v4800, %v5152
    %v5154 = vpop.f32.mrf.mxu0
    %v5155 = vadd.f32 %v4802, %v5154
    %5156 = vmatprep.mubr.bf16.mxu0 %v1425
    %5157 = vmatmul.mubr.bf16.gmra.mxu0 %v1424
    %v5158 = vpop.f32.mrf.mxu0
    %v5159 = vadd.f32 %v4806, %v5158
    %v5160 = vpop.f32.mrf.mxu0
    %v5161 = vadd.f32 %v4808, %v5160
    %v5162 = vpop.f32.mrf.mxu0
    %v5163 = vadd.f32 %v4810, %v5162
    %v5164 = vpop.f32.mrf.mxu0
    %v5165 = vadd.f32 %v4812, %v5164
    %5166 = vmatprep.mubr.bf16.mxu0 %v1432
    %5167 = vmatmul.mubr.bf16.gmra.mxu0 %v1431
    %v5168 = vpop.f32.mrf.mxu0
    %v5169 = vadd.f32 %v4816, %v5168
    %v5170 = vpop.f32.mrf.mxu0
    %v5171 = vadd.f32 %v4818, %v5170
    %v5172 = vpop.f32.mrf.mxu0
    %v5173 = vadd.f32 %v4820, %v5172
    %v5174 = vpop.f32.mrf.mxu0
    %v5175 = vadd.f32 %v4822, %v5174
    %5176 = vmatprep.mubr.bf16.mxu0 %v1439
    %5177 = vmatmul.mubr.bf16.gmra.mxu0 %v1438
    %v5178 = vpop.f32.mrf.mxu0
    %v5179 = vadd.f32 %v4826, %v5178
    %v5180 = vpop.f32.mrf.mxu0
    %v5181 = vadd.f32 %v4828, %v5180
    %v5182 = vpop.f32.mrf.mxu0
    %v5183 = vadd.f32 %v4830, %v5182
    %v5184 = vpop.f32.mrf.mxu0
    %v5185 = vadd.f32 %v4832, %v5184
    %5186 = vmatprep.mubr.bf16.mxu0 %v1446
    %5187 = vmatmul.mubr.bf16.gmra.mxu0 %v1445
    %v5188 = vpop.f32.mrf.mxu0
    %v5189 = vadd.f32 %v4836, %v5188
    %v5190 = vpop.f32.mrf.mxu0
    %v5191 = vadd.f32 %v4838, %v5190
    %v5192 = vpop.f32.mrf.mxu0
    %v5193 = vadd.f32 %v4840, %v5192
    %v5194 = vpop.f32.mrf.mxu0
    %v5195 = vadd.f32 %v4842, %v5194
    %5196 = vmatprep.mubr.bf16.mxu0 %v1453
    %5197 = vmatmul.mubr.bf16.gmra.mxu0 %v1452
    %v5198 = vpop.f32.mrf.mxu0
    %v5199 = vadd.f32 %v4846, %v5198
    %v5200 = vpop.f32.mrf.mxu0
    %v5201 = vadd.f32 %v4848, %v5200
    %v5202 = vpop.f32.mrf.mxu0
    %v5203 = vadd.f32 %v4850, %v5202
    %v5204 = vpop.f32.mrf.mxu0
    %v5205 = vadd.f32 %v4852, %v5204
    %5206 = vmatprep.mubr.bf16.mxu0 %v1460
    %5207 = vmatmul.mubr.bf16.gmra.mxu0 %v1459
    %v5208 = vpop.f32.mrf.mxu0
    %v5209 = vadd.f32 %v4856, %v5208
    %v5210 = vpop.f32.mrf.mxu0
    %v5211 = vadd.f32 %v4858, %v5210
    %v5212 = vpop.f32.mrf.mxu0
    %v5213 = vadd.f32 %v4860, %v5212
    %v5214 = vpop.f32.mrf.mxu0
    %v5215 = vadd.f32 %v4862, %v5214
    %5216 = vmatprep.mubr.bf16.mxu0 %v1467
    %5217 = vmatmul.mubr.bf16.gmra.mxu0 %v1466
    %v5218 = vpop.f32.mrf.mxu0
    %v5219 = vadd.f32 %v4866, %v5218
    %v5220 = vpop.f32.mrf.mxu0
    %v5221 = vadd.f32 %v4868, %v5220
    %v5222 = vpop.f32.mrf.mxu0
    %v5223 = vadd.f32 %v4870, %v5222
    %v5224 = vpop.f32.mrf.mxu0
    %v5225 = vadd.f32 %v4872, %v5224
    %5226 = vmatprep.mubr.bf16.mxu0 %v1474
    %5227 = vmatmul.mubr.bf16.gmra.mxu0 %v1473
    %v5228 = vpop.f32.mrf.mxu0
    %v5229 = vadd.f32 %v4876, %v5228
    %v5230 = vpop.f32.mrf.mxu0
    %v5231 = vadd.f32 %v4878, %v5230
    %v5232 = vpop.f32.mrf.mxu0
    %v5233 = vadd.f32 %v4880, %v5232
    %v5234 = vpop.f32.mrf.mxu0
    %v5235 = vadd.f32 %v4882, %v5234
    %5236 = vmatprep.mubr.bf16.mxu0 %v1481
    %5237 = vmatmul.mubr.bf16.gmra.mxu0 %v1480
    %v5238 = vpop.f32.mrf.mxu0
    %v5239 = vadd.f32 %v4886, %v5238
    %v5240 = vpop.f32.mrf.mxu0
    %v5241 = vadd.f32 %v4888, %v5240
    %v5242 = vpop.f32.mrf.mxu0
    %v5243 = vadd.f32 %v4890, %v5242
    %v5244 = vpop.f32.mrf.mxu0
    %v5245 = vadd.f32 %v4892, %v5244
    %5246 = vmatprep.mubr.bf16.mxu0 %v1488
    %5247 = vmatmul.mubr.bf16.gmra.mxu0 %v1487
    %v5248 = vpop.f32.mrf.mxu0
    %v5249 = vadd.f32 %v4896, %v5248
    %v5250 = vpop.f32.mrf.mxu0
    %v5251 = vadd.f32 %v4898, %v5250
    %v5252 = vpop.f32.mrf.mxu0
    %v5253 = vadd.f32 %v4900, %v5252
    %v5254 = vpop.f32.mrf.mxu0
    %v5255 = vadd.f32 %v4902, %v5254
    %5256 = vmatprep.mubr.bf16.mxu0 %v1495
    %5257 = vmatmul.mubr.bf16.gmra.mxu0 %v1494
    %v5258 = vpop.f32.mrf.mxu0
    %v5259 = vadd.f32 %v4906, %v5258
    %v5260 = vpop.f32.mrf.mxu0
    %v5261 = vadd.f32 %v4908, %v5260
    %v5262 = vpop.f32.mrf.mxu0
    %v5263 = vadd.f32 %v4910, %v5262
    %v5264 = vpop.f32.mrf.mxu0
    %v5265 = vadd.f32 %v4912, %v5264
    %5266 = vmatprep.mubr.bf16.mxu0 %v1502
    %5267 = vmatmul.mubr.bf16.gmra.mxu0 %v1501
    %v5268 = vpop.f32.mrf.mxu0
    %v5269 = vadd.f32 %v4916, %v5268
    %v5270 = vpop.f32.mrf.mxu0
    %v5271 = vadd.f32 %v4918, %v5270
    %v5272 = vpop.f32.mrf.mxu0
    %v5273 = vadd.f32 %v4920, %v5272
    %v5274 = vpop.f32.mrf.mxu0
    %v5275 = vadd.f32 %v4922, %v5274
    %5276 = vmatprep.mubr.bf16.mxu0 %v1509
    %5277 = vmatmul.mubr.bf16.gmra.mxu0 %v1508
    %v5278 = vpop.f32.mrf.mxu0
    %v5279 = vadd.f32 %v4926, %v5278
    %v5280 = vpop.f32.mrf.mxu0
    %v5281 = vadd.f32 %v4928, %v5280
    %v5282 = vpop.f32.mrf.mxu0
    %v5283 = vadd.f32 %v4930, %v5282
    %v5284 = vpop.f32.mrf.mxu0
    %v5285 = vadd.f32 %v4932, %v5284
    %5286 = vmatprep.mubr.bf16.mxu0 %v1516
    %5287 = vmatmul.mubr.bf16.gmra.mxu0 %v1515
    %v5288 = vpop.f32.mrf.mxu0
    %v5289 = vadd.f32 %v4936, %v5288
    %v5290 = vpop.f32.mrf.mxu0
    %v5291 = vadd.f32 %v4938, %v5290
    %v5292 = vpop.f32.mrf.mxu0
    %v5293 = vadd.f32 %v4940, %v5292
    %v5294 = vpop.f32.mrf.mxu0
    %v5295 = vadd.f32 %v4942, %v5294
    %5296 = vmatprep.mubr.bf16.mxu0 %v1523
    %5297 = vmatmul.mubr.bf16.gmra.mxu0 %v1522
    %v5298 = vpop.f32.mrf.mxu0
    %v5299 = vadd.f32 %v4946, %v5298
    %v5300 = vpop.f32.mrf.mxu0
    %v5301 = vadd.f32 %v4948, %v5300
    %v5302 = vpop.f32.mrf.mxu0
    %v5303 = vadd.f32 %v4950, %v5302
    %v5304 = vpop.f32.mrf.mxu0
    %v5305 = vadd.f32 %v4952, %v5304
    %5306 = vmatprep.mubr.bf16.mxu0 %v1530
    %5307 = vmatmul.mubr.bf16.gmra.mxu0 %v1529
    %v5308 = vpop.f32.mrf.mxu0
    %v5309 = vadd.f32 %v4956, %v5308
    %v5310 = vpop.f32.mrf.mxu0
    %v5311 = vadd.f32 %v4958, %v5310
    %v5312 = vpop.f32.mrf.mxu0
    %v5313 = vadd.f32 %v4960, %v5312
    %v5314 = vpop.f32.mrf.mxu0
    %v5315 = vadd.f32 %v4962, %v5314
    %5316 = vmatprep.mubr.bf16.mxu0 %v1537
    %5317 = vmatmul.mubr.bf16.gmra.mxu0 %v1536
    %v5318 = vpop.f32.mrf.mxu0
    %v5319 = vadd.f32 %v4966, %v5318
    %v5320 = vpop.f32.mrf.mxu0
    %v5321 = vadd.f32 %v4968, %v5320
    %v5322 = vpop.f32.mrf.mxu0
    %v5323 = vadd.f32 %v4970, %v5322
    %v5324 = vpop.f32.mrf.mxu0
    %v5325 = vadd.f32 %v4972, %v5324
    %5326 = vmatprep.mubr.bf16.mxu0 %v1544
    %5327 = vmatmul.mubr.bf16.gmra.mxu0 %v1543
    %v5328 = vpop.f32.mrf.mxu0
    %v5329 = vadd.f32 %v4976, %v5328
    %v5330 = vpop.f32.mrf.mxu0
    %v5331 = vadd.f32 %v4978, %v5330
    %v5332 = vpop.f32.mrf.mxu0
    %v5333 = vadd.f32 %v4980, %v5332
    %v5334 = vpop.f32.mrf.mxu0
    %v5335 = vadd.f32 %v4982, %v5334
    %5336 = vmatprep.mubr.bf16.mxu0 %v1551
    %5337 = vmatmul.mubr.bf16.gmra.mxu0 %v1550
    %v5338 = vpop.f32.mrf.mxu0
    %v5339 = vadd.f32 %v4986, %v5338
    %v5340 = vpop.f32.mrf.mxu0
    %v5341 = vadd.f32 %v4988, %v5340
    %v5342 = vpop.f32.mrf.mxu0
    %v5343 = vadd.f32 %v4990, %v5342
    %v5344 = vpop.f32.mrf.mxu0
    %v5345 = vadd.f32 %v4992, %v5344
    %5346 = vmatprep.mubr.bf16.mxu0 %v1558
    %5347 = vmatmul.mubr.bf16.gmra.mxu0 %v1557
    %v5348 = vpop.f32.mrf.mxu0
    %v5349 = vadd.f32 %v4996, %v5348
    %v5350 = vpop.f32.mrf.mxu0
    %v5351 = vadd.f32 %v4998, %v5350
    %v5352 = vpop.f32.mrf.mxu0
    %v5353 = vadd.f32 %v5000, %v5352
    %v5354 = vpop.f32.mrf.mxu0
    %v5355 = vadd.f32 %v5002, %v5354
    %5356 = vmatprep.mubr.bf16.mxu0 %v1565
    %5357 = vmatmul.mubr.bf16.gmra.mxu0 %v1564
    %v5358 = vpop.f32.mrf.mxu0
    %v5359 = vadd.f32 %v5006, %v5358
    %v5360 = vpop.f32.mrf.mxu0
    %v5361 = vadd.f32 %v5008, %v5360
    %v5362 = vpop.f32.mrf.mxu0
    %v5363 = vadd.f32 %v5010, %v5362
    %v5364 = vpop.f32.mrf.mxu0
    %v5365 = vadd.f32 %v5012, %v5364
    %5366 = vmatprep.mubr.bf16.mxu0 %v1572
    %5367 = vmatmul.mubr.bf16.gmra.mxu0 %v1571
    %v5368 = vpop.f32.mrf.mxu0
    %v5369 = vadd.f32 %v5016, %v5368
    %v5370 = vpop.f32.mrf.mxu0
    %v5371 = vadd.f32 %v5018, %v5370
    %v5372 = vpop.f32.mrf.mxu0
    %v5373 = vadd.f32 %v5020, %v5372
    %v5374 = vpop.f32.mrf.mxu0
    %v5375 = vadd.f32 %v5022, %v5374
    %5376 = vmatprep.mubr.bf16.mxu0 %v1579
    %5377 = vmatmul.mubr.bf16.gmra.mxu0 %v1578
    %v5378 = vpop.f32.mrf.mxu0
    %v5379 = vadd.f32 %v5026, %v5378
    %v5380 = vpop.f32.mrf.mxu0
    %v5381 = vadd.f32 %v5028, %v5380
    %v5382 = vpop.f32.mrf.mxu0
    %v5383 = vadd.f32 %v5030, %v5382
    %v5384 = vpop.f32.mrf.mxu0
    %v5385 = vadd.f32 %v5032, %v5384
    %5386 = vmatprep.mubr.bf16.mxu0 %v1586
    %5387 = vmatmul.mubr.bf16.gmra.mxu0 %v1585
    %v5388 = vpop.f32.mrf.mxu0
    %v5389 = vadd.f32 %v5036, %v5388
    %v5390 = vpop.f32.mrf.mxu0
    %v5391 = vadd.f32 %v5038, %v5390
    %v5392 = vpop.f32.mrf.mxu0
    %v5393 = vadd.f32 %v5040, %v5392
    %v5394 = vpop.f32.mrf.mxu0
    %v5395 = vadd.f32 %v5042, %v5394
    %5396 = vmatprep.mubr.bf16.mxu0 %v1593
    %5397 = vmatmul.mubr.bf16.gmra.mxu0 %v1592
    %v5398 = vpop.f32.mrf.mxu0
    %v5399 = vadd.f32 %v5046, %v5398
    %v5400 = vpop.f32.mrf.mxu0
    %v5401 = vadd.f32 %v5048, %v5400
    %v5402 = vpop.f32.mrf.mxu0
    %v5403 = vadd.f32 %v5050, %v5402
    %v5404 = vpop.f32.mrf.mxu0
    %v5405 = vadd.f32 %v5052, %v5404
    %5406 = vmatprep.mubr.bf16.mxu0 %v1600
    %5407 = vmatmul.mubr.bf16.gmra.mxu0 %v1599
    %v5408 = vpop.f32.mrf.mxu0
    %v5409 = vadd.f32 %v5056, %v5408
    %v5410 = vpop.f32.mrf.mxu0
    %v5411 = vadd.f32 %v5058, %v5410
    %v5412 = vpop.f32.mrf.mxu0
    %v5413 = vadd.f32 %v5060, %v5412
    %v5414 = vpop.f32.mrf.mxu0
    %v5415 = vadd.f32 %v5062, %v5414
    %5416 = vdwg.mxu0
    %5417 = vmatprep.subr.bf16.mxu0 %v2721
    %5418 = vmatpush1.bf16.msra.mxu0 %v2720
    %5419 = vmatprep.subr.bf16.mxu0 %v2717
    %5420 = vmatpush1.bf16.msra.mxu0 %v2716
    %5421 = vmatprep.subr.bf16.mxu0 %v2713
    %5422 = vmatpush1.bf16.msra.mxu0 %v2712
    %5423 = vmatprep.subr.bf16.mxu0 %v2709
    %5424 = vmatpush1.bf16.msra.mxu0 %v2708
    %5425 = vmatprep.subr.bf16.mxu0 %v2705
    %5426 = vmatpush1.bf16.msra.mxu0 %v2704
    %5427 = vmatprep.subr.bf16.mxu0 %v2701
    %5428 = vmatpush1.bf16.msra.mxu0 %v2700
    %5429 = vmatprep.subr.bf16.mxu0 %v2697
    %5430 = vmatpush1.bf16.msra.mxu0 %v2696
    %5431 = vmatprep.subr.bf16.mxu0 %v2693
    %5432 = vmatpush1.bf16.msra.mxu0 %v2692
    %5433 = vmatprep.subr.bf16.mxu0 0
    %5434 = vmatpush2.bf16.msra.mxu0 0
    %5435 = vmatprep.subr.bf16.mxu0 0
    %5436 = vmatpush2.bf16.msra.mxu0 0
    %5437 = vmatprep.subr.bf16.mxu0 0
    %5438 = vmatpush2.bf16.msra.mxu0 0
    %5439 = vmatprep.subr.bf16.mxu0 0
    %5440 = vmatpush2.bf16.msra.mxu0 0
    %5441 = vmatprep.subr.bf16.mxu0 0
    %5442 = vmatpush2.bf16.msra.mxu0 0
    %5443 = vmatprep.subr.bf16.mxu0 0
    %5444 = vmatpush2.bf16.msra.mxu0 0
    %5445 = vmatprep.subr.bf16.mxu0 0
    %5446 = vmatpush2.bf16.msra.mxu0 0
    %5447 = vmatprep.subr.bf16.mxu0 0
    %5448 = vmatpush2.bf16.msra.mxu0 0
    %5449 = vmatprep.mubr.bf16.mxu0 0
    %5450 = vmatmul.mubr.bf16.gmra.mxu0 %v1384
    %v5451 = vpop.f32.mrf.mxu0
    %v5452 = vadd.f32 %v5099, %v5451
    %v5453 = vpop.f32.mrf.mxu0
    %v5454 = vadd.f32 %v5101, %v5453
    %v5455 = vpop.f32.mrf.mxu0
    %v5456 = vadd.f32 %v5103, %v5455
    %v5457 = vpop.f32.mrf.mxu0
    %v5458 = vadd.f32 %v5105, %v5457
    %5459 = vmatprep.mubr.bf16.mxu0 0
    %5460 = vmatmul.mubr.bf16.gmra.mxu0 %v1391
    %v5461 = vpop.f32.mrf.mxu0
    %v5462 = vadd.f32 %v5109, %v5461
    %v5463 = vpop.f32.mrf.mxu0
    %v5464 = vadd.f32 %v5111, %v5463
    %v5465 = vpop.f32.mrf.mxu0
    %v5466 = vadd.f32 %v5113, %v5465
    %v5467 = vpop.f32.mrf.mxu0
    %v5468 = vadd.f32 %v5115, %v5467
    %5469 = vmatprep.mubr.bf16.mxu0 0
    %5470 = vmatmul.mubr.bf16.gmra.mxu0 %v1398
    %v5471 = vpop.f32.mrf.mxu0
    %v5472 = vadd.f32 %v5119, %v5471
    %v5473 = vpop.f32.mrf.mxu0
    %v5474 = vadd.f32 %v5121, %v5473
    %v5475 = vpop.f32.mrf.mxu0
    %v5476 = vadd.f32 %v5123, %v5475
    %v5477 = vpop.f32.mrf.mxu0
    %v5478 = vadd.f32 %v5125, %v5477
    %5479 = vmatprep.mubr.bf16.mxu0 0
    %5480 = vmatmul.mubr.bf16.gmra.mxu0 %v1405
    %v5481 = vpop.f32.mrf.mxu0
    %v5482 = vadd.f32 %v5129, %v5481
    %v5483 = vpop.f32.mrf.mxu0
    %v5484 = vadd.f32 %v5131, %v5483
    %v5485 = vpop.f32.mrf.mxu0
    %v5486 = vadd.f32 %v5133, %v5485
    %v5487 = vpop.f32.mrf.mxu0
    %v5488 = vadd.f32 %v5135, %v5487
    %5489 = vmatprep.mubr.bf16.mxu0 0
    %5490 = vmatmul.mubr.bf16.gmra.mxu0 %v1412
    %v5491 = vpop.f32.mrf.mxu0
    %v5492 = vadd.f32 %v5139, %v5491
    %v5493 = vpop.f32.mrf.mxu0
    %v5494 = vadd.f32 %v5141, %v5493
    %v5495 = vpop.f32.mrf.mxu0
    %v5496 = vadd.f32 %v5143, %v5495
    %v5497 = vpop.f32.mrf.mxu0
    %v5498 = vadd.f32 %v5145, %v5497
    %5499 = vmatprep.mubr.bf16.mxu0 0
    %5500 = vmatmul.mubr.bf16.gmra.mxu0 %v1419
    %v5501 = vpop.f32.mrf.mxu0
    %v5502 = vadd.f32 %v5149, %v5501
    %v5503 = vpop.f32.mrf.mxu0
    %v5504 = vadd.f32 %v5151, %v5503
    %v5505 = vpop.f32.mrf.mxu0
    %v5506 = vadd.f32 %v5153, %v5505
    %v5507 = vpop.f32.mrf.mxu0
    %v5508 = vadd.f32 %v5155, %v5507
    %5509 = vmatprep.mubr.bf16.mxu0 0
    %5510 = vmatmul.mubr.bf16.gmra.mxu0 %v1426
    %v5511 = vpop.f32.mrf.mxu0
    %v5512 = vadd.f32 %v5159, %v5511
    %v5513 = vpop.f32.mrf.mxu0
    %v5514 = vadd.f32 %v5161, %v5513
    %v5515 = vpop.f32.mrf.mxu0
    %v5516 = vadd.f32 %v5163, %v5515
    %v5517 = vpop.f32.mrf.mxu0
    %v5518 = vadd.f32 %v5165, %v5517
    %5519 = vmatprep.mubr.bf16.mxu0 0
    %5520 = vmatmul.mubr.bf16.gmra.mxu0 %v1433
    %v5521 = vpop.f32.mrf.mxu0
    %v5522 = vadd.f32 %v5169, %v5521
    %v5523 = vpop.f32.mrf.mxu0
    %v5524 = vadd.f32 %v5171, %v5523
    %v5525 = vpop.f32.mrf.mxu0
    %v5526 = vadd.f32 %v5173, %v5525
    %v5527 = vpop.f32.mrf.mxu0
    %v5528 = vadd.f32 %v5175, %v5527
    %5529 = vmatprep.mubr.bf16.mxu0 0
    %5530 = vmatmul.mubr.bf16.gmra.mxu0 %v1440
    %v5531 = vpop.f32.mrf.mxu0
    %v5532 = vadd.f32 %v5179, %v5531
    %v5533 = vpop.f32.mrf.mxu0
    %v5534 = vadd.f32 %v5181, %v5533
    %v5535 = vpop.f32.mrf.mxu0
    %v5536 = vadd.f32 %v5183, %v5535
    %v5537 = vpop.f32.mrf.mxu0
    %v5538 = vadd.f32 %v5185, %v5537
    %5539 = vmatprep.mubr.bf16.mxu0 0
    %5540 = vmatmul.mubr.bf16.gmra.mxu0 %v1447
    %v5541 = vpop.f32.mrf.mxu0
    %v5542 = vadd.f32 %v5189, %v5541
    %v5543 = vpop.f32.mrf.mxu0
    %v5544 = vadd.f32 %v5191, %v5543
    %v5545 = vpop.f32.mrf.mxu0
    %v5546 = vadd.f32 %v5193, %v5545
    %v5547 = vpop.f32.mrf.mxu0
    %v5548 = vadd.f32 %v5195, %v5547
    %5549 = vmatprep.mubr.bf16.mxu0 0
    %5550 = vmatmul.mubr.bf16.gmra.mxu0 %v1454
    %v5551 = vpop.f32.mrf.mxu0
    %v5552 = vadd.f32 %v5199, %v5551
    %v5553 = vpop.f32.mrf.mxu0
    %v5554 = vadd.f32 %v5201, %v5553
    %v5555 = vpop.f32.mrf.mxu0
    %v5556 = vadd.f32 %v5203, %v5555
    %v5557 = vpop.f32.mrf.mxu0
    %v5558 = vadd.f32 %v5205, %v5557
    %5559 = vmatprep.mubr.bf16.mxu0 0
    %5560 = vmatmul.mubr.bf16.gmra.mxu0 %v1461
    %v5561 = vpop.f32.mrf.mxu0
    %v5562 = vadd.f32 %v5209, %v5561
    %v5563 = vpop.f32.mrf.mxu0
    %v5564 = vadd.f32 %v5211, %v5563
    %v5565 = vpop.f32.mrf.mxu0
    %v5566 = vadd.f32 %v5213, %v5565
    %v5567 = vpop.f32.mrf.mxu0
    %v5568 = vadd.f32 %v5215, %v5567
    %5569 = vmatprep.mubr.bf16.mxu0 0
    %5570 = vmatmul.mubr.bf16.gmra.mxu0 %v1468
    %v5571 = vpop.f32.mrf.mxu0
    %v5572 = vadd.f32 %v5219, %v5571
    %v5573 = vpop.f32.mrf.mxu0
    %v5574 = vadd.f32 %v5221, %v5573
    %v5575 = vpop.f32.mrf.mxu0
    %v5576 = vadd.f32 %v5223, %v5575
    %v5577 = vpop.f32.mrf.mxu0
    %v5578 = vadd.f32 %v5225, %v5577
    %5579 = vmatprep.mubr.bf16.mxu0 0
    %5580 = vmatmul.mubr.bf16.gmra.mxu0 %v1475
    %v5581 = vpop.f32.mrf.mxu0
    %v5582 = vadd.f32 %v5229, %v5581
    %v5583 = vpop.f32.mrf.mxu0
    %v5584 = vadd.f32 %v5231, %v5583
    %v5585 = vpop.f32.mrf.mxu0
    %v5586 = vadd.f32 %v5233, %v5585
    %v5587 = vpop.f32.mrf.mxu0
    %v5588 = vadd.f32 %v5235, %v5587
    %5589 = vmatprep.mubr.bf16.mxu0 0
    %5590 = vmatmul.mubr.bf16.gmra.mxu0 %v1482
    %v5591 = vpop.f32.mrf.mxu0
    %v5592 = vadd.f32 %v5239, %v5591
    %v5593 = vpop.f32.mrf.mxu0
    %v5594 = vadd.f32 %v5241, %v5593
    %v5595 = vpop.f32.mrf.mxu0
    %v5596 = vadd.f32 %v5243, %v5595
    %v5597 = vpop.f32.mrf.mxu0
    %v5598 = vadd.f32 %v5245, %v5597
    %5599 = vmatprep.mubr.bf16.mxu0 0
    %5600 = vmatmul.mubr.bf16.gmra.mxu0 %v1489
    %v5601 = vpop.f32.mrf.mxu0
    %v5602 = vadd.f32 %v5249, %v5601
    %v5603 = vpop.f32.mrf.mxu0
    %v5604 = vadd.f32 %v5251, %v5603
    %v5605 = vpop.f32.mrf.mxu0
    %v5606 = vadd.f32 %v5253, %v5605
    %v5607 = vpop.f32.mrf.mxu0
    %v5608 = vadd.f32 %v5255, %v5607
    %5609 = vmatprep.mubr.bf16.mxu0 0
    %5610 = vmatmul.mubr.bf16.gmra.mxu0 %v1496
    %v5611 = vpop.f32.mrf.mxu0
    %v5612 = vadd.f32 %v5259, %v5611
    %v5613 = vpop.f32.mrf.mxu0
    %v5614 = vadd.f32 %v5261, %v5613
    %v5615 = vpop.f32.mrf.mxu0
    %v5616 = vadd.f32 %v5263, %v5615
    %v5617 = vpop.f32.mrf.mxu0
    %v5618 = vadd.f32 %v5265, %v5617
    %5619 = vmatprep.mubr.bf16.mxu0 0
    %5620 = vmatmul.mubr.bf16.gmra.mxu0 %v1503
    %v5621 = vpop.f32.mrf.mxu0
    %v5622 = vadd.f32 %v5269, %v5621
    %v5623 = vpop.f32.mrf.mxu0
    %v5624 = vadd.f32 %v5271, %v5623
    %v5625 = vpop.f32.mrf.mxu0
    %v5626 = vadd.f32 %v5273, %v5625
    %v5627 = vpop.f32.mrf.mxu0
    %v5628 = vadd.f32 %v5275, %v5627
    %5629 = vmatprep.mubr.bf16.mxu0 0
    %5630 = vmatmul.mubr.bf16.gmra.mxu0 %v1510
    %v5631 = vpop.f32.mrf.mxu0
    %v5632 = vadd.f32 %v5279, %v5631
    %v5633 = vpop.f32.mrf.mxu0
    %v5634 = vadd.f32 %v5281, %v5633
    %v5635 = vpop.f32.mrf.mxu0
    %v5636 = vadd.f32 %v5283, %v5635
    %v5637 = vpop.f32.mrf.mxu0
    %v5638 = vadd.f32 %v5285, %v5637
    %5639 = vmatprep.mubr.bf16.mxu0 0
    %5640 = vmatmul.mubr.bf16.gmra.mxu0 %v1517
    %v5641 = vpop.f32.mrf.mxu0
    %v5642 = vadd.f32 %v5289, %v5641
    %v5643 = vpop.f32.mrf.mxu0
    %v5644 = vadd.f32 %v5291, %v5643
    %v5645 = vpop.f32.mrf.mxu0
    %v5646 = vadd.f32 %v5293, %v5645
    %v5647 = vpop.f32.mrf.mxu0
    %v5648 = vadd.f32 %v5295, %v5647
    %5649 = vmatprep.mubr.bf16.mxu0 0
    %5650 = vmatmul.mubr.bf16.gmra.mxu0 %v1524
    %v5651 = vpop.f32.mrf.mxu0
    %v5652 = vadd.f32 %v5299, %v5651
    %v5653 = vpop.f32.mrf.mxu0
    %v5654 = vadd.f32 %v5301, %v5653
    %v5655 = vpop.f32.mrf.mxu0
    %v5656 = vadd.f32 %v5303, %v5655
    %v5657 = vpop.f32.mrf.mxu0
    %v5658 = vadd.f32 %v5305, %v5657
    %5659 = vmatprep.mubr.bf16.mxu0 0
    %5660 = vmatmul.mubr.bf16.gmra.mxu0 %v1531
    %v5661 = vpop.f32.mrf.mxu0
    %v5662 = vadd.f32 %v5309, %v5661
    %v5663 = vpop.f32.mrf.mxu0
    %v5664 = vadd.f32 %v5311, %v5663
    %v5665 = vpop.f32.mrf.mxu0
    %v5666 = vadd.f32 %v5313, %v5665
    %v5667 = vpop.f32.mrf.mxu0
    %v5668 = vadd.f32 %v5315, %v5667
    %5669 = vmatprep.mubr.bf16.mxu0 0
    %5670 = vmatmul.mubr.bf16.gmra.mxu0 %v1538
    %v5671 = vpop.f32.mrf.mxu0
    %v5672 = vadd.f32 %v5319, %v5671
    %v5673 = vpop.f32.mrf.mxu0
    %v5674 = vadd.f32 %v5321, %v5673
    %v5675 = vpop.f32.mrf.mxu0
    %v5676 = vadd.f32 %v5323, %v5675
    %v5677 = vpop.f32.mrf.mxu0
    %v5678 = vadd.f32 %v5325, %v5677
    %5679 = vmatprep.mubr.bf16.mxu0 0
    %5680 = vmatmul.mubr.bf16.gmra.mxu0 %v1545
    %v5681 = vpop.f32.mrf.mxu0
    %v5682 = vadd.f32 %v5329, %v5681
    %v5683 = vpop.f32.mrf.mxu0
    %v5684 = vadd.f32 %v5331, %v5683
    %v5685 = vpop.f32.mrf.mxu0
    %v5686 = vadd.f32 %v5333, %v5685
    %v5687 = vpop.f32.mrf.mxu0
    %v5688 = vadd.f32 %v5335, %v5687
    %5689 = vmatprep.mubr.bf16.mxu0 0
    %5690 = vmatmul.mubr.bf16.gmra.mxu0 %v1552
    %v5691 = vpop.f32.mrf.mxu0
    %v5692 = vadd.f32 %v5339, %v5691
    %v5693 = vpop.f32.mrf.mxu0
    %v5694 = vadd.f32 %v5341, %v5693
    %v5695 = vpop.f32.mrf.mxu0
    %v5696 = vadd.f32 %v5343, %v5695
    %v5697 = vpop.f32.mrf.mxu0
    %v5698 = vadd.f32 %v5345, %v5697
    %5699 = vmatprep.mubr.bf16.mxu0 0
    %5700 = vmatmul.mubr.bf16.gmra.mxu0 %v1559
    %v5701 = vpop.f32.mrf.mxu0
    %v5702 = vadd.f32 %v5349, %v5701
    %v5703 = vpop.f32.mrf.mxu0
    %v5704 = vadd.f32 %v5351, %v5703
    %v5705 = vpop.f32.mrf.mxu0
    %v5706 = vadd.f32 %v5353, %v5705
    %v5707 = vpop.f32.mrf.mxu0
    %v5708 = vadd.f32 %v5355, %v5707
    %5709 = vmatprep.mubr.bf16.mxu0 0
    %5710 = vmatmul.mubr.bf16.gmra.mxu0 %v1566
    %v5711 = vpop.f32.mrf.mxu0
    %v5712 = vadd.f32 %v5359, %v5711
    %v5713 = vpop.f32.mrf.mxu0
    %v5714 = vadd.f32 %v5361, %v5713
    %v5715 = vpop.f32.mrf.mxu0
    %v5716 = vadd.f32 %v5363, %v5715
    %v5717 = vpop.f32.mrf.mxu0
    %v5718 = vadd.f32 %v5365, %v5717
    %5719 = vmatprep.mubr.bf16.mxu0 0
    %5720 = vmatmul.mubr.bf16.gmra.mxu0 %v1573
    %v5721 = vpop.f32.mrf.mxu0
    %v5722 = vadd.f32 %v5369, %v5721
    %v5723 = vpop.f32.mrf.mxu0
    %v5724 = vadd.f32 %v5371, %v5723
    %v5725 = vpop.f32.mrf.mxu0
    %v5726 = vadd.f32 %v5373, %v5725
    %v5727 = vpop.f32.mrf.mxu0
    %v5728 = vadd.f32 %v5375, %v5727
    %5729 = vmatprep.mubr.bf16.mxu0 0
    %5730 = vmatmul.mubr.bf16.gmra.mxu0 %v1580
    %v5731 = vpop.f32.mrf.mxu0
    %v5732 = vadd.f32 %v5379, %v5731
    %v5733 = vpop.f32.mrf.mxu0
    %v5734 = vadd.f32 %v5381, %v5733
    %v5735 = vpop.f32.mrf.mxu0
    %v5736 = vadd.f32 %v5383, %v5735
    %v5737 = vpop.f32.mrf.mxu0
    %v5738 = vadd.f32 %v5385, %v5737
    %5739 = vmatprep.mubr.bf16.mxu0 0
    %5740 = vmatmul.mubr.bf16.gmra.mxu0 %v1587
    %v5741 = vpop.f32.mrf.mxu0
    %v5742 = vadd.f32 %v5389, %v5741
    %v5743 = vpop.f32.mrf.mxu0
    %v5744 = vadd.f32 %v5391, %v5743
    %v5745 = vpop.f32.mrf.mxu0
    %v5746 = vadd.f32 %v5393, %v5745
    %v5747 = vpop.f32.mrf.mxu0
    %v5748 = vadd.f32 %v5395, %v5747
    %5749 = vmatprep.mubr.bf16.mxu0 0
    %5750 = vmatmul.mubr.bf16.gmra.mxu0 %v1594
    %v5751 = vpop.f32.mrf.mxu0
    %v5752 = vadd.f32 %v5399, %v5751
    %v5753 = vpop.f32.mrf.mxu0
    %v5754 = vadd.f32 %v5401, %v5753
    %v5755 = vpop.f32.mrf.mxu0
    %v5756 = vadd.f32 %v5403, %v5755
    %v5757 = vpop.f32.mrf.mxu0
    %v5758 = vadd.f32 %v5405, %v5757
    %5759 = vmatprep.mubr.bf16.mxu0 0
    %5760 = vmatmul.mubr.bf16.gmra.mxu0 %v1601
    %v5761 = vpop.f32.mrf.mxu0
    %v5762 = vadd.f32 %v5409, %v5761
    %v5763 = vpop.f32.mrf.mxu0
    %v5764 = vadd.f32 %v5411, %v5763
    %v5765 = vpop.f32.mrf.mxu0
    %v5766 = vadd.f32 %v5413, %v5765
    %v5767 = vpop.f32.mrf.mxu0
    %v5768 = vadd.f32 %v5415, %v5767
    %5769 = vdwg.mxu0
    %v5770 = vmax.f32 %v4040, 0.0
    %v5771 = vmax.f32 %v4042, 0.0
    %v5772 = vmax.f32 %v5452, 0.0
    %v5773 = vmax.f32 %v5454, 0.0
    %v5774 = vmax.f32 %v4044, 0.0
    %v5775 = vmax.f32 %v4046, 0.0
    %v5776 = vmax.f32 %v5456, 0.0
    %v5777 = vmax.f32 %v5458, 0.0
    %v5778 = vmax.f32 %v4050, 0.0
    %v5779 = vmax.f32 %v4052, 0.0
    %v5780 = vmax.f32 %v5462, 0.0
    %v5781 = vmax.f32 %v5464, 0.0
    %v5782 = vmax.f32 %v4054, 0.0
    %v5783 = vmax.f32 %v4056, 0.0
    %v5784 = vmax.f32 %v5466, 0.0
    %v5785 = vmax.f32 %v5468, 0.0
    %v5786 = vmax.f32 %v4060, 0.0
    %v5787 = vmax.f32 %v4062, 0.0
    %v5788 = vmax.f32 %v5472, 0.0
    %v5789 = vmax.f32 %v5474, 0.0
    %v5790 = vmax.f32 %v4064, 0.0
    %v5791 = vmax.f32 %v4066, 0.0
    %v5792 = vmax.f32 %v5476, 0.0
    %v5793 = vmax.f32 %v5478, 0.0
    %v5794 = vmax.f32 %v4070, 0.0
    %v5795 = vmax.f32 %v4072, 0.0
    %v5796 = vmax.f32 %v5482, 0.0
    %v5797 = vmax.f32 %v5484, 0.0
    %v5798 = vmax.f32 %v4074, 0.0
    %v5799 = vmax.f32 %v4076, 0.0
    %v5800 = vmax.f32 %v5486, 0.0
    %v5801 = vmax.f32 %v5488, 0.0
    %v5802 = vmax.f32 %v4080, 0.0
    %v5803 = vmax.f32 %v4082, 0.0
    %v5804 = vmax.f32 %v5492, 0.0
    %v5805 = vmax.f32 %v5494, 0.0
    %v5806 = vmax.f32 %v4084, 0.0
    %v5807 = vmax.f32 %v4086, 0.0
    %v5808 = vmax.f32 %v5496, 0.0
    %v5809 = vmax.f32 %v5498, 0.0
    %v5810 = vmax.f32 %v4090, 0.0
    %v5811 = vmax.f32 %v4092, 0.0
    %v5812 = vmax.f32 %v5502, 0.0
    %v5813 = vmax.f32 %v5504, 0.0
    %v5814 = vmax.f32 %v4094, 0.0
    %v5815 = vmax.f32 %v4096, 0.0
    %v5816 = vmax.f32 %v5506, 0.0
    %v5817 = vmax.f32 %v5508, 0.0
    %v5818 = vmax.f32 %v4100, 0.0
    %v5819 = vmax.f32 %v4102, 0.0
    %v5820 = vmax.f32 %v5512, 0.0
    %v5821 = vmax.f32 %v5514, 0.0
    %v5822 = vmax.f32 %v4104, 0.0
    %v5823 = vmax.f32 %v4106, 0.0
    %v5824 = vmax.f32 %v5516, 0.0
    %v5825 = vmax.f32 %v5518, 0.0
    %v5826 = vmax.f32 %v4110, 0.0
    %v5827 = vmax.f32 %v4112, 0.0
    %v5828 = vmax.f32 %v5522, 0.0
    %v5829 = vmax.f32 %v5524, 0.0
    %v5830 = vmax.f32 %v4114, 0.0
    %v5831 = vmax.f32 %v4116, 0.0
    %v5832 = vmax.f32 %v5526, 0.0
    %v5833 = vmax.f32 %v5528, 0.0
    %v5834 = vmax.f32 %v4120, 0.0
    %v5835 = vmax.f32 %v4122, 0.0
    %v5836 = vmax.f32 %v5532, 0.0
    %v5837 = vmax.f32 %v5534, 0.0
    %v5838 = vmax.f32 %v4124, 0.0
    %v5839 = vmax.f32 %v4126, 0.0
    %v5840 = vmax.f32 %v5536, 0.0
    %v5841 = vmax.f32 %v5538, 0.0
    %v5842 = vmax.f32 %v4130, 0.0
    %v5843 = vmax.f32 %v4132, 0.0
    %v5844 = vmax.f32 %v5542, 0.0
    %v5845 = vmax.f32 %v5544, 0.0
    %v5846 = vmax.f32 %v4134, 0.0
    %v5847 = vmax.f32 %v4136, 0.0
    %v5848 = vmax.f32 %v5546, 0.0
    %v5849 = vmax.f32 %v5548, 0.0
    %v5850 = vmax.f32 %v4140, 0.0
    %v5851 = vmax.f32 %v4142, 0.0
    %v5852 = vmax.f32 %v5552, 0.0
    %v5853 = vmax.f32 %v5554, 0.0
    %v5854 = vmax.f32 %v4144, 0.0
    %v5855 = vmax.f32 %v4146, 0.0
    %v5856 = vmax.f32 %v5556, 0.0
    %v5857 = vmax.f32 %v5558, 0.0
    %v5858 = vmax.f32 %v4150, 0.0
    %v5859 = vmax.f32 %v4152, 0.0
    %v5860 = vmax.f32 %v5562, 0.0
    %v5861 = vmax.f32 %v5564, 0.0
    %v5862 = vmax.f32 %v4154, 0.0
    %v5863 = vmax.f32 %v4156, 0.0
    %v5864 = vmax.f32 %v5566, 0.0
    %v5865 = vmax.f32 %v5568, 0.0
    %v5866 = vmax.f32 %v4160, 0.0
    %v5867 = vmax.f32 %v4162, 0.0
    %v5868 = vmax.f32 %v5572, 0.0
    %v5869 = vmax.f32 %v5574, 0.0
    %v5870 = vmax.f32 %v4164, 0.0
    %v5871 = vmax.f32 %v4166, 0.0
    %v5872 = vmax.f32 %v5576, 0.0
    %v5873 = vmax.f32 %v5578, 0.0
    %v5874 = vmax.f32 %v4170, 0.0
    %v5875 = vmax.f32 %v4172, 0.0
    %v5876 = vmax.f32 %v5582, 0.0
    %v5877 = vmax.f32 %v5584, 0.0
    %v5878 = vmax.f32 %v4174, 0.0
    %v5879 = vmax.f32 %v4176, 0.0
    %v5880 = vmax.f32 %v5586, 0.0
    %v5881 = vmax.f32 %v5588, 0.0
    %v5882 = vmax.f32 %v4180, 0.0
    %v5883 = vmax.f32 %v4182, 0.0
    %v5884 = vmax.f32 %v5592, 0.0
    %v5885 = vmax.f32 %v5594, 0.0
    %v5886 = vmax.f32 %v4184, 0.0
    %v5887 = vmax.f32 %v4186, 0.0
    %v5888 = vmax.f32 %v5596, 0.0
    %v5889 = vmax.f32 %v5598, 0.0
    %v5890 = vmax.f32 %v4190, 0.0
    %v5891 = vmax.f32 %v4192, 0.0
    %v5892 = vmax.f32 %v5602, 0.0
    %v5893 = vmax.f32 %v5604, 0.0
    %v5894 = vmax.f32 %v4194, 0.0
    %v5895 = vmax.f32 %v4196, 0.0
    %v5896 = vmax.f32 %v5606, 0.0
    %v5897 = vmax.f32 %v5608, 0.0
    %v5898 = vmax.f32 %v4200, 0.0
    %v5899 = vmax.f32 %v4202, 0.0
    %v5900 = vmax.f32 %v5612, 0.0
    %v5901 = vmax.f32 %v5614, 0.0
    %v5902 = vmax.f32 %v4204, 0.0
    %v5903 = vmax.f32 %v4206, 0.0
    %v5904 = vmax.f32 %v5616, 0.0
    %v5905 = vmax.f32 %v5618, 0.0
    %v5906 = vmax.f32 %v4210, 0.0
    %v5907 = vmax.f32 %v4212, 0.0
    %v5908 = vmax.f32 %v5622, 0.0
    %v5909 = vmax.f32 %v5624, 0.0
    %v5910 = vmax.f32 %v4214, 0.0
    %v5911 = vmax.f32 %v4216, 0.0
    %v5912 = vmax.f32 %v5626, 0.0
    %v5913 = vmax.f32 %v5628, 0.0
    %v5914 = vmax.f32 %v4220, 0.0
    %v5915 = vmax.f32 %v4222, 0.0
    %v5916 = vmax.f32 %v5632, 0.0
    %v5917 = vmax.f32 %v5634, 0.0
    %v5918 = vmax.f32 %v4224, 0.0
    %v5919 = vmax.f32 %v4226, 0.0
    %v5920 = vmax.f32 %v5636, 0.0
    %v5921 = vmax.f32 %v5638, 0.0
    %v5922 = vmax.f32 %v4230, 0.0
    %v5923 = vmax.f32 %v4232, 0.0
    %v5924 = vmax.f32 %v5642, 0.0
    %v5925 = vmax.f32 %v5644, 0.0
    %v5926 = vmax.f32 %v4234, 0.0
    %v5927 = vmax.f32 %v4236, 0.0
    %v5928 = vmax.f32 %v5646, 0.0
    %v5929 = vmax.f32 %v5648, 0.0
    %v5930 = vmax.f32 %v4240, 0.0
    %v5931 = vmax.f32 %v4242, 0.0
    %v5932 = vmax.f32 %v5652, 0.0
    %v5933 = vmax.f32 %v5654, 0.0
    %v5934 = vmax.f32 %v4244, 0.0
    %v5935 = vmax.f32 %v4246, 0.0
    %v5936 = vmax.f32 %v5656, 0.0
    %v5937 = vmax.f32 %v5658, 0.0
    %v5938 = vmax.f32 %v4250, 0.0
    %v5939 = vmax.f32 %v4252, 0.0
    %v5940 = vmax.f32 %v5662, 0.0
    %v5941 = vmax.f32 %v5664, 0.0
    %v5942 = vmax.f32 %v4254, 0.0
    %v5943 = vmax.f32 %v4256, 0.0
    %v5944 = vmax.f32 %v5666, 0.0
    %v5945 = vmax.f32 %v5668, 0.0
    %v5946 = vmax.f32 %v4260, 0.0
    %v5947 = vmax.f32 %v4262, 0.0
    %v5948 = vmax.f32 %v5672, 0.0
    %v5949 = vmax.f32 %v5674, 0.0
    %v5950 = vmax.f32 %v4264, 0.0
    %v5951 = vmax.f32 %v4266, 0.0
    %v5952 = vmax.f32 %v5676, 0.0
    %v5953 = vmax.f32 %v5678, 0.0
    %v5954 = vmax.f32 %v4270, 0.0
    %v5955 = vmax.f32 %v4272, 0.0
    %v5956 = vmax.f32 %v5682, 0.0
    %v5957 = vmax.f32 %v5684, 0.0
    %v5958 = vmax.f32 %v4274, 0.0
    %v5959 = vmax.f32 %v4276, 0.0
    %v5960 = vmax.f32 %v5686, 0.0
    %v5961 = vmax.f32 %v5688, 0.0
    %v5962 = vmax.f32 %v4280, 0.0
    %v5963 = vmax.f32 %v4282, 0.0
    %v5964 = vmax.f32 %v5692, 0.0
    %v5965 = vmax.f32 %v5694, 0.0
    %v5966 = vmax.f32 %v4284, 0.0
    %v5967 = vmax.f32 %v4286, 0.0
    %v5968 = vmax.f32 %v5696, 0.0
    %v5969 = vmax.f32 %v5698, 0.0
    %v5970 = vmax.f32 %v4290, 0.0
    %v5971 = vmax.f32 %v4292, 0.0
    %v5972 = vmax.f32 %v5702, 0.0
    %v5973 = vmax.f32 %v5704, 0.0
    %v5974 = vmax.f32 %v4294, 0.0
    %v5975 = vmax.f32 %v4296, 0.0
    %v5976 = vmax.f32 %v5706, 0.0
    %v5977 = vmax.f32 %v5708, 0.0
    %v5978 = vmax.f32 %v4300, 0.0
    %v5979 = vmax.f32 %v4302, 0.0
    %v5980 = vmax.f32 %v5712, 0.0
    %v5981 = vmax.f32 %v5714, 0.0
    %v5982 = vmax.f32 %v4304, 0.0
    %v5983 = vmax.f32 %v4306, 0.0
    %v5984 = vmax.f32 %v5716, 0.0
    %v5985 = vmax.f32 %v5718, 0.0
    %v5986 = vmax.f32 %v4310, 0.0
    %v5987 = vmax.f32 %v4312, 0.0
    %v5988 = vmax.f32 %v5722, 0.0
    %v5989 = vmax.f32 %v5724, 0.0
    %v5990 = vmax.f32 %v4314, 0.0
    %v5991 = vmax.f32 %v4316, 0.0
    %v5992 = vmax.f32 %v5726, 0.0
    %v5993 = vmax.f32 %v5728, 0.0
    %v5994 = vmax.f32 %v4320, 0.0
    %v5995 = vmax.f32 %v4322, 0.0
    %v5996 = vmax.f32 %v5732, 0.0
    %v5997 = vmax.f32 %v5734, 0.0
    %v5998 = vmax.f32 %v4324, 0.0
    %v5999 = vmax.f32 %v4326, 0.0
    %v6000 = vmax.f32 %v5736, 0.0
    %v6001 = vmax.f32 %v5738, 0.0
    %v6002 = vmax.f32 %v4330, 0.0
    %v6003 = vmax.f32 %v4332, 0.0
    %v6004 = vmax.f32 %v5742, 0.0
    %v6005 = vmax.f32 %v5744, 0.0
    %v6006 = vmax.f32 %v4334, 0.0
    %v6007 = vmax.f32 %v4336, 0.0
    %v6008 = vmax.f32 %v5746, 0.0
    %v6009 = vmax.f32 %v5748, 0.0
    %v6010 = vmax.f32 %v4340, 0.0
    %v6011 = vmax.f32 %v4342, 0.0
    %v6012 = vmax.f32 %v5752, 0.0
    %v6013 = vmax.f32 %v5754, 0.0
    %v6014 = vmax.f32 %v4344, 0.0
    %v6015 = vmax.f32 %v4346, 0.0
    %v6016 = vmax.f32 %v5756, 0.0
    %v6017 = vmax.f32 %v5758, 0.0
    %v6018 = vmax.f32 %v4350, 0.0
    %v6019 = vmax.f32 %v4352, 0.0
    %v6020 = vmax.f32 %v5762, 0.0
    %v6021 = vmax.f32 %v5764, 0.0
    %v6022 = vmax.f32 %v4354, 0.0
    %v6023 = vmax.f32 %v4356, 0.0
    %v6024 = vmax.f32 %v5766, 0.0
    %v6025 = vmax.f32 %v5768, 0.0
    %v6026 = vpack.c.bf16 %v5774, %v5770
    %v6027 = vpack.c.bf16 %v5775, %v5771
    %v6028 = vpack.c.bf16 %v5776, %v5772
    %v6029 = vpack.c.bf16 %v5777, %v5773
    %v6030 = vpack.c.bf16 %v5782, %v5778
    %v6031 = vpack.c.bf16 %v5783, %v5779
    %v6032 = vpack.c.bf16 %v5784, %v5780
    %v6033 = vpack.c.bf16 %v5785, %v5781
    %v6034 = vpack.c.bf16 %v5790, %v5786
    %v6035 = vpack.c.bf16 %v5791, %v5787
    %v6036 = vpack.c.bf16 %v5792, %v5788
    %v6037 = vpack.c.bf16 %v5793, %v5789
    %v6038 = vpack.c.bf16 %v5798, %v5794
    %v6039 = vpack.c.bf16 %v5799, %v5795
    %v6040 = vpack.c.bf16 %v5800, %v5796
    %v6041 = vpack.c.bf16 %v5801, %v5797
    %v6042 = vpack.c.bf16 %v5806, %v5802
    %v6043 = vpack.c.bf16 %v5807, %v5803
    %v6044 = vpack.c.bf16 %v5808, %v5804
    %v6045 = vpack.c.bf16 %v5809, %v5805
    %v6046 = vpack.c.bf16 %v5814, %v5810
    %v6047 = vpack.c.bf16 %v5815, %v5811
    %v6048 = vpack.c.bf16 %v5816, %v5812
    %v6049 = vpack.c.bf16 %v5817, %v5813
    %v6050 = vpack.c.bf16 %v5822, %v5818
    %v6051 = vpack.c.bf16 %v5823, %v5819
    %v6052 = vpack.c.bf16 %v5824, %v5820
    %v6053 = vpack.c.bf16 %v5825, %v5821
    %v6054 = vpack.c.bf16 %v5830, %v5826
    %v6055 = vpack.c.bf16 %v5831, %v5827
    %v6056 = vpack.c.bf16 %v5832, %v5828
    %v6057 = vpack.c.bf16 %v5833, %v5829
    %v6058 = vpack.c.bf16 %v5838, %v5834
    %v6059 = vpack.c.bf16 %v5839, %v5835
    %v6060 = vpack.c.bf16 %v5840, %v5836
    %v6061 = vpack.c.bf16 %v5841, %v5837
    %v6062 = vpack.c.bf16 %v5846, %v5842
    %v6063 = vpack.c.bf16 %v5847, %v5843
    %v6064 = vpack.c.bf16 %v5848, %v5844
    %v6065 = vpack.c.bf16 %v5849, %v5845
    %v6066 = vpack.c.bf16 %v5854, %v5850
    %v6067 = vpack.c.bf16 %v5855, %v5851
    %v6068 = vpack.c.bf16 %v5856, %v5852
    %v6069 = vpack.c.bf16 %v5857, %v5853
    %v6070 = vpack.c.bf16 %v5862, %v5858
    %v6071 = vpack.c.bf16 %v5863, %v5859
    %v6072 = vpack.c.bf16 %v5864, %v5860
    %v6073 = vpack.c.bf16 %v5865, %v5861
    %v6074 = vpack.c.bf16 %v5870, %v5866
    %v6075 = vpack.c.bf16 %v5871, %v5867
    %v6076 = vpack.c.bf16 %v5872, %v5868
    %v6077 = vpack.c.bf16 %v5873, %v5869
    %v6078 = vpack.c.bf16 %v5878, %v5874
    %v6079 = vpack.c.bf16 %v5879, %v5875
    %v6080 = vpack.c.bf16 %v5880, %v5876
    %v6081 = vpack.c.bf16 %v5881, %v5877
    %v6082 = vpack.c.bf16 %v5886, %v5882
    %v6083 = vpack.c.bf16 %v5887, %v5883
    %v6084 = vpack.c.bf16 %v5888, %v5884
    %v6085 = vpack.c.bf16 %v5889, %v5885
    %v6086 = vpack.c.bf16 %v5894, %v5890
    %v6087 = vpack.c.bf16 %v5895, %v5891
    %v6088 = vpack.c.bf16 %v5896, %v5892
    %v6089 = vpack.c.bf16 %v5897, %v5893
    %v6090 = vpack.c.bf16 %v5902, %v5898
    %v6091 = vpack.c.bf16 %v5903, %v5899
    %v6092 = vpack.c.bf16 %v5904, %v5900
    %v6093 = vpack.c.bf16 %v5905, %v5901
    %v6094 = vpack.c.bf16 %v5910, %v5906
    %v6095 = vpack.c.bf16 %v5911, %v5907
    %v6096 = vpack.c.bf16 %v5912, %v5908
    %v6097 = vpack.c.bf16 %v5913, %v5909
    %v6098 = vpack.c.bf16 %v5918, %v5914
    %v6099 = vpack.c.bf16 %v5919, %v5915
    %v6100 = vpack.c.bf16 %v5920, %v5916
    %v6101 = vpack.c.bf16 %v5921, %v5917
    %v6102 = vpack.c.bf16 %v5926, %v5922
    %v6103 = vpack.c.bf16 %v5927, %v5923
    %v6104 = vpack.c.bf16 %v5928, %v5924
    %v6105 = vpack.c.bf16 %v5929, %v5925
    %v6106 = vpack.c.bf16 %v5934, %v5930
    %v6107 = vpack.c.bf16 %v5935, %v5931
    %v6108 = vpack.c.bf16 %v5936, %v5932
    %v6109 = vpack.c.bf16 %v5937, %v5933
    %v6110 = vpack.c.bf16 %v5942, %v5938
    %v6111 = vpack.c.bf16 %v5943, %v5939
    %v6112 = vpack.c.bf16 %v5944, %v5940
    %v6113 = vpack.c.bf16 %v5945, %v5941
    %v6114 = vpack.c.bf16 %v5950, %v5946
    %v6115 = vpack.c.bf16 %v5951, %v5947
    %v6116 = vpack.c.bf16 %v5952, %v5948
    %v6117 = vpack.c.bf16 %v5953, %v5949
    %v6118 = vpack.c.bf16 %v5958, %v5954
    %v6119 = vpack.c.bf16 %v5959, %v5955
    %v6120 = vpack.c.bf16 %v5960, %v5956
    %v6121 = vpack.c.bf16 %v5961, %v5957
    %v6122 = vpack.c.bf16 %v5966, %v5962
    %v6123 = vpack.c.bf16 %v5967, %v5963
    %v6124 = vpack.c.bf16 %v5968, %v5964
    %v6125 = vpack.c.bf16 %v5969, %v5965
    %v6126 = vpack.c.bf16 %v5974, %v5970
    %v6127 = vpack.c.bf16 %v5975, %v5971
    %v6128 = vpack.c.bf16 %v5976, %v5972
    %v6129 = vpack.c.bf16 %v5977, %v5973
    %v6130 = vpack.c.bf16 %v5982, %v5978
    %v6131 = vpack.c.bf16 %v5983, %v5979
    %v6132 = vpack.c.bf16 %v5984, %v5980
    %v6133 = vpack.c.bf16 %v5985, %v5981
    %v6134 = vpack.c.bf16 %v5990, %v5986
    %v6135 = vpack.c.bf16 %v5991, %v5987
    %v6136 = vpack.c.bf16 %v5992, %v5988
    %v6137 = vpack.c.bf16 %v5993, %v5989
    %v6138 = vpack.c.bf16 %v5998, %v5994
    %v6139 = vpack.c.bf16 %v5999, %v5995
    %v6140 = vpack.c.bf16 %v6000, %v5996
    %v6141 = vpack.c.bf16 %v6001, %v5997
    %v6142 = vpack.c.bf16 %v6006, %v6002
    %v6143 = vpack.c.bf16 %v6007, %v6003
    %v6144 = vpack.c.bf16 %v6008, %v6004
    %v6145 = vpack.c.bf16 %v6009, %v6005
    %v6146 = vpack.c.bf16 %v6014, %v6010
    %v6147 = vpack.c.bf16 %v6015, %v6011
    %v6148 = vpack.c.bf16 %v6016, %v6012
    %v6149 = vpack.c.bf16 %v6017, %v6013
    %v6150 = vpack.c.bf16 %v6022, %v6018
    %v6151 = vpack.c.bf16 %v6023, %v6019
    %v6152 = vpack.c.bf16 %v6024, %v6020
    %v6153 = vpack.c.bf16 %v6025, %v6021
    %v6154 = vld [vmem:[#allocation8] sm:$0xff]
    %v6155 = vld [vmem:[#allocation8 + $0x8] sm:$0xff]
    %v6156 = vld [vmem:[#allocation8 + $0x10] sm:$0xff]
    %v6157 = vld [vmem:[#allocation8 + $0x18] sm:$0xff]
    %v6158 = vld [vmem:[#allocation8 + $0x20] sm:$0xff]
    %v6159 = vld [vmem:[#allocation8 + $0x28] sm:$0xff]
    %v6160 = vld [vmem:[#allocation8 + $0x30] sm:$0xff]
    %v6161 = vld [vmem:[#allocation8 + $0x38] sm:$0xff]
    %v6162 = vld [vmem:[#allocation8 + $0x40] sm:$0xff]
    %v6163 = vld [vmem:[#allocation8 + $0x48] sm:$0xff]
    %v6164 = vld [vmem:[#allocation8 + $0x50] sm:$0xff]
    %v6165 = vld [vmem:[#allocation8 + $0x58] sm:$0xff]
    %v6166 = vld [vmem:[#allocation8 + $0x60] sm:$0xff]
    %v6167 = vld [vmem:[#allocation8 + $0x68] sm:$0xff]
    %v6168 = vld [vmem:[#allocation8 + $0x70] sm:$0xff]
    %v6169 = vld [vmem:[#allocation8 + $0x78] sm:$0xff]
    %v6170 = vld [vmem:[#allocation8 + $0x80] sm:$0xff]
    %v6171 = vld [vmem:[#allocation8 + $0x88] sm:$0xff]
    %v6172 = vld [vmem:[#allocation8 + $0x90] sm:$0xff]
    %v6173 = vld [vmem:[#allocation8 + $0x98] sm:$0xff]
    %v6174 = vld [vmem:[#allocation8 + $0xa0] sm:$0xff]
    %v6175 = vld [vmem:[#allocation8 + $0xa8] sm:$0xff]
    %v6176 = vld [vmem:[#allocation8 + $0xb0] sm:$0xff]
    %v6177 = vld [vmem:[#allocation8 + $0xb8] sm:$0xff]
    %v6178 = vld [vmem:[#allocation8 + $0xc0] sm:$0xff]
    %v6179 = vld [vmem:[#allocation8 + $0xc8] sm:$0xff]
    %v6180 = vld [vmem:[#allocation8 + $0xd0] sm:$0xff]
    %v6181 = vld [vmem:[#allocation8 + $0xd8] sm:$0xff]
    %v6182 = vld [vmem:[#allocation8 + $0xe0] sm:$0xff]
    %v6183 = vld [vmem:[#allocation8 + $0xe8] sm:$0xff]
    %v6184 = vld [vmem:[#allocation8 + $0xf0] sm:$0xff]
    %v6185 = vld [vmem:[#allocation8 + $0xf8] sm:$0xff]
    %v6186 = vld [vmem:[#allocation8 + $0x100] sm:$0xff]
    %v6187 = vld [vmem:[#allocation8 + $0x108] sm:$0xff]
    %v6188 = vld [vmem:[#allocation8 + $0x110] sm:$0xff]
    %v6189 = vld [vmem:[#allocation8 + $0x118] sm:$0xff]
    %v6190 = vld [vmem:[#allocation8 + $0x120] sm:$0xff]
    %v6191 = vld [vmem:[#allocation8 + $0x128] sm:$0xff]
    %v6192 = vld [vmem:[#allocation8 + $0x130] sm:$0xff]
    %v6193 = vld [vmem:[#allocation8 + $0x138] sm:$0xff]
    %v6194 = vld [vmem:[#allocation8 + $0x140] sm:$0xff]
    %v6195 = vld [vmem:[#allocation8 + $0x148] sm:$0xff]
    %v6196 = vld [vmem:[#allocation8 + $0x150] sm:$0xff]
    %v6197 = vld [vmem:[#allocation8 + $0x158] sm:$0xff]
    %v6198 = vld [vmem:[#allocation8 + $0x160] sm:$0xff]
    %v6199 = vld [vmem:[#allocation8 + $0x168] sm:$0xff]
    %v6200 = vld [vmem:[#allocation8 + $0x170] sm:$0xff]
    %v6201 = vld [vmem:[#allocation8 + $0x178] sm:$0xff]
    %v6202 = vld [vmem:[#allocation8 + $0x180] sm:$0xff]
    %v6203 = vld [vmem:[#allocation8 + $0x188] sm:$0xff]
    %v6204 = vld [vmem:[#allocation8 + $0x190] sm:$0xff]
    %v6205 = vld [vmem:[#allocation8 + $0x198] sm:$0xff]
    %v6206 = vld [vmem:[#allocation8 + $0x1a0] sm:$0xff]
    %v6207 = vld [vmem:[#allocation8 + $0x1a8] sm:$0xff]
    %v6208 = vld [vmem:[#allocation8 + $0x1b0] sm:$0xff]
    %v6209 = vld [vmem:[#allocation8 + $0x1b8] sm:$0xff]
    %v6210 = vld [vmem:[#allocation8 + $0x1c0] sm:$0xff]
    %v6211 = vld [vmem:[#allocation8 + $0x1c8] sm:$0xff]
    %v6212 = vld [vmem:[#allocation8 + $0x1d0] sm:$0xff]
    %v6213 = vld [vmem:[#allocation8 + $0x1d8] sm:$0xff]
    %v6214 = vld [vmem:[#allocation8 + $0x1e0] sm:$0xff]
    %v6215 = vld [vmem:[#allocation8 + $0x1e8] sm:$0xff]
    %v6216 = vld [vmem:[#allocation8 + $0x1f0] sm:$0xff]
    %v6217 = vld [vmem:[#allocation8 + $0x1f8] sm:$0xff]
    %v6218 = vld [vmem:[%s4] sm:$0x3]
    %v6220 = vlaneseq
    %v6221 = vshrl.u32 %v6220, 7
    %v6222 = vsub.s32 0, %v6221
    %v6223 = vrot.slane %v6218, %v6222
    %v6224 = vlaneseq
    %v6225 = vshrl.u32 %v6224, 7
    %v6226 = vsub.s32 1, %v6225
    %v6227 = vrot.slane %v6218, %v6226
    %v6294 = vunpack.c.l.b16 %v6154
    %v6295 = vunpack.c.h.b16 %v6154
    %v6296 = vunpack.c.l.b16 %v6155
    %v6297 = vunpack.c.h.b16 %v6155
    %v6298 = vunpack.c.l.b16 %v6156
    %v6299 = vunpack.c.h.b16 %v6156
    %v6300 = vunpack.c.l.b16 %v6157
    %v6301 = vunpack.c.h.b16 %v6157
    %v6302 = vunpack.c.l.b16 %v6158
    %v6303 = vunpack.c.h.b16 %v6158
    %v6304 = vunpack.c.l.b16 %v6159
    %v6305 = vunpack.c.h.b16 %v6159
    %v6306 = vunpack.c.l.b16 %v6160
    %v6307 = vunpack.c.h.b16 %v6160
    %v6308 = vunpack.c.l.b16 %v6161
    %v6309 = vunpack.c.h.b16 %v6161
    %v6310 = vunpack.c.l.b16 %v6162
    %v6311 = vunpack.c.h.b16 %v6162
    %v6312 = vunpack.c.l.b16 %v6163
    %v6313 = vunpack.c.h.b16 %v6163
    %v6314 = vunpack.c.l.b16 %v6164
    %v6315 = vunpack.c.h.b16 %v6164
    %v6316 = vunpack.c.l.b16 %v6165
    %v6317 = vunpack.c.h.b16 %v6165
    %v6318 = vunpack.c.l.b16 %v6166
    %v6319 = vunpack.c.h.b16 %v6166
    %v6320 = vunpack.c.l.b16 %v6167
    %v6321 = vunpack.c.h.b16 %v6167
    %v6322 = vunpack.c.l.b16 %v6168
    %v6323 = vunpack.c.h.b16 %v6168
    %v6324 = vunpack.c.l.b16 %v6169
    %v6325 = vunpack.c.h.b16 %v6169
    %v6326 = vunpack.c.l.b16 %v6170
    %v6327 = vunpack.c.h.b16 %v6170
    %v6328 = vunpack.c.l.b16 %v6171
    %v6329 = vunpack.c.h.b16 %v6171
    %v6330 = vunpack.c.l.b16 %v6172
    %v6331 = vunpack.c.h.b16 %v6172
    %v6332 = vunpack.c.l.b16 %v6173
    %v6333 = vunpack.c.h.b16 %v6173
    %v6334 = vunpack.c.l.b16 %v6174
    %v6335 = vunpack.c.h.b16 %v6174
    %v6336 = vunpack.c.l.b16 %v6175
    %v6337 = vunpack.c.h.b16 %v6175
    %v6338 = vunpack.c.l.b16 %v6176
    %v6339 = vunpack.c.h.b16 %v6176
    %v6340 = vunpack.c.l.b16 %v6177
    %v6341 = vunpack.c.h.b16 %v6177
    %v6342 = vunpack.c.l.b16 %v6178
    %v6343 = vunpack.c.h.b16 %v6178
    %v6344 = vunpack.c.l.b16 %v6179
    %v6345 = vunpack.c.h.b16 %v6179
    %v6346 = vunpack.c.l.b16 %v6180
    %v6347 = vunpack.c.h.b16 %v6180
    %v6348 = vunpack.c.l.b16 %v6181
    %v6349 = vunpack.c.h.b16 %v6181
    %v6350 = vunpack.c.l.b16 %v6182
    %v6351 = vunpack.c.h.b16 %v6182
    %v6352 = vunpack.c.l.b16 %v6183
    %v6353 = vunpack.c.h.b16 %v6183
    %v6354 = vunpack.c.l.b16 %v6184
    %v6355 = vunpack.c.h.b16 %v6184
    %v6356 = vunpack.c.l.b16 %v6185
    %v6357 = vunpack.c.h.b16 %v6185
    %v6358 = vunpack.c.l.b16 %v6186
    %v6359 = vunpack.c.h.b16 %v6186
    %v6360 = vunpack.c.l.b16 %v6187
    %v6361 = vunpack.c.h.b16 %v6187
    %v6362 = vunpack.c.l.b16 %v6188
    %v6363 = vunpack.c.h.b16 %v6188
    %v6364 = vunpack.c.l.b16 %v6189
    %v6365 = vunpack.c.h.b16 %v6189
    %v6366 = vunpack.c.l.b16 %v6190
    %v6367 = vunpack.c.h.b16 %v6190
    %v6368 = vunpack.c.l.b16 %v6191
    %v6369 = vunpack.c.h.b16 %v6191
    %v6370 = vunpack.c.l.b16 %v6192
    %v6371 = vunpack.c.h.b16 %v6192
    %v6372 = vunpack.c.l.b16 %v6193
    %v6373 = vunpack.c.h.b16 %v6193
    %v6374 = vunpack.c.l.b16 %v6194
    %v6375 = vunpack.c.h.b16 %v6194
    %v6376 = vunpack.c.l.b16 %v6195
    %v6377 = vunpack.c.h.b16 %v6195
    %v6378 = vunpack.c.l.b16 %v6196
    %v6379 = vunpack.c.h.b16 %v6196
    %v6380 = vunpack.c.l.b16 %v6197
    %v6381 = vunpack.c.h.b16 %v6197
    %v6382 = vunpack.c.l.b16 %v6198
    %v6383 = vunpack.c.h.b16 %v6198
    %v6384 = vunpack.c.l.b16 %v6199
    %v6385 = vunpack.c.h.b16 %v6199
    %v6386 = vunpack.c.l.b16 %v6200
    %v6387 = vunpack.c.h.b16 %v6200
    %v6388 = vunpack.c.l.b16 %v6201
    %v6389 = vunpack.c.h.b16 %v6201
    %v6390 = vunpack.c.l.b16 %v6202
    %v6391 = vunpack.c.h.b16 %v6202
    %v6392 = vunpack.c.l.b16 %v6203
    %v6393 = vunpack.c.h.b16 %v6203
    %v6394 = vunpack.c.l.b16 %v6204
    %v6395 = vunpack.c.h.b16 %v6204
    %v6396 = vunpack.c.l.b16 %v6205
    %v6397 = vunpack.c.h.b16 %v6205
    %v6398 = vunpack.c.l.b16 %v6206
    %v6399 = vunpack.c.h.b16 %v6206
    %v6400 = vunpack.c.l.b16 %v6207
    %v6401 = vunpack.c.h.b16 %v6207
    %v6402 = vunpack.c.l.b16 %v6208
    %v6403 = vunpack.c.h.b16 %v6208
    %v6404 = vunpack.c.l.b16 %v6209
    %v6405 = vunpack.c.h.b16 %v6209
    %v6406 = vunpack.c.l.b16 %v6210
    %v6407 = vunpack.c.h.b16 %v6210
    %v6408 = vunpack.c.l.b16 %v6211
    %v6409 = vunpack.c.h.b16 %v6211
    %v6410 = vunpack.c.l.b16 %v6212
    %v6411 = vunpack.c.h.b16 %v6212
    %v6412 = vunpack.c.l.b16 %v6213
    %v6413 = vunpack.c.h.b16 %v6213
    %v6414 = vunpack.c.l.b16 %v6214
    %v6415 = vunpack.c.h.b16 %v6214
    %v6416 = vunpack.c.l.b16 %v6215
    %v6417 = vunpack.c.h.b16 %v6215
    %v6418 = vunpack.c.l.b16 %v6216
    %v6419 = vunpack.c.h.b16 %v6216
    %v6420 = vunpack.c.l.b16 %v6217
    %v6421 = vunpack.c.h.b16 %v6217
    %v6422 = vpack.c.b16 %v6296, %v6294
    %v6423 = vpack.c.b16 %v6297, %v6295
    %v6424 = vpack.c.b16 %v6300, %v6298
    %v6425 = vpack.c.b16 %v6301, %v6299
    %v6426 = vpack.c.b16 %v6304, %v6302
    %v6427 = vpack.c.b16 %v6305, %v6303
    %v6428 = vpack.c.b16 %v6308, %v6306
    %v6429 = vpack.c.b16 %v6309, %v6307
    %v6430 = vpack.c.b16 %v6312, %v6310
    %v6431 = vpack.c.b16 %v6313, %v6311
    %v6432 = vpack.c.b16 %v6316, %v6314
    %v6433 = vpack.c.b16 %v6317, %v6315
    %v6434 = vpack.c.b16 %v6320, %v6318
    %v6435 = vpack.c.b16 %v6321, %v6319
    %v6436 = vpack.c.b16 %v6324, %v6322
    %v6437 = vpack.c.b16 %v6325, %v6323
    %v6438 = vpack.c.b16 %v6328, %v6326
    %v6439 = vpack.c.b16 %v6329, %v6327
    %v6440 = vpack.c.b16 %v6332, %v6330
    %v6441 = vpack.c.b16 %v6333, %v6331
    %v6442 = vpack.c.b16 %v6336, %v6334
    %v6443 = vpack.c.b16 %v6337, %v6335
    %v6444 = vpack.c.b16 %v6340, %v6338
    %v6445 = vpack.c.b16 %v6341, %v6339
    %v6446 = vpack.c.b16 %v6344, %v6342
    %v6447 = vpack.c.b16 %v6345, %v6343
    %v6448 = vpack.c.b16 %v6348, %v6346
    %v6449 = vpack.c.b16 %v6349, %v6347
    %v6450 = vpack.c.b16 %v6352, %v6350
    %v6451 = vpack.c.b16 %v6353, %v6351
    %v6452 = vpack.c.b16 %v6356, %v6354
    %v6453 = vpack.c.b16 %v6357, %v6355
    %v6454 = vpack.c.b16 %v6360, %v6358
    %v6455 = vpack.c.b16 %v6361, %v6359
    %v6456 = vpack.c.b16 %v6364, %v6362
    %v6457 = vpack.c.b16 %v6365, %v6363
    %v6458 = vpack.c.b16 %v6368, %v6366
    %v6459 = vpack.c.b16 %v6369, %v6367
    %v6460 = vpack.c.b16 %v6372, %v6370
    %v6461 = vpack.c.b16 %v6373, %v6371
    %v6462 = vpack.c.b16 %v6376, %v6374
    %v6463 = vpack.c.b16 %v6377, %v6375
    %v6464 = vpack.c.b16 %v6380, %v6378
    %v6465 = vpack.c.b16 %v6381, %v6379
    %v6466 = vpack.c.b16 %v6384, %v6382
    %v6467 = vpack.c.b16 %v6385, %v6383
    %v6468 = vpack.c.b16 %v6388, %v6386
    %v6469 = vpack.c.b16 %v6389, %v6387
    %v6470 = vpack.c.b16 %v6392, %v6390
    %v6471 = vpack.c.b16 %v6393, %v6391
    %v6472 = vpack.c.b16 %v6396, %v6394
    %v6473 = vpack.c.b16 %v6397, %v6395
    %v6474 = vpack.c.b16 %v6400, %v6398
    %v6475 = vpack.c.b16 %v6401, %v6399
    %v6476 = vpack.c.b16 %v6404, %v6402
    %v6477 = vpack.c.b16 %v6405, %v6403
    %v6478 = vpack.c.b16 %v6408, %v6406
    %v6479 = vpack.c.b16 %v6409, %v6407
    %v6480 = vpack.c.b16 %v6412, %v6410
    %v6481 = vpack.c.b16 %v6413, %v6411
    %v6482 = vpack.c.b16 %v6416, %v6414
    %v6483 = vpack.c.b16 %v6417, %v6415
    %v6484 = vpack.c.b16 %v6420, %v6418
    %v6485 = vpack.c.b16 %v6421, %v6419
    %6550 = vmatprep.subr.bf16.mxu0 %v6437
    %6551 = vmatpush1.bf16.msra.mxu0 %v6436
    %6552 = vmatprep.subr.bf16.mxu0 %v6435
    %6553 = vmatpush1.bf16.msra.mxu0 %v6434
    %6554 = vmatprep.subr.bf16.mxu0 %v6433
    %6555 = vmatpush1.bf16.msra.mxu0 %v6432
    %6556 = vmatprep.subr.bf16.mxu0 %v6431
    %6557 = vmatpush1.bf16.msra.mxu0 %v6430
    %6558 = vmatprep.subr.bf16.mxu0 %v6429
    %6559 = vmatpush1.bf16.msra.mxu0 %v6428
    %6560 = vmatprep.subr.bf16.mxu0 %v6427
    %6561 = vmatpush1.bf16.msra.mxu0 %v6426
    %6562 = vmatprep.subr.bf16.mxu0 %v6425
    %6563 = vmatpush1.bf16.msra.mxu0 %v6424
    %6564 = vmatprep.subr.bf16.mxu0 %v6423
    %6565 = vmatpush1.bf16.msra.mxu0 %v6422
    %6566 = vmatprep.subr.bf16.mxu0 %v6453
    %6567 = vmatpush2.bf16.msra.mxu0 %v6452
    %6568 = vmatprep.subr.bf16.mxu0 %v6451
    %6569 = vmatpush2.bf16.msra.mxu0 %v6450
    %6570 = vmatprep.subr.bf16.mxu0 %v6449
    %6571 = vmatpush2.bf16.msra.mxu0 %v6448
    %6572 = vmatprep.subr.bf16.mxu0 %v6447
    %6573 = vmatpush2.bf16.msra.mxu0 %v6446
    %6574 = vmatprep.subr.bf16.mxu0 %v6445
    %6575 = vmatpush2.bf16.msra.mxu0 %v6444
    %6576 = vmatprep.subr.bf16.mxu0 %v6443
    %6577 = vmatpush2.bf16.msra.mxu0 %v6442
    %6578 = vmatprep.subr.bf16.mxu0 %v6441
    %6579 = vmatpush2.bf16.msra.mxu0 %v6440
    %6580 = vmatprep.subr.bf16.mxu0 %v6439
    %6581 = vmatpush2.bf16.msra.mxu0 %v6438
    %6582 = vmatprep.mubr.bf16.mxu0 %v6027
    %6583 = vmatmul.mubr.bf16.gmra.mxu0 %v6026
    %v6584 = vpop.f32.mrf.mxu0
    %v6585 = vadd.f32 %v6223, %v6584
    %v6586 = vpop.f32.mrf.mxu0
    %v6587 = vadd.f32 %v6227, %v6586
    %v6588 = vpop.f32.mrf.mxu0
    %v6589 = vadd.f32 %v6223, %v6588
    %v6590 = vpop.f32.mrf.mxu0
    %v6591 = vadd.f32 %v6227, %v6590
    %6592 = vmatprep.mubr.bf16.mxu0 %v6031
    %6593 = vmatmul.mubr.bf16.gmra.mxu0 %v6030
    %v6594 = vpop.f32.mrf.mxu0
    %v6595 = vadd.f32 %v6223, %v6594
    %v6596 = vpop.f32.mrf.mxu0
    %v6597 = vadd.f32 %v6227, %v6596
    %v6598 = vpop.f32.mrf.mxu0
    %v6599 = vadd.f32 %v6223, %v6598
    %v6600 = vpop.f32.mrf.mxu0
    %v6601 = vadd.f32 %v6227, %v6600
    %6602 = vmatprep.mubr.bf16.mxu0 %v6035
    %6603 = vmatmul.mubr.bf16.gmra.mxu0 %v6034
    %v6604 = vpop.f32.mrf.mxu0
    %v6605 = vadd.f32 %v6223, %v6604
    %v6606 = vpop.f32.mrf.mxu0
    %v6607 = vadd.f32 %v6227, %v6606
    %v6608 = vpop.f32.mrf.mxu0
    %v6609 = vadd.f32 %v6223, %v6608
    %v6610 = vpop.f32.mrf.mxu0
    %v6611 = vadd.f32 %v6227, %v6610
    %6612 = vmatprep.mubr.bf16.mxu0 %v6039
    %6613 = vmatmul.mubr.bf16.gmra.mxu0 %v6038
    %v6614 = vpop.f32.mrf.mxu0
    %v6615 = vadd.f32 %v6223, %v6614
    %v6616 = vpop.f32.mrf.mxu0
    %v6617 = vadd.f32 %v6227, %v6616
    %v6618 = vpop.f32.mrf.mxu0
    %v6619 = vadd.f32 %v6223, %v6618
    %v6620 = vpop.f32.mrf.mxu0
    %v6621 = vadd.f32 %v6227, %v6620
    %6622 = vmatprep.mubr.bf16.mxu0 %v6043
    %6623 = vmatmul.mubr.bf16.gmra.mxu0 %v6042
    %v6624 = vpop.f32.mrf.mxu0
    %v6625 = vadd.f32 %v6223, %v6624
    %v6626 = vpop.f32.mrf.mxu0
    %v6627 = vadd.f32 %v6227, %v6626
    %v6628 = vpop.f32.mrf.mxu0
    %v6629 = vadd.f32 %v6223, %v6628
    %v6630 = vpop.f32.mrf.mxu0
    %v6631 = vadd.f32 %v6227, %v6630
    %6632 = vmatprep.mubr.bf16.mxu0 %v6047
    %6633 = vmatmul.mubr.bf16.gmra.mxu0 %v6046
    %v6634 = vpop.f32.mrf.mxu0
    %v6635 = vadd.f32 %v6223, %v6634
    %v6636 = vpop.f32.mrf.mxu0
    %v6637 = vadd.f32 %v6227, %v6636
    %v6638 = vpop.f32.mrf.mxu0
    %v6639 = vadd.f32 %v6223, %v6638
    %v6640 = vpop.f32.mrf.mxu0
    %v6641 = vadd.f32 %v6227, %v6640
    %6642 = vmatprep.mubr.bf16.mxu0 %v6051
    %6643 = vmatmul.mubr.bf16.gmra.mxu0 %v6050
    %v6644 = vpop.f32.mrf.mxu0
    %v6645 = vadd.f32 %v6223, %v6644
    %v6646 = vpop.f32.mrf.mxu0
    %v6647 = vadd.f32 %v6227, %v6646
    %v6648 = vpop.f32.mrf.mxu0
    %v6649 = vadd.f32 %v6223, %v6648
    %v6650 = vpop.f32.mrf.mxu0
    %v6651 = vadd.f32 %v6227, %v6650
    %6652 = vmatprep.mubr.bf16.mxu0 %v6055
    %6653 = vmatmul.mubr.bf16.gmra.mxu0 %v6054
    %v6654 = vpop.f32.mrf.mxu0
    %v6655 = vadd.f32 %v6223, %v6654
    %v6656 = vpop.f32.mrf.mxu0
    %v6657 = vadd.f32 %v6227, %v6656
    %v6658 = vpop.f32.mrf.mxu0
    %v6659 = vadd.f32 %v6223, %v6658
    %v6660 = vpop.f32.mrf.mxu0
    %v6661 = vadd.f32 %v6227, %v6660
    %6662 = vmatprep.mubr.bf16.mxu0 %v6059
    %6663 = vmatmul.mubr.bf16.gmra.mxu0 %v6058
    %v6664 = vpop.f32.mrf.mxu0
    %v6665 = vadd.f32 %v6223, %v6664
    %v6666 = vpop.f32.mrf.mxu0
    %v6667 = vadd.f32 %v6227, %v6666
    %v6668 = vpop.f32.mrf.mxu0
    %v6669 = vadd.f32 %v6223, %v6668
    %v6670 = vpop.f32.mrf.mxu0
    %v6671 = vadd.f32 %v6227, %v6670
    %6672 = vmatprep.mubr.bf16.mxu0 %v6063
    %6673 = vmatmul.mubr.bf16.gmra.mxu0 %v6062
    %v6674 = vpop.f32.mrf.mxu0
    %v6675 = vadd.f32 %v6223, %v6674
    %v6676 = vpop.f32.mrf.mxu0
    %v6677 = vadd.f32 %v6227, %v6676
    %v6678 = vpop.f32.mrf.mxu0
    %v6679 = vadd.f32 %v6223, %v6678
    %v6680 = vpop.f32.mrf.mxu0
    %v6681 = vadd.f32 %v6227, %v6680
    %6682 = vmatprep.mubr.bf16.mxu0 %v6067
    %6683 = vmatmul.mubr.bf16.gmra.mxu0 %v6066
    %v6684 = vpop.f32.mrf.mxu0
    %v6685 = vadd.f32 %v6223, %v6684
    %v6686 = vpop.f32.mrf.mxu0
    %v6687 = vadd.f32 %v6227, %v6686
    %v6688 = vpop.f32.mrf.mxu0
    %v6689 = vadd.f32 %v6223, %v6688
    %v6690 = vpop.f32.mrf.mxu0
    %v6691 = vadd.f32 %v6227, %v6690
    %6692 = vmatprep.mubr.bf16.mxu0 %v6071
    %6693 = vmatmul.mubr.bf16.gmra.mxu0 %v6070
    %v6694 = vpop.f32.mrf.mxu0
    %v6695 = vadd.f32 %v6223, %v6694
    %v6696 = vpop.f32.mrf.mxu0
    %v6697 = vadd.f32 %v6227, %v6696
    %v6698 = vpop.f32.mrf.mxu0
    %v6699 = vadd.f32 %v6223, %v6698
    %v6700 = vpop.f32.mrf.mxu0
    %v6701 = vadd.f32 %v6227, %v6700
    %6702 = vmatprep.mubr.bf16.mxu0 %v6075
    %6703 = vmatmul.mubr.bf16.gmra.mxu0 %v6074
    %v6704 = vpop.f32.mrf.mxu0
    %v6705 = vadd.f32 %v6223, %v6704
    %v6706 = vpop.f32.mrf.mxu0
    %v6707 = vadd.f32 %v6227, %v6706
    %v6708 = vpop.f32.mrf.mxu0
    %v6709 = vadd.f32 %v6223, %v6708
    %v6710 = vpop.f32.mrf.mxu0
    %v6711 = vadd.f32 %v6227, %v6710
    %6712 = vmatprep.mubr.bf16.mxu0 %v6079
    %6713 = vmatmul.mubr.bf16.gmra.mxu0 %v6078
    %v6714 = vpop.f32.mrf.mxu0
    %v6715 = vadd.f32 %v6223, %v6714
    %v6716 = vpop.f32.mrf.mxu0
    %v6717 = vadd.f32 %v6227, %v6716
    %v6718 = vpop.f32.mrf.mxu0
    %v6719 = vadd.f32 %v6223, %v6718
    %v6720 = vpop.f32.mrf.mxu0
    %v6721 = vadd.f32 %v6227, %v6720
    %6722 = vmatprep.mubr.bf16.mxu0 %v6083
    %6723 = vmatmul.mubr.bf16.gmra.mxu0 %v6082
    %v6724 = vpop.f32.mrf.mxu0
    %v6725 = vadd.f32 %v6223, %v6724
    %v6726 = vpop.f32.mrf.mxu0
    %v6727 = vadd.f32 %v6227, %v6726
    %v6728 = vpop.f32.mrf.mxu0
    %v6729 = vadd.f32 %v6223, %v6728
    %v6730 = vpop.f32.mrf.mxu0
    %v6731 = vadd.f32 %v6227, %v6730
    %6732 = vmatprep.mubr.bf16.mxu0 %v6087
    %6733 = vmatmul.mubr.bf16.gmra.mxu0 %v6086
    %v6734 = vpop.f32.mrf.mxu0
    %v6735 = vadd.f32 %v6223, %v6734
    %v6736 = vpop.f32.mrf.mxu0
    %v6737 = vadd.f32 %v6227, %v6736
    %v6738 = vpop.f32.mrf.mxu0
    %v6739 = vadd.f32 %v6223, %v6738
    %v6740 = vpop.f32.mrf.mxu0
    %v6741 = vadd.f32 %v6227, %v6740
    %6742 = vmatprep.mubr.bf16.mxu0 %v6091
    %6743 = vmatmul.mubr.bf16.gmra.mxu0 %v6090
    %v6744 = vpop.f32.mrf.mxu0
    %v6745 = vadd.f32 %v6223, %v6744
    %v6746 = vpop.f32.mrf.mxu0
    %v6747 = vadd.f32 %v6227, %v6746
    %v6748 = vpop.f32.mrf.mxu0
    %v6749 = vadd.f32 %v6223, %v6748
    %v6750 = vpop.f32.mrf.mxu0
    %v6751 = vadd.f32 %v6227, %v6750
    %6752 = vmatprep.mubr.bf16.mxu0 %v6095
    %6753 = vmatmul.mubr.bf16.gmra.mxu0 %v6094
    %v6754 = vpop.f32.mrf.mxu0
    %v6755 = vadd.f32 %v6223, %v6754
    %v6756 = vpop.f32.mrf.mxu0
    %v6757 = vadd.f32 %v6227, %v6756
    %v6758 = vpop.f32.mrf.mxu0
    %v6759 = vadd.f32 %v6223, %v6758
    %v6760 = vpop.f32.mrf.mxu0
    %v6761 = vadd.f32 %v6227, %v6760
    %6762 = vmatprep.mubr.bf16.mxu0 %v6099
    %6763 = vmatmul.mubr.bf16.gmra.mxu0 %v6098
    %v6764 = vpop.f32.mrf.mxu0
    %v6765 = vadd.f32 %v6223, %v6764
    %v6766 = vpop.f32.mrf.mxu0
    %v6767 = vadd.f32 %v6227, %v6766
    %v6768 = vpop.f32.mrf.mxu0
    %v6769 = vadd.f32 %v6223, %v6768
    %v6770 = vpop.f32.mrf.mxu0
    %v6771 = vadd.f32 %v6227, %v6770
    %6772 = vmatprep.mubr.bf16.mxu0 %v6103
    %6773 = vmatmul.mubr.bf16.gmra.mxu0 %v6102
    %v6774 = vpop.f32.mrf.mxu0
    %v6775 = vadd.f32 %v6223, %v6774
    %v6776 = vpop.f32.mrf.mxu0
    %v6777 = vadd.f32 %v6227, %v6776
    %v6778 = vpop.f32.mrf.mxu0
    %v6779 = vadd.f32 %v6223, %v6778
    %v6780 = vpop.f32.mrf.mxu0
    %v6781 = vadd.f32 %v6227, %v6780
    %6782 = vmatprep.mubr.bf16.mxu0 %v6107
    %6783 = vmatmul.mubr.bf16.gmra.mxu0 %v6106
    %v6784 = vpop.f32.mrf.mxu0
    %v6785 = vadd.f32 %v6223, %v6784
    %v6786 = vpop.f32.mrf.mxu0
    %v6787 = vadd.f32 %v6227, %v6786
    %v6788 = vpop.f32.mrf.mxu0
    %v6789 = vadd.f32 %v6223, %v6788
    %v6790 = vpop.f32.mrf.mxu0
    %v6791 = vadd.f32 %v6227, %v6790
    %6792 = vmatprep.mubr.bf16.mxu0 %v6111
    %6793 = vmatmul.mubr.bf16.gmra.mxu0 %v6110
    %v6794 = vpop.f32.mrf.mxu0
    %v6795 = vadd.f32 %v6223, %v6794
    %v6796 = vpop.f32.mrf.mxu0
    %v6797 = vadd.f32 %v6227, %v6796
    %v6798 = vpop.f32.mrf.mxu0
    %v6799 = vadd.f32 %v6223, %v6798
    %v6800 = vpop.f32.mrf.mxu0
    %v6801 = vadd.f32 %v6227, %v6800
    %6802 = vmatprep.mubr.bf16.mxu0 %v6115
    %6803 = vmatmul.mubr.bf16.gmra.mxu0 %v6114
    %v6804 = vpop.f32.mrf.mxu0
    %v6805 = vadd.f32 %v6223, %v6804
    %v6806 = vpop.f32.mrf.mxu0
    %v6807 = vadd.f32 %v6227, %v6806
    %v6808 = vpop.f32.mrf.mxu0
    %v6809 = vadd.f32 %v6223, %v6808
    %v6810 = vpop.f32.mrf.mxu0
    %v6811 = vadd.f32 %v6227, %v6810
    %6812 = vmatprep.mubr.bf16.mxu0 %v6119
    %6813 = vmatmul.mubr.bf16.gmra.mxu0 %v6118
    %v6814 = vpop.f32.mrf.mxu0
    %v6815 = vadd.f32 %v6223, %v6814
    %v6816 = vpop.f32.mrf.mxu0
    %v6817 = vadd.f32 %v6227, %v6816
    %v6818 = vpop.f32.mrf.mxu0
    %v6819 = vadd.f32 %v6223, %v6818
    %v6820 = vpop.f32.mrf.mxu0
    %v6821 = vadd.f32 %v6227, %v6820
    %6822 = vmatprep.mubr.bf16.mxu0 %v6123
    %6823 = vmatmul.mubr.bf16.gmra.mxu0 %v6122
    %v6824 = vpop.f32.mrf.mxu0
    %v6825 = vadd.f32 %v6223, %v6824
    %v6826 = vpop.f32.mrf.mxu0
    %v6827 = vadd.f32 %v6227, %v6826
    %v6828 = vpop.f32.mrf.mxu0
    %v6829 = vadd.f32 %v6223, %v6828
    %v6830 = vpop.f32.mrf.mxu0
    %v6831 = vadd.f32 %v6227, %v6830
    %6832 = vmatprep.mubr.bf16.mxu0 %v6127
    %6833 = vmatmul.mubr.bf16.gmra.mxu0 %v6126
    %v6834 = vpop.f32.mrf.mxu0
    %v6835 = vadd.f32 %v6223, %v6834
    %v6836 = vpop.f32.mrf.mxu0
    %v6837 = vadd.f32 %v6227, %v6836
    %v6838 = vpop.f32.mrf.mxu0
    %v6839 = vadd.f32 %v6223, %v6838
    %v6840 = vpop.f32.mrf.mxu0
    %v6841 = vadd.f32 %v6227, %v6840
    %6842 = vmatprep.mubr.bf16.mxu0 %v6131
    %6843 = vmatmul.mubr.bf16.gmra.mxu0 %v6130
    %v6844 = vpop.f32.mrf.mxu0
    %v6845 = vadd.f32 %v6223, %v6844
    %v6846 = vpop.f32.mrf.mxu0
    %v6847 = vadd.f32 %v6227, %v6846
    %v6848 = vpop.f32.mrf.mxu0
    %v6849 = vadd.f32 %v6223, %v6848
    %v6850 = vpop.f32.mrf.mxu0
    %v6851 = vadd.f32 %v6227, %v6850
    %6852 = vmatprep.mubr.bf16.mxu0 %v6135
    %6853 = vmatmul.mubr.bf16.gmra.mxu0 %v6134
    %v6854 = vpop.f32.mrf.mxu0
    %v6855 = vadd.f32 %v6223, %v6854
    %v6856 = vpop.f32.mrf.mxu0
    %v6857 = vadd.f32 %v6227, %v6856
    %v6858 = vpop.f32.mrf.mxu0
    %v6859 = vadd.f32 %v6223, %v6858
    %v6860 = vpop.f32.mrf.mxu0
    %v6861 = vadd.f32 %v6227, %v6860
    %6862 = vmatprep.mubr.bf16.mxu0 %v6139
    %6863 = vmatmul.mubr.bf16.gmra.mxu0 %v6138
    %v6864 = vpop.f32.mrf.mxu0
    %v6865 = vadd.f32 %v6223, %v6864
    %v6866 = vpop.f32.mrf.mxu0
    %v6867 = vadd.f32 %v6227, %v6866
    %v6868 = vpop.f32.mrf.mxu0
    %v6869 = vadd.f32 %v6223, %v6868
    %v6870 = vpop.f32.mrf.mxu0
    %v6871 = vadd.f32 %v6227, %v6870
    %6872 = vmatprep.mubr.bf16.mxu0 %v6143
    %6873 = vmatmul.mubr.bf16.gmra.mxu0 %v6142
    %v6874 = vpop.f32.mrf.mxu0
    %v6875 = vadd.f32 %v6223, %v6874
    %v6876 = vpop.f32.mrf.mxu0
    %v6877 = vadd.f32 %v6227, %v6876
    %v6878 = vpop.f32.mrf.mxu0
    %v6879 = vadd.f32 %v6223, %v6878
    %v6880 = vpop.f32.mrf.mxu0
    %v6881 = vadd.f32 %v6227, %v6880
    %6882 = vmatprep.mubr.bf16.mxu0 %v6147
    %6883 = vmatmul.mubr.bf16.gmra.mxu0 %v6146
    %v6884 = vpop.f32.mrf.mxu0
    %v6885 = vadd.f32 %v6223, %v6884
    %v6886 = vpop.f32.mrf.mxu0
    %v6887 = vadd.f32 %v6227, %v6886
    %v6888 = vpop.f32.mrf.mxu0
    %v6889 = vadd.f32 %v6223, %v6888
    %v6890 = vpop.f32.mrf.mxu0
    %v6891 = vadd.f32 %v6227, %v6890
    %6892 = vmatprep.mubr.bf16.mxu0 %v6151
    %6893 = vmatmul.mubr.bf16.gmra.mxu0 %v6150
    %v6894 = vpop.f32.mrf.mxu0
    %v6895 = vadd.f32 %v6223, %v6894
    %v6896 = vpop.f32.mrf.mxu0
    %v6897 = vadd.f32 %v6227, %v6896
    %v6898 = vpop.f32.mrf.mxu0
    %v6899 = vadd.f32 %v6223, %v6898
    %v6900 = vpop.f32.mrf.mxu0
    %v6901 = vadd.f32 %v6227, %v6900
    %6902 = vdwg.mxu0
    %6903 = vmatprep.subr.bf16.mxu0 %v6469
    %6904 = vmatpush1.bf16.msra.mxu0 %v6468
    %6905 = vmatprep.subr.bf16.mxu0 %v6467
    %6906 = vmatpush1.bf16.msra.mxu0 %v6466
    %6907 = vmatprep.subr.bf16.mxu0 %v6465
    %6908 = vmatpush1.bf16.msra.mxu0 %v6464
    %6909 = vmatprep.subr.bf16.mxu0 %v6463
    %6910 = vmatpush1.bf16.msra.mxu0 %v6462
    %6911 = vmatprep.subr.bf16.mxu0 %v6461
    %6912 = vmatpush1.bf16.msra.mxu0 %v6460
    %6913 = vmatprep.subr.bf16.mxu0 %v6459
    %6914 = vmatpush1.bf16.msra.mxu0 %v6458
    %6915 = vmatprep.subr.bf16.mxu0 %v6457
    %6916 = vmatpush1.bf16.msra.mxu0 %v6456
    %6917 = vmatprep.subr.bf16.mxu0 %v6455
    %6918 = vmatpush1.bf16.msra.mxu0 %v6454
    %6919 = vmatprep.subr.bf16.mxu0 %v6485
    %6920 = vmatpush2.bf16.msra.mxu0 %v6484
    %6921 = vmatprep.subr.bf16.mxu0 %v6483
    %6922 = vmatpush2.bf16.msra.mxu0 %v6482
    %6923 = vmatprep.subr.bf16.mxu0 %v6481
    %6924 = vmatpush2.bf16.msra.mxu0 %v6480
    %6925 = vmatprep.subr.bf16.mxu0 %v6479
    %6926 = vmatpush2.bf16.msra.mxu0 %v6478
    %6927 = vmatprep.subr.bf16.mxu0 %v6477
    %6928 = vmatpush2.bf16.msra.mxu0 %v6476
    %6929 = vmatprep.subr.bf16.mxu0 %v6475
    %6930 = vmatpush2.bf16.msra.mxu0 %v6474
    %6931 = vmatprep.subr.bf16.mxu0 %v6473
    %6932 = vmatpush2.bf16.msra.mxu0 %v6472
    %6933 = vmatprep.subr.bf16.mxu0 %v6471
    %6934 = vmatpush2.bf16.msra.mxu0 %v6470
    %6935 = vmatprep.mubr.bf16.mxu0 %v6029
    %6936 = vmatmul.mubr.bf16.gmra.mxu0 %v6028
    %v6937 = vpop.f32.mrf.mxu0
    %v6938 = vadd.f32 %v6585, %v6937
    %v6939 = vpop.f32.mrf.mxu0
    %v6940 = vadd.f32 %v6587, %v6939
    %v6941 = vpop.f32.mrf.mxu0
    %v6942 = vadd.f32 %v6589, %v6941
    %v6943 = vpop.f32.mrf.mxu0
    %v6944 = vadd.f32 %v6591, %v6943
    %6945 = vmatprep.mubr.bf16.mxu0 %v6033
    %6946 = vmatmul.mubr.bf16.gmra.mxu0 %v6032
    %v6947 = vpop.f32.mrf.mxu0
    %v6948 = vadd.f32 %v6595, %v6947
    %v6949 = vpop.f32.mrf.mxu0
    %v6950 = vadd.f32 %v6597, %v6949
    %v6951 = vpop.f32.mrf.mxu0
    %v6952 = vadd.f32 %v6599, %v6951
    %v6953 = vpop.f32.mrf.mxu0
    %v6954 = vadd.f32 %v6601, %v6953
    %6955 = vmatprep.mubr.bf16.mxu0 %v6037
    %6956 = vmatmul.mubr.bf16.gmra.mxu0 %v6036
    %v6957 = vpop.f32.mrf.mxu0
    %v6958 = vadd.f32 %v6605, %v6957
    %v6959 = vpop.f32.mrf.mxu0
    %v6960 = vadd.f32 %v6607, %v6959
    %v6961 = vpop.f32.mrf.mxu0
    %v6962 = vadd.f32 %v6609, %v6961
    %v6963 = vpop.f32.mrf.mxu0
    %v6964 = vadd.f32 %v6611, %v6963
    %6965 = vmatprep.mubr.bf16.mxu0 %v6041
    %6966 = vmatmul.mubr.bf16.gmra.mxu0 %v6040
    %v6967 = vpop.f32.mrf.mxu0
    %v6968 = vadd.f32 %v6615, %v6967
    %v6969 = vpop.f32.mrf.mxu0
    %v6970 = vadd.f32 %v6617, %v6969
    %v6971 = vpop.f32.mrf.mxu0
    %v6972 = vadd.f32 %v6619, %v6971
    %v6973 = vpop.f32.mrf.mxu0
    %v6974 = vadd.f32 %v6621, %v6973
    %6975 = vmatprep.mubr.bf16.mxu0 %v6045
    %6976 = vmatmul.mubr.bf16.gmra.mxu0 %v6044
    %v6977 = vpop.f32.mrf.mxu0
    %v6978 = vadd.f32 %v6625, %v6977
    %v6979 = vpop.f32.mrf.mxu0
    %v6980 = vadd.f32 %v6627, %v6979
    %v6981 = vpop.f32.mrf.mxu0
    %v6982 = vadd.f32 %v6629, %v6981
    %v6983 = vpop.f32.mrf.mxu0
    %v6984 = vadd.f32 %v6631, %v6983
    %6985 = vmatprep.mubr.bf16.mxu0 %v6049
    %6986 = vmatmul.mubr.bf16.gmra.mxu0 %v6048
    %v6987 = vpop.f32.mrf.mxu0
    %v6988 = vadd.f32 %v6635, %v6987
    %v6989 = vpop.f32.mrf.mxu0
    %v6990 = vadd.f32 %v6637, %v6989
    %v6991 = vpop.f32.mrf.mxu0
    %v6992 = vadd.f32 %v6639, %v6991
    %v6993 = vpop.f32.mrf.mxu0
    %v6994 = vadd.f32 %v6641, %v6993
    %6995 = vmatprep.mubr.bf16.mxu0 %v6053
    %6996 = vmatmul.mubr.bf16.gmra.mxu0 %v6052
    %v6997 = vpop.f32.mrf.mxu0
    %v6998 = vadd.f32 %v6645, %v6997
    %v6999 = vpop.f32.mrf.mxu0
    %v7000 = vadd.f32 %v6647, %v6999
    %v7001 = vpop.f32.mrf.mxu0
    %v7002 = vadd.f32 %v6649, %v7001
    %v7003 = vpop.f32.mrf.mxu0
    %v7004 = vadd.f32 %v6651, %v7003
    %7005 = vmatprep.mubr.bf16.mxu0 %v6057
    %7006 = vmatmul.mubr.bf16.gmra.mxu0 %v6056
    %v7007 = vpop.f32.mrf.mxu0
    %v7008 = vadd.f32 %v6655, %v7007
    %v7009 = vpop.f32.mrf.mxu0
    %v7010 = vadd.f32 %v6657, %v7009
    %v7011 = vpop.f32.mrf.mxu0
    %v7012 = vadd.f32 %v6659, %v7011
    %v7013 = vpop.f32.mrf.mxu0
    %v7014 = vadd.f32 %v6661, %v7013
    %7015 = vmatprep.mubr.bf16.mxu0 %v6061
    %7016 = vmatmul.mubr.bf16.gmra.mxu0 %v6060
    %v7017 = vpop.f32.mrf.mxu0
    %v7018 = vadd.f32 %v6665, %v7017
    %v7019 = vpop.f32.mrf.mxu0
    %v7020 = vadd.f32 %v6667, %v7019
    %v7021 = vpop.f32.mrf.mxu0
    %v7022 = vadd.f32 %v6669, %v7021
    %v7023 = vpop.f32.mrf.mxu0
    %v7024 = vadd.f32 %v6671, %v7023
    %7025 = vmatprep.mubr.bf16.mxu0 %v6065
    %7026 = vmatmul.mubr.bf16.gmra.mxu0 %v6064
    %v7027 = vpop.f32.mrf.mxu0
    %v7028 = vadd.f32 %v6675, %v7027
    %v7029 = vpop.f32.mrf.mxu0
    %v7030 = vadd.f32 %v6677, %v7029
    %v7031 = vpop.f32.mrf.mxu0
    %v7032 = vadd.f32 %v6679, %v7031
    %v7033 = vpop.f32.mrf.mxu0
    %v7034 = vadd.f32 %v6681, %v7033
    %7035 = vmatprep.mubr.bf16.mxu0 %v6069
    %7036 = vmatmul.mubr.bf16.gmra.mxu0 %v6068
    %v7037 = vpop.f32.mrf.mxu0
    %v7038 = vadd.f32 %v6685, %v7037
    %v7039 = vpop.f32.mrf.mxu0
    %v7040 = vadd.f32 %v6687, %v7039
    %v7041 = vpop.f32.mrf.mxu0
    %v7042 = vadd.f32 %v6689, %v7041
    %v7043 = vpop.f32.mrf.mxu0
    %v7044 = vadd.f32 %v6691, %v7043
    %7045 = vmatprep.mubr.bf16.mxu0 %v6073
    %7046 = vmatmul.mubr.bf16.gmra.mxu0 %v6072
    %v7047 = vpop.f32.mrf.mxu0
    %v7048 = vadd.f32 %v6695, %v7047
    %v7049 = vpop.f32.mrf.mxu0
    %v7050 = vadd.f32 %v6697, %v7049
    %v7051 = vpop.f32.mrf.mxu0
    %v7052 = vadd.f32 %v6699, %v7051
    %v7053 = vpop.f32.mrf.mxu0
    %v7054 = vadd.f32 %v6701, %v7053
    %7055 = vmatprep.mubr.bf16.mxu0 %v6077
    %7056 = vmatmul.mubr.bf16.gmra.mxu0 %v6076
    %v7057 = vpop.f32.mrf.mxu0
    %v7058 = vadd.f32 %v6705, %v7057
    %v7059 = vpop.f32.mrf.mxu0
    %v7060 = vadd.f32 %v6707, %v7059
    %v7061 = vpop.f32.mrf.mxu0
    %v7062 = vadd.f32 %v6709, %v7061
    %v7063 = vpop.f32.mrf.mxu0
    %v7064 = vadd.f32 %v6711, %v7063
    %7065 = vmatprep.mubr.bf16.mxu0 %v6081
    %7066 = vmatmul.mubr.bf16.gmra.mxu0 %v6080
    %v7067 = vpop.f32.mrf.mxu0
    %v7068 = vadd.f32 %v6715, %v7067
    %v7069 = vpop.f32.mrf.mxu0
    %v7070 = vadd.f32 %v6717, %v7069
    %v7071 = vpop.f32.mrf.mxu0
    %v7072 = vadd.f32 %v6719, %v7071
    %v7073 = vpop.f32.mrf.mxu0
    %v7074 = vadd.f32 %v6721, %v7073
    %7075 = vmatprep.mubr.bf16.mxu0 %v6085
    %7076 = vmatmul.mubr.bf16.gmra.mxu0 %v6084
    %v7077 = vpop.f32.mrf.mxu0
    %v7078 = vadd.f32 %v6725, %v7077
    %v7079 = vpop.f32.mrf.mxu0
    %v7080 = vadd.f32 %v6727, %v7079
    %v7081 = vpop.f32.mrf.mxu0
    %v7082 = vadd.f32 %v6729, %v7081
    %v7083 = vpop.f32.mrf.mxu0
    %v7084 = vadd.f32 %v6731, %v7083
    %7085 = vmatprep.mubr.bf16.mxu0 %v6089
    %7086 = vmatmul.mubr.bf16.gmra.mxu0 %v6088
    %v7087 = vpop.f32.mrf.mxu0
    %v7088 = vadd.f32 %v6735, %v7087
    %v7089 = vpop.f32.mrf.mxu0
    %v7090 = vadd.f32 %v6737, %v7089
    %v7091 = vpop.f32.mrf.mxu0
    %v7092 = vadd.f32 %v6739, %v7091
    %v7093 = vpop.f32.mrf.mxu0
    %v7094 = vadd.f32 %v6741, %v7093
    %7095 = vmatprep.mubr.bf16.mxu0 %v6093
    %7096 = vmatmul.mubr.bf16.gmra.mxu0 %v6092
    %v7097 = vpop.f32.mrf.mxu0
    %v7098 = vadd.f32 %v6745, %v7097
    %v7099 = vpop.f32.mrf.mxu0
    %v7100 = vadd.f32 %v6747, %v7099
    %v7101 = vpop.f32.mrf.mxu0
    %v7102 = vadd.f32 %v6749, %v7101
    %v7103 = vpop.f32.mrf.mxu0
    %v7104 = vadd.f32 %v6751, %v7103
    %7105 = vmatprep.mubr.bf16.mxu0 %v6097
    %7106 = vmatmul.mubr.bf16.gmra.mxu0 %v6096
    %v7107 = vpop.f32.mrf.mxu0
    %v7108 = vadd.f32 %v6755, %v7107
    %v7109 = vpop.f32.mrf.mxu0
    %v7110 = vadd.f32 %v6757, %v7109
    %v7111 = vpop.f32.mrf.mxu0
    %v7112 = vadd.f32 %v6759, %v7111
    %v7113 = vpop.f32.mrf.mxu0
    %v7114 = vadd.f32 %v6761, %v7113
    %7115 = vmatprep.mubr.bf16.mxu0 %v6101
    %7116 = vmatmul.mubr.bf16.gmra.mxu0 %v6100
    %v7117 = vpop.f32.mrf.mxu0
    %v7118 = vadd.f32 %v6765, %v7117
    %v7119 = vpop.f32.mrf.mxu0
    %v7120 = vadd.f32 %v6767, %v7119
    %v7121 = vpop.f32.mrf.mxu0
    %v7122 = vadd.f32 %v6769, %v7121
    %v7123 = vpop.f32.mrf.mxu0
    %v7124 = vadd.f32 %v6771, %v7123
    %7125 = vmatprep.mubr.bf16.mxu0 %v6105
    %7126 = vmatmul.mubr.bf16.gmra.mxu0 %v6104
    %v7127 = vpop.f32.mrf.mxu0
    %v7128 = vadd.f32 %v6775, %v7127
    %v7129 = vpop.f32.mrf.mxu0
    %v7130 = vadd.f32 %v6777, %v7129
    %v7131 = vpop.f32.mrf.mxu0
    %v7132 = vadd.f32 %v6779, %v7131
    %v7133 = vpop.f32.mrf.mxu0
    %v7134 = vadd.f32 %v6781, %v7133
    %7135 = vmatprep.mubr.bf16.mxu0 %v6109
    %7136 = vmatmul.mubr.bf16.gmra.mxu0 %v6108
    %v7137 = vpop.f32.mrf.mxu0
    %v7138 = vadd.f32 %v6785, %v7137
    %v7139 = vpop.f32.mrf.mxu0
    %v7140 = vadd.f32 %v6787, %v7139
    %v7141 = vpop.f32.mrf.mxu0
    %v7142 = vadd.f32 %v6789, %v7141
    %v7143 = vpop.f32.mrf.mxu0
    %v7144 = vadd.f32 %v6791, %v7143
    %7145 = vmatprep.mubr.bf16.mxu0 %v6113
    %7146 = vmatmul.mubr.bf16.gmra.mxu0 %v6112
    %v7147 = vpop.f32.mrf.mxu0
    %v7148 = vadd.f32 %v6795, %v7147
    %v7149 = vpop.f32.mrf.mxu0
    %v7150 = vadd.f32 %v6797, %v7149
    %v7151 = vpop.f32.mrf.mxu0
    %v7152 = vadd.f32 %v6799, %v7151
    %v7153 = vpop.f32.mrf.mxu0
    %v7154 = vadd.f32 %v6801, %v7153
    %7155 = vmatprep.mubr.bf16.mxu0 %v6117
    %7156 = vmatmul.mubr.bf16.gmra.mxu0 %v6116
    %v7157 = vpop.f32.mrf.mxu0
    %v7158 = vadd.f32 %v6805, %v7157
    %v7159 = vpop.f32.mrf.mxu0
    %v7160 = vadd.f32 %v6807, %v7159
    %v7161 = vpop.f32.mrf.mxu0
    %v7162 = vadd.f32 %v6809, %v7161
    %v7163 = vpop.f32.mrf.mxu0
    %v7164 = vadd.f32 %v6811, %v7163
    %7165 = vmatprep.mubr.bf16.mxu0 %v6121
    %7166 = vmatmul.mubr.bf16.gmra.mxu0 %v6120
    %v7167 = vpop.f32.mrf.mxu0
    %v7168 = vadd.f32 %v6815, %v7167
    %v7169 = vpop.f32.mrf.mxu0
    %v7170 = vadd.f32 %v6817, %v7169
    %v7171 = vpop.f32.mrf.mxu0
    %v7172 = vadd.f32 %v6819, %v7171
    %v7173 = vpop.f32.mrf.mxu0
    %v7174 = vadd.f32 %v6821, %v7173
    %7175 = vmatprep.mubr.bf16.mxu0 %v6125
    %7176 = vmatmul.mubr.bf16.gmra.mxu0 %v6124
    %v7177 = vpop.f32.mrf.mxu0
    %v7178 = vadd.f32 %v6825, %v7177
    %v7179 = vpop.f32.mrf.mxu0
    %v7180 = vadd.f32 %v6827, %v7179
    %v7181 = vpop.f32.mrf.mxu0
    %v7182 = vadd.f32 %v6829, %v7181
    %v7183 = vpop.f32.mrf.mxu0
    %v7184 = vadd.f32 %v6831, %v7183
    %7185 = vmatprep.mubr.bf16.mxu0 %v6129
    %7186 = vmatmul.mubr.bf16.gmra.mxu0 %v6128
    %v7187 = vpop.f32.mrf.mxu0
    %v7188 = vadd.f32 %v6835, %v7187
    %v7189 = vpop.f32.mrf.mxu0
    %v7190 = vadd.f32 %v6837, %v7189
    %v7191 = vpop.f32.mrf.mxu0
    %v7192 = vadd.f32 %v6839, %v7191
    %v7193 = vpop.f32.mrf.mxu0
    %v7194 = vadd.f32 %v6841, %v7193
    %7195 = vmatprep.mubr.bf16.mxu0 %v6133
    %7196 = vmatmul.mubr.bf16.gmra.mxu0 %v6132
    %v7197 = vpop.f32.mrf.mxu0
    %v7198 = vadd.f32 %v6845, %v7197
    %v7199 = vpop.f32.mrf.mxu0
    %v7200 = vadd.f32 %v6847, %v7199
    %v7201 = vpop.f32.mrf.mxu0
    %v7202 = vadd.f32 %v6849, %v7201
    %v7203 = vpop.f32.mrf.mxu0
    %v7204 = vadd.f32 %v6851, %v7203
    %7205 = vmatprep.mubr.bf16.mxu0 %v6137
    %7206 = vmatmul.mubr.bf16.gmra.mxu0 %v6136
    %v7207 = vpop.f32.mrf.mxu0
    %v7208 = vadd.f32 %v6855, %v7207
    %v7209 = vpop.f32.mrf.mxu0
    %v7210 = vadd.f32 %v6857, %v7209
    %v7211 = vpop.f32.mrf.mxu0
    %v7212 = vadd.f32 %v6859, %v7211
    %v7213 = vpop.f32.mrf.mxu0
    %v7214 = vadd.f32 %v6861, %v7213
    %7215 = vmatprep.mubr.bf16.mxu0 %v6141
    %7216 = vmatmul.mubr.bf16.gmra.mxu0 %v6140
    %v7217 = vpop.f32.mrf.mxu0
    %v7218 = vadd.f32 %v6865, %v7217
    %v7219 = vpop.f32.mrf.mxu0
    %v7220 = vadd.f32 %v6867, %v7219
    %v7221 = vpop.f32.mrf.mxu0
    %v7222 = vadd.f32 %v6869, %v7221
    %v7223 = vpop.f32.mrf.mxu0
    %v7224 = vadd.f32 %v6871, %v7223
    %7225 = vmatprep.mubr.bf16.mxu0 %v6145
    %7226 = vmatmul.mubr.bf16.gmra.mxu0 %v6144
    %v7227 = vpop.f32.mrf.mxu0
    %v7228 = vadd.f32 %v6875, %v7227
    %v7229 = vpop.f32.mrf.mxu0
    %v7230 = vadd.f32 %v6877, %v7229
    %v7231 = vpop.f32.mrf.mxu0
    %v7232 = vadd.f32 %v6879, %v7231
    %v7233 = vpop.f32.mrf.mxu0
    %v7234 = vadd.f32 %v6881, %v7233
    %7235 = vmatprep.mubr.bf16.mxu0 %v6149
    %7236 = vmatmul.mubr.bf16.gmra.mxu0 %v6148
    %v7237 = vpop.f32.mrf.mxu0
    %v7238 = vadd.f32 %v6885, %v7237
    %v7239 = vpop.f32.mrf.mxu0
    %v7240 = vadd.f32 %v6887, %v7239
    %v7241 = vpop.f32.mrf.mxu0
    %v7242 = vadd.f32 %v6889, %v7241
    %v7243 = vpop.f32.mrf.mxu0
    %v7244 = vadd.f32 %v6891, %v7243
    %7245 = vmatprep.mubr.bf16.mxu0 %v6153
    %7246 = vmatmul.mubr.bf16.gmra.mxu0 %v6152
    %v7247 = vpop.f32.mrf.mxu0
    %v7248 = vadd.f32 %v6895, %v7247
    %v7249 = vpop.f32.mrf.mxu0
    %v7250 = vadd.f32 %v6897, %v7249
    %v7251 = vpop.f32.mrf.mxu0
    %v7252 = vadd.f32 %v6899, %v7251
    %v7253 = vpop.f32.mrf.mxu0
    %v7254 = vadd.f32 %v6901, %v7253
    %7255 = vdwg.mxu0
    %v7256 = vmax.f32 %v6938, 0.0
    %v7257 = vmax.f32 %v6940, 0.0
    %v7258 = vmax.f32 %v6942, 0.0
    %v7259 = vmax.f32 %v6944, 0.0
    %v7260 = vmax.f32 %v6948, 0.0
    %v7261 = vmax.f32 %v6950, 0.0
    %v7262 = vmax.f32 %v6952, 0.0
    %v7263 = vmax.f32 %v6954, 0.0
    %v7264 = vmax.f32 %v6958, 0.0
    %v7265 = vmax.f32 %v6960, 0.0
    %v7266 = vmax.f32 %v6962, 0.0
    %v7267 = vmax.f32 %v6964, 0.0
    %v7268 = vmax.f32 %v6968, 0.0
    %v7269 = vmax.f32 %v6970, 0.0
    %v7270 = vmax.f32 %v6972, 0.0
    %v7271 = vmax.f32 %v6974, 0.0
    %v7272 = vmax.f32 %v6978, 0.0
    %v7273 = vmax.f32 %v6980, 0.0
    %v7274 = vmax.f32 %v6982, 0.0
    %v7275 = vmax.f32 %v6984, 0.0
    %v7276 = vmax.f32 %v6988, 0.0
    %v7277 = vmax.f32 %v6990, 0.0
    %v7278 = vmax.f32 %v6992, 0.0
    %v7279 = vmax.f32 %v6994, 0.0
    %v7280 = vmax.f32 %v6998, 0.0
    %v7281 = vmax.f32 %v7000, 0.0
    %v7282 = vmax.f32 %v7002, 0.0
    %v7283 = vmax.f32 %v7004, 0.0
    %v7284 = vmax.f32 %v7008, 0.0
    %v7285 = vmax.f32 %v7010, 0.0
    %v7286 = vmax.f32 %v7012, 0.0
    %v7287 = vmax.f32 %v7014, 0.0
    %v7288 = vmax.f32 %v7018, 0.0
    %v7289 = vmax.f32 %v7020, 0.0
    %v7290 = vmax.f32 %v7022, 0.0
    %v7291 = vmax.f32 %v7024, 0.0
    %v7292 = vmax.f32 %v7028, 0.0
    %v7293 = vmax.f32 %v7030, 0.0
    %v7294 = vmax.f32 %v7032, 0.0
    %v7295 = vmax.f32 %v7034, 0.0
    %v7296 = vmax.f32 %v7038, 0.0
    %v7297 = vmax.f32 %v7040, 0.0
    %v7298 = vmax.f32 %v7042, 0.0
    %v7299 = vmax.f32 %v7044, 0.0
    %v7300 = vmax.f32 %v7048, 0.0
    %v7301 = vmax.f32 %v7050, 0.0
    %v7302 = vmax.f32 %v7052, 0.0
    %v7303 = vmax.f32 %v7054, 0.0
    %v7304 = vmax.f32 %v7058, 0.0
    %v7305 = vmax.f32 %v7060, 0.0
    %v7306 = vmax.f32 %v7062, 0.0
    %v7307 = vmax.f32 %v7064, 0.0
    %v7308 = vmax.f32 %v7068, 0.0
    %v7309 = vmax.f32 %v7070, 0.0
    %v7310 = vmax.f32 %v7072, 0.0
    %v7311 = vmax.f32 %v7074, 0.0
    %v7312 = vmax.f32 %v7078, 0.0
    %v7313 = vmax.f32 %v7080, 0.0
    %v7314 = vmax.f32 %v7082, 0.0
    %v7315 = vmax.f32 %v7084, 0.0
    %v7316 = vmax.f32 %v7088, 0.0
    %v7317 = vmax.f32 %v7090, 0.0
    %v7318 = vmax.f32 %v7092, 0.0
    %v7319 = vmax.f32 %v7094, 0.0
    %v7320 = vmax.f32 %v7098, 0.0
    %v7321 = vmax.f32 %v7100, 0.0
    %v7322 = vmax.f32 %v7102, 0.0
    %v7323 = vmax.f32 %v7104, 0.0
    %v7324 = vmax.f32 %v7108, 0.0
    %v7325 = vmax.f32 %v7110, 0.0
    %v7326 = vmax.f32 %v7112, 0.0
    %v7327 = vmax.f32 %v7114, 0.0
    %v7328 = vmax.f32 %v7118, 0.0
    %v7329 = vmax.f32 %v7120, 0.0
    %v7330 = vmax.f32 %v7122, 0.0
    %v7331 = vmax.f32 %v7124, 0.0
    %v7332 = vmax.f32 %v7128, 0.0
    %v7333 = vmax.f32 %v7130, 0.0
    %v7334 = vmax.f32 %v7132, 0.0
    %v7335 = vmax.f32 %v7134, 0.0
    %v7336 = vmax.f32 %v7138, 0.0
    %v7337 = vmax.f32 %v7140, 0.0
    %v7338 = vmax.f32 %v7142, 0.0
    %v7339 = vmax.f32 %v7144, 0.0
    %v7340 = vmax.f32 %v7148, 0.0
    %v7341 = vmax.f32 %v7150, 0.0
    %v7342 = vmax.f32 %v7152, 0.0
    %v7343 = vmax.f32 %v7154, 0.0
    %v7344 = vmax.f32 %v7158, 0.0
    %v7345 = vmax.f32 %v7160, 0.0
    %v7346 = vmax.f32 %v7162, 0.0
    %v7347 = vmax.f32 %v7164, 0.0
    %v7348 = vmax.f32 %v7168, 0.0
    %v7349 = vmax.f32 %v7170, 0.0
    %v7350 = vmax.f32 %v7172, 0.0
    %v7351 = vmax.f32 %v7174, 0.0
    %v7352 = vmax.f32 %v7178, 0.0
    %v7353 = vmax.f32 %v7180, 0.0
    %v7354 = vmax.f32 %v7182, 0.0
    %v7355 = vmax.f32 %v7184, 0.0
    %v7356 = vmax.f32 %v7188, 0.0
    %v7357 = vmax.f32 %v7190, 0.0
    %v7358 = vmax.f32 %v7192, 0.0
    %v7359 = vmax.f32 %v7194, 0.0
    %v7360 = vmax.f32 %v7198, 0.0
    %v7361 = vmax.f32 %v7200, 0.0
    %v7362 = vmax.f32 %v7202, 0.0
    %v7363 = vmax.f32 %v7204, 0.0
    %v7364 = vmax.f32 %v7208, 0.0
    %v7365 = vmax.f32 %v7210, 0.0
    %v7366 = vmax.f32 %v7212, 0.0
    %v7367 = vmax.f32 %v7214, 0.0
    %v7368 = vmax.f32 %v7218, 0.0
    %v7369 = vmax.f32 %v7220, 0.0
    %v7370 = vmax.f32 %v7222, 0.0
    %v7371 = vmax.f32 %v7224, 0.0
    %v7372 = vmax.f32 %v7228, 0.0
    %v7373 = vmax.f32 %v7230, 0.0
    %v7374 = vmax.f32 %v7232, 0.0
    %v7375 = vmax.f32 %v7234, 0.0
    %v7376 = vmax.f32 %v7238, 0.0
    %v7377 = vmax.f32 %v7240, 0.0
    %v7378 = vmax.f32 %v7242, 0.0
    %v7379 = vmax.f32 %v7244, 0.0
    %v7380 = vmax.f32 %v7248, 0.0
    %v7381 = vmax.f32 %v7250, 0.0
    %v7382 = vmax.f32 %v7252, 0.0
    %v7383 = vmax.f32 %v7254, 0.0
    %v7384 = vpack.c.bf16 %v7258, %v7256
    %v7385 = vpack.c.bf16 %v7259, %v7257
    %v7386 = vpack.c.bf16 %v7262, %v7260
    %v7387 = vpack.c.bf16 %v7263, %v7261
    %v7388 = vpack.c.bf16 %v7266, %v7264
    %v7389 = vpack.c.bf16 %v7267, %v7265
    %v7390 = vpack.c.bf16 %v7270, %v7268
    %v7391 = vpack.c.bf16 %v7271, %v7269
    %v7392 = vpack.c.bf16 %v7274, %v7272
    %v7393 = vpack.c.bf16 %v7275, %v7273
    %v7394 = vpack.c.bf16 %v7278, %v7276
    %v7395 = vpack.c.bf16 %v7279, %v7277
    %v7396 = vpack.c.bf16 %v7282, %v7280
    %v7397 = vpack.c.bf16 %v7283, %v7281
    %v7398 = vpack.c.bf16 %v7286, %v7284
    %v7399 = vpack.c.bf16 %v7287, %v7285
    %v7400 = vpack.c.bf16 %v7290, %v7288
    %v7401 = vpack.c.bf16 %v7291, %v7289
    %v7402 = vpack.c.bf16 %v7294, %v7292
    %v7403 = vpack.c.bf16 %v7295, %v7293
    %v7404 = vpack.c.bf16 %v7298, %v7296
    %v7405 = vpack.c.bf16 %v7299, %v7297
    %v7406 = vpack.c.bf16 %v7302, %v7300
    %v7407 = vpack.c.bf16 %v7303, %v7301
    %v7408 = vpack.c.bf16 %v7306, %v7304
    %v7409 = vpack.c.bf16 %v7307, %v7305
    %v7410 = vpack.c.bf16 %v7310, %v7308
    %v7411 = vpack.c.bf16 %v7311, %v7309
    %v7412 = vpack.c.bf16 %v7314, %v7312
    %v7413 = vpack.c.bf16 %v7315, %v7313
    %v7414 = vpack.c.bf16 %v7318, %v7316
    %v7415 = vpack.c.bf16 %v7319, %v7317
    %v7416 = vpack.c.bf16 %v7322, %v7320
    %v7417 = vpack.c.bf16 %v7323, %v7321
    %v7418 = vpack.c.bf16 %v7326, %v7324
    %v7419 = vpack.c.bf16 %v7327, %v7325
    %v7420 = vpack.c.bf16 %v7330, %v7328
    %v7421 = vpack.c.bf16 %v7331, %v7329
    %v7422 = vpack.c.bf16 %v7334, %v7332
    %v7423 = vpack.c.bf16 %v7335, %v7333
    %v7424 = vpack.c.bf16 %v7338, %v7336
    %v7425 = vpack.c.bf16 %v7339, %v7337
    %v7426 = vpack.c.bf16 %v7342, %v7340
    %v7427 = vpack.c.bf16 %v7343, %v7341
    %v7428 = vpack.c.bf16 %v7346, %v7344
    %v7429 = vpack.c.bf16 %v7347, %v7345
    %v7430 = vpack.c.bf16 %v7350, %v7348
    %v7431 = vpack.c.bf16 %v7351, %v7349
    %v7432 = vpack.c.bf16 %v7354, %v7352
    %v7433 = vpack.c.bf16 %v7355, %v7353
    %v7434 = vpack.c.bf16 %v7358, %v7356
    %v7435 = vpack.c.bf16 %v7359, %v7357
    %v7436 = vpack.c.bf16 %v7362, %v7360
    %v7437 = vpack.c.bf16 %v7363, %v7361
    %v7438 = vpack.c.bf16 %v7366, %v7364
    %v7439 = vpack.c.bf16 %v7367, %v7365
    %v7440 = vpack.c.bf16 %v7370, %v7368
    %v7441 = vpack.c.bf16 %v7371, %v7369
    %v7442 = vpack.c.bf16 %v7374, %v7372
    %v7443 = vpack.c.bf16 %v7375, %v7373
    %v7444 = vpack.c.bf16 %v7378, %v7376
    %v7445 = vpack.c.bf16 %v7379, %v7377
    %v7446 = vpack.c.bf16 %v7382, %v7380
    %v7447 = vpack.c.bf16 %v7383, %v7381
    %v7448 = vld [vmem:[#allocation10] sm:$0xf]
    %v7449 = vld [vmem:[#allocation10 + $0x4] sm:$0xf]
    %v7450 = vld [vmem:[#allocation10 + $0x8] sm:$0xf]
    %v7451 = vld [vmem:[#allocation10 + $0xc] sm:$0xf]
    %v7452 = vld [vmem:[#allocation10 + $0x10] sm:$0xf]
    %v7453 = vld [vmem:[#allocation10 + $0x14] sm:$0xf]
    %v7454 = vld [vmem:[#allocation10 + $0x18] sm:$0xf]
    %v7455 = vld [vmem:[#allocation10 + $0x1c] sm:$0xf]
    %v7456 = vld [vmem:[#allocation10 + $0x20] sm:$0xf]
    %v7457 = vld [vmem:[#allocation10 + $0x24] sm:$0xf]
    %v7458 = vld [vmem:[#allocation10 + $0x28] sm:$0xf]
    %v7459 = vld [vmem:[#allocation10 + $0x2c] sm:$0xf]
    %v7460 = vld [vmem:[#allocation10 + $0x30] sm:$0xf]
    %v7461 = vld [vmem:[#allocation10 + $0x34] sm:$0xf]
    %v7462 = vld [vmem:[#allocation10 + $0x38] sm:$0xf]
    %v7463 = vld [vmem:[#allocation10 + $0x3c] sm:$0xf]
    %v7464 = vld [vmem:[#allocation10 + $0x40] sm:$0xf]
    %v7465 = vld [vmem:[#allocation10 + $0x44] sm:$0xf]
    %v7466 = vld [vmem:[#allocation10 + $0x48] sm:$0xf]
    %v7467 = vld [vmem:[#allocation10 + $0x4c] sm:$0xf]
    %v7468 = vld [vmem:[#allocation10 + $0x50] sm:$0xf]
    %v7469 = vld [vmem:[#allocation10 + $0x54] sm:$0xf]
    %v7470 = vld [vmem:[#allocation10 + $0x58] sm:$0xf]
    %v7471 = vld [vmem:[#allocation10 + $0x5c] sm:$0xf]
    %v7472 = vld [vmem:[#allocation10 + $0x60] sm:$0xf]
    %v7473 = vld [vmem:[#allocation10 + $0x64] sm:$0xf]
    %v7474 = vld [vmem:[#allocation10 + $0x68] sm:$0xf]
    %v7475 = vld [vmem:[#allocation10 + $0x6c] sm:$0xf]
    %v7476 = vld [vmem:[#allocation10 + $0x70] sm:$0xf]
    %v7477 = vld [vmem:[#allocation10 + $0x74] sm:$0xf]
    %v7478 = vld [vmem:[#allocation10 + $0x78] sm:$0xf]
    %v7479 = vld [vmem:[#allocation10 + $0x7c] sm:$0xf]
    %v7480 = vld [vmem:[%s6] sm:$0x1]
    %v7482 = vlaneseq
    %v7483 = vshrl.u32 %v7482, 7
    %v7484 = vsub.s32 0, %v7483
    %v7485 = vrot.slane %v7480, %v7484
    %v7519 = vunpack.c.l.b16 %v7448
    %v7520 = vunpack.c.l.b16 %v7449
    %v7521 = vunpack.c.l.b16 %v7450
    %v7522 = vunpack.c.l.b16 %v7451
    %v7523 = vunpack.c.l.b16 %v7452
    %v7524 = vunpack.c.l.b16 %v7453
    %v7525 = vunpack.c.l.b16 %v7454
    %v7526 = vunpack.c.l.b16 %v7455
    %v7527 = vunpack.c.l.b16 %v7456
    %v7528 = vunpack.c.l.b16 %v7457
    %v7529 = vunpack.c.l.b16 %v7458
    %v7530 = vunpack.c.l.b16 %v7459
    %v7531 = vunpack.c.l.b16 %v7460
    %v7532 = vunpack.c.l.b16 %v7461
    %v7533 = vunpack.c.l.b16 %v7462
    %v7534 = vunpack.c.l.b16 %v7463
    %v7535 = vunpack.c.l.b16 %v7464
    %v7536 = vunpack.c.l.b16 %v7465
    %v7537 = vunpack.c.l.b16 %v7466
    %v7538 = vunpack.c.l.b16 %v7467
    %v7539 = vunpack.c.l.b16 %v7468
    %v7540 = vunpack.c.l.b16 %v7469
    %v7541 = vunpack.c.l.b16 %v7470
    %v7542 = vunpack.c.l.b16 %v7471
    %v7543 = vunpack.c.l.b16 %v7472
    %v7544 = vunpack.c.l.b16 %v7473
    %v7545 = vunpack.c.l.b16 %v7474
    %v7546 = vunpack.c.l.b16 %v7475
    %v7547 = vunpack.c.l.b16 %v7476
    %v7548 = vunpack.c.l.b16 %v7477
    %v7549 = vunpack.c.l.b16 %v7478
    %v7550 = vunpack.c.l.b16 %v7479
    %v7551 = vpack.c.b16 %v7520, %v7519
    %v7552 = vpack.c.b16 %v7522, %v7521
    %v7553 = vpack.c.b16 %v7524, %v7523
    %v7554 = vpack.c.b16 %v7526, %v7525
    %v7555 = vpack.c.b16 %v7528, %v7527
    %v7556 = vpack.c.b16 %v7530, %v7529
    %v7557 = vpack.c.b16 %v7532, %v7531
    %v7558 = vpack.c.b16 %v7534, %v7533
    %v7559 = vpack.c.b16 %v7536, %v7535
    %v7560 = vpack.c.b16 %v7538, %v7537
    %v7561 = vpack.c.b16 %v7540, %v7539
    %v7562 = vpack.c.b16 %v7542, %v7541
    %v7563 = vpack.c.b16 %v7544, %v7543
    %v7564 = vpack.c.b16 %v7546, %v7545
    %v7565 = vpack.c.b16 %v7548, %v7547
    %v7566 = vpack.c.b16 %v7550, %v7549
    %7583 = vmatprep.subr.bf16.mxu0 0
    %7584 = vmatpush1.bf16.msra.mxu0 %v7558
    %7585 = vmatprep.subr.bf16.mxu0 0
    %7586 = vmatpush1.bf16.msra.mxu0 %v7557
    %7587 = vmatprep.subr.bf16.mxu0 0
    %7588 = vmatpush1.bf16.msra.mxu0 %v7556
    %7589 = vmatprep.subr.bf16.mxu0 0
    %7590 = vmatpush1.bf16.msra.mxu0 %v7555
    %7591 = vmatprep.subr.bf16.mxu0 0
    %7592 = vmatpush1.bf16.msra.mxu0 %v7554
    %7593 = vmatprep.subr.bf16.mxu0 0
    %7594 = vmatpush1.bf16.msra.mxu0 %v7553
    %7595 = vmatprep.subr.bf16.mxu0 0
    %7596 = vmatpush1.bf16.msra.mxu0 %v7552
    %7597 = vmatprep.subr.bf16.mxu0 0
    %7598 = vmatpush1.bf16.msra.mxu0 %v7551
    %7599 = vmatprep.subr.bf16.mxu0 0
    %7600 = vmatpush2.bf16.msra.mxu0 %v7566
    %7601 = vmatprep.subr.bf16.mxu0 0
    %7602 = vmatpush2.bf16.msra.mxu0 %v7565
    %7603 = vmatprep.subr.bf16.mxu0 0
    %7604 = vmatpush2.bf16.msra.mxu0 %v7564
    %7605 = vmatprep.subr.bf16.mxu0 0
    %7606 = vmatpush2.bf16.msra.mxu0 %v7563
    %7607 = vmatprep.subr.bf16.mxu0 0
    %7608 = vmatpush2.bf16.msra.mxu0 %v7562
    %7609 = vmatprep.subr.bf16.mxu0 0
    %7610 = vmatpush2.bf16.msra.mxu0 %v7561
    %7611 = vmatprep.subr.bf16.mxu0 0
    %7612 = vmatpush2.bf16.msra.mxu0 %v7560
    %7613 = vmatprep.subr.bf16.mxu0 0
    %7614 = vmatpush2.bf16.msra.mxu0 %v7559
    %7615 = vmatprep.mubr.bf16.mxu0 %v7385
    %7616 = vmatmul.mubr.bf16.gmra.mxu0 %v7384
    %v7617 = vpop.f32.mrf.mxu0
    %v7618 = vadd.f32 %v7485, %v7617
    %v7619 = vpop.f32.mrf.mxu0
    %v7620 = vpop.f32.mrf.mxu0
    %v7621 = vadd.f32 %v7485, %v7620
    %v7622 = vpop.f32.mrf.mxu0
    %7623 = vmatprep.mubr.bf16.mxu0 %v7387
    %7624 = vmatmul.mubr.bf16.gmra.mxu0 %v7386
    %v7625 = vpop.f32.mrf.mxu0
    %v7626 = vadd.f32 %v7485, %v7625
    %v7627 = vpop.f32.mrf.mxu0
    %v7628 = vpop.f32.mrf.mxu0
    %v7629 = vadd.f32 %v7485, %v7628
    %v7630 = vpop.f32.mrf.mxu0
    %7631 = vmatprep.mubr.bf16.mxu0 %v7389
    %7632 = vmatmul.mubr.bf16.gmra.mxu0 %v7388
    %v7633 = vpop.f32.mrf.mxu0
    %v7634 = vadd.f32 %v7485, %v7633
    %v7635 = vpop.f32.mrf.mxu0
    %v7636 = vpop.f32.mrf.mxu0
    %v7637 = vadd.f32 %v7485, %v7636
    %v7638 = vpop.f32.mrf.mxu0
    %7639 = vmatprep.mubr.bf16.mxu0 %v7391
    %7640 = vmatmul.mubr.bf16.gmra.mxu0 %v7390
    %v7641 = vpop.f32.mrf.mxu0
    %v7642 = vadd.f32 %v7485, %v7641
    %v7643 = vpop.f32.mrf.mxu0
    %v7644 = vpop.f32.mrf.mxu0
    %v7645 = vadd.f32 %v7485, %v7644
    %v7646 = vpop.f32.mrf.mxu0
    %7647 = vmatprep.mubr.bf16.mxu0 %v7393
    %7648 = vmatmul.mubr.bf16.gmra.mxu0 %v7392
    %v7649 = vpop.f32.mrf.mxu0
    %v7650 = vadd.f32 %v7485, %v7649
    %v7651 = vpop.f32.mrf.mxu0
    %v7652 = vpop.f32.mrf.mxu0
    %v7653 = vadd.f32 %v7485, %v7652
    %v7654 = vpop.f32.mrf.mxu0
    %7655 = vmatprep.mubr.bf16.mxu0 %v7395
    %7656 = vmatmul.mubr.bf16.gmra.mxu0 %v7394
    %v7657 = vpop.f32.mrf.mxu0
    %v7658 = vadd.f32 %v7485, %v7657
    %v7659 = vpop.f32.mrf.mxu0
    %v7660 = vpop.f32.mrf.mxu0
    %v7661 = vadd.f32 %v7485, %v7660
    %v7662 = vpop.f32.mrf.mxu0
    %7663 = vmatprep.mubr.bf16.mxu0 %v7397
    %7664 = vmatmul.mubr.bf16.gmra.mxu0 %v7396
    %v7665 = vpop.f32.mrf.mxu0
    %v7666 = vadd.f32 %v7485, %v7665
    %v7667 = vpop.f32.mrf.mxu0
    %v7668 = vpop.f32.mrf.mxu0
    %v7669 = vadd.f32 %v7485, %v7668
    %v7670 = vpop.f32.mrf.mxu0
    %7671 = vmatprep.mubr.bf16.mxu0 %v7399
    %7672 = vmatmul.mubr.bf16.gmra.mxu0 %v7398
    %v7673 = vpop.f32.mrf.mxu0
    %v7674 = vadd.f32 %v7485, %v7673
    %v7675 = vpop.f32.mrf.mxu0
    %v7676 = vpop.f32.mrf.mxu0
    %v7677 = vadd.f32 %v7485, %v7676
    %v7678 = vpop.f32.mrf.mxu0
    %7679 = vmatprep.mubr.bf16.mxu0 %v7401
    %7680 = vmatmul.mubr.bf16.gmra.mxu0 %v7400
    %v7681 = vpop.f32.mrf.mxu0
    %v7682 = vadd.f32 %v7485, %v7681
    %v7683 = vpop.f32.mrf.mxu0
    %v7684 = vpop.f32.mrf.mxu0
    %v7685 = vadd.f32 %v7485, %v7684
    %v7686 = vpop.f32.mrf.mxu0
    %7687 = vmatprep.mubr.bf16.mxu0 %v7403
    %7688 = vmatmul.mubr.bf16.gmra.mxu0 %v7402
    %v7689 = vpop.f32.mrf.mxu0
    %v7690 = vadd.f32 %v7485, %v7689
    %v7691 = vpop.f32.mrf.mxu0
    %v7692 = vpop.f32.mrf.mxu0
    %v7693 = vadd.f32 %v7485, %v7692
    %v7694 = vpop.f32.mrf.mxu0
    %7695 = vmatprep.mubr.bf16.mxu0 %v7405
    %7696 = vmatmul.mubr.bf16.gmra.mxu0 %v7404
    %v7697 = vpop.f32.mrf.mxu0
    %v7698 = vadd.f32 %v7485, %v7697
    %v7699 = vpop.f32.mrf.mxu0
    %v7700 = vpop.f32.mrf.mxu0
    %v7701 = vadd.f32 %v7485, %v7700
    %v7702 = vpop.f32.mrf.mxu0
    %7703 = vmatprep.mubr.bf16.mxu0 %v7407
    %7704 = vmatmul.mubr.bf16.gmra.mxu0 %v7406
    %v7705 = vpop.f32.mrf.mxu0
    %v7706 = vadd.f32 %v7485, %v7705
    %v7707 = vpop.f32.mrf.mxu0
    %v7708 = vpop.f32.mrf.mxu0
    %v7709 = vadd.f32 %v7485, %v7708
    %v7710 = vpop.f32.mrf.mxu0
    %7711 = vmatprep.mubr.bf16.mxu0 %v7409
    %7712 = vmatmul.mubr.bf16.gmra.mxu0 %v7408
    %v7713 = vpop.f32.mrf.mxu0
    %v7714 = vadd.f32 %v7485, %v7713
    %v7715 = vpop.f32.mrf.mxu0
    %v7716 = vpop.f32.mrf.mxu0
    %v7717 = vadd.f32 %v7485, %v7716
    %v7718 = vpop.f32.mrf.mxu0
    %7719 = vmatprep.mubr.bf16.mxu0 %v7411
    %7720 = vmatmul.mubr.bf16.gmra.mxu0 %v7410
    %v7721 = vpop.f32.mrf.mxu0
    %v7722 = vadd.f32 %v7485, %v7721
    %v7723 = vpop.f32.mrf.mxu0
    %v7724 = vpop.f32.mrf.mxu0
    %v7725 = vadd.f32 %v7485, %v7724
    %v7726 = vpop.f32.mrf.mxu0
    %7727 = vmatprep.mubr.bf16.mxu0 %v7413
    %7728 = vmatmul.mubr.bf16.gmra.mxu0 %v7412
    %v7729 = vpop.f32.mrf.mxu0
    %v7730 = vadd.f32 %v7485, %v7729
    %v7731 = vpop.f32.mrf.mxu0
    %v7732 = vpop.f32.mrf.mxu0
    %v7733 = vadd.f32 %v7485, %v7732
    %v7734 = vpop.f32.mrf.mxu0
    %7735 = vmatprep.mubr.bf16.mxu0 %v7415
    %7736 = vmatmul.mubr.bf16.gmra.mxu0 %v7414
    %v7737 = vpop.f32.mrf.mxu0
    %v7738 = vadd.f32 %v7485, %v7737
    %v7739 = vpop.f32.mrf.mxu0
    %v7740 = vpop.f32.mrf.mxu0
    %v7741 = vadd.f32 %v7485, %v7740
    %v7742 = vpop.f32.mrf.mxu0
    %7743 = vmatprep.mubr.bf16.mxu0 %v7417
    %7744 = vmatmul.mubr.bf16.gmra.mxu0 %v7416
    %v7745 = vpop.f32.mrf.mxu0
    %v7746 = vadd.f32 %v7485, %v7745
    %v7747 = vpop.f32.mrf.mxu0
    %v7748 = vpop.f32.mrf.mxu0
    %v7749 = vadd.f32 %v7485, %v7748
    %v7750 = vpop.f32.mrf.mxu0
    %7751 = vmatprep.mubr.bf16.mxu0 %v7419
    %7752 = vmatmul.mubr.bf16.gmra.mxu0 %v7418
    %v7753 = vpop.f32.mrf.mxu0
    %v7754 = vadd.f32 %v7485, %v7753
    %v7755 = vpop.f32.mrf.mxu0
    %v7756 = vpop.f32.mrf.mxu0
    %v7757 = vadd.f32 %v7485, %v7756
    %v7758 = vpop.f32.mrf.mxu0
    %7759 = vmatprep.mubr.bf16.mxu0 %v7421
    %7760 = vmatmul.mubr.bf16.gmra.mxu0 %v7420
    %v7761 = vpop.f32.mrf.mxu0
    %v7762 = vadd.f32 %v7485, %v7761
    %v7763 = vpop.f32.mrf.mxu0
    %v7764 = vpop.f32.mrf.mxu0
    %v7765 = vadd.f32 %v7485, %v7764
    %v7766 = vpop.f32.mrf.mxu0
    %7767 = vmatprep.mubr.bf16.mxu0 %v7423
    %7768 = vmatmul.mubr.bf16.gmra.mxu0 %v7422
    %v7769 = vpop.f32.mrf.mxu0
    %v7770 = vadd.f32 %v7485, %v7769
    %v7771 = vpop.f32.mrf.mxu0
    %v7772 = vpop.f32.mrf.mxu0
    %v7773 = vadd.f32 %v7485, %v7772
    %v7774 = vpop.f32.mrf.mxu0
    %7775 = vmatprep.mubr.bf16.mxu0 %v7425
    %7776 = vmatmul.mubr.bf16.gmra.mxu0 %v7424
    %v7777 = vpop.f32.mrf.mxu0
    %v7778 = vadd.f32 %v7485, %v7777
    %v7779 = vpop.f32.mrf.mxu0
    %v7780 = vpop.f32.mrf.mxu0
    %v7781 = vadd.f32 %v7485, %v7780
    %v7782 = vpop.f32.mrf.mxu0
    %7783 = vmatprep.mubr.bf16.mxu0 %v7427
    %7784 = vmatmul.mubr.bf16.gmra.mxu0 %v7426
    %v7785 = vpop.f32.mrf.mxu0
    %v7786 = vadd.f32 %v7485, %v7785
    %v7787 = vpop.f32.mrf.mxu0
    %v7788 = vpop.f32.mrf.mxu0
    %v7789 = vadd.f32 %v7485, %v7788
    %v7790 = vpop.f32.mrf.mxu0
    %7791 = vmatprep.mubr.bf16.mxu0 %v7429
    %7792 = vmatmul.mubr.bf16.gmra.mxu0 %v7428
    %v7793 = vpop.f32.mrf.mxu0
    %v7794 = vadd.f32 %v7485, %v7793
    %v7795 = vpop.f32.mrf.mxu0
    %v7796 = vpop.f32.mrf.mxu0
    %v7797 = vadd.f32 %v7485, %v7796
    %v7798 = vpop.f32.mrf.mxu0
    %7799 = vmatprep.mubr.bf16.mxu0 %v7431
    %7800 = vmatmul.mubr.bf16.gmra.mxu0 %v7430
    %v7801 = vpop.f32.mrf.mxu0
    %v7802 = vadd.f32 %v7485, %v7801
    %v7803 = vpop.f32.mrf.mxu0
    %v7804 = vpop.f32.mrf.mxu0
    %v7805 = vadd.f32 %v7485, %v7804
    %v7806 = vpop.f32.mrf.mxu0
    %7807 = vmatprep.mubr.bf16.mxu0 %v7433
    %7808 = vmatmul.mubr.bf16.gmra.mxu0 %v7432
    %v7809 = vpop.f32.mrf.mxu0
    %v7810 = vadd.f32 %v7485, %v7809
    %v7811 = vpop.f32.mrf.mxu0
    %v7812 = vpop.f32.mrf.mxu0
    %v7813 = vadd.f32 %v7485, %v7812
    %v7814 = vpop.f32.mrf.mxu0
    %7815 = vmatprep.mubr.bf16.mxu0 %v7435
    %7816 = vmatmul.mubr.bf16.gmra.mxu0 %v7434
    %v7817 = vpop.f32.mrf.mxu0
    %v7818 = vadd.f32 %v7485, %v7817
    %v7819 = vpop.f32.mrf.mxu0
    %v7820 = vpop.f32.mrf.mxu0
    %v7821 = vadd.f32 %v7485, %v7820
    %v7822 = vpop.f32.mrf.mxu0
    %7823 = vmatprep.mubr.bf16.mxu0 %v7437
    %7824 = vmatmul.mubr.bf16.gmra.mxu0 %v7436
    %v7825 = vpop.f32.mrf.mxu0
    %v7826 = vadd.f32 %v7485, %v7825
    %v7827 = vpop.f32.mrf.mxu0
    %v7828 = vpop.f32.mrf.mxu0
    %v7829 = vadd.f32 %v7485, %v7828
    %v7830 = vpop.f32.mrf.mxu0
    %7831 = vmatprep.mubr.bf16.mxu0 %v7439
    %7832 = vmatmul.mubr.bf16.gmra.mxu0 %v7438
    %v7833 = vpop.f32.mrf.mxu0
    %v7834 = vadd.f32 %v7485, %v7833
    %v7835 = vpop.f32.mrf.mxu0
    %v7836 = vpop.f32.mrf.mxu0
    %v7837 = vadd.f32 %v7485, %v7836
    %v7838 = vpop.f32.mrf.mxu0
    %7839 = vmatprep.mubr.bf16.mxu0 %v7441
    %7840 = vmatmul.mubr.bf16.gmra.mxu0 %v7440
    %v7841 = vpop.f32.mrf.mxu0
    %v7842 = vadd.f32 %v7485, %v7841
    %v7843 = vpop.f32.mrf.mxu0
    %v7844 = vpop.f32.mrf.mxu0
    %v7845 = vadd.f32 %v7485, %v7844
    %v7846 = vpop.f32.mrf.mxu0
    %7847 = vmatprep.mubr.bf16.mxu0 %v7443
    %7848 = vmatmul.mubr.bf16.gmra.mxu0 %v7442
    %v7849 = vpop.f32.mrf.mxu0
    %v7850 = vadd.f32 %v7485, %v7849
    %v7851 = vpop.f32.mrf.mxu0
    %v7852 = vpop.f32.mrf.mxu0
    %v7853 = vadd.f32 %v7485, %v7852
    %v7854 = vpop.f32.mrf.mxu0
    %7855 = vmatprep.mubr.bf16.mxu0 %v7445
    %7856 = vmatmul.mubr.bf16.gmra.mxu0 %v7444
    %v7857 = vpop.f32.mrf.mxu0
    %v7858 = vadd.f32 %v7485, %v7857
    %v7859 = vpop.f32.mrf.mxu0
    %v7860 = vpop.f32.mrf.mxu0
    %v7861 = vadd.f32 %v7485, %v7860
    %v7862 = vpop.f32.mrf.mxu0
    %7863 = vmatprep.mubr.bf16.mxu0 %v7447
    %7864 = vmatmul.mubr.bf16.gmra.mxu0 %v7446
    %v7865 = vpop.f32.mrf.mxu0
    %v7866 = vadd.f32 %v7485, %v7865
    %v7867 = vpop.f32.mrf.mxu0
    %v7868 = vpop.f32.mrf.mxu0
    %v7869 = vadd.f32 %v7485, %v7868
    %v7870 = vpop.f32.mrf.mxu0
    %7871 = vdwg.mxu0
    %v7872 = vmax.f32 %v7618, 0.0
    %v7873 = vmax.f32 %v7621, 0.0
    %v7874 = vmax.f32 %v7626, 0.0
    %v7875 = vmax.f32 %v7629, 0.0
    %v7876 = vmax.f32 %v7634, 0.0
    %v7877 = vmax.f32 %v7637, 0.0
    %v7878 = vmax.f32 %v7642, 0.0
    %v7879 = vmax.f32 %v7645, 0.0
    %v7880 = vmax.f32 %v7650, 0.0
    %v7881 = vmax.f32 %v7653, 0.0
    %v7882 = vmax.f32 %v7658, 0.0
    %v7883 = vmax.f32 %v7661, 0.0
    %v7884 = vmax.f32 %v7666, 0.0
    %v7885 = vmax.f32 %v7669, 0.0
    %v7886 = vmax.f32 %v7674, 0.0
    %v7887 = vmax.f32 %v7677, 0.0
    %v7888 = vmax.f32 %v7682, 0.0
    %v7889 = vmax.f32 %v7685, 0.0
    %v7890 = vmax.f32 %v7690, 0.0
    %v7891 = vmax.f32 %v7693, 0.0
    %v7892 = vmax.f32 %v7698, 0.0
    %v7893 = vmax.f32 %v7701, 0.0
    %v7894 = vmax.f32 %v7706, 0.0
    %v7895 = vmax.f32 %v7709, 0.0
    %v7896 = vmax.f32 %v7714, 0.0
    %v7897 = vmax.f32 %v7717, 0.0
    %v7898 = vmax.f32 %v7722, 0.0
    %v7899 = vmax.f32 %v7725, 0.0
    %v7900 = vmax.f32 %v7730, 0.0
    %v7901 = vmax.f32 %v7733, 0.0
    %v7902 = vmax.f32 %v7738, 0.0
    %v7903 = vmax.f32 %v7741, 0.0
    %v7904 = vmax.f32 %v7746, 0.0
    %v7905 = vmax.f32 %v7749, 0.0
    %v7906 = vmax.f32 %v7754, 0.0
    %v7907 = vmax.f32 %v7757, 0.0
    %v7908 = vmax.f32 %v7762, 0.0
    %v7909 = vmax.f32 %v7765, 0.0
    %v7910 = vmax.f32 %v7770, 0.0
    %v7911 = vmax.f32 %v7773, 0.0
    %v7912 = vmax.f32 %v7778, 0.0
    %v7913 = vmax.f32 %v7781, 0.0
    %v7914 = vmax.f32 %v7786, 0.0
    %v7915 = vmax.f32 %v7789, 0.0
    %v7916 = vmax.f32 %v7794, 0.0
    %v7917 = vmax.f32 %v7797, 0.0
    %v7918 = vmax.f32 %v7802, 0.0
    %v7919 = vmax.f32 %v7805, 0.0
    %v7920 = vmax.f32 %v7810, 0.0
    %v7921 = vmax.f32 %v7813, 0.0
    %v7922 = vmax.f32 %v7818, 0.0
    %v7923 = vmax.f32 %v7821, 0.0
    %v7924 = vmax.f32 %v7826, 0.0
    %v7925 = vmax.f32 %v7829, 0.0
    %v7926 = vmax.f32 %v7834, 0.0
    %v7927 = vmax.f32 %v7837, 0.0
    %v7928 = vmax.f32 %v7842, 0.0
    %v7929 = vmax.f32 %v7845, 0.0
    %v7930 = vmax.f32 %v7850, 0.0
    %v7931 = vmax.f32 %v7853, 0.0
    %v7932 = vmax.f32 %v7858, 0.0
    %v7933 = vmax.f32 %v7861, 0.0
    %v7934 = vmax.f32 %v7866, 0.0
    %v7935 = vmax.f32 %v7869, 0.0
    %v7936 = vpack.c.bf16 %v7873, %v7872
    %v7937 = vpack.c.bf16 %v7875, %v7874
    %v7938 = vpack.c.bf16 %v7877, %v7876
    %v7939 = vpack.c.bf16 %v7879, %v7878
    %v7940 = vpack.c.bf16 %v7881, %v7880
    %v7941 = vpack.c.bf16 %v7883, %v7882
    %v7942 = vpack.c.bf16 %v7885, %v7884
    %v7943 = vpack.c.bf16 %v7887, %v7886
    %v7944 = vpack.c.bf16 %v7889, %v7888
    %v7945 = vpack.c.bf16 %v7891, %v7890
    %v7946 = vpack.c.bf16 %v7893, %v7892
    %v7947 = vpack.c.bf16 %v7895, %v7894
    %v7948 = vpack.c.bf16 %v7897, %v7896
    %v7949 = vpack.c.bf16 %v7899, %v7898
    %v7950 = vpack.c.bf16 %v7901, %v7900
    %v7951 = vpack.c.bf16 %v7903, %v7902
    %v7952 = vpack.c.bf16 %v7905, %v7904
    %v7953 = vpack.c.bf16 %v7907, %v7906
    %v7954 = vpack.c.bf16 %v7909, %v7908
    %v7955 = vpack.c.bf16 %v7911, %v7910
    %v7956 = vpack.c.bf16 %v7913, %v7912
    %v7957 = vpack.c.bf16 %v7915, %v7914
    %v7958 = vpack.c.bf16 %v7917, %v7916
    %v7959 = vpack.c.bf16 %v7919, %v7918
    %v7960 = vpack.c.bf16 %v7921, %v7920
    %v7961 = vpack.c.bf16 %v7923, %v7922
    %v7962 = vpack.c.bf16 %v7925, %v7924
    %v7963 = vpack.c.bf16 %v7927, %v7926
    %v7964 = vpack.c.bf16 %v7929, %v7928
    %v7965 = vpack.c.bf16 %v7931, %v7930
    %v7966 = vpack.c.bf16 %v7933, %v7932
    %v7967 = vpack.c.bf16 %v7935, %v7934
    %v7968 = vld [vmem:[#allocation11] sm:$0xf]
    %v7969 = vld [vmem:[#allocation11 + $0x4] sm:$0xf]
    %v7970 = vld [vmem:[#allocation11 + $0x8] sm:$0xf]
    %v7971 = vld [vmem:[#allocation11 + $0xc] sm:$0xf]
    %v7972 = vld [vmem:[#allocation11 + $0x10] sm:$0xf]
    %v7973 = vld [vmem:[#allocation11 + $0x14] sm:$0xf]
    %v7974 = vld [vmem:[#allocation11 + $0x18] sm:$0xf]
    %v7975 = vld [vmem:[#allocation11 + $0x1c] sm:$0xf]
    %v7976 = vld [vmem:[#allocation11 + $0x20] sm:$0xf]
    %v7977 = vld [vmem:[#allocation11 + $0x24] sm:$0xf]
    %v7978 = vld [vmem:[#allocation11 + $0x28] sm:$0xf]
    %v7979 = vld [vmem:[#allocation11 + $0x2c] sm:$0xf]
    %v7980 = vld [vmem:[#allocation11 + $0x30] sm:$0xf]
    %v7981 = vld [vmem:[#allocation11 + $0x34] sm:$0xf]
    %v7982 = vld [vmem:[#allocation11 + $0x38] sm:$0xf]
    %v7983 = vld [vmem:[#allocation11 + $0x3c] sm:$0xf]
    %v7984 = vld [vmem:[%s8] sm:$0x1]
    %v7986 = vlaneseq
    %v7987 = vshrl.u32 %v7986, 7
    %v7988 = vsub.s32 0, %v7987
    %v7989 = vrot.slane %v7984, %v7988
    %v8007 = vunpack.c.l.b16 %v7968
    %v8008 = vunpack.c.l.b16 %v7969
    %v8009 = vunpack.c.l.b16 %v7970
    %v8010 = vunpack.c.l.b16 %v7971
    %v8011 = vunpack.c.l.b16 %v7972
    %v8012 = vunpack.c.l.b16 %v7973
    %v8013 = vunpack.c.l.b16 %v7974
    %v8014 = vunpack.c.l.b16 %v7975
    %v8015 = vunpack.c.l.b16 %v7976
    %v8016 = vunpack.c.l.b16 %v7977
    %v8017 = vunpack.c.l.b16 %v7978
    %v8018 = vunpack.c.l.b16 %v7979
    %v8019 = vunpack.c.l.b16 %v7980
    %v8020 = vunpack.c.l.b16 %v7981
    %v8021 = vunpack.c.l.b16 %v7982
    %v8022 = vunpack.c.l.b16 %v7983
    %v8023 = vpack.c.b16 %v8008, %v8007
    %v8024 = vpack.c.b16 %v8010, %v8009
    %v8025 = vpack.c.b16 %v8012, %v8011
    %v8026 = vpack.c.b16 %v8014, %v8013
    %v8027 = vpack.c.b16 %v8016, %v8015
    %v8028 = vpack.c.b16 %v8018, %v8017
    %v8029 = vpack.c.b16 %v8020, %v8019
    %v8030 = vpack.c.b16 %v8022, %v8021
    %8039 = vmatprep.subr.bf16.mxu0 0
    %8040 = vmatpush1.bf16.msra.mxu0 %v8030
    %8041 = vmatprep.subr.bf16.mxu0 0
    %8042 = vmatpush1.bf16.msra.mxu0 %v8029
    %8043 = vmatprep.subr.bf16.mxu0 0
    %8044 = vmatpush1.bf16.msra.mxu0 %v8028
    %8045 = vmatprep.subr.bf16.mxu0 0
    %8046 = vmatpush1.bf16.msra.mxu0 %v8027
    %8047 = vmatprep.subr.bf16.mxu0 0
    %8048 = vmatpush1.bf16.msra.mxu0 %v8026
    %8049 = vmatprep.subr.bf16.mxu0 0
    %8050 = vmatpush1.bf16.msra.mxu0 %v8025
    %8051 = vmatprep.subr.bf16.mxu0 0
    %8052 = vmatpush1.bf16.msra.mxu0 %v8024
    %8053 = vmatprep.subr.bf16.mxu0 0
    %8054 = vmatpush1.bf16.msra.mxu0 %v8023
    %8055 = vmatprep.subr.bf16.mxu0 0
    %8056 = vmatpush2.bf16.msra.mxu0 0
    %8057 = vmatprep.subr.bf16.mxu0 0
    %8058 = vmatpush2.bf16.msra.mxu0 0
    %8059 = vmatprep.subr.bf16.mxu0 0
    %8060 = vmatpush2.bf16.msra.mxu0 0
    %8061 = vmatprep.subr.bf16.mxu0 0
    %8062 = vmatpush2.bf16.msra.mxu0 0
    %8063 = vmatprep.subr.bf16.mxu0 0
    %8064 = vmatpush2.bf16.msra.mxu0 0
    %8065 = vmatprep.subr.bf16.mxu0 0
    %8066 = vmatpush2.bf16.msra.mxu0 0
    %8067 = vmatprep.subr.bf16.mxu0 0
    %8068 = vmatpush2.bf16.msra.mxu0 0
    %8069 = vmatprep.subr.bf16.mxu0 0
    %8070 = vmatpush2.bf16.msra.mxu0 0
    %8071 = vmatprep.mubr.bf16.mxu0 0
    %8072 = vmatmul.mubr.bf16.gmra.mxu0 %v7936
    %v8073 = vpop.f32.mrf.mxu0
    %v8074 = vadd.f32 %v7989, %v8073
    %v8075 = vpop.f32.mrf.mxu0
    %v8076 = vpop.f32.mrf.mxu0
    %v8077 = vadd.f32 %v7989, %v8076
    %v8078 = vpop.f32.mrf.mxu0
    %8079 = vmatprep.mubr.bf16.mxu0 0
    %8080 = vmatmul.mubr.bf16.gmra.mxu0 %v7937
    %v8081 = vpop.f32.mrf.mxu0
    %v8082 = vadd.f32 %v7989, %v8081
    %v8083 = vpop.f32.mrf.mxu0
    %v8084 = vpop.f32.mrf.mxu0
    %v8085 = vadd.f32 %v7989, %v8084
    %v8086 = vpop.f32.mrf.mxu0
    %8087 = vmatprep.mubr.bf16.mxu0 0
    %8088 = vmatmul.mubr.bf16.gmra.mxu0 %v7938
    %v8089 = vpop.f32.mrf.mxu0
    %v8090 = vadd.f32 %v7989, %v8089
    %v8091 = vpop.f32.mrf.mxu0
    %v8092 = vpop.f32.mrf.mxu0
    %v8093 = vadd.f32 %v7989, %v8092
    %v8094 = vpop.f32.mrf.mxu0
    %8095 = vmatprep.mubr.bf16.mxu0 0
    %8096 = vmatmul.mubr.bf16.gmra.mxu0 %v7939
    %v8097 = vpop.f32.mrf.mxu0
    %v8098 = vadd.f32 %v7989, %v8097
    %v8099 = vpop.f32.mrf.mxu0
    %v8100 = vpop.f32.mrf.mxu0
    %v8101 = vadd.f32 %v7989, %v8100
    %v8102 = vpop.f32.mrf.mxu0
    %8103 = vmatprep.mubr.bf16.mxu0 0
    %8104 = vmatmul.mubr.bf16.gmra.mxu0 %v7940
    %v8105 = vpop.f32.mrf.mxu0
    %v8106 = vadd.f32 %v7989, %v8105
    %v8107 = vpop.f32.mrf.mxu0
    %v8108 = vpop.f32.mrf.mxu0
    %v8109 = vadd.f32 %v7989, %v8108
    %v8110 = vpop.f32.mrf.mxu0
    %8111 = vmatprep.mubr.bf16.mxu0 0
    %8112 = vmatmul.mubr.bf16.gmra.mxu0 %v7941
    %v8113 = vpop.f32.mrf.mxu0
    %v8114 = vadd.f32 %v7989, %v8113
    %v8115 = vpop.f32.mrf.mxu0
    %v8116 = vpop.f32.mrf.mxu0
    %v8117 = vadd.f32 %v7989, %v8116
    %v8118 = vpop.f32.mrf.mxu0
    %8119 = vmatprep.mubr.bf16.mxu0 0
    %8120 = vmatmul.mubr.bf16.gmra.mxu0 %v7942
    %v8121 = vpop.f32.mrf.mxu0
    %v8122 = vadd.f32 %v7989, %v8121
    %v8123 = vpop.f32.mrf.mxu0
    %v8124 = vpop.f32.mrf.mxu0
    %v8125 = vadd.f32 %v7989, %v8124
    %v8126 = vpop.f32.mrf.mxu0
    %8127 = vmatprep.mubr.bf16.mxu0 0
    %8128 = vmatmul.mubr.bf16.gmra.mxu0 %v7943
    %v8129 = vpop.f32.mrf.mxu0
    %v8130 = vadd.f32 %v7989, %v8129
    %v8131 = vpop.f32.mrf.mxu0
    %v8132 = vpop.f32.mrf.mxu0
    %v8133 = vadd.f32 %v7989, %v8132
    %v8134 = vpop.f32.mrf.mxu0
    %8135 = vmatprep.mubr.bf16.mxu0 0
    %8136 = vmatmul.mubr.bf16.gmra.mxu0 %v7944
    %v8137 = vpop.f32.mrf.mxu0
    %v8138 = vadd.f32 %v7989, %v8137
    %v8139 = vpop.f32.mrf.mxu0
    %v8140 = vpop.f32.mrf.mxu0
    %v8141 = vadd.f32 %v7989, %v8140
    %v8142 = vpop.f32.mrf.mxu0
    %8143 = vmatprep.mubr.bf16.mxu0 0
    %8144 = vmatmul.mubr.bf16.gmra.mxu0 %v7945
    %v8145 = vpop.f32.mrf.mxu0
    %v8146 = vadd.f32 %v7989, %v8145
    %v8147 = vpop.f32.mrf.mxu0
    %v8148 = vpop.f32.mrf.mxu0
    %v8149 = vadd.f32 %v7989, %v8148
    %v8150 = vpop.f32.mrf.mxu0
    %8151 = vmatprep.mubr.bf16.mxu0 0
    %8152 = vmatmul.mubr.bf16.gmra.mxu0 %v7946
    %v8153 = vpop.f32.mrf.mxu0
    %v8154 = vadd.f32 %v7989, %v8153
    %v8155 = vpop.f32.mrf.mxu0
    %v8156 = vpop.f32.mrf.mxu0
    %v8157 = vadd.f32 %v7989, %v8156
    %v8158 = vpop.f32.mrf.mxu0
    %8159 = vmatprep.mubr.bf16.mxu0 0
    %8160 = vmatmul.mubr.bf16.gmra.mxu0 %v7947
    %v8161 = vpop.f32.mrf.mxu0
    %v8162 = vadd.f32 %v7989, %v8161
    %v8163 = vpop.f32.mrf.mxu0
    %v8164 = vpop.f32.mrf.mxu0
    %v8165 = vadd.f32 %v7989, %v8164
    %v8166 = vpop.f32.mrf.mxu0
    %8167 = vmatprep.mubr.bf16.mxu0 0
    %8168 = vmatmul.mubr.bf16.gmra.mxu0 %v7948
    %v8169 = vpop.f32.mrf.mxu0
    %v8170 = vadd.f32 %v7989, %v8169
    %v8171 = vpop.f32.mrf.mxu0
    %v8172 = vpop.f32.mrf.mxu0
    %v8173 = vadd.f32 %v7989, %v8172
    %v8174 = vpop.f32.mrf.mxu0
    %8175 = vmatprep.mubr.bf16.mxu0 0
    %8176 = vmatmul.mubr.bf16.gmra.mxu0 %v7949
    %v8177 = vpop.f32.mrf.mxu0
    %v8178 = vadd.f32 %v7989, %v8177
    %v8179 = vpop.f32.mrf.mxu0
    %v8180 = vpop.f32.mrf.mxu0
    %v8181 = vadd.f32 %v7989, %v8180
    %v8182 = vpop.f32.mrf.mxu0
    %8183 = vmatprep.mubr.bf16.mxu0 0
    %8184 = vmatmul.mubr.bf16.gmra.mxu0 %v7950
    %v8185 = vpop.f32.mrf.mxu0
    %v8186 = vadd.f32 %v7989, %v8185
    %v8187 = vpop.f32.mrf.mxu0
    %v8188 = vpop.f32.mrf.mxu0
    %v8189 = vadd.f32 %v7989, %v8188
    %v8190 = vpop.f32.mrf.mxu0
    %8191 = vmatprep.mubr.bf16.mxu0 0
    %8192 = vmatmul.mubr.bf16.gmra.mxu0 %v7951
    %v8193 = vpop.f32.mrf.mxu0
    %v8194 = vadd.f32 %v7989, %v8193
    %v8195 = vpop.f32.mrf.mxu0
    %v8196 = vpop.f32.mrf.mxu0
    %v8197 = vadd.f32 %v7989, %v8196
    %v8198 = vpop.f32.mrf.mxu0
    %8199 = vmatprep.mubr.bf16.mxu0 0
    %8200 = vmatmul.mubr.bf16.gmra.mxu0 %v7952
    %v8201 = vpop.f32.mrf.mxu0
    %v8202 = vadd.f32 %v7989, %v8201
    %v8203 = vpop.f32.mrf.mxu0
    %v8204 = vpop.f32.mrf.mxu0
    %v8205 = vadd.f32 %v7989, %v8204
    %v8206 = vpop.f32.mrf.mxu0
    %8207 = vmatprep.mubr.bf16.mxu0 0
    %8208 = vmatmul.mubr.bf16.gmra.mxu0 %v7953
    %v8209 = vpop.f32.mrf.mxu0
    %v8210 = vadd.f32 %v7989, %v8209
    %v8211 = vpop.f32.mrf.mxu0
    %v8212 = vpop.f32.mrf.mxu0
    %v8213 = vadd.f32 %v7989, %v8212
    %v8214 = vpop.f32.mrf.mxu0
    %8215 = vmatprep.mubr.bf16.mxu0 0
    %8216 = vmatmul.mubr.bf16.gmra.mxu0 %v7954
    %v8217 = vpop.f32.mrf.mxu0
    %v8218 = vadd.f32 %v7989, %v8217
    %v8219 = vpop.f32.mrf.mxu0
    %v8220 = vpop.f32.mrf.mxu0
    %v8221 = vadd.f32 %v7989, %v8220
    %v8222 = vpop.f32.mrf.mxu0
    %8223 = vmatprep.mubr.bf16.mxu0 0
    %8224 = vmatmul.mubr.bf16.gmra.mxu0 %v7955
    %v8225 = vpop.f32.mrf.mxu0
    %v8226 = vadd.f32 %v7989, %v8225
    %v8227 = vpop.f32.mrf.mxu0
    %v8228 = vpop.f32.mrf.mxu0
    %v8229 = vadd.f32 %v7989, %v8228
    %v8230 = vpop.f32.mrf.mxu0
    %8231 = vmatprep.mubr.bf16.mxu0 0
    %8232 = vmatmul.mubr.bf16.gmra.mxu0 %v7956
    %v8233 = vpop.f32.mrf.mxu0
    %v8234 = vadd.f32 %v7989, %v8233
    %v8235 = vpop.f32.mrf.mxu0
    %v8236 = vpop.f32.mrf.mxu0
    %v8237 = vadd.f32 %v7989, %v8236
    %v8238 = vpop.f32.mrf.mxu0
    %8239 = vmatprep.mubr.bf16.mxu0 0
    %8240 = vmatmul.mubr.bf16.gmra.mxu0 %v7957
    %v8241 = vpop.f32.mrf.mxu0
    %v8242 = vadd.f32 %v7989, %v8241
    %v8243 = vpop.f32.mrf.mxu0
    %v8244 = vpop.f32.mrf.mxu0
    %v8245 = vadd.f32 %v7989, %v8244
    %v8246 = vpop.f32.mrf.mxu0
    %8247 = vmatprep.mubr.bf16.mxu0 0
    %8248 = vmatmul.mubr.bf16.gmra.mxu0 %v7958
    %v8249 = vpop.f32.mrf.mxu0
    %v8250 = vadd.f32 %v7989, %v8249
    %v8251 = vpop.f32.mrf.mxu0
    %v8252 = vpop.f32.mrf.mxu0
    %v8253 = vadd.f32 %v7989, %v8252
    %v8254 = vpop.f32.mrf.mxu0
    %8255 = vmatprep.mubr.bf16.mxu0 0
    %8256 = vmatmul.mubr.bf16.gmra.mxu0 %v7959
    %v8257 = vpop.f32.mrf.mxu0
    %v8258 = vadd.f32 %v7989, %v8257
    %v8259 = vpop.f32.mrf.mxu0
    %v8260 = vpop.f32.mrf.mxu0
    %v8261 = vadd.f32 %v7989, %v8260
    %v8262 = vpop.f32.mrf.mxu0
    %8263 = vmatprep.mubr.bf16.mxu0 0
    %8264 = vmatmul.mubr.bf16.gmra.mxu0 %v7960
    %v8265 = vpop.f32.mrf.mxu0
    %v8266 = vadd.f32 %v7989, %v8265
    %v8267 = vpop.f32.mrf.mxu0
    %v8268 = vpop.f32.mrf.mxu0
    %v8269 = vadd.f32 %v7989, %v8268
    %v8270 = vpop.f32.mrf.mxu0
    %8271 = vmatprep.mubr.bf16.mxu0 0
    %8272 = vmatmul.mubr.bf16.gmra.mxu0 %v7961
    %v8273 = vpop.f32.mrf.mxu0
    %v8274 = vadd.f32 %v7989, %v8273
    %v8275 = vpop.f32.mrf.mxu0
    %v8276 = vpop.f32.mrf.mxu0
    %v8277 = vadd.f32 %v7989, %v8276
    %v8278 = vpop.f32.mrf.mxu0
    %8279 = vmatprep.mubr.bf16.mxu0 0
    %8280 = vmatmul.mubr.bf16.gmra.mxu0 %v7962
    %v8281 = vpop.f32.mrf.mxu0
    %v8282 = vadd.f32 %v7989, %v8281
    %v8283 = vpop.f32.mrf.mxu0
    %v8284 = vpop.f32.mrf.mxu0
    %v8285 = vadd.f32 %v7989, %v8284
    %v8286 = vpop.f32.mrf.mxu0
    %8287 = vmatprep.mubr.bf16.mxu0 0
    %8288 = vmatmul.mubr.bf16.gmra.mxu0 %v7963
    %v8289 = vpop.f32.mrf.mxu0
    %v8290 = vadd.f32 %v7989, %v8289
    %v8291 = vpop.f32.mrf.mxu0
    %v8292 = vpop.f32.mrf.mxu0
    %v8293 = vadd.f32 %v7989, %v8292
    %v8294 = vpop.f32.mrf.mxu0
    %8295 = vmatprep.mubr.bf16.mxu0 0
    %8296 = vmatmul.mubr.bf16.gmra.mxu0 %v7964
    %v8297 = vpop.f32.mrf.mxu0
    %v8298 = vadd.f32 %v7989, %v8297
    %v8299 = vpop.f32.mrf.mxu0
    %v8300 = vpop.f32.mrf.mxu0
    %v8301 = vadd.f32 %v7989, %v8300
    %v8302 = vpop.f32.mrf.mxu0
    %8303 = vmatprep.mubr.bf16.mxu0 0
    %8304 = vmatmul.mubr.bf16.gmra.mxu0 %v7965
    %v8305 = vpop.f32.mrf.mxu0
    %v8306 = vadd.f32 %v7989, %v8305
    %v8307 = vpop.f32.mrf.mxu0
    %v8308 = vpop.f32.mrf.mxu0
    %v8309 = vadd.f32 %v7989, %v8308
    %v8310 = vpop.f32.mrf.mxu0
    %8311 = vmatprep.mubr.bf16.mxu0 0
    %8312 = vmatmul.mubr.bf16.gmra.mxu0 %v7966
    %v8313 = vpop.f32.mrf.mxu0
    %v8314 = vadd.f32 %v7989, %v8313
    %v8315 = vpop.f32.mrf.mxu0
    %v8316 = vpop.f32.mrf.mxu0
    %v8317 = vadd.f32 %v7989, %v8316
    %v8318 = vpop.f32.mrf.mxu0
    %8319 = vmatprep.mubr.bf16.mxu0 0
    %8320 = vmatmul.mubr.bf16.gmra.mxu0 %v7967
    %v8321 = vpop.f32.mrf.mxu0
    %v8322 = vadd.f32 %v7989, %v8321
    %v8323 = vpop.f32.mrf.mxu0
    %v8324 = vpop.f32.mrf.mxu0
    %v8325 = vadd.f32 %v7989, %v8324
    %v8326 = vpop.f32.mrf.mxu0
    %8327 = vdwg.mxu0
    %v8328 = vmax.f32 %v8074, 0.0
    %v8329 = vmax.f32 %v8077, 0.0
    %v8330 = vmax.f32 %v8082, 0.0
    %v8331 = vmax.f32 %v8085, 0.0
    %v8332 = vmax.f32 %v8090, 0.0
    %v8333 = vmax.f32 %v8093, 0.0
    %v8334 = vmax.f32 %v8098, 0.0
    %v8335 = vmax.f32 %v8101, 0.0
    %v8336 = vmax.f32 %v8106, 0.0
    %v8337 = vmax.f32 %v8109, 0.0
    %v8338 = vmax.f32 %v8114, 0.0
    %v8339 = vmax.f32 %v8117, 0.0
    %v8340 = vmax.f32 %v8122, 0.0
    %v8341 = vmax.f32 %v8125, 0.0
    %v8342 = vmax.f32 %v8130, 0.0
    %v8343 = vmax.f32 %v8133, 0.0
    %v8344 = vmax.f32 %v8138, 0.0
    %v8345 = vmax.f32 %v8141, 0.0
    %v8346 = vmax.f32 %v8146, 0.0
    %v8347 = vmax.f32 %v8149, 0.0
    %v8348 = vmax.f32 %v8154, 0.0
    %v8349 = vmax.f32 %v8157, 0.0
    %v8350 = vmax.f32 %v8162, 0.0
    %v8351 = vmax.f32 %v8165, 0.0
    %v8352 = vmax.f32 %v8170, 0.0
    %v8353 = vmax.f32 %v8173, 0.0
    %v8354 = vmax.f32 %v8178, 0.0
    %v8355 = vmax.f32 %v8181, 0.0
    %v8356 = vmax.f32 %v8186, 0.0
    %v8357 = vmax.f32 %v8189, 0.0
    %v8358 = vmax.f32 %v8194, 0.0
    %v8359 = vmax.f32 %v8197, 0.0
    %v8360 = vmax.f32 %v8202, 0.0
    %v8361 = vmax.f32 %v8205, 0.0
    %v8362 = vmax.f32 %v8210, 0.0
    %v8363 = vmax.f32 %v8213, 0.0
    %v8364 = vmax.f32 %v8218, 0.0
    %v8365 = vmax.f32 %v8221, 0.0
    %v8366 = vmax.f32 %v8226, 0.0
    %v8367 = vmax.f32 %v8229, 0.0
    %v8368 = vmax.f32 %v8234, 0.0
    %v8369 = vmax.f32 %v8237, 0.0
    %v8370 = vmax.f32 %v8242, 0.0
    %v8371 = vmax.f32 %v8245, 0.0
    %v8372 = vmax.f32 %v8250, 0.0
    %v8373 = vmax.f32 %v8253, 0.0
    %v8374 = vmax.f32 %v8258, 0.0
    %v8375 = vmax.f32 %v8261, 0.0
    %v8376 = vmax.f32 %v8266, 0.0
    %v8377 = vmax.f32 %v8269, 0.0
    %v8378 = vmax.f32 %v8274, 0.0
    %v8379 = vmax.f32 %v8277, 0.0
    %v8380 = vmax.f32 %v8282, 0.0
    %v8381 = vmax.f32 %v8285, 0.0
    %v8382 = vmax.f32 %v8290, 0.0
    %v8383 = vmax.f32 %v8293, 0.0
    %v8384 = vmax.f32 %v8298, 0.0
    %v8385 = vmax.f32 %v8301, 0.0
    %v8386 = vmax.f32 %v8306, 0.0
    %v8387 = vmax.f32 %v8309, 0.0
    %v8388 = vmax.f32 %v8314, 0.0
    %v8389 = vmax.f32 %v8317, 0.0
    %v8390 = vmax.f32 %v8322, 0.0
    %v8391 = vmax.f32 %v8325, 0.0
    %v8392 = vpack.c.bf16 %v8329, %v8328
    %v8393 = vpack.c.bf16 %v8331, %v8330
    %v8394 = vpack.c.bf16 %v8333, %v8332
    %v8395 = vpack.c.bf16 %v8335, %v8334
    %v8396 = vpack.c.bf16 %v8337, %v8336
    %v8397 = vpack.c.bf16 %v8339, %v8338
    %v8398 = vpack.c.bf16 %v8341, %v8340
    %v8399 = vpack.c.bf16 %v8343, %v8342
    %v8400 = vpack.c.bf16 %v8345, %v8344
    %v8401 = vpack.c.bf16 %v8347, %v8346
    %v8402 = vpack.c.bf16 %v8349, %v8348
    %v8403 = vpack.c.bf16 %v8351, %v8350
    %v8404 = vpack.c.bf16 %v8353, %v8352
    %v8405 = vpack.c.bf16 %v8355, %v8354
    %v8406 = vpack.c.bf16 %v8357, %v8356
    %v8407 = vpack.c.bf16 %v8359, %v8358
    %v8408 = vpack.c.bf16 %v8361, %v8360
    %v8409 = vpack.c.bf16 %v8363, %v8362
    %v8410 = vpack.c.bf16 %v8365, %v8364
    %v8411 = vpack.c.bf16 %v8367, %v8366
    %v8412 = vpack.c.bf16 %v8369, %v8368
    %v8413 = vpack.c.bf16 %v8371, %v8370
    %v8414 = vpack.c.bf16 %v8373, %v8372
    %v8415 = vpack.c.bf16 %v8375, %v8374
    %v8416 = vpack.c.bf16 %v8377, %v8376
    %v8417 = vpack.c.bf16 %v8379, %v8378
    %v8418 = vpack.c.bf16 %v8381, %v8380
    %v8419 = vpack.c.bf16 %v8383, %v8382
    %v8420 = vpack.c.bf16 %v8385, %v8384
    %v8421 = vpack.c.bf16 %v8387, %v8386
    %v8422 = vpack.c.bf16 %v8389, %v8388
    %v8423 = vpack.c.bf16 %v8391, %v8390
    %v8424 = vld [vmem:[#allocation13] sm:$0xf]
    %v8425 = vld [vmem:[#allocation13 + $0x4] sm:$0xf]
    %v8426 = vld [vmem:[#allocation13 + $0x8] sm:$0xf]
    %v8427 = vld [vmem:[#allocation13 + $0xc] sm:$0xf]
    %v8428 = vld [vmem:[#allocation13 + $0x10] sm:$0xf]
    %v8429 = vld [vmem:[#allocation13 + $0x14] sm:$0xf]
    %v8430 = vld [vmem:[#allocation13 + $0x18] sm:$0xf]
    %v8431 = vld [vmem:[#allocation13 + $0x1c] sm:$0xf]
    %v8432 = vld [vmem:[#allocation13 + $0x20] sm:$0xf]
    %v8433 = vld [vmem:[#allocation13 + $0x24] sm:$0xf]
    %v8434 = vld [vmem:[#allocation13 + $0x28] sm:$0xf]
    %v8435 = vld [vmem:[#allocation13 + $0x2c] sm:$0xf]
    %v8436 = vld [vmem:[#allocation13 + $0x30] sm:$0xf]
    %v8437 = vld [vmem:[#allocation13 + $0x34] sm:$0xf]
    %v8438 = vld [vmem:[#allocation13 + $0x38] sm:$0xf]
    %v8439 = vld [vmem:[#allocation13 + $0x3c] sm:$0xf]
    %v8440 = vld [vmem:[%s10] sm:$0x1]
    %v8442 = vlaneseq
    %v8443 = vshrl.u32 %v8442, 7
    %v8444 = vsub.s32 0, %v8443
    %v8445 = vrot.slane %v8440, %v8444
    %v8463 = vunpack.c.l.b16 %v8424
    %v8464 = vunpack.c.l.b16 %v8425
    %v8465 = vunpack.c.l.b16 %v8426
    %v8466 = vunpack.c.l.b16 %v8427
    %v8467 = vunpack.c.l.b16 %v8428
    %v8468 = vunpack.c.l.b16 %v8429
    %v8469 = vunpack.c.l.b16 %v8430
    %v8470 = vunpack.c.l.b16 %v8431
    %v8471 = vunpack.c.l.b16 %v8432
    %v8472 = vunpack.c.l.b16 %v8433
    %v8473 = vunpack.c.l.b16 %v8434
    %v8474 = vunpack.c.l.b16 %v8435
    %v8475 = vunpack.c.l.b16 %v8436
    %v8476 = vunpack.c.l.b16 %v8437
    %v8477 = vunpack.c.l.b16 %v8438
    %v8478 = vunpack.c.l.b16 %v8439
    %v8479 = vpack.c.b16 %v8464, %v8463
    %v8480 = vpack.c.b16 %v8466, %v8465
    %v8481 = vpack.c.b16 %v8468, %v8467
    %v8482 = vpack.c.b16 %v8470, %v8469
    %v8483 = vpack.c.b16 %v8472, %v8471
    %v8484 = vpack.c.b16 %v8474, %v8473
    %v8485 = vpack.c.b16 %v8476, %v8475
    %v8486 = vpack.c.b16 %v8478, %v8477
    %8495 = vmatprep.subr.bf16.mxu0 0
    %8496 = vmatpush1.bf16.msra.mxu0 %v8486
    %8497 = vmatprep.subr.bf16.mxu0 0
    %8498 = vmatpush1.bf16.msra.mxu0 %v8485
    %8499 = vmatprep.subr.bf16.mxu0 0
    %8500 = vmatpush1.bf16.msra.mxu0 %v8484
    %8501 = vmatprep.subr.bf16.mxu0 0
    %8502 = vmatpush1.bf16.msra.mxu0 %v8483
    %8503 = vmatprep.subr.bf16.mxu0 0
    %8504 = vmatpush1.bf16.msra.mxu0 %v8482
    %8505 = vmatprep.subr.bf16.mxu0 0
    %8506 = vmatpush1.bf16.msra.mxu0 %v8481
    %8507 = vmatprep.subr.bf16.mxu0 0
    %8508 = vmatpush1.bf16.msra.mxu0 %v8480
    %8509 = vmatprep.subr.bf16.mxu0 0
    %8510 = vmatpush1.bf16.msra.mxu0 %v8479
    %8511 = vmatprep.subr.bf16.mxu0 0
    %8512 = vmatpush2.bf16.msra.mxu0 0
    %8513 = vmatprep.subr.bf16.mxu0 0
    %8514 = vmatpush2.bf16.msra.mxu0 0
    %8515 = vmatprep.subr.bf16.mxu0 0
    %8516 = vmatpush2.bf16.msra.mxu0 0
    %8517 = vmatprep.subr.bf16.mxu0 0
    %8518 = vmatpush2.bf16.msra.mxu0 0
    %8519 = vmatprep.subr.bf16.mxu0 0
    %8520 = vmatpush2.bf16.msra.mxu0 0
    %8521 = vmatprep.subr.bf16.mxu0 0
    %8522 = vmatpush2.bf16.msra.mxu0 0
    %8523 = vmatprep.subr.bf16.mxu0 0
    %8524 = vmatpush2.bf16.msra.mxu0 0
    %8525 = vmatprep.subr.bf16.mxu0 0
    %8526 = vmatpush2.bf16.msra.mxu0 0
    %8527 = vmatprep.mubr.bf16.mxu0 0
    %8528 = vmatmul.mubr.bf16.gmra.mxu0 %v8392
    %v8529 = vpop.f32.mrf.mxu0
    %v8530 = vadd.f32 %v8445, %v8529
    %v8531 = vpop.f32.mrf.mxu0
    %v8532 = vpop.f32.mrf.mxu0
    %v8533 = vadd.f32 %v8445, %v8532
    %v8534 = vpop.f32.mrf.mxu0
    %8535 = vmatprep.mubr.bf16.mxu0 0
    %8536 = vmatmul.mubr.bf16.gmra.mxu0 %v8393
    %v8537 = vpop.f32.mrf.mxu0
    %v8538 = vadd.f32 %v8445, %v8537
    %v8539 = vpop.f32.mrf.mxu0
    %v8540 = vpop.f32.mrf.mxu0
    %v8541 = vadd.f32 %v8445, %v8540
    %v8542 = vpop.f32.mrf.mxu0
    %8543 = vmatprep.mubr.bf16.mxu0 0
    %8544 = vmatmul.mubr.bf16.gmra.mxu0 %v8394
    %v8545 = vpop.f32.mrf.mxu0
    %v8546 = vadd.f32 %v8445, %v8545
    %v8547 = vpop.f32.mrf.mxu0
    %v8548 = vpop.f32.mrf.mxu0
    %v8549 = vadd.f32 %v8445, %v8548
    %v8550 = vpop.f32.mrf.mxu0
    %8551 = vmatprep.mubr.bf16.mxu0 0
    %8552 = vmatmul.mubr.bf16.gmra.mxu0 %v8395
    %v8553 = vpop.f32.mrf.mxu0
    %v8554 = vadd.f32 %v8445, %v8553
    %v8555 = vpop.f32.mrf.mxu0
    %v8556 = vpop.f32.mrf.mxu0
    %v8557 = vadd.f32 %v8445, %v8556
    %v8558 = vpop.f32.mrf.mxu0
    %8559 = vmatprep.mubr.bf16.mxu0 0
    %8560 = vmatmul.mubr.bf16.gmra.mxu0 %v8396
    %v8561 = vpop.f32.mrf.mxu0
    %v8562 = vadd.f32 %v8445, %v8561
    %v8563 = vpop.f32.mrf.mxu0
    %v8564 = vpop.f32.mrf.mxu0
    %v8565 = vadd.f32 %v8445, %v8564
    %v8566 = vpop.f32.mrf.mxu0
    %8567 = vmatprep.mubr.bf16.mxu0 0
    %8568 = vmatmul.mubr.bf16.gmra.mxu0 %v8397
    %v8569 = vpop.f32.mrf.mxu0
    %v8570 = vadd.f32 %v8445, %v8569
    %v8571 = vpop.f32.mrf.mxu0
    %v8572 = vpop.f32.mrf.mxu0
    %v8573 = vadd.f32 %v8445, %v8572
    %v8574 = vpop.f32.mrf.mxu0
    %8575 = vmatprep.mubr.bf16.mxu0 0
    %8576 = vmatmul.mubr.bf16.gmra.mxu0 %v8398
    %v8577 = vpop.f32.mrf.mxu0
    %v8578 = vadd.f32 %v8445, %v8577
    %v8579 = vpop.f32.mrf.mxu0
    %v8580 = vpop.f32.mrf.mxu0
    %v8581 = vadd.f32 %v8445, %v8580
    %v8582 = vpop.f32.mrf.mxu0
    %8583 = vmatprep.mubr.bf16.mxu0 0
    %8584 = vmatmul.mubr.bf16.gmra.mxu0 %v8399
    %v8585 = vpop.f32.mrf.mxu0
    %v8586 = vadd.f32 %v8445, %v8585
    %v8587 = vpop.f32.mrf.mxu0
    %v8588 = vpop.f32.mrf.mxu0
    %v8589 = vadd.f32 %v8445, %v8588
    %v8590 = vpop.f32.mrf.mxu0
    %8591 = vmatprep.mubr.bf16.mxu0 0
    %8592 = vmatmul.mubr.bf16.gmra.mxu0 %v8400
    %v8593 = vpop.f32.mrf.mxu0
    %v8594 = vadd.f32 %v8445, %v8593
    %v8595 = vpop.f32.mrf.mxu0
    %v8596 = vpop.f32.mrf.mxu0
    %v8597 = vadd.f32 %v8445, %v8596
    %v8598 = vpop.f32.mrf.mxu0
    %8599 = vmatprep.mubr.bf16.mxu0 0
    %8600 = vmatmul.mubr.bf16.gmra.mxu0 %v8401
    %v8601 = vpop.f32.mrf.mxu0
    %v8602 = vadd.f32 %v8445, %v8601
    %v8603 = vpop.f32.mrf.mxu0
    %v8604 = vpop.f32.mrf.mxu0
    %v8605 = vadd.f32 %v8445, %v8604
    %v8606 = vpop.f32.mrf.mxu0
    %8607 = vmatprep.mubr.bf16.mxu0 0
    %8608 = vmatmul.mubr.bf16.gmra.mxu0 %v8402
    %v8609 = vpop.f32.mrf.mxu0
    %v8610 = vadd.f32 %v8445, %v8609
    %v8611 = vpop.f32.mrf.mxu0
    %v8612 = vpop.f32.mrf.mxu0
    %v8613 = vadd.f32 %v8445, %v8612
    %v8614 = vpop.f32.mrf.mxu0
    %8615 = vmatprep.mubr.bf16.mxu0 0
    %8616 = vmatmul.mubr.bf16.gmra.mxu0 %v8403
    %v8617 = vpop.f32.mrf.mxu0
    %v8618 = vadd.f32 %v8445, %v8617
    %v8619 = vpop.f32.mrf.mxu0
    %v8620 = vpop.f32.mrf.mxu0
    %v8621 = vadd.f32 %v8445, %v8620
    %v8622 = vpop.f32.mrf.mxu0
    %8623 = vmatprep.mubr.bf16.mxu0 0
    %8624 = vmatmul.mubr.bf16.gmra.mxu0 %v8404
    %v8625 = vpop.f32.mrf.mxu0
    %v8626 = vadd.f32 %v8445, %v8625
    %v8627 = vpop.f32.mrf.mxu0
    %v8628 = vpop.f32.mrf.mxu0
    %v8629 = vadd.f32 %v8445, %v8628
    %v8630 = vpop.f32.mrf.mxu0
    %8631 = vmatprep.mubr.bf16.mxu0 0
    %8632 = vmatmul.mubr.bf16.gmra.mxu0 %v8405
    %v8633 = vpop.f32.mrf.mxu0
    %v8634 = vadd.f32 %v8445, %v8633
    %v8635 = vpop.f32.mrf.mxu0
    %v8636 = vpop.f32.mrf.mxu0
    %v8637 = vadd.f32 %v8445, %v8636
    %v8638 = vpop.f32.mrf.mxu0
    %8639 = vmatprep.mubr.bf16.mxu0 0
    %8640 = vmatmul.mubr.bf16.gmra.mxu0 %v8406
    %v8641 = vpop.f32.mrf.mxu0
    %v8642 = vadd.f32 %v8445, %v8641
    %v8643 = vpop.f32.mrf.mxu0
    %v8644 = vpop.f32.mrf.mxu0
    %v8645 = vadd.f32 %v8445, %v8644
    %v8646 = vpop.f32.mrf.mxu0
    %8647 = vmatprep.mubr.bf16.mxu0 0
    %8648 = vmatmul.mubr.bf16.gmra.mxu0 %v8407
    %v8649 = vpop.f32.mrf.mxu0
    %v8650 = vadd.f32 %v8445, %v8649
    %v8651 = vpop.f32.mrf.mxu0
    %v8652 = vpop.f32.mrf.mxu0
    %v8653 = vadd.f32 %v8445, %v8652
    %v8654 = vpop.f32.mrf.mxu0
    %8655 = vmatprep.mubr.bf16.mxu0 0
    %8656 = vmatmul.mubr.bf16.gmra.mxu0 %v8408
    %v8657 = vpop.f32.mrf.mxu0
    %v8658 = vadd.f32 %v8445, %v8657
    %v8659 = vpop.f32.mrf.mxu0
    %v8660 = vpop.f32.mrf.mxu0
    %v8661 = vadd.f32 %v8445, %v8660
    %v8662 = vpop.f32.mrf.mxu0
    %8663 = vmatprep.mubr.bf16.mxu0 0
    %8664 = vmatmul.mubr.bf16.gmra.mxu0 %v8409
    %v8665 = vpop.f32.mrf.mxu0
    %v8666 = vadd.f32 %v8445, %v8665
    %v8667 = vpop.f32.mrf.mxu0
    %v8668 = vpop.f32.mrf.mxu0
    %v8669 = vadd.f32 %v8445, %v8668
    %v8670 = vpop.f32.mrf.mxu0
    %8671 = vmatprep.mubr.bf16.mxu0 0
    %8672 = vmatmul.mubr.bf16.gmra.mxu0 %v8410
    %v8673 = vpop.f32.mrf.mxu0
    %v8674 = vadd.f32 %v8445, %v8673
    %v8675 = vpop.f32.mrf.mxu0
    %v8676 = vpop.f32.mrf.mxu0
    %v8677 = vadd.f32 %v8445, %v8676
    %v8678 = vpop.f32.mrf.mxu0
    %8679 = vmatprep.mubr.bf16.mxu0 0
    %8680 = vmatmul.mubr.bf16.gmra.mxu0 %v8411
    %v8681 = vpop.f32.mrf.mxu0
    %v8682 = vadd.f32 %v8445, %v8681
    %v8683 = vpop.f32.mrf.mxu0
    %v8684 = vpop.f32.mrf.mxu0
    %v8685 = vadd.f32 %v8445, %v8684
    %v8686 = vpop.f32.mrf.mxu0
    %8687 = vmatprep.mubr.bf16.mxu0 0
    %8688 = vmatmul.mubr.bf16.gmra.mxu0 %v8412
    %v8689 = vpop.f32.mrf.mxu0
    %v8690 = vadd.f32 %v8445, %v8689
    %v8691 = vpop.f32.mrf.mxu0
    %v8692 = vpop.f32.mrf.mxu0
    %v8693 = vadd.f32 %v8445, %v8692
    %v8694 = vpop.f32.mrf.mxu0
    %8695 = vmatprep.mubr.bf16.mxu0 0
    %8696 = vmatmul.mubr.bf16.gmra.mxu0 %v8413
    %v8697 = vpop.f32.mrf.mxu0
    %v8698 = vadd.f32 %v8445, %v8697
    %v8699 = vpop.f32.mrf.mxu0
    %v8700 = vpop.f32.mrf.mxu0
    %v8701 = vadd.f32 %v8445, %v8700
    %v8702 = vpop.f32.mrf.mxu0
    %8703 = vmatprep.mubr.bf16.mxu0 0
    %8704 = vmatmul.mubr.bf16.gmra.mxu0 %v8414
    %v8705 = vpop.f32.mrf.mxu0
    %v8706 = vadd.f32 %v8445, %v8705
    %v8707 = vpop.f32.mrf.mxu0
    %v8708 = vpop.f32.mrf.mxu0
    %v8709 = vadd.f32 %v8445, %v8708
    %v8710 = vpop.f32.mrf.mxu0
    %8711 = vmatprep.mubr.bf16.mxu0 0
    %8712 = vmatmul.mubr.bf16.gmra.mxu0 %v8415
    %v8713 = vpop.f32.mrf.mxu0
    %v8714 = vadd.f32 %v8445, %v8713
    %v8715 = vpop.f32.mrf.mxu0
    %v8716 = vpop.f32.mrf.mxu0
    %v8717 = vadd.f32 %v8445, %v8716
    %v8718 = vpop.f32.mrf.mxu0
    %8719 = vmatprep.mubr.bf16.mxu0 0
    %8720 = vmatmul.mubr.bf16.gmra.mxu0 %v8416
    %v8721 = vpop.f32.mrf.mxu0
    %v8722 = vadd.f32 %v8445, %v8721
    %v8723 = vpop.f32.mrf.mxu0
    %v8724 = vpop.f32.mrf.mxu0
    %v8725 = vadd.f32 %v8445, %v8724
    %v8726 = vpop.f32.mrf.mxu0
    %8727 = vmatprep.mubr.bf16.mxu0 0
    %8728 = vmatmul.mubr.bf16.gmra.mxu0 %v8417
    %v8729 = vpop.f32.mrf.mxu0
    %v8730 = vadd.f32 %v8445, %v8729
    %v8731 = vpop.f32.mrf.mxu0
    %v8732 = vpop.f32.mrf.mxu0
    %v8733 = vadd.f32 %v8445, %v8732
    %v8734 = vpop.f32.mrf.mxu0
    %8735 = vmatprep.mubr.bf16.mxu0 0
    %8736 = vmatmul.mubr.bf16.gmra.mxu0 %v8418
    %v8737 = vpop.f32.mrf.mxu0
    %v8738 = vadd.f32 %v8445, %v8737
    %v8739 = vpop.f32.mrf.mxu0
    %v8740 = vpop.f32.mrf.mxu0
    %v8741 = vadd.f32 %v8445, %v8740
    %v8742 = vpop.f32.mrf.mxu0
    %8743 = vmatprep.mubr.bf16.mxu0 0
    %8744 = vmatmul.mubr.bf16.gmra.mxu0 %v8419
    %v8745 = vpop.f32.mrf.mxu0
    %v8746 = vadd.f32 %v8445, %v8745
    %v8747 = vpop.f32.mrf.mxu0
    %v8748 = vpop.f32.mrf.mxu0
    %v8749 = vadd.f32 %v8445, %v8748
    %v8750 = vpop.f32.mrf.mxu0
    %8751 = vmatprep.mubr.bf16.mxu0 0
    %8752 = vmatmul.mubr.bf16.gmra.mxu0 %v8420
    %v8753 = vpop.f32.mrf.mxu0
    %v8754 = vadd.f32 %v8445, %v8753
    %v8755 = vpop.f32.mrf.mxu0
    %v8756 = vpop.f32.mrf.mxu0
    %v8757 = vadd.f32 %v8445, %v8756
    %v8758 = vpop.f32.mrf.mxu0
    %8759 = vmatprep.mubr.bf16.mxu0 0
    %8760 = vmatmul.mubr.bf16.gmra.mxu0 %v8421
    %v8761 = vpop.f32.mrf.mxu0
    %v8762 = vadd.f32 %v8445, %v8761
    %v8763 = vpop.f32.mrf.mxu0
    %v8764 = vpop.f32.mrf.mxu0
    %v8765 = vadd.f32 %v8445, %v8764
    %v8766 = vpop.f32.mrf.mxu0
    %8767 = vmatprep.mubr.bf16.mxu0 0
    %8768 = vmatmul.mubr.bf16.gmra.mxu0 %v8422
    %v8769 = vpop.f32.mrf.mxu0
    %v8770 = vadd.f32 %v8445, %v8769
    %v8771 = vpop.f32.mrf.mxu0
    %v8772 = vpop.f32.mrf.mxu0
    %v8773 = vadd.f32 %v8445, %v8772
    %v8774 = vpop.f32.mrf.mxu0
    %8775 = vmatprep.mubr.bf16.mxu0 0
    %8776 = vmatmul.mubr.bf16.gmra.mxu0 %v8423
    %v8777 = vpop.f32.mrf.mxu0
    %v8778 = vadd.f32 %v8445, %v8777
    %v8779 = vpop.f32.mrf.mxu0
    %v8780 = vpop.f32.mrf.mxu0
    %v8781 = vadd.f32 %v8445, %v8780
    %v8782 = vpop.f32.mrf.mxu0
    %8783 = vdwg.mxu0
    %v8784 = vmax.f32 %v8530, 0.0
    %v8785 = vmax.f32 %v8533, 0.0
    %v8786 = vmax.f32 %v8538, 0.0
    %v8787 = vmax.f32 %v8541, 0.0
    %v8788 = vmax.f32 %v8546, 0.0
    %v8789 = vmax.f32 %v8549, 0.0
    %v8790 = vmax.f32 %v8554, 0.0
    %v8791 = vmax.f32 %v8557, 0.0
    %v8792 = vmax.f32 %v8562, 0.0
    %v8793 = vmax.f32 %v8565, 0.0
    %v8794 = vmax.f32 %v8570, 0.0
    %v8795 = vmax.f32 %v8573, 0.0
    %v8796 = vmax.f32 %v8578, 0.0
    %v8797 = vmax.f32 %v8581, 0.0
    %v8798 = vmax.f32 %v8586, 0.0
    %v8799 = vmax.f32 %v8589, 0.0
    %v8800 = vmax.f32 %v8594, 0.0
    %v8801 = vmax.f32 %v8597, 0.0
    %v8802 = vmax.f32 %v8602, 0.0
    %v8803 = vmax.f32 %v8605, 0.0
    %v8804 = vmax.f32 %v8610, 0.0
    %v8805 = vmax.f32 %v8613, 0.0
    %v8806 = vmax.f32 %v8618, 0.0
    %v8807 = vmax.f32 %v8621, 0.0
    %v8808 = vmax.f32 %v8626, 0.0
    %v8809 = vmax.f32 %v8629, 0.0
    %v8810 = vmax.f32 %v8634, 0.0
    %v8811 = vmax.f32 %v8637, 0.0
    %v8812 = vmax.f32 %v8642, 0.0
    %v8813 = vmax.f32 %v8645, 0.0
    %v8814 = vmax.f32 %v8650, 0.0
    %v8815 = vmax.f32 %v8653, 0.0
    %v8816 = vmax.f32 %v8658, 0.0
    %v8817 = vmax.f32 %v8661, 0.0
    %v8818 = vmax.f32 %v8666, 0.0
    %v8819 = vmax.f32 %v8669, 0.0
    %v8820 = vmax.f32 %v8674, 0.0
    %v8821 = vmax.f32 %v8677, 0.0
    %v8822 = vmax.f32 %v8682, 0.0
    %v8823 = vmax.f32 %v8685, 0.0
    %v8824 = vmax.f32 %v8690, 0.0
    %v8825 = vmax.f32 %v8693, 0.0
    %v8826 = vmax.f32 %v8698, 0.0
    %v8827 = vmax.f32 %v8701, 0.0
    %v8828 = vmax.f32 %v8706, 0.0
    %v8829 = vmax.f32 %v8709, 0.0
    %v8830 = vmax.f32 %v8714, 0.0
    %v8831 = vmax.f32 %v8717, 0.0
    %v8832 = vmax.f32 %v8722, 0.0
    %v8833 = vmax.f32 %v8725, 0.0
    %v8834 = vmax.f32 %v8730, 0.0
    %v8835 = vmax.f32 %v8733, 0.0
    %v8836 = vmax.f32 %v8738, 0.0
    %v8837 = vmax.f32 %v8741, 0.0
    %v8838 = vmax.f32 %v8746, 0.0
    %v8839 = vmax.f32 %v8749, 0.0
    %v8840 = vmax.f32 %v8754, 0.0
    %v8841 = vmax.f32 %v8757, 0.0
    %v8842 = vmax.f32 %v8762, 0.0
    %v8843 = vmax.f32 %v8765, 0.0
    %v8844 = vmax.f32 %v8770, 0.0
    %v8845 = vmax.f32 %v8773, 0.0
    %v8846 = vmax.f32 %v8778, 0.0
    %v8847 = vmax.f32 %v8781, 0.0
    %v8848 = vpack.c.bf16 %v8785, %v8784
    %v8849 = vpack.c.bf16 %v8787, %v8786
    %v8850 = vpack.c.bf16 %v8789, %v8788
    %v8851 = vpack.c.bf16 %v8791, %v8790
    %v8852 = vpack.c.bf16 %v8793, %v8792
    %v8853 = vpack.c.bf16 %v8795, %v8794
    %v8854 = vpack.c.bf16 %v8797, %v8796
    %v8855 = vpack.c.bf16 %v8799, %v8798
    %v8856 = vpack.c.bf16 %v8801, %v8800
    %v8857 = vpack.c.bf16 %v8803, %v8802
    %v8858 = vpack.c.bf16 %v8805, %v8804
    %v8859 = vpack.c.bf16 %v8807, %v8806
    %v8860 = vpack.c.bf16 %v8809, %v8808
    %v8861 = vpack.c.bf16 %v8811, %v8810
    %v8862 = vpack.c.bf16 %v8813, %v8812
    %v8863 = vpack.c.bf16 %v8815, %v8814
    %v8864 = vpack.c.bf16 %v8817, %v8816
    %v8865 = vpack.c.bf16 %v8819, %v8818
    %v8866 = vpack.c.bf16 %v8821, %v8820
    %v8867 = vpack.c.bf16 %v8823, %v8822
    %v8868 = vpack.c.bf16 %v8825, %v8824
    %v8869 = vpack.c.bf16 %v8827, %v8826
    %v8870 = vpack.c.bf16 %v8829, %v8828
    %v8871 = vpack.c.bf16 %v8831, %v8830
    %v8872 = vpack.c.bf16 %v8833, %v8832
    %v8873 = vpack.c.bf16 %v8835, %v8834
    %v8874 = vpack.c.bf16 %v8837, %v8836
    %v8875 = vpack.c.bf16 %v8839, %v8838
    %v8876 = vpack.c.bf16 %v8841, %v8840
    %v8877 = vpack.c.bf16 %v8843, %v8842
    %v8878 = vpack.c.bf16 %v8845, %v8844
    %v8879 = vpack.c.bf16 %v8847, %v8846
    %v8880 = vld [vmem:[#allocation14] sm:$0xf]
    %v8881 = vld [vmem:[#allocation14 + $0x4] sm:$0xf]
    %v8882 = vld [vmem:[#allocation14 + $0x8] sm:$0xf]
    %v8883 = vld [vmem:[#allocation14 + $0xc] sm:$0xf]
    %v8884 = vld [vmem:[#allocation14 + $0x10] sm:$0xf]
    %v8885 = vld [vmem:[#allocation14 + $0x14] sm:$0xf]
    %v8886 = vld [vmem:[#allocation14 + $0x18] sm:$0xf]
    %v8887 = vld [vmem:[#allocation14 + $0x1c] sm:$0xf]
    %v8888 = vld [vmem:[#allocation14 + $0x20] sm:$0xf]
    %v8889 = vld [vmem:[#allocation14 + $0x24] sm:$0xf]
    %v8890 = vld [vmem:[#allocation14 + $0x28] sm:$0xf]
    %v8891 = vld [vmem:[#allocation14 + $0x2c] sm:$0xf]
    %v8892 = vld [vmem:[#allocation14 + $0x30] sm:$0xf]
    %v8893 = vld [vmem:[#allocation14 + $0x34] sm:$0xf]
    %v8894 = vld [vmem:[#allocation14 + $0x38] sm:$0xf]
    %v8895 = vld [vmem:[#allocation14 + $0x3c] sm:$0xf]
    %v8896 = vld [vmem:[%s12] sm:$0x1]
    %v8898 = vlaneseq
    %v8899 = vshrl.u32 %v8898, 7
    %v8900 = vsub.s32 0, %v8899
    %v8901 = vrot.slane %v8896, %v8900
    %v8919 = vunpack.c.l.b16 %v8880
    %v8920 = vunpack.c.l.b16 %v8881
    %v8921 = vunpack.c.l.b16 %v8882
    %v8922 = vunpack.c.l.b16 %v8883
    %v8923 = vunpack.c.l.b16 %v8884
    %v8924 = vunpack.c.l.b16 %v8885
    %v8925 = vunpack.c.l.b16 %v8886
    %v8926 = vunpack.c.l.b16 %v8887
    %v8927 = vunpack.c.l.b16 %v8888
    %v8928 = vunpack.c.l.b16 %v8889
    %v8929 = vunpack.c.l.b16 %v8890
    %v8930 = vunpack.c.l.b16 %v8891
    %v8931 = vunpack.c.l.b16 %v8892
    %v8932 = vunpack.c.l.b16 %v8893
    %v8933 = vunpack.c.l.b16 %v8894
    %v8934 = vunpack.c.l.b16 %v8895
    %v8935 = vpack.c.b16 %v8920, %v8919
    %v8936 = vpack.c.b16 %v8922, %v8921
    %v8937 = vpack.c.b16 %v8924, %v8923
    %v8938 = vpack.c.b16 %v8926, %v8925
    %v8939 = vpack.c.b16 %v8928, %v8927
    %v8940 = vpack.c.b16 %v8930, %v8929
    %v8941 = vpack.c.b16 %v8932, %v8931
    %v8942 = vpack.c.b16 %v8934, %v8933
    %8951 = vmatprep.subr.bf16.mxu0 0
    %8952 = vmatpush1.bf16.msra.mxu0 %v8942
    %8953 = vmatprep.subr.bf16.mxu0 0
    %8954 = vmatpush1.bf16.msra.mxu0 %v8941
    %8955 = vmatprep.subr.bf16.mxu0 0
    %8956 = vmatpush1.bf16.msra.mxu0 %v8940
    %8957 = vmatprep.subr.bf16.mxu0 0
    %8958 = vmatpush1.bf16.msra.mxu0 %v8939
    %8959 = vmatprep.subr.bf16.mxu0 0
    %8960 = vmatpush1.bf16.msra.mxu0 %v8938
    %8961 = vmatprep.subr.bf16.mxu0 0
    %8962 = vmatpush1.bf16.msra.mxu0 %v8937
    %8963 = vmatprep.subr.bf16.mxu0 0
    %8964 = vmatpush1.bf16.msra.mxu0 %v8936
    %8965 = vmatprep.subr.bf16.mxu0 0
    %8966 = vmatpush1.bf16.msra.mxu0 %v8935
    %8967 = vmatprep.subr.bf16.mxu0 0
    %8968 = vmatpush2.bf16.msra.mxu0 0
    %8969 = vmatprep.subr.bf16.mxu0 0
    %8970 = vmatpush2.bf16.msra.mxu0 0
    %8971 = vmatprep.subr.bf16.mxu0 0
    %8972 = vmatpush2.bf16.msra.mxu0 0
    %8973 = vmatprep.subr.bf16.mxu0 0
    %8974 = vmatpush2.bf16.msra.mxu0 0
    %8975 = vmatprep.subr.bf16.mxu0 0
    %8976 = vmatpush2.bf16.msra.mxu0 0
    %8977 = vmatprep.subr.bf16.mxu0 0
    %8978 = vmatpush2.bf16.msra.mxu0 0
    %8979 = vmatprep.subr.bf16.mxu0 0
    %8980 = vmatpush2.bf16.msra.mxu0 0
    %8981 = vmatprep.subr.bf16.mxu0 0
    %8982 = vmatpush2.bf16.msra.mxu0 0
    %8983 = vmatprep.mubr.bf16.mxu0 0
    %8984 = vmatmul.mubr.bf16.gmra.mxu0 %v8848
    %v8985 = vpop.f32.mrf.mxu0
    %v8986 = vadd.f32 %v8901, %v8985
    %v8987 = vpop.f32.mrf.mxu0
    %v8988 = vpop.f32.mrf.mxu0
    %v8989 = vadd.f32 %v8901, %v8988
    %v8990 = vpop.f32.mrf.mxu0
    %8991 = vmatprep.mubr.bf16.mxu0 0
    %8992 = vmatmul.mubr.bf16.gmra.mxu0 %v8849
    %v8993 = vpop.f32.mrf.mxu0
    %v8994 = vadd.f32 %v8901, %v8993
    %v8995 = vpop.f32.mrf.mxu0
    %v8996 = vpop.f32.mrf.mxu0
    %v8997 = vadd.f32 %v8901, %v8996
    %v8998 = vpop.f32.mrf.mxu0
    %8999 = vmatprep.mubr.bf16.mxu0 0
    %9000 = vmatmul.mubr.bf16.gmra.mxu0 %v8850
    %v9001 = vpop.f32.mrf.mxu0
    %v9002 = vadd.f32 %v8901, %v9001
    %v9003 = vpop.f32.mrf.mxu0
    %v9004 = vpop.f32.mrf.mxu0
    %v9005 = vadd.f32 %v8901, %v9004
    %v9006 = vpop.f32.mrf.mxu0
    %9007 = vmatprep.mubr.bf16.mxu0 0
    %9008 = vmatmul.mubr.bf16.gmra.mxu0 %v8851
    %v9009 = vpop.f32.mrf.mxu0
    %v9010 = vadd.f32 %v8901, %v9009
    %v9011 = vpop.f32.mrf.mxu0
    %v9012 = vpop.f32.mrf.mxu0
    %v9013 = vadd.f32 %v8901, %v9012
    %v9014 = vpop.f32.mrf.mxu0
    %9015 = vmatprep.mubr.bf16.mxu0 0
    %9016 = vmatmul.mubr.bf16.gmra.mxu0 %v8852
    %v9017 = vpop.f32.mrf.mxu0
    %v9018 = vadd.f32 %v8901, %v9017
    %v9019 = vpop.f32.mrf.mxu0
    %v9020 = vpop.f32.mrf.mxu0
    %v9021 = vadd.f32 %v8901, %v9020
    %v9022 = vpop.f32.mrf.mxu0
    %9023 = vmatprep.mubr.bf16.mxu0 0
    %9024 = vmatmul.mubr.bf16.gmra.mxu0 %v8853
    %v9025 = vpop.f32.mrf.mxu0
    %v9026 = vadd.f32 %v8901, %v9025
    %v9027 = vpop.f32.mrf.mxu0
    %v9028 = vpop.f32.mrf.mxu0
    %v9029 = vadd.f32 %v8901, %v9028
    %v9030 = vpop.f32.mrf.mxu0
    %9031 = vmatprep.mubr.bf16.mxu0 0
    %9032 = vmatmul.mubr.bf16.gmra.mxu0 %v8854
    %v9033 = vpop.f32.mrf.mxu0
    %v9034 = vadd.f32 %v8901, %v9033
    %v9035 = vpop.f32.mrf.mxu0
    %v9036 = vpop.f32.mrf.mxu0
    %v9037 = vadd.f32 %v8901, %v9036
    %v9038 = vpop.f32.mrf.mxu0
    %9039 = vmatprep.mubr.bf16.mxu0 0
    %9040 = vmatmul.mubr.bf16.gmra.mxu0 %v8855
    %v9041 = vpop.f32.mrf.mxu0
    %v9042 = vadd.f32 %v8901, %v9041
    %v9043 = vpop.f32.mrf.mxu0
    %v9044 = vpop.f32.mrf.mxu0
    %v9045 = vadd.f32 %v8901, %v9044
    %v9046 = vpop.f32.mrf.mxu0
    %9047 = vmatprep.mubr.bf16.mxu0 0
    %9048 = vmatmul.mubr.bf16.gmra.mxu0 %v8856
    %v9049 = vpop.f32.mrf.mxu0
    %v9050 = vadd.f32 %v8901, %v9049
    %v9051 = vpop.f32.mrf.mxu0
    %v9052 = vpop.f32.mrf.mxu0
    %v9053 = vadd.f32 %v8901, %v9052
    %v9054 = vpop.f32.mrf.mxu0
    %9055 = vmatprep.mubr.bf16.mxu0 0
    %9056 = vmatmul.mubr.bf16.gmra.mxu0 %v8857
    %v9057 = vpop.f32.mrf.mxu0
    %v9058 = vadd.f32 %v8901, %v9057
    %v9059 = vpop.f32.mrf.mxu0
    %v9060 = vpop.f32.mrf.mxu0
    %v9061 = vadd.f32 %v8901, %v9060
    %v9062 = vpop.f32.mrf.mxu0
    %9063 = vmatprep.mubr.bf16.mxu0 0
    %9064 = vmatmul.mubr.bf16.gmra.mxu0 %v8858
    %v9065 = vpop.f32.mrf.mxu0
    %v9066 = vadd.f32 %v8901, %v9065
    %v9067 = vpop.f32.mrf.mxu0
    %v9068 = vpop.f32.mrf.mxu0
    %v9069 = vadd.f32 %v8901, %v9068
    %v9070 = vpop.f32.mrf.mxu0
    %9071 = vmatprep.mubr.bf16.mxu0 0
    %9072 = vmatmul.mubr.bf16.gmra.mxu0 %v8859
    %v9073 = vpop.f32.mrf.mxu0
    %v9074 = vadd.f32 %v8901, %v9073
    %v9075 = vpop.f32.mrf.mxu0
    %v9076 = vpop.f32.mrf.mxu0
    %v9077 = vadd.f32 %v8901, %v9076
    %v9078 = vpop.f32.mrf.mxu0
    %9079 = vmatprep.mubr.bf16.mxu0 0
    %9080 = vmatmul.mubr.bf16.gmra.mxu0 %v8860
    %v9081 = vpop.f32.mrf.mxu0
    %v9082 = vadd.f32 %v8901, %v9081
    %v9083 = vpop.f32.mrf.mxu0
    %v9084 = vpop.f32.mrf.mxu0
    %v9085 = vadd.f32 %v8901, %v9084
    %v9086 = vpop.f32.mrf.mxu0
    %9087 = vmatprep.mubr.bf16.mxu0 0
    %9088 = vmatmul.mubr.bf16.gmra.mxu0 %v8861
    %v9089 = vpop.f32.mrf.mxu0
    %v9090 = vadd.f32 %v8901, %v9089
    %v9091 = vpop.f32.mrf.mxu0
    %v9092 = vpop.f32.mrf.mxu0
    %v9093 = vadd.f32 %v8901, %v9092
    %v9094 = vpop.f32.mrf.mxu0
    %9095 = vmatprep.mubr.bf16.mxu0 0
    %9096 = vmatmul.mubr.bf16.gmra.mxu0 %v8862
    %v9097 = vpop.f32.mrf.mxu0
    %v9098 = vadd.f32 %v8901, %v9097
    %v9099 = vpop.f32.mrf.mxu0
    %v9100 = vpop.f32.mrf.mxu0
    %v9101 = vadd.f32 %v8901, %v9100
    %v9102 = vpop.f32.mrf.mxu0
    %9103 = vmatprep.mubr.bf16.mxu0 0
    %9104 = vmatmul.mubr.bf16.gmra.mxu0 %v8863
    %v9105 = vpop.f32.mrf.mxu0
    %v9106 = vadd.f32 %v8901, %v9105
    %v9107 = vpop.f32.mrf.mxu0
    %v9108 = vpop.f32.mrf.mxu0
    %v9109 = vadd.f32 %v8901, %v9108
    %v9110 = vpop.f32.mrf.mxu0
    %9111 = vmatprep.mubr.bf16.mxu0 0
    %9112 = vmatmul.mubr.bf16.gmra.mxu0 %v8864
    %v9113 = vpop.f32.mrf.mxu0
    %v9114 = vadd.f32 %v8901, %v9113
    %v9115 = vpop.f32.mrf.mxu0
    %v9116 = vpop.f32.mrf.mxu0
    %v9117 = vadd.f32 %v8901, %v9116
    %v9118 = vpop.f32.mrf.mxu0
    %9119 = vmatprep.mubr.bf16.mxu0 0
    %9120 = vmatmul.mubr.bf16.gmra.mxu0 %v8865
    %v9121 = vpop.f32.mrf.mxu0
    %v9122 = vadd.f32 %v8901, %v9121
    %v9123 = vpop.f32.mrf.mxu0
    %v9124 = vpop.f32.mrf.mxu0
    %v9125 = vadd.f32 %v8901, %v9124
    %v9126 = vpop.f32.mrf.mxu0
    %9127 = vmatprep.mubr.bf16.mxu0 0
    %9128 = vmatmul.mubr.bf16.gmra.mxu0 %v8866
    %v9129 = vpop.f32.mrf.mxu0
    %v9130 = vadd.f32 %v8901, %v9129
    %v9131 = vpop.f32.mrf.mxu0
    %v9132 = vpop.f32.mrf.mxu0
    %v9133 = vadd.f32 %v8901, %v9132
    %v9134 = vpop.f32.mrf.mxu0
    %9135 = vmatprep.mubr.bf16.mxu0 0
    %9136 = vmatmul.mubr.bf16.gmra.mxu0 %v8867
    %v9137 = vpop.f32.mrf.mxu0
    %v9138 = vadd.f32 %v8901, %v9137
    %v9139 = vpop.f32.mrf.mxu0
    %v9140 = vpop.f32.mrf.mxu0
    %v9141 = vadd.f32 %v8901, %v9140
    %v9142 = vpop.f32.mrf.mxu0
    %9143 = vmatprep.mubr.bf16.mxu0 0
    %9144 = vmatmul.mubr.bf16.gmra.mxu0 %v8868
    %v9145 = vpop.f32.mrf.mxu0
    %v9146 = vadd.f32 %v8901, %v9145
    %v9147 = vpop.f32.mrf.mxu0
    %v9148 = vpop.f32.mrf.mxu0
    %v9149 = vadd.f32 %v8901, %v9148
    %v9150 = vpop.f32.mrf.mxu0
    %9151 = vmatprep.mubr.bf16.mxu0 0
    %9152 = vmatmul.mubr.bf16.gmra.mxu0 %v8869
    %v9153 = vpop.f32.mrf.mxu0
    %v9154 = vadd.f32 %v8901, %v9153
    %v9155 = vpop.f32.mrf.mxu0
    %v9156 = vpop.f32.mrf.mxu0
    %v9157 = vadd.f32 %v8901, %v9156
    %v9158 = vpop.f32.mrf.mxu0
    %9159 = vmatprep.mubr.bf16.mxu0 0
    %9160 = vmatmul.mubr.bf16.gmra.mxu0 %v8870
    %v9161 = vpop.f32.mrf.mxu0
    %v9162 = vadd.f32 %v8901, %v9161
    %v9163 = vpop.f32.mrf.mxu0
    %v9164 = vpop.f32.mrf.mxu0
    %v9165 = vadd.f32 %v8901, %v9164
    %v9166 = vpop.f32.mrf.mxu0
    %9167 = vmatprep.mubr.bf16.mxu0 0
    %9168 = vmatmul.mubr.bf16.gmra.mxu0 %v8871
    %v9169 = vpop.f32.mrf.mxu0
    %v9170 = vadd.f32 %v8901, %v9169
    %v9171 = vpop.f32.mrf.mxu0
    %v9172 = vpop.f32.mrf.mxu0
    %v9173 = vadd.f32 %v8901, %v9172
    %v9174 = vpop.f32.mrf.mxu0
    %9175 = vmatprep.mubr.bf16.mxu0 0
    %9176 = vmatmul.mubr.bf16.gmra.mxu0 %v8872
    %v9177 = vpop.f32.mrf.mxu0
    %v9178 = vadd.f32 %v8901, %v9177
    %v9179 = vpop.f32.mrf.mxu0
    %v9180 = vpop.f32.mrf.mxu0
    %v9181 = vadd.f32 %v8901, %v9180
    %v9182 = vpop.f32.mrf.mxu0
    %9183 = vmatprep.mubr.bf16.mxu0 0
    %9184 = vmatmul.mubr.bf16.gmra.mxu0 %v8873
    %v9185 = vpop.f32.mrf.mxu0
    %v9186 = vadd.f32 %v8901, %v9185
    %v9187 = vpop.f32.mrf.mxu0
    %v9188 = vpop.f32.mrf.mxu0
    %v9189 = vadd.f32 %v8901, %v9188
    %v9190 = vpop.f32.mrf.mxu0
    %9191 = vmatprep.mubr.bf16.mxu0 0
    %9192 = vmatmul.mubr.bf16.gmra.mxu0 %v8874
    %v9193 = vpop.f32.mrf.mxu0
    %v9194 = vadd.f32 %v8901, %v9193
    %v9195 = vpop.f32.mrf.mxu0
    %v9196 = vpop.f32.mrf.mxu0
    %v9197 = vadd.f32 %v8901, %v9196
    %v9198 = vpop.f32.mrf.mxu0
    %9199 = vmatprep.mubr.bf16.mxu0 0
    %9200 = vmatmul.mubr.bf16.gmra.mxu0 %v8875
    %v9201 = vpop.f32.mrf.mxu0
    %v9202 = vadd.f32 %v8901, %v9201
    %v9203 = vpop.f32.mrf.mxu0
    %v9204 = vpop.f32.mrf.mxu0
    %v9205 = vadd.f32 %v8901, %v9204
    %v9206 = vpop.f32.mrf.mxu0
    %9207 = vmatprep.mubr.bf16.mxu0 0
    %9208 = vmatmul.mubr.bf16.gmra.mxu0 %v8876
    %v9209 = vpop.f32.mrf.mxu0
    %v9210 = vadd.f32 %v8901, %v9209
    %v9211 = vpop.f32.mrf.mxu0
    %v9212 = vpop.f32.mrf.mxu0
    %v9213 = vadd.f32 %v8901, %v9212
    %v9214 = vpop.f32.mrf.mxu0
    %9215 = vmatprep.mubr.bf16.mxu0 0
    %9216 = vmatmul.mubr.bf16.gmra.mxu0 %v8877
    %v9217 = vpop.f32.mrf.mxu0
    %v9218 = vadd.f32 %v8901, %v9217
    %v9219 = vpop.f32.mrf.mxu0
    %v9220 = vpop.f32.mrf.mxu0
    %v9221 = vadd.f32 %v8901, %v9220
    %v9222 = vpop.f32.mrf.mxu0
    %9223 = vmatprep.mubr.bf16.mxu0 0
    %9224 = vmatmul.mubr.bf16.gmra.mxu0 %v8878
    %v9225 = vpop.f32.mrf.mxu0
    %v9226 = vadd.f32 %v8901, %v9225
    %v9227 = vpop.f32.mrf.mxu0
    %v9228 = vpop.f32.mrf.mxu0
    %v9229 = vadd.f32 %v8901, %v9228
    %v9230 = vpop.f32.mrf.mxu0
    %9231 = vmatprep.mubr.bf16.mxu0 0
    %9232 = vmatmul.mubr.bf16.gmra.mxu0 %v8879
    %v9233 = vpop.f32.mrf.mxu0
    %v9234 = vadd.f32 %v8901, %v9233
    %v9235 = vpop.f32.mrf.mxu0
    %v9236 = vpop.f32.mrf.mxu0
    %v9237 = vadd.f32 %v8901, %v9236
    %v9238 = vpop.f32.mrf.mxu0
    %9239 = vdwg.mxu0
    %v9240 = vmax.f32 %v8986, 0.0
    %v9241 = vmax.f32 %v8989, 0.0
    %v9242 = vmax.f32 %v8994, 0.0
    %v9243 = vmax.f32 %v8997, 0.0
    %v9244 = vmax.f32 %v9002, 0.0
    %v9245 = vmax.f32 %v9005, 0.0
    %v9246 = vmax.f32 %v9010, 0.0
    %v9247 = vmax.f32 %v9013, 0.0
    %v9248 = vmax.f32 %v9018, 0.0
    %v9249 = vmax.f32 %v9021, 0.0
    %v9250 = vmax.f32 %v9026, 0.0
    %v9251 = vmax.f32 %v9029, 0.0
    %v9252 = vmax.f32 %v9034, 0.0
    %v9253 = vmax.f32 %v9037, 0.0
    %v9254 = vmax.f32 %v9042, 0.0
    %v9255 = vmax.f32 %v9045, 0.0
    %v9256 = vmax.f32 %v9050, 0.0
    %v9257 = vmax.f32 %v9053, 0.0
    %v9258 = vmax.f32 %v9058, 0.0
    %v9259 = vmax.f32 %v9061, 0.0
    %v9260 = vmax.f32 %v9066, 0.0
    %v9261 = vmax.f32 %v9069, 0.0
    %v9262 = vmax.f32 %v9074, 0.0
    %v9263 = vmax.f32 %v9077, 0.0
    %v9264 = vmax.f32 %v9082, 0.0
    %v9265 = vmax.f32 %v9085, 0.0
    %v9266 = vmax.f32 %v9090, 0.0
    %v9267 = vmax.f32 %v9093, 0.0
    %v9268 = vmax.f32 %v9098, 0.0
    %v9269 = vmax.f32 %v9101, 0.0
    %v9270 = vmax.f32 %v9106, 0.0
    %v9271 = vmax.f32 %v9109, 0.0
    %v9272 = vmax.f32 %v9114, 0.0
    %v9273 = vmax.f32 %v9117, 0.0
    %v9274 = vmax.f32 %v9122, 0.0
    %v9275 = vmax.f32 %v9125, 0.0
    %v9276 = vmax.f32 %v9130, 0.0
    %v9277 = vmax.f32 %v9133, 0.0
    %v9278 = vmax.f32 %v9138, 0.0
    %v9279 = vmax.f32 %v9141, 0.0
    %v9280 = vmax.f32 %v9146, 0.0
    %v9281 = vmax.f32 %v9149, 0.0
    %v9282 = vmax.f32 %v9154, 0.0
    %v9283 = vmax.f32 %v9157, 0.0
    %v9284 = vmax.f32 %v9162, 0.0
    %v9285 = vmax.f32 %v9165, 0.0
    %v9286 = vmax.f32 %v9170, 0.0
    %v9287 = vmax.f32 %v9173, 0.0
    %v9288 = vmax.f32 %v9178, 0.0
    %v9289 = vmax.f32 %v9181, 0.0
    %v9290 = vmax.f32 %v9186, 0.0
    %v9291 = vmax.f32 %v9189, 0.0
    %v9292 = vmax.f32 %v9194, 0.0
    %v9293 = vmax.f32 %v9197, 0.0
    %v9294 = vmax.f32 %v9202, 0.0
    %v9295 = vmax.f32 %v9205, 0.0
    %v9296 = vmax.f32 %v9210, 0.0
    %v9297 = vmax.f32 %v9213, 0.0
    %v9298 = vmax.f32 %v9218, 0.0
    %v9299 = vmax.f32 %v9221, 0.0
    %v9300 = vmax.f32 %v9226, 0.0
    %v9301 = vmax.f32 %v9229, 0.0
    %v9302 = vmax.f32 %v9234, 0.0
    %v9303 = vmax.f32 %v9237, 0.0
    %v9304 = vpack.c.bf16 %v9241, %v9240
    %v9305 = vpack.c.bf16 %v9243, %v9242
    %v9306 = vpack.c.bf16 %v9245, %v9244
    %v9307 = vpack.c.bf16 %v9247, %v9246
    %v9308 = vpack.c.bf16 %v9249, %v9248
    %v9309 = vpack.c.bf16 %v9251, %v9250
    %v9310 = vpack.c.bf16 %v9253, %v9252
    %v9311 = vpack.c.bf16 %v9255, %v9254
    %v9312 = vpack.c.bf16 %v9257, %v9256
    %v9313 = vpack.c.bf16 %v9259, %v9258
    %v9314 = vpack.c.bf16 %v9261, %v9260
    %v9315 = vpack.c.bf16 %v9263, %v9262
    %v9316 = vpack.c.bf16 %v9265, %v9264
    %v9317 = vpack.c.bf16 %v9267, %v9266
    %v9318 = vpack.c.bf16 %v9269, %v9268
    %v9319 = vpack.c.bf16 %v9271, %v9270
    %v9320 = vpack.c.bf16 %v9273, %v9272
    %v9321 = vpack.c.bf16 %v9275, %v9274
    %v9322 = vpack.c.bf16 %v9277, %v9276
    %v9323 = vpack.c.bf16 %v9279, %v9278
    %v9324 = vpack.c.bf16 %v9281, %v9280
    %v9325 = vpack.c.bf16 %v9283, %v9282
    %v9326 = vpack.c.bf16 %v9285, %v9284
    %v9327 = vpack.c.bf16 %v9287, %v9286
    %v9328 = vpack.c.bf16 %v9289, %v9288
    %v9329 = vpack.c.bf16 %v9291, %v9290
    %v9330 = vpack.c.bf16 %v9293, %v9292
    %v9331 = vpack.c.bf16 %v9295, %v9294
    %v9332 = vpack.c.bf16 %v9297, %v9296
    %v9333 = vpack.c.bf16 %v9299, %v9298
    %v9334 = vpack.c.bf16 %v9301, %v9300
    %v9335 = vpack.c.bf16 %v9303, %v9302
    %v9336 = vld [vmem:[#allocation16] sm:$0xf]
    %v9337 = vld [vmem:[#allocation16 + $0x4] sm:$0xf]
    %v9338 = vld [vmem:[#allocation16 + $0x8] sm:$0xf]
    %v9339 = vld [vmem:[#allocation16 + $0xc] sm:$0xf]
    %v9340 = vld [vmem:[#allocation16 + $0x10] sm:$0xf]
    %v9341 = vld [vmem:[#allocation16 + $0x14] sm:$0xf]
    %v9342 = vld [vmem:[#allocation16 + $0x18] sm:$0xf]
    %v9343 = vld [vmem:[#allocation16 + $0x1c] sm:$0xf]
    %v9344 = vld [vmem:[#allocation16 + $0x20] sm:$0xf]
    %v9345 = vld [vmem:[#allocation16 + $0x24] sm:$0xf]
    %v9346 = vld [vmem:[#allocation16 + $0x28] sm:$0xf]
    %v9347 = vld [vmem:[#allocation16 + $0x2c] sm:$0xf]
    %v9348 = vld [vmem:[#allocation16 + $0x30] sm:$0xf]
    %v9349 = vld [vmem:[#allocation16 + $0x34] sm:$0xf]
    %v9350 = vld [vmem:[#allocation16 + $0x38] sm:$0xf]
    %v9351 = vld [vmem:[#allocation16 + $0x3c] sm:$0xf]
    %v9352 = vld [vmem:[%s14] sm:$0x1]
    %v9354 = vlaneseq
    %v9355 = vshrl.u32 %v9354, 7
    %v9356 = vsub.s32 0, %v9355
    %v9357 = vrot.slane %v9352, %v9356
    %v9375 = vunpack.c.l.b16 %v9336
    %v9376 = vunpack.c.l.b16 %v9337
    %v9377 = vunpack.c.l.b16 %v9338
    %v9378 = vunpack.c.l.b16 %v9339
    %v9379 = vunpack.c.l.b16 %v9340
    %v9380 = vunpack.c.l.b16 %v9341
    %v9381 = vunpack.c.l.b16 %v9342
    %v9382 = vunpack.c.l.b16 %v9343
    %v9383 = vunpack.c.l.b16 %v9344
    %v9384 = vunpack.c.l.b16 %v9345
    %v9385 = vunpack.c.l.b16 %v9346
    %v9386 = vunpack.c.l.b16 %v9347
    %v9387 = vunpack.c.l.b16 %v9348
    %v9388 = vunpack.c.l.b16 %v9349
    %v9389 = vunpack.c.l.b16 %v9350
    %v9390 = vunpack.c.l.b16 %v9351
    %v9391 = vpack.c.b16 %v9376, %v9375
    %v9392 = vpack.c.b16 %v9378, %v9377
    %v9393 = vpack.c.b16 %v9380, %v9379
    %v9394 = vpack.c.b16 %v9382, %v9381
    %v9395 = vpack.c.b16 %v9384, %v9383
    %v9396 = vpack.c.b16 %v9386, %v9385
    %v9397 = vpack.c.b16 %v9388, %v9387
    %v9398 = vpack.c.b16 %v9390, %v9389
    %9407 = vmatprep.subr.bf16.mxu0 0
    %9408 = vmatpush1.bf16.msra.mxu0 %v9398
    %9409 = vmatprep.subr.bf16.mxu0 0
    %9410 = vmatpush1.bf16.msra.mxu0 %v9397
    %9411 = vmatprep.subr.bf16.mxu0 0
    %9412 = vmatpush1.bf16.msra.mxu0 %v9396
    %9413 = vmatprep.subr.bf16.mxu0 0
    %9414 = vmatpush1.bf16.msra.mxu0 %v9395
    %9415 = vmatprep.subr.bf16.mxu0 0
    %9416 = vmatpush1.bf16.msra.mxu0 %v9394
    %9417 = vmatprep.subr.bf16.mxu0 0
    %9418 = vmatpush1.bf16.msra.mxu0 %v9393
    %9419 = vmatprep.subr.bf16.mxu0 0
    %9420 = vmatpush1.bf16.msra.mxu0 %v9392
    %9421 = vmatprep.subr.bf16.mxu0 0
    %9422 = vmatpush1.bf16.msra.mxu0 %v9391
    %9423 = vmatprep.subr.bf16.mxu0 0
    %9424 = vmatpush2.bf16.msra.mxu0 0
    %9425 = vmatprep.subr.bf16.mxu0 0
    %9426 = vmatpush2.bf16.msra.mxu0 0
    %9427 = vmatprep.subr.bf16.mxu0 0
    %9428 = vmatpush2.bf16.msra.mxu0 0
    %9429 = vmatprep.subr.bf16.mxu0 0
    %9430 = vmatpush2.bf16.msra.mxu0 0
    %9431 = vmatprep.subr.bf16.mxu0 0
    %9432 = vmatpush2.bf16.msra.mxu0 0
    %9433 = vmatprep.subr.bf16.mxu0 0
    %9434 = vmatpush2.bf16.msra.mxu0 0
    %9435 = vmatprep.subr.bf16.mxu0 0
    %9436 = vmatpush2.bf16.msra.mxu0 0
    %9437 = vmatprep.subr.bf16.mxu0 0
    %9438 = vmatpush2.bf16.msra.mxu0 0
    %9439 = vmatprep.mubr.bf16.mxu0 0
    %9440 = vmatmul.mubr.bf16.gmra.mxu0 %v9304
    %v9441 = vpop.f32.mrf.mxu0
    %v9442 = vadd.f32 %v9357, %v9441
    %v9443 = vpop.f32.mrf.mxu0
    %v9444 = vpop.f32.mrf.mxu0
    %v9445 = vadd.f32 %v9357, %v9444
    %v9446 = vpop.f32.mrf.mxu0
    %9447 = vmatprep.mubr.bf16.mxu0 0
    %9448 = vmatmul.mubr.bf16.gmra.mxu0 %v9305
    %v9449 = vpop.f32.mrf.mxu0
    %v9450 = vadd.f32 %v9357, %v9449
    %v9451 = vpop.f32.mrf.mxu0
    %v9452 = vpop.f32.mrf.mxu0
    %v9453 = vadd.f32 %v9357, %v9452
    %v9454 = vpop.f32.mrf.mxu0
    %9455 = vmatprep.mubr.bf16.mxu0 0
    %9456 = vmatmul.mubr.bf16.gmra.mxu0 %v9306
    %v9457 = vpop.f32.mrf.mxu0
    %v9458 = vadd.f32 %v9357, %v9457
    %v9459 = vpop.f32.mrf.mxu0
    %v9460 = vpop.f32.mrf.mxu0
    %v9461 = vadd.f32 %v9357, %v9460
    %v9462 = vpop.f32.mrf.mxu0
    %9463 = vmatprep.mubr.bf16.mxu0 0
    %9464 = vmatmul.mubr.bf16.gmra.mxu0 %v9307
    %v9465 = vpop.f32.mrf.mxu0
    %v9466 = vadd.f32 %v9357, %v9465
    %v9467 = vpop.f32.mrf.mxu0
    %v9468 = vpop.f32.mrf.mxu0
    %v9469 = vadd.f32 %v9357, %v9468
    %v9470 = vpop.f32.mrf.mxu0
    %9471 = vmatprep.mubr.bf16.mxu0 0
    %9472 = vmatmul.mubr.bf16.gmra.mxu0 %v9308
    %v9473 = vpop.f32.mrf.mxu0
    %v9474 = vadd.f32 %v9357, %v9473
    %v9475 = vpop.f32.mrf.mxu0
    %v9476 = vpop.f32.mrf.mxu0
    %v9477 = vadd.f32 %v9357, %v9476
    %v9478 = vpop.f32.mrf.mxu0
    %9479 = vmatprep.mubr.bf16.mxu0 0
    %9480 = vmatmul.mubr.bf16.gmra.mxu0 %v9309
    %v9481 = vpop.f32.mrf.mxu0
    %v9482 = vadd.f32 %v9357, %v9481
    %v9483 = vpop.f32.mrf.mxu0
    %v9484 = vpop.f32.mrf.mxu0
    %v9485 = vadd.f32 %v9357, %v9484
    %v9486 = vpop.f32.mrf.mxu0
    %9487 = vmatprep.mubr.bf16.mxu0 0
    %9488 = vmatmul.mubr.bf16.gmra.mxu0 %v9310
    %v9489 = vpop.f32.mrf.mxu0
    %v9490 = vadd.f32 %v9357, %v9489
    %v9491 = vpop.f32.mrf.mxu0
    %v9492 = vpop.f32.mrf.mxu0
    %v9493 = vadd.f32 %v9357, %v9492
    %v9494 = vpop.f32.mrf.mxu0
    %9495 = vmatprep.mubr.bf16.mxu0 0
    %9496 = vmatmul.mubr.bf16.gmra.mxu0 %v9311
    %v9497 = vpop.f32.mrf.mxu0
    %v9498 = vadd.f32 %v9357, %v9497
    %v9499 = vpop.f32.mrf.mxu0
    %v9500 = vpop.f32.mrf.mxu0
    %v9501 = vadd.f32 %v9357, %v9500
    %v9502 = vpop.f32.mrf.mxu0
    %9503 = vmatprep.mubr.bf16.mxu0 0
    %9504 = vmatmul.mubr.bf16.gmra.mxu0 %v9312
    %v9505 = vpop.f32.mrf.mxu0
    %v9506 = vadd.f32 %v9357, %v9505
    %v9507 = vpop.f32.mrf.mxu0
    %v9508 = vpop.f32.mrf.mxu0
    %v9509 = vadd.f32 %v9357, %v9508
    %v9510 = vpop.f32.mrf.mxu0
    %9511 = vmatprep.mubr.bf16.mxu0 0
    %9512 = vmatmul.mubr.bf16.gmra.mxu0 %v9313
    %v9513 = vpop.f32.mrf.mxu0
    %v9514 = vadd.f32 %v9357, %v9513
    %v9515 = vpop.f32.mrf.mxu0
    %v9516 = vpop.f32.mrf.mxu0
    %v9517 = vadd.f32 %v9357, %v9516
    %v9518 = vpop.f32.mrf.mxu0
    %9519 = vmatprep.mubr.bf16.mxu0 0
    %9520 = vmatmul.mubr.bf16.gmra.mxu0 %v9314
    %v9521 = vpop.f32.mrf.mxu0
    %v9522 = vadd.f32 %v9357, %v9521
    %v9523 = vpop.f32.mrf.mxu0
    %v9524 = vpop.f32.mrf.mxu0
    %v9525 = vadd.f32 %v9357, %v9524
    %v9526 = vpop.f32.mrf.mxu0
    %9527 = vmatprep.mubr.bf16.mxu0 0
    %9528 = vmatmul.mubr.bf16.gmra.mxu0 %v9315
    %v9529 = vpop.f32.mrf.mxu0
    %v9530 = vadd.f32 %v9357, %v9529
    %v9531 = vpop.f32.mrf.mxu0
    %v9532 = vpop.f32.mrf.mxu0
    %v9533 = vadd.f32 %v9357, %v9532
    %v9534 = vpop.f32.mrf.mxu0
    %9535 = vmatprep.mubr.bf16.mxu0 0
    %9536 = vmatmul.mubr.bf16.gmra.mxu0 %v9316
    %v9537 = vpop.f32.mrf.mxu0
    %v9538 = vadd.f32 %v9357, %v9537
    %v9539 = vpop.f32.mrf.mxu0
    %v9540 = vpop.f32.mrf.mxu0
    %v9541 = vadd.f32 %v9357, %v9540
    %v9542 = vpop.f32.mrf.mxu0
    %9543 = vmatprep.mubr.bf16.mxu0 0
    %9544 = vmatmul.mubr.bf16.gmra.mxu0 %v9317
    %v9545 = vpop.f32.mrf.mxu0
    %v9546 = vadd.f32 %v9357, %v9545
    %v9547 = vpop.f32.mrf.mxu0
    %v9548 = vpop.f32.mrf.mxu0
    %v9549 = vadd.f32 %v9357, %v9548
    %v9550 = vpop.f32.mrf.mxu0
    %9551 = vmatprep.mubr.bf16.mxu0 0
    %9552 = vmatmul.mubr.bf16.gmra.mxu0 %v9318
    %v9553 = vpop.f32.mrf.mxu0
    %v9554 = vadd.f32 %v9357, %v9553
    %v9555 = vpop.f32.mrf.mxu0
    %v9556 = vpop.f32.mrf.mxu0
    %v9557 = vadd.f32 %v9357, %v9556
    %v9558 = vpop.f32.mrf.mxu0
    %9559 = vmatprep.mubr.bf16.mxu0 0
    %9560 = vmatmul.mubr.bf16.gmra.mxu0 %v9319
    %v9561 = vpop.f32.mrf.mxu0
    %v9562 = vadd.f32 %v9357, %v9561
    %v9563 = vpop.f32.mrf.mxu0
    %v9564 = vpop.f32.mrf.mxu0
    %v9565 = vadd.f32 %v9357, %v9564
    %v9566 = vpop.f32.mrf.mxu0
    %9567 = vmatprep.mubr.bf16.mxu0 0
    %9568 = vmatmul.mubr.bf16.gmra.mxu0 %v9320
    %v9569 = vpop.f32.mrf.mxu0
    %v9570 = vadd.f32 %v9357, %v9569
    %v9571 = vpop.f32.mrf.mxu0
    %v9572 = vpop.f32.mrf.mxu0
    %v9573 = vadd.f32 %v9357, %v9572
    %v9574 = vpop.f32.mrf.mxu0
    %9575 = vmatprep.mubr.bf16.mxu0 0
    %9576 = vmatmul.mubr.bf16.gmra.mxu0 %v9321
    %v9577 = vpop.f32.mrf.mxu0
    %v9578 = vadd.f32 %v9357, %v9577
    %v9579 = vpop.f32.mrf.mxu0
    %v9580 = vpop.f32.mrf.mxu0
    %v9581 = vadd.f32 %v9357, %v9580
    %v9582 = vpop.f32.mrf.mxu0
    %9583 = vmatprep.mubr.bf16.mxu0 0
    %9584 = vmatmul.mubr.bf16.gmra.mxu0 %v9322
    %v9585 = vpop.f32.mrf.mxu0
    %v9586 = vadd.f32 %v9357, %v9585
    %v9587 = vpop.f32.mrf.mxu0
    %v9588 = vpop.f32.mrf.mxu0
    %v9589 = vadd.f32 %v9357, %v9588
    %v9590 = vpop.f32.mrf.mxu0
    %9591 = vmatprep.mubr.bf16.mxu0 0
    %9592 = vmatmul.mubr.bf16.gmra.mxu0 %v9323
    %v9593 = vpop.f32.mrf.mxu0
    %v9594 = vadd.f32 %v9357, %v9593
    %v9595 = vpop.f32.mrf.mxu0
    %v9596 = vpop.f32.mrf.mxu0
    %v9597 = vadd.f32 %v9357, %v9596
    %v9598 = vpop.f32.mrf.mxu0
    %9599 = vmatprep.mubr.bf16.mxu0 0
    %9600 = vmatmul.mubr.bf16.gmra.mxu0 %v9324
    %v9601 = vpop.f32.mrf.mxu0
    %v9602 = vadd.f32 %v9357, %v9601
    %v9603 = vpop.f32.mrf.mxu0
    %v9604 = vpop.f32.mrf.mxu0
    %v9605 = vadd.f32 %v9357, %v9604
    %v9606 = vpop.f32.mrf.mxu0
    %9607 = vmatprep.mubr.bf16.mxu0 0
    %9608 = vmatmul.mubr.bf16.gmra.mxu0 %v9325
    %v9609 = vpop.f32.mrf.mxu0
    %v9610 = vadd.f32 %v9357, %v9609
    %v9611 = vpop.f32.mrf.mxu0
    %v9612 = vpop.f32.mrf.mxu0
    %v9613 = vadd.f32 %v9357, %v9612
    %v9614 = vpop.f32.mrf.mxu0
    %9615 = vmatprep.mubr.bf16.mxu0 0
    %9616 = vmatmul.mubr.bf16.gmra.mxu0 %v9326
    %v9617 = vpop.f32.mrf.mxu0
    %v9618 = vadd.f32 %v9357, %v9617
    %v9619 = vpop.f32.mrf.mxu0
    %v9620 = vpop.f32.mrf.mxu0
    %v9621 = vadd.f32 %v9357, %v9620
    %v9622 = vpop.f32.mrf.mxu0
    %9623 = vmatprep.mubr.bf16.mxu0 0
    %9624 = vmatmul.mubr.bf16.gmra.mxu0 %v9327
    %v9625 = vpop.f32.mrf.mxu0
    %v9626 = vadd.f32 %v9357, %v9625
    %v9627 = vpop.f32.mrf.mxu0
    %v9628 = vpop.f32.mrf.mxu0
    %v9629 = vadd.f32 %v9357, %v9628
    %v9630 = vpop.f32.mrf.mxu0
    %9631 = vmatprep.mubr.bf16.mxu0 0
    %9632 = vmatmul.mubr.bf16.gmra.mxu0 %v9328
    %v9633 = vpop.f32.mrf.mxu0
    %v9634 = vadd.f32 %v9357, %v9633
    %v9635 = vpop.f32.mrf.mxu0
    %v9636 = vpop.f32.mrf.mxu0
    %v9637 = vadd.f32 %v9357, %v9636
    %v9638 = vpop.f32.mrf.mxu0
    %9639 = vmatprep.mubr.bf16.mxu0 0
    %9640 = vmatmul.mubr.bf16.gmra.mxu0 %v9329
    %v9641 = vpop.f32.mrf.mxu0
    %v9642 = vadd.f32 %v9357, %v9641
    %v9643 = vpop.f32.mrf.mxu0
    %v9644 = vpop.f32.mrf.mxu0
    %v9645 = vadd.f32 %v9357, %v9644
    %v9646 = vpop.f32.mrf.mxu0
    %9647 = vmatprep.mubr.bf16.mxu0 0
    %9648 = vmatmul.mubr.bf16.gmra.mxu0 %v9330
    %v9649 = vpop.f32.mrf.mxu0
    %v9650 = vadd.f32 %v9357, %v9649
    %v9651 = vpop.f32.mrf.mxu0
    %v9652 = vpop.f32.mrf.mxu0
    %v9653 = vadd.f32 %v9357, %v9652
    %v9654 = vpop.f32.mrf.mxu0
    %9655 = vmatprep.mubr.bf16.mxu0 0
    %9656 = vmatmul.mubr.bf16.gmra.mxu0 %v9331
    %v9657 = vpop.f32.mrf.mxu0
    %v9658 = vadd.f32 %v9357, %v9657
    %v9659 = vpop.f32.mrf.mxu0
    %v9660 = vpop.f32.mrf.mxu0
    %v9661 = vadd.f32 %v9357, %v9660
    %v9662 = vpop.f32.mrf.mxu0
    %9663 = vmatprep.mubr.bf16.mxu0 0
    %9664 = vmatmul.mubr.bf16.gmra.mxu0 %v9332
    %v9665 = vpop.f32.mrf.mxu0
    %v9666 = vadd.f32 %v9357, %v9665
    %v9667 = vpop.f32.mrf.mxu0
    %v9668 = vpop.f32.mrf.mxu0
    %v9669 = vadd.f32 %v9357, %v9668
    %v9670 = vpop.f32.mrf.mxu0
    %9671 = vmatprep.mubr.bf16.mxu0 0
    %9672 = vmatmul.mubr.bf16.gmra.mxu0 %v9333
    %v9673 = vpop.f32.mrf.mxu0
    %v9674 = vadd.f32 %v9357, %v9673
    %v9675 = vpop.f32.mrf.mxu0
    %v9676 = vpop.f32.mrf.mxu0
    %v9677 = vadd.f32 %v9357, %v9676
    %v9678 = vpop.f32.mrf.mxu0
    %9679 = vmatprep.mubr.bf16.mxu0 0
    %9680 = vmatmul.mubr.bf16.gmra.mxu0 %v9334
    %v9681 = vpop.f32.mrf.mxu0
    %v9682 = vadd.f32 %v9357, %v9681
    %v9683 = vpop.f32.mrf.mxu0
    %v9684 = vpop.f32.mrf.mxu0
    %v9685 = vadd.f32 %v9357, %v9684
    %v9686 = vpop.f32.mrf.mxu0
    %9687 = vmatprep.mubr.bf16.mxu0 0
    %9688 = vmatmul.mubr.bf16.gmra.mxu0 %v9335
    %v9689 = vpop.f32.mrf.mxu0
    %v9690 = vadd.f32 %v9357, %v9689
    %v9691 = vpop.f32.mrf.mxu0
    %v9692 = vpop.f32.mrf.mxu0
    %v9693 = vadd.f32 %v9357, %v9692
    %v9694 = vpop.f32.mrf.mxu0
    %9695 = vdwg.mxu0
    %v9696 = vlaneseq
    %v9697 = vand.u32 %v9696, 127
    %vm9698 = vcmp.lt.s32.totalorder %v9697, 10
    %v9699 = vsel %vm9698, %v9442, -1e+30
    %v9700 = vsel %vm9698, %v9445, -1e+30
    %v9701 = vsel %vm9698, %v9450, -1e+30
    %v9702 = vsel %vm9698, %v9453, -1e+30
    %v9703 = vsel %vm9698, %v9458, -1e+30
    %v9704 = vsel %vm9698, %v9461, -1e+30
    %v9705 = vsel %vm9698, %v9466, -1e+30
    %v9706 = vsel %vm9698, %v9469, -1e+30
    %v9707 = vsel %vm9698, %v9474, -1e+30
    %v9708 = vsel %vm9698, %v9477, -1e+30
    %v9709 = vsel %vm9698, %v9482, -1e+30
    %v9710 = vsel %vm9698, %v9485, -1e+30
    %v9711 = vsel %vm9698, %v9490, -1e+30
    %v9712 = vsel %vm9698, %v9493, -1e+30
    %v9713 = vsel %vm9698, %v9498, -1e+30
    %v9714 = vsel %vm9698, %v9501, -1e+30
    %v9715 = vsel %vm9698, %v9506, -1e+30
    %v9716 = vsel %vm9698, %v9509, -1e+30
    %v9717 = vsel %vm9698, %v9514, -1e+30
    %v9718 = vsel %vm9698, %v9517, -1e+30
    %v9719 = vsel %vm9698, %v9522, -1e+30
    %v9720 = vsel %vm9698, %v9525, -1e+30
    %v9721 = vsel %vm9698, %v9530, -1e+30
    %v9722 = vsel %vm9698, %v9533, -1e+30
    %v9723 = vsel %vm9698, %v9538, -1e+30
    %v9724 = vsel %vm9698, %v9541, -1e+30
    %v9725 = vsel %vm9698, %v9546, -1e+30
    %v9726 = vsel %vm9698, %v9549, -1e+30
    %v9727 = vsel %vm9698, %v9554, -1e+30
    %v9728 = vsel %vm9698, %v9557, -1e+30
    %v9729 = vsel %vm9698, %v9562, -1e+30
    %v9730 = vsel %vm9698, %v9565, -1e+30
    %v9731 = vsel %vm9698, %v9570, -1e+30
    %v9732 = vsel %vm9698, %v9573, -1e+30
    %v9733 = vsel %vm9698, %v9578, -1e+30
    %v9734 = vsel %vm9698, %v9581, -1e+30
    %v9735 = vsel %vm9698, %v9586, -1e+30
    %v9736 = vsel %vm9698, %v9589, -1e+30
    %v9737 = vsel %vm9698, %v9594, -1e+30
    %v9738 = vsel %vm9698, %v9597, -1e+30
    %v9739 = vsel %vm9698, %v9602, -1e+30
    %v9740 = vsel %vm9698, %v9605, -1e+30
    %v9741 = vsel %vm9698, %v9610, -1e+30
    %v9742 = vsel %vm9698, %v9613, -1e+30
    %v9743 = vsel %vm9698, %v9618, -1e+30
    %v9744 = vsel %vm9698, %v9621, -1e+30
    %v9745 = vsel %vm9698, %v9626, -1e+30
    %v9746 = vsel %vm9698, %v9629, -1e+30
    %v9747 = vsel %vm9698, %v9634, -1e+30
    %v9748 = vsel %vm9698, %v9637, -1e+30
    %v9749 = vsel %vm9698, %v9642, -1e+30
    %v9750 = vsel %vm9698, %v9645, -1e+30
    %v9751 = vsel %vm9698, %v9650, -1e+30
    %v9752 = vsel %vm9698, %v9653, -1e+30
    %v9753 = vsel %vm9698, %v9658, -1e+30
    %v9754 = vsel %vm9698, %v9661, -1e+30
    %v9755 = vsel %vm9698, %v9666, -1e+30
    %v9756 = vsel %vm9698, %v9669, -1e+30
    %v9757 = vsel %vm9698, %v9674, -1e+30
    %v9758 = vsel %vm9698, %v9677, -1e+30
    %v9759 = vsel %vm9698, %v9682, -1e+30
    %v9760 = vsel %vm9698, %v9685, -1e+30
    %v9761 = vsel %vm9698, %v9690, -1e+30
    %v9762 = vsel %vm9698, %v9693, -1e+30
    %9763 = vmax.xlane.f32.xlu0 %v9699
    %v9764 = vpop.xlane.xlu0 %9763
    %9765 = vmax.xlane.f32.xlu0 %v9700
    %v9766 = vpop.xlane.xlu0 %9765
    %9767 = vmax.xlane.f32.xlu0 %v9701
    %v9768 = vpop.xlane.xlu0 %9767
    %9769 = vmax.xlane.f32.xlu0 %v9702
    %v9770 = vpop.xlane.xlu0 %9769
    %9771 = vmax.xlane.f32.xlu0 %v9703
    %v9772 = vpop.xlane.xlu0 %9771
    %9773 = vmax.xlane.f32.xlu0 %v9704
    %v9774 = vpop.xlane.xlu0 %9773
    %9775 = vmax.xlane.f32.xlu0 %v9705
    %v9776 = vpop.xlane.xlu0 %9775
    %9777 = vmax.xlane.f32.xlu0 %v9706
    %v9778 = vpop.xlane.xlu0 %9777
    %9779 = vmax.xlane.f32.xlu0 %v9707
    %v9780 = vpop.xlane.xlu0 %9779
    %9781 = vmax.xlane.f32.xlu0 %v9708
    %v9782 = vpop.xlane.xlu0 %9781
    %9783 = vmax.xlane.f32.xlu0 %v9709
    %v9784 = vpop.xlane.xlu0 %9783
    %9785 = vmax.xlane.f32.xlu0 %v9710
    %v9786 = vpop.xlane.xlu0 %9785
    %9787 = vmax.xlane.f32.xlu0 %v9711
    %v9788 = vpop.xlane.xlu0 %9787
    %9789 = vmax.xlane.f32.xlu0 %v9712
    %v9790 = vpop.xlane.xlu0 %9789
    %9791 = vmax.xlane.f32.xlu0 %v9713
    %v9792 = vpop.xlane.xlu0 %9791
    %9793 = vmax.xlane.f32.xlu0 %v9714
    %v9794 = vpop.xlane.xlu0 %9793
    %9795 = vmax.xlane.f32.xlu0 %v9715
    %v9796 = vpop.xlane.xlu0 %9795
    %9797 = vmax.xlane.f32.xlu0 %v9716
    %v9798 = vpop.xlane.xlu0 %9797
    %9799 = vmax.xlane.f32.xlu0 %v9717
    %v9800 = vpop.xlane.xlu0 %9799
    %9801 = vmax.xlane.f32.xlu0 %v9718
    %v9802 = vpop.xlane.xlu0 %9801
    %9803 = vmax.xlane.f32.xlu0 %v9719
    %v9804 = vpop.xlane.xlu0 %9803
    %9805 = vmax.xlane.f32.xlu0 %v9720
    %v9806 = vpop.xlane.xlu0 %9805
    %9807 = vmax.xlane.f32.xlu0 %v9721
    %v9808 = vpop.xlane.xlu0 %9807
    %9809 = vmax.xlane.f32.xlu0 %v9722
    %v9810 = vpop.xlane.xlu0 %9809
    %9811 = vmax.xlane.f32.xlu0 %v9723
    %v9812 = vpop.xlane.xlu0 %9811
    %9813 = vmax.xlane.f32.xlu0 %v9724
    %v9814 = vpop.xlane.xlu0 %9813
    %9815 = vmax.xlane.f32.xlu0 %v9725
    %v9816 = vpop.xlane.xlu0 %9815
    %9817 = vmax.xlane.f32.xlu0 %v9726
    %v9818 = vpop.xlane.xlu0 %9817
    %9819 = vmax.xlane.f32.xlu0 %v9727
    %v9820 = vpop.xlane.xlu0 %9819
    %9821 = vmax.xlane.f32.xlu0 %v9728
    %v9822 = vpop.xlane.xlu0 %9821
    %9823 = vmax.xlane.f32.xlu0 %v9729
    %v9824 = vpop.xlane.xlu0 %9823
    %9825 = vmax.xlane.f32.xlu0 %v9730
    %v9826 = vpop.xlane.xlu0 %9825
    %9827 = vmax.xlane.f32.xlu0 %v9731
    %v9828 = vpop.xlane.xlu0 %9827
    %9829 = vmax.xlane.f32.xlu0 %v9732
    %v9830 = vpop.xlane.xlu0 %9829
    %9831 = vmax.xlane.f32.xlu0 %v9733
    %v9832 = vpop.xlane.xlu0 %9831
    %9833 = vmax.xlane.f32.xlu0 %v9734
    %v9834 = vpop.xlane.xlu0 %9833
    %9835 = vmax.xlane.f32.xlu0 %v9735
    %v9836 = vpop.xlane.xlu0 %9835
    %9837 = vmax.xlane.f32.xlu0 %v9736
    %v9838 = vpop.xlane.xlu0 %9837
    %9839 = vmax.xlane.f32.xlu0 %v9737
    %v9840 = vpop.xlane.xlu0 %9839
    %9841 = vmax.xlane.f32.xlu0 %v9738
    %v9842 = vpop.xlane.xlu0 %9841
    %9843 = vmax.xlane.f32.xlu0 %v9739
    %v9844 = vpop.xlane.xlu0 %9843
    %9845 = vmax.xlane.f32.xlu0 %v9740
    %v9846 = vpop.xlane.xlu0 %9845
    %9847 = vmax.xlane.f32.xlu0 %v9741
    %v9848 = vpop.xlane.xlu0 %9847
    %9849 = vmax.xlane.f32.xlu0 %v9742
    %v9850 = vpop.xlane.xlu0 %9849
    %9851 = vmax.xlane.f32.xlu0 %v9743
    %v9852 = vpop.xlane.xlu0 %9851
    %9853 = vmax.xlane.f32.xlu0 %v9744
    %v9854 = vpop.xlane.xlu0 %9853
    %9855 = vmax.xlane.f32.xlu0 %v9745
    %v9856 = vpop.xlane.xlu0 %9855
    %9857 = vmax.xlane.f32.xlu0 %v9746
    %v9858 = vpop.xlane.xlu0 %9857
    %9859 = vmax.xlane.f32.xlu0 %v9747
    %v9860 = vpop.xlane.xlu0 %9859
    %9861 = vmax.xlane.f32.xlu0 %v9748
    %v9862 = vpop.xlane.xlu0 %9861
    %9863 = vmax.xlane.f32.xlu0 %v9749
    %v9864 = vpop.xlane.xlu0 %9863
    %9865 = vmax.xlane.f32.xlu0 %v9750
    %v9866 = vpop.xlane.xlu0 %9865
    %9867 = vmax.xlane.f32.xlu0 %v9751
    %v9868 = vpop.xlane.xlu0 %9867
    %9869 = vmax.xlane.f32.xlu0 %v9752
    %v9870 = vpop.xlane.xlu0 %9869
    %9871 = vmax.xlane.f32.xlu0 %v9753
    %v9872 = vpop.xlane.xlu0 %9871
    %9873 = vmax.xlane.f32.xlu0 %v9754
    %v9874 = vpop.xlane.xlu0 %9873
    %9875 = vmax.xlane.f32.xlu0 %v9755
    %v9876 = vpop.xlane.xlu0 %9875
    %9877 = vmax.xlane.f32.xlu0 %v9756
    %v9878 = vpop.xlane.xlu0 %9877
    %9879 = vmax.xlane.f32.xlu0 %v9757
    %v9880 = vpop.xlane.xlu0 %9879
    %9881 = vmax.xlane.f32.xlu0 %v9758
    %v9882 = vpop.xlane.xlu0 %9881
    %9883 = vmax.xlane.f32.xlu0 %v9759
    %v9884 = vpop.xlane.xlu0 %9883
    %9885 = vmax.xlane.f32.xlu0 %v9760
    %v9886 = vpop.xlane.xlu0 %9885
    %9887 = vmax.xlane.f32.xlu0 %v9761
    %v9888 = vpop.xlane.xlu0 %9887
    %9889 = vmax.xlane.f32.xlu0 %v9762
    %v9890 = vpop.xlane.xlu0 %9889
    %v9891 = vsub.f32 %v9699, %v9764
    %v9892 = vsub.f32 %v9700, %v9766
    %v9893 = vsub.f32 %v9701, %v9768
    %v9894 = vsub.f32 %v9702, %v9770
    %v9895 = vsub.f32 %v9703, %v9772
    %v9896 = vsub.f32 %v9704, %v9774
    %v9897 = vsub.f32 %v9705, %v9776
    %v9898 = vsub.f32 %v9706, %v9778
    %v9899 = vsub.f32 %v9707, %v9780
    %v9900 = vsub.f32 %v9708, %v9782
    %v9901 = vsub.f32 %v9709, %v9784
    %v9902 = vsub.f32 %v9710, %v9786
    %v9903 = vsub.f32 %v9711, %v9788
    %v9904 = vsub.f32 %v9712, %v9790
    %v9905 = vsub.f32 %v9713, %v9792
    %v9906 = vsub.f32 %v9714, %v9794
    %v9907 = vsub.f32 %v9715, %v9796
    %v9908 = vsub.f32 %v9716, %v9798
    %v9909 = vsub.f32 %v9717, %v9800
    %v9910 = vsub.f32 %v9718, %v9802
    %v9911 = vsub.f32 %v9719, %v9804
    %v9912 = vsub.f32 %v9720, %v9806
    %v9913 = vsub.f32 %v9721, %v9808
    %v9914 = vsub.f32 %v9722, %v9810
    %v9915 = vsub.f32 %v9723, %v9812
    %v9916 = vsub.f32 %v9724, %v9814
    %v9917 = vsub.f32 %v9725, %v9816
    %v9918 = vsub.f32 %v9726, %v9818
    %v9919 = vsub.f32 %v9727, %v9820
    %v9920 = vsub.f32 %v9728, %v9822
    %v9921 = vsub.f32 %v9729, %v9824
    %v9922 = vsub.f32 %v9730, %v9826
    %v9923 = vsub.f32 %v9731, %v9828
    %v9924 = vsub.f32 %v9732, %v9830
    %v9925 = vsub.f32 %v9733, %v9832
    %v9926 = vsub.f32 %v9734, %v9834
    %v9927 = vsub.f32 %v9735, %v9836
    %v9928 = vsub.f32 %v9736, %v9838
    %v9929 = vsub.f32 %v9737, %v9840
    %v9930 = vsub.f32 %v9738, %v9842
    %v9931 = vsub.f32 %v9739, %v9844
    %v9932 = vsub.f32 %v9740, %v9846
    %v9933 = vsub.f32 %v9741, %v9848
    %v9934 = vsub.f32 %v9742, %v9850
    %v9935 = vsub.f32 %v9743, %v9852
    %v9936 = vsub.f32 %v9744, %v9854
    %v9937 = vsub.f32 %v9745, %v9856
    %v9938 = vsub.f32 %v9746, %v9858
    %v9939 = vsub.f32 %v9747, %v9860
    %v9940 = vsub.f32 %v9748, %v9862
    %v9941 = vsub.f32 %v9749, %v9864
    %v9942 = vsub.f32 %v9750, %v9866
    %v9943 = vsub.f32 %v9751, %v9868
    %v9944 = vsub.f32 %v9752, %v9870
    %v9945 = vsub.f32 %v9753, %v9872
    %v9946 = vsub.f32 %v9754, %v9874
    %v9947 = vsub.f32 %v9755, %v9876
    %v9948 = vsub.f32 %v9756, %v9878
    %v9949 = vsub.f32 %v9757, %v9880
    %v9950 = vsub.f32 %v9758, %v9882
    %v9951 = vsub.f32 %v9759, %v9884
    %v9952 = vsub.f32 %v9760, %v9886
    %v9953 = vsub.f32 %v9761, %v9888
    %v9954 = vsub.f32 %v9762, %v9890
    %v9955 = vmul.f32 %v9891, 1.442695
    %v9956 = vpow.pop %v9955
    %v9957 = vmul.f32 %v9892, 1.442695
    %v9958 = vpow.pop %v9957
    %v9959 = vmul.f32 %v9893, 1.442695
    %v9960 = vpow.pop %v9959
    %v9961 = vmul.f32 %v9894, 1.442695
    %v9962 = vpow.pop %v9961
    %v9963 = vmul.f32 %v9895, 1.442695
    %v9964 = vpow.pop %v9963
    %v9965 = vmul.f32 %v9896, 1.442695
    %v9966 = vpow.pop %v9965
    %v9967 = vmul.f32 %v9897, 1.442695
    %v9968 = vpow.pop %v9967
    %v9969 = vmul.f32 %v9898, 1.442695
    %v9970 = vpow.pop %v9969
    %v9971 = vmul.f32 %v9899, 1.442695
    %v9972 = vpow.pop %v9971
    %v9973 = vmul.f32 %v9900, 1.442695
    %v9974 = vpow.pop %v9973
    %v9975 = vmul.f32 %v9901, 1.442695
    %v9976 = vpow.pop %v9975
    %v9977 = vmul.f32 %v9902, 1.442695
    %v9978 = vpow.pop %v9977
    %v9979 = vmul.f32 %v9903, 1.442695
    %v9980 = vpow.pop %v9979
    %v9981 = vmul.f32 %v9904, 1.442695
    %v9982 = vpow.pop %v9981
    %v9983 = vmul.f32 %v9905, 1.442695
    %v9984 = vpow.pop %v9983
    %v9985 = vmul.f32 %v9906, 1.442695
    %v9986 = vpow.pop %v9985
    %v9987 = vmul.f32 %v9907, 1.442695
    %v9988 = vpow.pop %v9987
    %v9989 = vmul.f32 %v9908, 1.442695
    %v9990 = vpow.pop %v9989
    %v9991 = vmul.f32 %v9909, 1.442695
    %v9992 = vpow.pop %v9991
    %v9993 = vmul.f32 %v9910, 1.442695
    %v9994 = vpow.pop %v9993
    %v9995 = vmul.f32 %v9911, 1.442695
    %v9996 = vpow.pop %v9995
    %v9997 = vmul.f32 %v9912, 1.442695
    %v9998 = vpow.pop %v9997
    %v9999 = vmul.f32 %v9913, 1.442695
    %v10000 = vpow.pop %v9999
    %v10001 = vmul.f32 %v9914, 1.442695
    %v10002 = vpow.pop %v10001
    %v10003 = vmul.f32 %v9915, 1.442695
    %v10004 = vpow.pop %v10003
    %v10005 = vmul.f32 %v9916, 1.442695
    %v10006 = vpow.pop %v10005
    %v10007 = vmul.f32 %v9917, 1.442695
    %v10008 = vpow.pop %v10007
    %v10009 = vmul.f32 %v9918, 1.442695
    %v10010 = vpow.pop %v10009
    %v10011 = vmul.f32 %v9919, 1.442695
    %v10012 = vpow.pop %v10011
    %v10013 = vmul.f32 %v9920, 1.442695
    %v10014 = vpow.pop %v10013
    %v10015 = vmul.f32 %v9921, 1.442695
    %v10016 = vpow.pop %v10015
    %v10017 = vmul.f32 %v9922, 1.442695
    %v10018 = vpow.pop %v10017
    %v10019 = vmul.f32 %v9923, 1.442695
    %v10020 = vpow.pop %v10019
    %v10021 = vmul.f32 %v9924, 1.442695
    %v10022 = vpow.pop %v10021
    %v10023 = vmul.f32 %v9925, 1.442695
    %v10024 = vpow.pop %v10023
    %v10025 = vmul.f32 %v9926, 1.442695
    %v10026 = vpow.pop %v10025
    %v10027 = vmul.f32 %v9927, 1.442695
    %v10028 = vpow.pop %v10027
    %v10029 = vmul.f32 %v9928, 1.442695
    %v10030 = vpow.pop %v10029
    %v10031 = vmul.f32 %v9929, 1.442695
    %v10032 = vpow.pop %v10031
    %v10033 = vmul.f32 %v9930, 1.442695
    %v10034 = vpow.pop %v10033
    %v10035 = vmul.f32 %v9931, 1.442695
    %v10036 = vpow.pop %v10035
    %v10037 = vmul.f32 %v9932, 1.442695
    %v10038 = vpow.pop %v10037
    %v10039 = vmul.f32 %v9933, 1.442695
    %v10040 = vpow.pop %v10039
    %v10041 = vmul.f32 %v9934, 1.442695
    %v10042 = vpow.pop %v10041
    %v10043 = vmul.f32 %v9935, 1.442695
    %v10044 = vpow.pop %v10043
    %v10045 = vmul.f32 %v9936, 1.442695
    %v10046 = vpow.pop %v10045
    %v10047 = vmul.f32 %v9937, 1.442695
    %v10048 = vpow.pop %v10047
    %v10049 = vmul.f32 %v9938, 1.442695
    %v10050 = vpow.pop %v10049
    %v10051 = vmul.f32 %v9939, 1.442695
    %v10052 = vpow.pop %v10051
    %v10053 = vmul.f32 %v9940, 1.442695
    %v10054 = vpow.pop %v10053
    %v10055 = vmul.f32 %v9941, 1.442695
    %v10056 = vpow.pop %v10055
    %v10057 = vmul.f32 %v9942, 1.442695
    %v10058 = vpow.pop %v10057
    %v10059 = vmul.f32 %v9943, 1.442695
    %v10060 = vpow.pop %v10059
    %v10061 = vmul.f32 %v9944, 1.442695
    %v10062 = vpow.pop %v10061
    %v10063 = vmul.f32 %v9945, 1.442695
    %v10064 = vpow.pop %v10063
    %v10065 = vmul.f32 %v9946, 1.442695
    %v10066 = vpow.pop %v10065
    %v10067 = vmul.f32 %v9947, 1.442695
    %v10068 = vpow.pop %v10067
    %v10069 = vmul.f32 %v9948, 1.442695
    %v10070 = vpow.pop %v10069
    %v10071 = vmul.f32 %v9949, 1.442695
    %v10072 = vpow.pop %v10071
    %v10073 = vmul.f32 %v9950, 1.442695
    %v10074 = vpow.pop %v10073
    %v10075 = vmul.f32 %v9951, 1.442695
    %v10076 = vpow.pop %v10075
    %v10077 = vmul.f32 %v9952, 1.442695
    %v10078 = vpow.pop %v10077
    %v10079 = vmul.f32 %v9953, 1.442695
    %v10080 = vpow.pop %v10079
    %v10081 = vmul.f32 %v9954, 1.442695
    %v10082 = vpow.pop %v10081
    %10083 = vadd.xlane.f32.xlu0 %v9956
    %v10084 = vpop.xlane.xlu0 %10083
    %10085 = vadd.xlane.f32.xlu0 %v9958
    %v10086 = vpop.xlane.xlu0 %10085
    %10087 = vadd.xlane.f32.xlu0 %v9960
    %v10088 = vpop.xlane.xlu0 %10087
    %10089 = vadd.xlane.f32.xlu0 %v9962
    %v10090 = vpop.xlane.xlu0 %10089
    %10091 = vadd.xlane.f32.xlu0 %v9964
    %v10092 = vpop.xlane.xlu0 %10091
    %10093 = vadd.xlane.f32.xlu0 %v9966
    %v10094 = vpop.xlane.xlu0 %10093
    %10095 = vadd.xlane.f32.xlu0 %v9968
    %v10096 = vpop.xlane.xlu0 %10095
    %10097 = vadd.xlane.f32.xlu0 %v9970
    %v10098 = vpop.xlane.xlu0 %10097
    %10099 = vadd.xlane.f32.xlu0 %v9972
    %v10100 = vpop.xlane.xlu0 %10099
    %10101 = vadd.xlane.f32.xlu0 %v9974
    %v10102 = vpop.xlane.xlu0 %10101
    %10103 = vadd.xlane.f32.xlu0 %v9976
    %v10104 = vpop.xlane.xlu0 %10103
    %10105 = vadd.xlane.f32.xlu0 %v9978
    %v10106 = vpop.xlane.xlu0 %10105
    %10107 = vadd.xlane.f32.xlu0 %v9980
    %v10108 = vpop.xlane.xlu0 %10107
    %10109 = vadd.xlane.f32.xlu0 %v9982
    %v10110 = vpop.xlane.xlu0 %10109
    %10111 = vadd.xlane.f32.xlu0 %v9984
    %v10112 = vpop.xlane.xlu0 %10111
    %10113 = vadd.xlane.f32.xlu0 %v9986
    %v10114 = vpop.xlane.xlu0 %10113
    %10115 = vadd.xlane.f32.xlu0 %v9988
    %v10116 = vpop.xlane.xlu0 %10115
    %10117 = vadd.xlane.f32.xlu0 %v9990
    %v10118 = vpop.xlane.xlu0 %10117
    %10119 = vadd.xlane.f32.xlu0 %v9992
    %v10120 = vpop.xlane.xlu0 %10119
    %10121 = vadd.xlane.f32.xlu0 %v9994
    %v10122 = vpop.xlane.xlu0 %10121
    %10123 = vadd.xlane.f32.xlu0 %v9996
    %v10124 = vpop.xlane.xlu0 %10123
    %10125 = vadd.xlane.f32.xlu0 %v9998
    %v10126 = vpop.xlane.xlu0 %10125
    %10127 = vadd.xlane.f32.xlu0 %v10000
    %v10128 = vpop.xlane.xlu0 %10127
    %10129 = vadd.xlane.f32.xlu0 %v10002
    %v10130 = vpop.xlane.xlu0 %10129
    %10131 = vadd.xlane.f32.xlu0 %v10004
    %v10132 = vpop.xlane.xlu0 %10131
    %10133 = vadd.xlane.f32.xlu0 %v10006
    %v10134 = vpop.xlane.xlu0 %10133
    %10135 = vadd.xlane.f32.xlu0 %v10008
    %v10136 = vpop.xlane.xlu0 %10135
    %10137 = vadd.xlane.f32.xlu0 %v10010
    %v10138 = vpop.xlane.xlu0 %10137
    %10139 = vadd.xlane.f32.xlu0 %v10012
    %v10140 = vpop.xlane.xlu0 %10139
    %10141 = vadd.xlane.f32.xlu0 %v10014
    %v10142 = vpop.xlane.xlu0 %10141
    %10143 = vadd.xlane.f32.xlu0 %v10016
    %v10144 = vpop.xlane.xlu0 %10143
    %10145 = vadd.xlane.f32.xlu0 %v10018
    %v10146 = vpop.xlane.xlu0 %10145
    %10147 = vadd.xlane.f32.xlu0 %v10020
    %v10148 = vpop.xlane.xlu0 %10147
    %10149 = vadd.xlane.f32.xlu0 %v10022
    %v10150 = vpop.xlane.xlu0 %10149
    %10151 = vadd.xlane.f32.xlu0 %v10024
    %v10152 = vpop.xlane.xlu0 %10151
    %10153 = vadd.xlane.f32.xlu0 %v10026
    %v10154 = vpop.xlane.xlu0 %10153
    %10155 = vadd.xlane.f32.xlu0 %v10028
    %v10156 = vpop.xlane.xlu0 %10155
    %10157 = vadd.xlane.f32.xlu0 %v10030
    %v10158 = vpop.xlane.xlu0 %10157
    %10159 = vadd.xlane.f32.xlu0 %v10032
    %v10160 = vpop.xlane.xlu0 %10159
    %10161 = vadd.xlane.f32.xlu0 %v10034
    %v10162 = vpop.xlane.xlu0 %10161
    %10163 = vadd.xlane.f32.xlu0 %v10036
    %v10164 = vpop.xlane.xlu0 %10163
    %10165 = vadd.xlane.f32.xlu0 %v10038
    %v10166 = vpop.xlane.xlu0 %10165
    %10167 = vadd.xlane.f32.xlu0 %v10040
    %v10168 = vpop.xlane.xlu0 %10167
    %10169 = vadd.xlane.f32.xlu0 %v10042
    %v10170 = vpop.xlane.xlu0 %10169
    %10171 = vadd.xlane.f32.xlu0 %v10044
    %v10172 = vpop.xlane.xlu0 %10171
    %10173 = vadd.xlane.f32.xlu0 %v10046
    %v10174 = vpop.xlane.xlu0 %10173
    %10175 = vadd.xlane.f32.xlu0 %v10048
    %v10176 = vpop.xlane.xlu0 %10175
    %10177 = vadd.xlane.f32.xlu0 %v10050
    %v10178 = vpop.xlane.xlu0 %10177
    %10179 = vadd.xlane.f32.xlu0 %v10052
    %v10180 = vpop.xlane.xlu0 %10179
    %10181 = vadd.xlane.f32.xlu0 %v10054
    %v10182 = vpop.xlane.xlu0 %10181
    %10183 = vadd.xlane.f32.xlu0 %v10056
    %v10184 = vpop.xlane.xlu0 %10183
    %10185 = vadd.xlane.f32.xlu0 %v10058
    %v10186 = vpop.xlane.xlu0 %10185
    %10187 = vadd.xlane.f32.xlu0 %v10060
    %v10188 = vpop.xlane.xlu0 %10187
    %10189 = vadd.xlane.f32.xlu0 %v10062
    %v10190 = vpop.xlane.xlu0 %10189
    %10191 = vadd.xlane.f32.xlu0 %v10064
    %v10192 = vpop.xlane.xlu0 %10191
    %10193 = vadd.xlane.f32.xlu0 %v10066
    %v10194 = vpop.xlane.xlu0 %10193
    %10195 = vadd.xlane.f32.xlu0 %v10068
    %v10196 = vpop.xlane.xlu0 %10195
    %10197 = vadd.xlane.f32.xlu0 %v10070
    %v10198 = vpop.xlane.xlu0 %10197
    %10199 = vadd.xlane.f32.xlu0 %v10072
    %v10200 = vpop.xlane.xlu0 %10199
    %10201 = vadd.xlane.f32.xlu0 %v10074
    %v10202 = vpop.xlane.xlu0 %10201
    %10203 = vadd.xlane.f32.xlu0 %v10076
    %v10204 = vpop.xlane.xlu0 %10203
    %10205 = vadd.xlane.f32.xlu0 %v10078
    %v10206 = vpop.xlane.xlu0 %10205
    %10207 = vadd.xlane.f32.xlu0 %v10080
    %v10208 = vpop.xlane.xlu0 %10207
    %10209 = vadd.xlane.f32.xlu0 %v10082
    %v10210 = vpop.xlane.xlu0 %10209
    %v10211 = vlog2.pop %v10084
    %v10212 = vmul.f32 %v10211, 0.6931472
    %v10213 = vlog2.pop %v10086
    %v10214 = vmul.f32 %v10213, 0.6931472
    %v10215 = vlog2.pop %v10088
    %v10216 = vmul.f32 %v10215, 0.6931472
    %v10217 = vlog2.pop %v10090
    %v10218 = vmul.f32 %v10217, 0.6931472
    %v10219 = vlog2.pop %v10092
    %v10220 = vmul.f32 %v10219, 0.6931472
    %v10221 = vlog2.pop %v10094
    %v10222 = vmul.f32 %v10221, 0.6931472
    %v10223 = vlog2.pop %v10096
    %v10224 = vmul.f32 %v10223, 0.6931472
    %v10225 = vlog2.pop %v10098
    %v10226 = vmul.f32 %v10225, 0.6931472
    %v10227 = vlog2.pop %v10100
    %v10228 = vmul.f32 %v10227, 0.6931472
    %v10229 = vlog2.pop %v10102
    %v10230 = vmul.f32 %v10229, 0.6931472
    %v10231 = vlog2.pop %v10104
    %v10232 = vmul.f32 %v10231, 0.6931472
    %v10233 = vlog2.pop %v10106
    %v10234 = vmul.f32 %v10233, 0.6931472
    %v10235 = vlog2.pop %v10108
    %v10236 = vmul.f32 %v10235, 0.6931472
    %v10237 = vlog2.pop %v10110
    %v10238 = vmul.f32 %v10237, 0.6931472
    %v10239 = vlog2.pop %v10112
    %v10240 = vmul.f32 %v10239, 0.6931472
    %v10241 = vlog2.pop %v10114
    %v10242 = vmul.f32 %v10241, 0.6931472
    %v10243 = vlog2.pop %v10116
    %v10244 = vmul.f32 %v10243, 0.6931472
    %v10245 = vlog2.pop %v10118
    %v10246 = vmul.f32 %v10245, 0.6931472
    %v10247 = vlog2.pop %v10120
    %v10248 = vmul.f32 %v10247, 0.6931472
    %v10249 = vlog2.pop %v10122
    %v10250 = vmul.f32 %v10249, 0.6931472
    %v10251 = vlog2.pop %v10124
    %v10252 = vmul.f32 %v10251, 0.6931472
    %v10253 = vlog2.pop %v10126
    %v10254 = vmul.f32 %v10253, 0.6931472
    %v10255 = vlog2.pop %v10128
    %v10256 = vmul.f32 %v10255, 0.6931472
    %v10257 = vlog2.pop %v10130
    %v10258 = vmul.f32 %v10257, 0.6931472
    %v10259 = vlog2.pop %v10132
    %v10260 = vmul.f32 %v10259, 0.6931472
    %v10261 = vlog2.pop %v10134
    %v10262 = vmul.f32 %v10261, 0.6931472
    %v10263 = vlog2.pop %v10136
    %v10264 = vmul.f32 %v10263, 0.6931472
    %v10265 = vlog2.pop %v10138
    %v10266 = vmul.f32 %v10265, 0.6931472
    %v10267 = vlog2.pop %v10140
    %v10268 = vmul.f32 %v10267, 0.6931472
    %v10269 = vlog2.pop %v10142
    %v10270 = vmul.f32 %v10269, 0.6931472
    %v10271 = vlog2.pop %v10144
    %v10272 = vmul.f32 %v10271, 0.6931472
    %v10273 = vlog2.pop %v10146
    %v10274 = vmul.f32 %v10273, 0.6931472
    %v10275 = vlog2.pop %v10148
    %v10276 = vmul.f32 %v10275, 0.6931472
    %v10277 = vlog2.pop %v10150
    %v10278 = vmul.f32 %v10277, 0.6931472
    %v10279 = vlog2.pop %v10152
    %v10280 = vmul.f32 %v10279, 0.6931472
    %v10281 = vlog2.pop %v10154
    %v10282 = vmul.f32 %v10281, 0.6931472
    %v10283 = vlog2.pop %v10156
    %v10284 = vmul.f32 %v10283, 0.6931472
    %v10285 = vlog2.pop %v10158
    %v10286 = vmul.f32 %v10285, 0.6931472
    %v10287 = vlog2.pop %v10160
    %v10288 = vmul.f32 %v10287, 0.6931472
    %v10289 = vlog2.pop %v10162
    %v10290 = vmul.f32 %v10289, 0.6931472
    %v10291 = vlog2.pop %v10164
    %v10292 = vmul.f32 %v10291, 0.6931472
    %v10293 = vlog2.pop %v10166
    %v10294 = vmul.f32 %v10293, 0.6931472
    %v10295 = vlog2.pop %v10168
    %v10296 = vmul.f32 %v10295, 0.6931472
    %v10297 = vlog2.pop %v10170
    %v10298 = vmul.f32 %v10297, 0.6931472
    %v10299 = vlog2.pop %v10172
    %v10300 = vmul.f32 %v10299, 0.6931472
    %v10301 = vlog2.pop %v10174
    %v10302 = vmul.f32 %v10301, 0.6931472
    %v10303 = vlog2.pop %v10176
    %v10304 = vmul.f32 %v10303, 0.6931472
    %v10305 = vlog2.pop %v10178
    %v10306 = vmul.f32 %v10305, 0.6931472
    %v10307 = vlog2.pop %v10180
    %v10308 = vmul.f32 %v10307, 0.6931472
    %v10309 = vlog2.pop %v10182
    %v10310 = vmul.f32 %v10309, 0.6931472
    %v10311 = vlog2.pop %v10184
    %v10312 = vmul.f32 %v10311, 0.6931472
    %v10313 = vlog2.pop %v10186
    %v10314 = vmul.f32 %v10313, 0.6931472
    %v10315 = vlog2.pop %v10188
    %v10316 = vmul.f32 %v10315, 0.6931472
    %v10317 = vlog2.pop %v10190
    %v10318 = vmul.f32 %v10317, 0.6931472
    %v10319 = vlog2.pop %v10192
    %v10320 = vmul.f32 %v10319, 0.6931472
    %v10321 = vlog2.pop %v10194
    %v10322 = vmul.f32 %v10321, 0.6931472
    %v10323 = vlog2.pop %v10196
    %v10324 = vmul.f32 %v10323, 0.6931472
    %v10325 = vlog2.pop %v10198
    %v10326 = vmul.f32 %v10325, 0.6931472
    %v10327 = vlog2.pop %v10200
    %v10328 = vmul.f32 %v10327, 0.6931472
    %v10329 = vlog2.pop %v10202
    %v10330 = vmul.f32 %v10329, 0.6931472
    %v10331 = vlog2.pop %v10204
    %v10332 = vmul.f32 %v10331, 0.6931472
    %v10333 = vlog2.pop %v10206
    %v10334 = vmul.f32 %v10333, 0.6931472
    %v10335 = vlog2.pop %v10208
    %v10336 = vmul.f32 %v10335, 0.6931472
    %v10337 = vlog2.pop %v10210
    %v10338 = vmul.f32 %v10337, 0.6931472
    %v10339 = vsub.f32 %v9891, %v10212
    %v10340 = vsub.f32 %v9892, %v10214
    %v10341 = vsub.f32 %v9893, %v10216
    %v10342 = vsub.f32 %v9894, %v10218
    %v10343 = vsub.f32 %v9895, %v10220
    %v10344 = vsub.f32 %v9896, %v10222
    %v10345 = vsub.f32 %v9897, %v10224
    %v10346 = vsub.f32 %v9898, %v10226
    %v10347 = vsub.f32 %v9899, %v10228
    %v10348 = vsub.f32 %v9900, %v10230
    %v10349 = vsub.f32 %v9901, %v10232
    %v10350 = vsub.f32 %v9902, %v10234
    %v10351 = vsub.f32 %v9903, %v10236
    %v10352 = vsub.f32 %v9904, %v10238
    %v10353 = vsub.f32 %v9905, %v10240
    %v10354 = vsub.f32 %v9906, %v10242
    %v10355 = vsub.f32 %v9907, %v10244
    %v10356 = vsub.f32 %v9908, %v10246
    %v10357 = vsub.f32 %v9909, %v10248
    %v10358 = vsub.f32 %v9910, %v10250
    %v10359 = vsub.f32 %v9911, %v10252
    %v10360 = vsub.f32 %v9912, %v10254
    %v10361 = vsub.f32 %v9913, %v10256
    %v10362 = vsub.f32 %v9914, %v10258
    %v10363 = vsub.f32 %v9915, %v10260
    %v10364 = vsub.f32 %v9916, %v10262
    %v10365 = vsub.f32 %v9917, %v10264
    %v10366 = vsub.f32 %v9918, %v10266
    %v10367 = vsub.f32 %v9919, %v10268
    %v10368 = vsub.f32 %v9920, %v10270
    %v10369 = vsub.f32 %v9921, %v10272
    %v10370 = vsub.f32 %v9922, %v10274
    %v10371 = vsub.f32 %v9923, %v10276
    %v10372 = vsub.f32 %v9924, %v10278
    %v10373 = vsub.f32 %v9925, %v10280
    %v10374 = vsub.f32 %v9926, %v10282
    %v10375 = vsub.f32 %v9927, %v10284
    %v10376 = vsub.f32 %v9928, %v10286
    %v10377 = vsub.f32 %v9929, %v10288
    %v10378 = vsub.f32 %v9930, %v10290
    %v10379 = vsub.f32 %v9931, %v10292
    %v10380 = vsub.f32 %v9932, %v10294
    %v10381 = vsub.f32 %v9933, %v10296
    %v10382 = vsub.f32 %v9934, %v10298
    %v10383 = vsub.f32 %v9935, %v10300
    %v10384 = vsub.f32 %v9936, %v10302
    %v10385 = vsub.f32 %v9937, %v10304
    %v10386 = vsub.f32 %v9938, %v10306
    %v10387 = vsub.f32 %v9939, %v10308
    %v10388 = vsub.f32 %v9940, %v10310
    %v10389 = vsub.f32 %v9941, %v10312
    %v10390 = vsub.f32 %v9942, %v10314
    %v10391 = vsub.f32 %v9943, %v10316
    %v10392 = vsub.f32 %v9944, %v10318
    %v10393 = vsub.f32 %v9945, %v10320
    %v10394 = vsub.f32 %v9946, %v10322
    %v10395 = vsub.f32 %v9947, %v10324
    %v10396 = vsub.f32 %v9948, %v10326
    %v10397 = vsub.f32 %v9949, %v10328
    %v10398 = vsub.f32 %v9950, %v10330
    %v10399 = vsub.f32 %v9951, %v10332
    %v10400 = vsub.f32 %v9952, %v10334
    %v10401 = vsub.f32 %v9953, %v10336
    %v10402 = vsub.f32 %v9954, %v10338
    %10403 = vst [vmem:[#allocation17] sm:$0xff] %v10339
    %10404 = vst [vmem:[#allocation17 + $0x8] sm:$0xff] %v10340
    %10405 = vst [vmem:[#allocation17 + $0x10] sm:$0xff] %v10341
    %10406 = vst [vmem:[#allocation17 + $0x18] sm:$0xff] %v10342
    %10407 = vst [vmem:[#allocation17 + $0x20] sm:$0xff] %v10343
    %10408 = vst [vmem:[#allocation17 + $0x28] sm:$0xff] %v10344
    %10409 = vst [vmem:[#allocation17 + $0x30] sm:$0xff] %v10345
    %10410 = vst [vmem:[#allocation17 + $0x38] sm:$0xff] %v10346
    %10411 = vst [vmem:[#allocation17 + $0x40] sm:$0xff] %v10347
    %10412 = vst [vmem:[#allocation17 + $0x48] sm:$0xff] %v10348
    %10413 = vst [vmem:[#allocation17 + $0x50] sm:$0xff] %v10349
    %10414 = vst [vmem:[#allocation17 + $0x58] sm:$0xff] %v10350
    %10415 = vst [vmem:[#allocation17 + $0x60] sm:$0xff] %v10351
    %10416 = vst [vmem:[#allocation17 + $0x68] sm:$0xff] %v10352
    %10417 = vst [vmem:[#allocation17 + $0x70] sm:$0xff] %v10353
    %10418 = vst [vmem:[#allocation17 + $0x78] sm:$0xff] %v10354
    %10419 = vst [vmem:[#allocation17 + $0x80] sm:$0xff] %v10355
    %10420 = vst [vmem:[#allocation17 + $0x88] sm:$0xff] %v10356
    %10421 = vst [vmem:[#allocation17 + $0x90] sm:$0xff] %v10357
    %10422 = vst [vmem:[#allocation17 + $0x98] sm:$0xff] %v10358
    %10423 = vst [vmem:[#allocation17 + $0xa0] sm:$0xff] %v10359
    %10424 = vst [vmem:[#allocation17 + $0xa8] sm:$0xff] %v10360
    %10425 = vst [vmem:[#allocation17 + $0xb0] sm:$0xff] %v10361
    %10426 = vst [vmem:[#allocation17 + $0xb8] sm:$0xff] %v10362
    %10427 = vst [vmem:[#allocation17 + $0xc0] sm:$0xff] %v10363
    %10428 = vst [vmem:[#allocation17 + $0xc8] sm:$0xff] %v10364
    %10429 = vst [vmem:[#allocation17 + $0xd0] sm:$0xff] %v10365
    %10430 = vst [vmem:[#allocation17 + $0xd8] sm:$0xff] %v10366
    %10431 = vst [vmem:[#allocation17 + $0xe0] sm:$0xff] %v10367
    %10432 = vst [vmem:[#allocation17 + $0xe8] sm:$0xff] %v10368
    %10433 = vst [vmem:[#allocation17 + $0xf0] sm:$0xff] %v10369
    %10434 = vst [vmem:[#allocation17 + $0xf8] sm:$0xff] %v10370
    %10435 = vst [vmem:[#allocation17 + $0x100] sm:$0xff] %v10371
    %10436 = vst [vmem:[#allocation17 + $0x108] sm:$0xff] %v10372
    %10437 = vst [vmem:[#allocation17 + $0x110] sm:$0xff] %v10373
    %10438 = vst [vmem:[#allocation17 + $0x118] sm:$0xff] %v10374
    %10439 = vst [vmem:[#allocation17 + $0x120] sm:$0xff] %v10375
    %10440 = vst [vmem:[#allocation17 + $0x128] sm:$0xff] %v10376
    %10441 = vst [vmem:[#allocation17 + $0x130] sm:$0xff] %v10377
    %10442 = vst [vmem:[#allocation17 + $0x138] sm:$0xff] %v10378
    %10443 = vst [vmem:[#allocation17 + $0x140] sm:$0xff] %v10379
    %10444 = vst [vmem:[#allocation17 + $0x148] sm:$0xff] %v10380
    %10445 = vst [vmem:[#allocation17 + $0x150] sm:$0xff] %v10381
    %10446 = vst [vmem:[#allocation17 + $0x158] sm:$0xff] %v10382
    %10447 = vst [vmem:[#allocation17 + $0x160] sm:$0xff] %v10383
    %10448 = vst [vmem:[#allocation17 + $0x168] sm:$0xff] %v10384
    %10449 = vst [vmem:[#allocation17 + $0x170] sm:$0xff] %v10385
    %10450 = vst [vmem:[#allocation17 + $0x178] sm:$0xff] %v10386
    %10451 = vst [vmem:[#allocation17 + $0x180] sm:$0xff] %v10387
    %10452 = vst [vmem:[#allocation17 + $0x188] sm:$0xff] %v10388
    %10453 = vst [vmem:[#allocation17 + $0x190] sm:$0xff] %v10389
    %10454 = vst [vmem:[#allocation17 + $0x198] sm:$0xff] %v10390
    %10455 = vst [vmem:[#allocation17 + $0x1a0] sm:$0xff] %v10391
    %10456 = vst [vmem:[#allocation17 + $0x1a8] sm:$0xff] %v10392
    %10457 = vst [vmem:[#allocation17 + $0x1b0] sm:$0xff] %v10393
    %10458 = vst [vmem:[#allocation17 + $0x1b8] sm:$0xff] %v10394
    %10459 = vst [vmem:[#allocation17 + $0x1c0] sm:$0xff] %v10395
    %10460 = vst [vmem:[#allocation17 + $0x1c8] sm:$0xff] %v10396
    %10461 = vst [vmem:[#allocation17 + $0x1d0] sm:$0xff] %v10397
    %10462 = vst [vmem:[#allocation17 + $0x1d8] sm:$0xff] %v10398
    %10463 = vst [vmem:[#allocation17 + $0x1e0] sm:$0xff] %v10399
    %10464 = vst [vmem:[#allocation17 + $0x1e8] sm:$0xff] %v10400
    %10465 = vst [vmem:[#allocation17 + $0x1f0] sm:$0xff] %v10401
    %10466 = vst [vmem:[#allocation17 + $0x1f8] sm:$0xff] %v10402
    // Predicated region
    $region98: #{tpu_custom_call.1} parent=1 // pred_check
      _
    $region99: #{tpu_custom_call.1} parent=1 // pred_check_branch
      %10468 = sbr.rel (0) target = $region101
    $region100: #{tpu_custom_call.1} parent=1 // pred_region
      %s10470 = ssub.s32 8192, 8192
      %10471 = vsyncadd [#allocation4], %s10470
      %s10472 = sshll.u32 [#allocation17], 4
      %s10473 = int_to_ptr.vmem [resolvable:$true] %s10472
      %10478 = dma.vmem_to_hbm [thread:$0]  %s10473, 8192, %s15, [#allocation4], 128, 128, 8
    $region101: #{tpu_custom_call.1} parent=1 // pred_fallthru
      _
    // Predicated region
    $region102: #{tpu_custom_call.1} parent=1 // pred_check
      _
    $region103: #{tpu_custom_call.1} parent=1 // pred_check_branch
      %10480 = sbr.rel (0) target = $region105
    $region104: #{tpu_custom_call.1} parent=1 // pred_region
      %10481 = dma.done [#allocation4], 8192
    $region105: #{tpu_custom_call.1} parent=1 // pred_fallthru
      _
    %10482 = vsyncpa [#allocation3], 1
    %10483 = vsyncpa [#allocation6], 1
    %10484 = vsyncpa [#allocation9], 1
    %10485 = vsyncpa [#allocation12], 1
    %10486 = vsyncpa [#allocation15], 1
    %10487 = vsyncpa [#allocation4], 1

</llo_original>
